<compile_context>
chip_gen: v7x
topology: tpu7x:2x2x1
jax: 0.10.0
libtpu: 0.0.40
codegen_flags: <defaults>
</compile_context>

<pallas_src>
import numpy as np
import jax
import jax.numpy as jnp
from jax import lax
from jax.experimental import pallas as pl
from jax.experimental.pallas import tpu as pltpu


def _roundup(v, m):
    return (v + m - 1) // m * m


# ----------------------------------------------------------------------------
# Trace-time constants
# ----------------------------------------------------------------------------
def _pool_matrix(H, W):
    """0/1 selection matrix P (4*Ho*Wo, H*W): the 4 row-blocks of P @ y hold
    the four 2x2-window members of every pooled position; a max over the
    blocks reproduces MaxPool2d(2, 2).  Pooling acts per-lane, so one matrix
    serves all images/channels packed along lanes."""
    Ho, Wo = H // 2, W // 2
    P = np.zeros((4 * Ho * Wo, H * W), np.float32)
    blk = 0
    for jy in range(2):
        for jx in range(2):
            for ho in range(Ho):
                for wo in range(Wo):
                    P[blk * Ho * Wo + ho * Wo + wo,
                      (2 * ho + jy) * W + 2 * wo + jx] = 1.0
            blk += 1
    return jnp.asarray(P)


# ----------------------------------------------------------------------------
# In-kernel helpers
# ----------------------------------------------------------------------------
def _conv3x3_taps(halo_ref, x, W):
    """Return the 9 shifted/masked (HW, C) windows of x for a 3x3 'same' conv
    (tap k = dy*3 + dx reads x[h+dy-1, w+dx-1], zero outside the image).
    halo_ref is a VMEM scratch with zero rows above/below the interior."""
    HW, C = x.shape
    off = _roundup(W + 1, 8)                 # aligned interior store
    rows = halo_ref.shape[0]
    # Refresh only the halo strips each step (cheap, aligned, and safe when
    # the grid is sharded across TensorCores); interior is rewritten below.
    halo_ref[0:off, :] = jnp.zeros((off, C), jnp.float32)
    halo_ref[off + HW:rows, :] = jnp.zeros((rows - off - HW, C), jnp.float32)
    halo_ref[off:off + HW, :] = x
    # dx = +-1 column-wrap masks from an iota (W is a power of two here).
    col = jnp.bitwise_and(lax.broadcasted_iota(jnp.int32, (HW, 1), 0), W - 1)
    ml = (col > 0).astype(jnp.float32)       # dx-1 = -1 valid
    mr = (col < W - 1).astype(jnp.float32)   # dx-1 = +1 valid
    taps = []
    for dy in range(3):
        for dx in range(3):
            s = (dy - 1) * W + (dx - 1)
            win = halo_ref[off + s:off + s + HW, :]
            if dx == 0:
                win = win * ml
            elif dx == 2:
                win = win * mr
            taps.append(win)
    return taps


def _maxpool2x2(pm_ref, y, n_out):
    """MaxPool2d(2,2) on a flat (H*W, C) activation: one 0/1 selection matmul
    (default MXU precision) gathers the four window members into 4 row
    blocks, then a max over the blocks."""
    z = jnp.dot(pm_ref[...], y, preferred_element_type=jnp.float32)
    return jnp.maximum(jnp.maximum(z[0:n_out], z[n_out:2 * n_out]),
                       jnp.maximum(z[2 * n_out:3 * n_out], z[3 * n_out:4 * n_out]))


def _bias_relu_bn(y, bst_ref):
    b = bst_ref[0:1, :]
    s = bst_ref[1:2, :]
    t = bst_ref[2:3, :]
    return jnp.maximum(y + b, 0.0) * s + t


# ----------------------------------------------------------------------------
# Fused forward kernel (one grid step = B lane-packed images)
# ----------------------------------------------------------------------------
def net_fwd_kernel(x_ref,
                   w1_ref, bst1_ref, pm1_ref,
                   w2_ref, bst2_ref, pm2_ref, wp2_ref, bp2_ref,
                   w3_ref, bst3_ref, pm3_ref, wp3_ref, bp3_ref,
                   wl_ref, bl_ref,
                   o_ref,
                   h1_ref, h2_ref, h3_ref):
    xf = x_ref[0]                                                 # (256, B)

    # conv1 block: 3x3 (1->8) + bias + ReLU + BN + maxpool       -> (64, 8B)
    taps = _conv3x3_taps(h1_ref, xf, 16)
    y = jnp.dot(taps[0], w1_ref[0], preferred_element_type=jnp.float32)
    for k in range(1, 9):
        y = y + jnp.dot(taps[k], w1_ref[k], preferred_element_type=jnp.float32)
    y = _bias_relu_bn(y, bst1_ref)                                # (256, 8B)
    a = _maxpool2x2(pm1_ref, y, 64)                               # (64, 8B)

    # conv2 block: 3x3 (8->16), one im2col matmul, + maxpool     -> (16, 16B)
    taps = _conv3x3_taps(h2_ref, a, 8)
    x9 = jnp.concatenate(taps, axis=1)                            # (64, 9*8B)
    y = jnp.dot(x9, w2_ref[...], preferred_element_type=jnp.float32)
    y = _bias_relu_bn(y, bst2_ref)                                # (64, 16B)
    a = _maxpool2x2(pm2_ref, y, 16)                               # (16, 16B)
    # conv2_pointwise: 1x1 (16->8) + ReLU                         -> (16, 8B)
    a = jnp.maximum(jnp.dot(a, wp2_ref[...],
                            preferred_element_type=jnp.float32) + bp2_ref[...], 0.0)

    # conv3 block: 3x3 (8->16), one im2col matmul, + maxpool     -> (4, 16B)
    taps = _conv3x3_taps(h3_ref, a, 4)
    x9 = jnp.concatenate(taps, axis=1)                            # (16, 9*8B)
    y = jnp.dot(x9, w3_ref[...], preferred_element_type=jnp.float32)
    y = _bias_relu_bn(y, bst3_ref)                                # (16, 16B)
    a = _maxpool2x2(pm3_ref, y, 4)                                # (4, 16B)
    # conv3_pointwise: 1x1 (16->8) + ReLU                         -> (4, 8B)
    a = jnp.maximum(jnp.dot(a, wp3_ref[...],
                            preferred_element_type=jnp.float32) + bp3_ref[...], 0.0)

    # Head: GAP over 2x2 (1/4 folded into wl) + Linear.  Lane-dense store;
    # log_softmax runs in the XLA wrapper.
    g = a[0:1] + a[1:2] + a[2:3] + a[3:4]                         # (1, 8B)
    z = jnp.dot(g, wl_ref[...], preferred_element_type=jnp.float32) + bl_ref[...]
    o_ref[0] = z.astype(o_ref.dtype)                              # (1, 10B)


# ----------------------------------------------------------------------------
# Wrapper: pack B images along lanes, build block-diagonal weights, one call
# ----------------------------------------------------------------------------
def forward(x_nchw, p, block=16):
    """x_nchw: (N, 1, 16, 16) float32.  Returns (N, 10) log-probs."""
    N = x_nchw.shape[0]
    B = block
    G = -(-N // B)
    Np = G * B

    # Flatten spatial (row-major p = h*16 + w), pad batch to a multiple of B,
    # and pack B images along the lane axis: (G, H*W, B).
    xf = x_nchw.reshape(N, 16 * 16)
    if Np != N:
        xf = jnp.concatenate([xf, jnp.zeros((Np - N, 16 * 16), xf.dtype)], axis=0)
    xp = jnp.transpose(xf.reshape(G, B, 16 * 16), (0, 2, 1))

    eyeB = jnp.eye(B, dtype=jnp.float32)
    bd = lambda w: jnp.kron(eyeB, w)              # per-image block-diagonal
    tile = lambda v: jnp.tile(v, B)               # per-image lane tiling

    w1_9 = p["w1"].reshape(9, 1, 8)
    w2_9 = p["w2"].reshape(9, 8, 16)
    w3_9 = p["w3"].reshape(9, 8, 16)
    consts = (
        jnp.stack([bd(w1_9[k]) for k in range(9)]),                 # (9, B, 8B)
        jnp.stack([tile(p["b1"]), tile(p["s1"]), tile(p["t1"])]),   # (3, 8B)
        _pool_matrix(16, 16),                                       # (256, 256)
        jnp.concatenate([bd(w2_9[k]) for k in range(9)], axis=0),   # (9*8B, 16B)
        jnp.stack([tile(p["b2"]), tile(p["s2"]), tile(p["t2"])]),   # (3, 16B)
        _pool_matrix(8, 8),                                         # (64, 64)
        bd(p["w2p"]),                                               # (16B, 8B)
        tile(p["b2p"]).reshape(1, -1),                              # (1, 8B)
        jnp.concatenate([bd(w3_9[k]) for k in range(9)], axis=0),   # (9*8B, 16B)
        jnp.stack([tile(p["b3"]), tile(p["s3"]), tile(p["t3"])]),   # (3, 16B)
        _pool_matrix(4, 4),                                         # (16, 16)
        bd(p["w3p"]),                                               # (16B, 8B)
        tile(p["b3p"]).reshape(1, -1),                              # (1, 8B)
        bd(p["wl"] * 0.25),                                         # (8B, 10B)  GAP folded
        tile(p["bl"]).reshape(1, -1),                               # (1, 10B)
    )

    in_specs = [pl.BlockSpec((1, 16 * 16, B), lambda g: (g, 0, 0))]
    for a in consts:
        in_specs.append(pl.BlockSpec(a.shape, lambda g, _z=(0,) * a.ndim: _z))

    halo_rows = lambda HW, W: _roundup(_roundup(W + 1, 8) + HW + W + 1, 8)

    out = pl.pallas_call(
        net_fwd_kernel,
        out_shape=jax.ShapeDtypeStruct((G, 1, 10 * B), jnp.float32),
        grid=(G,),
        in_specs=in_specs,
        out_specs=pl.BlockSpec((1, 1, 10 * B), lambda g: (g, 0, 0)),
        scratch_shapes=[
            pltpu.VMEM((halo_rows(256, 16), B), jnp.float32),       # conv1 halo
            pltpu.VMEM((halo_rows(64, 8), 8 * B), jnp.float32),     # conv2 halo
            pltpu.VMEM((halo_rows(16, 4), 8 * B), jnp.float32),     # conv3 halo
        ],
        compiler_params=pltpu.CompilerParams(dimension_semantics=("parallel",)),
    )(xp, *consts)

    logits = out.reshape(G * B, 10)[:N]
    return jax.nn.log_softmax(logits, axis=-1)


# ----------------------------------------------------------------------------
# Pure-JAX reference (golden, HIGHEST precision) for numerical verification
# ----------------------------------------------------------------------------
def ref_forward(x, p):
    def cb(x, w, b, sc, sh):
        y = lax.conv_general_dilated(
            x, w, window_strides=(1, 1), padding=((1, 1), (1, 1)),
            dimension_numbers=("NHWC", "HWIO", "NHWC"),
            precision=lax.Precision.HIGHEST)
        y = jnp.maximum(y + b, 0.0)
        y = y * sc + sh
        return lax.reduce_window(y, -jnp.inf, lax.max,
                                 (1, 2, 2, 1), (1, 2, 2, 1), "VALID")

    def pw(x, w, b):
        return jnp.maximum(
            jnp.einsum("nhwc,cd->nhwd", x, w, precision=lax.Precision.HIGHEST) + b, 0.0)

    x = cb(x, p["w1"], p["b1"], p["s1"], p["t1"])
    x = cb(x, p["w2"], p["b2"], p["s2"], p["t2"])
    x = pw(x, p["w2p"], p["b2p"])
    x = cb(x, p["w3"], p["b3"], p["s3"], p["t3"])
    x = pw(x, p["w3p"], p["b3p"])
    g = jnp.mean(x, axis=(1, 2))
    z = jnp.dot(g, p["wl"], precision=lax.Precision.HIGHEST) + p["bl"]
    return jax.nn.log_softmax(z, axis=1)


# ----------------------------------------------------------------------------
# Deterministic parameter initialization
# ----------------------------------------------------------------------------
def init_conv(key, kh, kw, cin, cout):
    k1, k2 = jax.random.split(key)
    bound = 1.0 / float(np.sqrt(kh * kw * cin))
    w = jax.random.uniform(k1, (kh, kw, cin, cout), jnp.float32, -bound, bound)
    b = jax.random.uniform(k2, (cout,), jnp.float32, -bound, bound)
    return w, b


def init_bn(key, c, eps=1e-5):
    k1, k2, k3, k4 = jax.random.split(key, 4)
    gamma = jax.random.uniform(k1, (c,), jnp.float32, 0.5, 1.5)
    beta = jax.random.uniform(k2, (c,), jnp.float32, -0.5, 0.5)
    mean = 0.1 * jax.random.normal(k3, (c,), jnp.float32)
    var = jax.random.uniform(k4, (c,), jnp.float32, 0.5, 1.5)
    scale = gamma / jnp.sqrt(var + eps)
    shift = beta - mean * scale
    return scale, shift


def make_params(key):
    ks = jax.random.split(key, 10)
    p = {}
    p["w1"], p["b1"] = init_conv(ks[0], 3, 3, 1, 8)
    p["s1"], p["t1"] = init_bn(ks[1], 8)
    p["w2"], p["b2"] = init_conv(ks[2], 3, 3, 8, 16)
    p["s2"], p["t2"] = init_bn(ks[3], 16)
    kw, kb = jax.random.split(ks[4])
    p["w2p"] = jax.random.uniform(kw, (16, 8), jnp.float32, -0.25, 0.25)
    p["b2p"] = jax.random.uniform(kb, (8,), jnp.float32, -0.25, 0.25)
    p["w3"], p["b3"] = init_conv(ks[5], 3, 3, 8, 16)
    p["s3"], p["t3"] = init_bn(ks[6], 16)
    kw, kb = jax.random.split(ks[7])
    p["w3p"] = jax.random.uniform(kw, (16, 8), jnp.float32, -0.25, 0.25)
    p["b3p"] = jax.random.uniform(kb, (8,), jnp.float32, -0.25, 0.25)
    kw, kb = jax.random.split(ks[8])
    p["wl"] = jax.random.uniform(kw, (8, 10), jnp.float32, -0.35, 0.35)
    p["bl"] = jax.random.uniform(kb, (10,), jnp.float32, -0.35, 0.35)
    return p


if __name__ == "__main__":
    key = jax.random.PRNGKey(0)
    kp, kx = jax.random.split(key)
    params = make_params(kp)

    # PyTorch-style NCHW input: 32 images of 1x16x16 -> 2 grid blocks of 16
    # lane-packed images (keeps both v7x TensorCores busy).
    N = 32
    x_nchw = jax.random.normal(kx, (N, 1, 16, 16), jnp.float32)

    out = jax.jit(forward)(x_nchw, params)
    out = jax.block_until_ready(out)
    assert out.shape == (N, 10)

    # All kernel matmuls (convs, pool selections, head) run at default MXU
    # precision (bf16 operand rounding, f32 accumulation) per the perf
    # guidance, while the reference runs at HIGHEST -- allow a few-1e-2 slack
    # on the log-probabilities.
    ref = ref_forward(jnp.transpose(x_nchw, (0, 2, 3, 1)), params)
    np.testing.assert_allclose(np.asarray(out), np.asarray(ref), atol=5e-2, rtol=5e-2)

    print("KERNEL_OK")
</pallas_src>

<mosaic_0001>
module attributes {stable_mosaic.version = 11 : i64} {
  func.func @net_fwd_kernel(%arg0: i32, %arg1: memref<1x256x16xf32, #tpu.memory_space<vmem>>, %arg2: memref<9x16x128xf32, #tpu.memory_space<vmem>>, %arg3: memref<3x128xf32, #tpu.memory_space<vmem>>, %arg4: memref<256x256xf32, #tpu.memory_space<vmem>>, %arg5: memref<1152x256xf32, #tpu.memory_space<vmem>>, %arg6: memref<3x256xf32, #tpu.memory_space<vmem>>, %arg7: memref<64x64xf32, #tpu.memory_space<vmem>>, %arg8: memref<256x128xf32, #tpu.memory_space<vmem>>, %arg9: memref<1x128xf32, #tpu.memory_space<vmem>>, %arg10: memref<1152x256xf32, #tpu.memory_space<vmem>>, %arg11: memref<3x256xf32, #tpu.memory_space<vmem>>, %arg12: memref<16x16xf32, #tpu.memory_space<vmem>>, %arg13: memref<256x128xf32, #tpu.memory_space<vmem>>, %arg14: memref<1x128xf32, #tpu.memory_space<vmem>>, %arg15: memref<128x160xf32, #tpu.memory_space<vmem>>, %arg16: memref<1x160xf32, #tpu.memory_space<vmem>>, %arg17: memref<1x1x160xf32, #tpu.memory_space<vmem>>, %arg18: memref<304x16xf32, #tpu.memory_space<vmem>>, %arg19: memref<96x128xf32, #tpu.memory_space<vmem>>, %arg20: memref<32x128xf32, #tpu.memory_space<vmem>>) attributes {dimension_semantics = [#tpu.dimension_semantics<parallel>], iteration_bounds = array<i64: 2>, scalar_prefetch = 0 : i64, scratch_operands = 3 : i64, tpu.core_type = #tpu.core_type<tc>, window_params = [{transform_indices = @transform_0, window_bounds = array<i64: 1, 256, 16>}, {pipeline_mode = #tpu.pipeline_mode<synchronous>, transform_indices = @transform_1, window_bounds = array<i64: 9, 16, 128>}, {pipeline_mode = #tpu.pipeline_mode<synchronous>, transform_indices = @transform_2, window_bounds = array<i64: 3, 128>}, {pipeline_mode = #tpu.pipeline_mode<synchronous>, transform_indices = @transform_3, window_bounds = array<i64: 256, 256>}, {pipeline_mode = #tpu.pipeline_mode<synchronous>, transform_indices = @transform_4, window_bounds = array<i64: 1152, 256>}, {pipeline_mode = #tpu.pipeline_mode<synchronous>, transform_indices = @transform_5, window_bounds = array<i64: 3, 256>}, {pipeline_mode = #tpu.pipeline_mode<synchronous>, transform_indices = @transform_6, window_bounds = array<i64: 64, 64>}, {pipeline_mode = #tpu.pipeline_mode<synchronous>, transform_indices = @transform_7, window_bounds = array<i64: 256, 128>}, {pipeline_mode = #tpu.pipeline_mode<synchronous>, transform_indices = @transform_8, window_bounds = array<i64: 1, 128>}, {pipeline_mode = #tpu.pipeline_mode<synchronous>, transform_indices = @transform_9, window_bounds = array<i64: 1152, 256>}, {pipeline_mode = #tpu.pipeline_mode<synchronous>, transform_indices = @transform_10, window_bounds = array<i64: 3, 256>}, {pipeline_mode = #tpu.pipeline_mode<synchronous>, transform_indices = @transform_11, window_bounds = array<i64: 16, 16>}, {pipeline_mode = #tpu.pipeline_mode<synchronous>, transform_indices = @transform_12, window_bounds = array<i64: 256, 128>}, {pipeline_mode = #tpu.pipeline_mode<synchronous>, transform_indices = @transform_13, window_bounds = array<i64: 1, 128>}, {pipeline_mode = #tpu.pipeline_mode<synchronous>, transform_indices = @transform_14, window_bounds = array<i64: 128, 160>}, {pipeline_mode = #tpu.pipeline_mode<synchronous>, transform_indices = @transform_15, window_bounds = array<i64: 1, 160>}, {transform_indices = @transform_16, window_bounds = array<i64: 1, 1, 160>}]} {
    %c0 = arith.constant 0 : index
    %c0_0 = arith.constant 0 : index
    %c0_1 = arith.constant 0 : index
    %0 = vector.load %arg1[%c0, %c0_0, %c0_1] : memref<1x256x16xf32, #tpu.memory_space<vmem>>, vector<1x256x16xf32>
    %1 = vector.shape_cast %0 : vector<1x256x16xf32> to vector<256x16xf32>
    %cst = arith.constant 0.000000e+00 : f32
    %2 = vector.broadcast %cst : f32 to vector<24x16xf32>
    %c0_2 = arith.constant 0 : index
    %c0_3 = arith.constant 0 : index
    %3 = vector.load %arg18[%c0_2, %c0_3] : memref<304x16xf32, #tpu.memory_space<vmem>>, vector<24x16xf32>
    tpu.vector_store %arg18[%c0_2, %c0_3], %2 {strides = array<i32>} : memref<304x16xf32, #tpu.memory_space<vmem>>, vector<24x16xf32>,
    %cst_4 = arith.constant 0.000000e+00 : f32
    %4 = vector.broadcast %cst_4 : f32 to vector<24x16xf32>
    %c280 = arith.constant 280 : index
    %c0_5 = arith.constant 0 : index
    %5 = vector.load %arg18[%c280, %c0_5] : memref<304x16xf32, #tpu.memory_space<vmem>>, vector<24x16xf32>
    tpu.vector_store %arg18[%c280, %c0_5], %4 {strides = array<i32>} : memref<304x16xf32, #tpu.memory_space<vmem>>, vector<24x16xf32>,
    %c24 = arith.constant 24 : index
    %c0_6 = arith.constant 0 : index
    %6 = vector.load %arg18[%c24, %c0_6] : memref<304x16xf32, #tpu.memory_space<vmem>>, vector<256x16xf32>
    tpu.vector_store %arg18[%c24, %c0_6], %1 {strides = array<i32>} : memref<304x16xf32, #tpu.memory_space<vmem>>, vector<256x16xf32>,
    %7 = tpu.iota {dimensions = array<i32: 0>} : vector<256x1xi32>
    %c15_i32 = arith.constant 15 : i32
    %8 = vector.broadcast %c15_i32 : i32 to vector<256x1xi32>
    %9 = arith.andi %7, %8 : vector<256x1xi32>
    %c0_i32 = arith.constant 0 : i32
    %10 = vector.broadcast %c0_i32 : i32 to vector<256x1xi32>
    %11 = arith.cmpi sgt, %9, %10 : vector<256x1xi32>
    %12 = arith.extui %11 : vector<256x1xi1> to vector<256x1xi32>
    %13 = arith.sitofp %12 : vector<256x1xi32> to vector<256x1xf32>
    %c15_i32_7 = arith.constant 15 : i32
    %14 = vector.broadcast %c15_i32_7 : i32 to vector<256x1xi32>
    %15 = arith.cmpi slt, %9, %14 : vector<256x1xi32>
    %16 = arith.extui %15 : vector<256x1xi1> to vector<256x1xi32>
    %17 = arith.sitofp %16 : vector<256x1xi32> to vector<256x1xf32>
    %c7 = arith.constant 7 : index
    %c0_8 = arith.constant 0 : index
    %18 = vector.load %arg18[%c7, %c0_8] : memref<304x16xf32, #tpu.memory_space<vmem>>, vector<256x16xf32>
    %19 = vector.broadcast %13 : vector<256x1xf32> to vector<256x16xf32>
    %20 = arith.mulf %18, %19 : vector<256x16xf32>
    %c8 = arith.constant 8 : index
    %c0_9 = arith.constant 0 : index
    %21 = vector.load %arg18[%c8, %c0_9] : memref<304x16xf32, #tpu.memory_space<vmem>>, vector<256x16xf32>
    %c9 = arith.constant 9 : index
    %c0_10 = arith.constant 0 : index
    %22 = vector.load %arg18[%c9, %c0_10] : memref<304x16xf32, #tpu.memory_space<vmem>>, vector<256x16xf32>
    %23 = vector.broadcast %17 : vector<256x1xf32> to vector<256x16xf32>
    %24 = arith.mulf %22, %23 : vector<256x16xf32>
    %c23 = arith.constant 23 : index
    %c0_11 = arith.constant 0 : index
    %25 = vector.load %arg18[%c23, %c0_11] : memref<304x16xf32, #tpu.memory_space<vmem>>, vector<256x16xf32>
    %26 = vector.broadcast %13 : vector<256x1xf32> to vector<256x16xf32>
    %27 = arith.mulf %25, %26 : vector<256x16xf32>
    %c24_12 = arith.constant 24 : index
    %c0_13 = arith.constant 0 : index
    %28 = vector.load %arg18[%c24_12, %c0_13] : memref<304x16xf32, #tpu.memory_space<vmem>>, vector<256x16xf32>
    %c25 = arith.constant 25 : index
    %c0_14 = arith.constant 0 : index
    %29 = vector.load %arg18[%c25, %c0_14] : memref<304x16xf32, #tpu.memory_space<vmem>>, vector<256x16xf32>
    %30 = vector.broadcast %17 : vector<256x1xf32> to vector<256x16xf32>
    %31 = arith.mulf %29, %30 : vector<256x16xf32>
    %c39 = arith.constant 39 : index
    %c0_15 = arith.constant 0 : index
    %32 = vector.load %arg18[%c39, %c0_15] : memref<304x16xf32, #tpu.memory_space<vmem>>, vector<256x16xf32>
    %33 = vector.broadcast %13 : vector<256x1xf32> to vector<256x16xf32>
    %34 = arith.mulf %32, %33 : vector<256x16xf32>
    %c40 = arith.constant 40 : index
    %c0_16 = arith.constant 0 : index
    %35 = vector.load %arg18[%c40, %c0_16] : memref<304x16xf32, #tpu.memory_space<vmem>>, vector<256x16xf32>
    %c41 = arith.constant 41 : index
    %c0_17 = arith.constant 0 : index
    %36 = vector.load %arg18[%c41, %c0_17] : memref<304x16xf32, #tpu.memory_space<vmem>>, vector<256x16xf32>
    %37 = vector.broadcast %17 : vector<256x1xf32> to vector<256x16xf32>
    %38 = arith.mulf %36, %37 : vector<256x16xf32>
    %c0_18 = arith.constant 0 : index
    %c0_19 = arith.constant 0 : index
    %c0_20 = arith.constant 0 : index
    %39 = vector.load %arg2[%c0_18, %c0_19, %c0_20] : memref<9x16x128xf32, #tpu.memory_space<vmem>>, vector<1x16x128xf32>
    %40 = vector.shape_cast %39 : vector<1x16x128xf32> to vector<16x128xf32>
    %cst_21 = arith.constant dense<0.000000e+00> : vector<256x128xf32>
    %41 = tpu.matmul %20, %40, %cst_21 {dimension_numbers = #tpu.dot_dimension_numbers<[1], [0], [0], [1], [0, 0, 1, 1], [], []>} : vector<256x16xf32>, vector<16x128xf32>, vector<256x128xf32> -> vector<256x128xf32>
    %c1 = arith.constant 1 : index
    %c0_22 = arith.constant 0 : index
    %c0_23 = arith.constant 0 : index
    %42 = vector.load %arg2[%c1, %c0_22, %c0_23] : memref<9x16x128xf32, #tpu.memory_space<vmem>>, vector<1x16x128xf32>
    %43 = vector.shape_cast %42 : vector<1x16x128xf32> to vector<16x128xf32>
    %cst_24 = arith.constant dense<0.000000e+00> : vector<256x128xf32>
    %44 = tpu.matmul %21, %43, %cst_24 {dimension_numbers = #tpu.dot_dimension_numbers<[1], [0], [0], [1], [0, 0, 1, 1], [], []>} : vector<256x16xf32>, vector<16x128xf32>, vector<256x128xf32> -> vector<256x128xf32>
    %45 = arith.addf %41, %44 : vector<256x128xf32>
    %c2 = arith.constant 2 : index
    %c0_25 = arith.constant 0 : index
    %c0_26 = arith.constant 0 : index
    %46 = vector.load %arg2[%c2, %c0_25, %c0_26] : memref<9x16x128xf32, #tpu.memory_space<vmem>>, vector<1x16x128xf32>
    %47 = vector.shape_cast %46 : vector<1x16x128xf32> to vector<16x128xf32>
    %cst_27 = arith.constant dense<0.000000e+00> : vector<256x128xf32>
    %48 = tpu.matmul %24, %47, %cst_27 {dimension_numbers = #tpu.dot_dimension_numbers<[1], [0], [0], [1], [0, 0, 1, 1], [], []>} : vector<256x16xf32>, vector<16x128xf32>, vector<256x128xf32> -> vector<256x128xf32>
    %49 = arith.addf %45, %48 : vector<256x128xf32>
    %c3 = arith.constant 3 : index
    %c0_28 = arith.constant 0 : index
    %c0_29 = arith.constant 0 : index
    %50 = vector.load %arg2[%c3, %c0_28, %c0_29] : memref<9x16x128xf32, #tpu.memory_space<vmem>>, vector<1x16x128xf32>
    %51 = vector.shape_cast %50 : vector<1x16x128xf32> to vector<16x128xf32>
    %cst_30 = arith.constant dense<0.000000e+00> : vector<256x128xf32>
    %52 = tpu.matmul %27, %51, %cst_30 {dimension_numbers = #tpu.dot_dimension_numbers<[1], [0], [0], [1], [0, 0, 1, 1], [], []>} : vector<256x16xf32>, vector<16x128xf32>, vector<256x128xf32> -> vector<256x128xf32>
    %53 = arith.addf %49, %52 : vector<256x128xf32>
    %c4 = arith.constant 4 : index
    %c0_31 = arith.constant 0 : index
    %c0_32 = arith.constant 0 : index
    %54 = vector.load %arg2[%c4, %c0_31, %c0_32] : memref<9x16x128xf32, #tpu.memory_space<vmem>>, vector<1x16x128xf32>
    %55 = vector.shape_cast %54 : vector<1x16x128xf32> to vector<16x128xf32>
    %cst_33 = arith.constant dense<0.000000e+00> : vector<256x128xf32>
    %56 = tpu.matmul %28, %55, %cst_33 {dimension_numbers = #tpu.dot_dimension_numbers<[1], [0], [0], [1], [0, 0, 1, 1], [], []>} : vector<256x16xf32>, vector<16x128xf32>, vector<256x128xf32> -> vector<256x128xf32>
    %57 = arith.addf %53, %56 : vector<256x128xf32>
    %c5 = arith.constant 5 : index
    %c0_34 = arith.constant 0 : index
    %c0_35 = arith.constant 0 : index
    %58 = vector.load %arg2[%c5, %c0_34, %c0_35] : memref<9x16x128xf32, #tpu.memory_space<vmem>>, vector<1x16x128xf32>
    %59 = vector.shape_cast %58 : vector<1x16x128xf32> to vector<16x128xf32>
    %cst_36 = arith.constant dense<0.000000e+00> : vector<256x128xf32>
    %60 = tpu.matmul %31, %59, %cst_36 {dimension_numbers = #tpu.dot_dimension_numbers<[1], [0], [0], [1], [0, 0, 1, 1], [], []>} : vector<256x16xf32>, vector<16x128xf32>, vector<256x128xf32> -> vector<256x128xf32>
    %61 = arith.addf %57, %60 : vector<256x128xf32>
    %c6 = arith.constant 6 : index
    %c0_37 = arith.constant 0 : index
    %c0_38 = arith.constant 0 : index
    %62 = vector.load %arg2[%c6, %c0_37, %c0_38] : memref<9x16x128xf32, #tpu.memory_space<vmem>>, vector<1x16x128xf32>
    %63 = vector.shape_cast %62 : vector<1x16x128xf32> to vector<16x128xf32>
    %cst_39 = arith.constant dense<0.000000e+00> : vector<256x128xf32>
    %64 = tpu.matmul %34, %63, %cst_39 {dimension_numbers = #tpu.dot_dimension_numbers<[1], [0], [0], [1], [0, 0, 1, 1], [], []>} : vector<256x16xf32>, vector<16x128xf32>, vector<256x128xf32> -> vector<256x128xf32>
    %65 = arith.addf %61, %64 : vector<256x128xf32>
    %c7_40 = arith.constant 7 : index
    %c0_41 = arith.constant 0 : index
    %c0_42 = arith.constant 0 : index
    %66 = vector.load %arg2[%c7_40, %c0_41, %c0_42] : memref<9x16x128xf32, #tpu.memory_space<vmem>>, vector<1x16x128xf32>
    %67 = vector.shape_cast %66 : vector<1x16x128xf32> to vector<16x128xf32>
    %cst_43 = arith.constant dense<0.000000e+00> : vector<256x128xf32>
    %68 = tpu.matmul %35, %67, %cst_43 {dimension_numbers = #tpu.dot_dimension_numbers<[1], [0], [0], [1], [0, 0, 1, 1], [], []>} : vector<256x16xf32>, vector<16x128xf32>, vector<256x128xf32> -> vector<256x128xf32>
    %69 = arith.addf %65, %68 : vector<256x128xf32>
    %c8_44 = arith.constant 8 : index
    %c0_45 = arith.constant 0 : index
    %c0_46 = arith.constant 0 : index
    %70 = vector.load %arg2[%c8_44, %c0_45, %c0_46] : memref<9x16x128xf32, #tpu.memory_space<vmem>>, vector<1x16x128xf32>
    %71 = vector.shape_cast %70 : vector<1x16x128xf32> to vector<16x128xf32>
    %cst_47 = arith.constant dense<0.000000e+00> : vector<256x128xf32>
    %72 = tpu.matmul %38, %71, %cst_47 {dimension_numbers = #tpu.dot_dimension_numbers<[1], [0], [0], [1], [0, 0, 1, 1], [], []>} : vector<256x16xf32>, vector<16x128xf32>, vector<256x128xf32> -> vector<256x128xf32>
    %73 = arith.addf %69, %72 : vector<256x128xf32>
    %c0_48 = arith.constant 0 : index
    %c0_49 = arith.constant 0 : index
    %74 = vector.load %arg3[%c0_48, %c0_49] : memref<3x128xf32, #tpu.memory_space<vmem>>, vector<1x128xf32>
    %c1_50 = arith.constant 1 : index
    %c0_51 = arith.constant 0 : index
    %75 = vector.load %arg3[%c1_50, %c0_51] : memref<3x128xf32, #tpu.memory_space<vmem>>, vector<1x128xf32>
    %c2_52 = arith.constant 2 : index
    %c0_53 = arith.constant 0 : index
    %76 = vector.load %arg3[%c2_52, %c0_53] : memref<3x128xf32, #tpu.memory_space<vmem>>, vector<1x128xf32>
    %77 = vector.broadcast %74 : vector<1x128xf32> to vector<256x128xf32>
    %78 = arith.addf %73, %77 : vector<256x128xf32>
    %cst_54 = arith.constant 0.000000e+00 : f32
    %79 = vector.broadcast %cst_54 : f32 to vector<256x128xf32>
    %80 = arith.maximumf %78, %79 : vector<256x128xf32>
    %81 = vector.broadcast %75 : vector<1x128xf32> to vector<256x128xf32>
    %82 = arith.mulf %80, %81 : vector<256x128xf32>
    %83 = vector.broadcast %76 : vector<1x128xf32> to vector<256x128xf32>
    %84 = arith.addf %82, %83 : vector<256x128xf32>
    %c0_55 = arith.constant 0 : index
    %c0_56 = arith.constant 0 : index
    %85 = vector.load %arg4[%c0_55, %c0_56] : memref<256x256xf32, #tpu.memory_space<vmem>>, vector<256x256xf32>
    %cst_57 = arith.constant dense<0.000000e+00> : vector<256x128xf32>
    %86 = tpu.matmul %85, %84, %cst_57 {dimension_numbers = #tpu.dot_dimension_numbers<[1], [0], [0], [1], [0, 0, 1, 1], [], []>} : vector<256x256xf32>, vector<256x128xf32>, vector<256x128xf32> -> vector<256x128xf32>
    %87 = vector.extract_strided_slice %86 {offsets = [0, 0], sizes = [64, 128], strides = [1, 1]} : vector<256x128xf32> to vector<64x128xf32>
    %88 = vector.extract_strided_slice %86 {offsets = [64, 0], sizes = [64, 128], strides = [1, 1]} : vector<256x128xf32> to vector<64x128xf32>
    %89 = arith.maximumf %87, %88 : vector<64x128xf32>
    %90 = vector.extract_strided_slice %86 {offsets = [128, 0], sizes = [64, 128], strides = [1, 1]} : vector<256x128xf32> to vector<64x128xf32>
    %91 = vector.extract_strided_slice %86 {offsets = [192, 0], sizes = [64, 128], strides = [1, 1]} : vector<256x128xf32> to vector<64x128xf32>
    %92 = arith.maximumf %90, %91 : vector<64x128xf32>
    %93 = arith.maximumf %89, %92 : vector<64x128xf32>
    %cst_58 = arith.constant 0.000000e+00 : f32
    %94 = vector.broadcast %cst_58 : f32 to vector<16x128xf32>
    %c0_59 = arith.constant 0 : index
    %c0_60 = arith.constant 0 : index
    %95 = vector.load %arg19[%c0_59, %c0_60] : memref<96x128xf32, #tpu.memory_space<vmem>>, vector<16x128xf32>
    tpu.vector_store %arg19[%c0_59, %c0_60], %94 {strides = array<i32>} : memref<96x128xf32, #tpu.memory_space<vmem>>, vector<16x128xf32>,
    %cst_61 = arith.constant 0.000000e+00 : f32
    %96 = vector.broadcast %cst_61 : f32 to vector<16x128xf32>
    %c80 = arith.constant 80 : index
    %c0_62 = arith.constant 0 : index
    %97 = vector.load %arg19[%c80, %c0_62] : memref<96x128xf32, #tpu.memory_space<vmem>>, vector<16x128xf32>
    tpu.vector_store %arg19[%c80, %c0_62], %96 {strides = array<i32>} : memref<96x128xf32, #tpu.memory_space<vmem>>, vector<16x128xf32>,
    %c16 = arith.constant 16 : index
    %c0_63 = arith.constant 0 : index
    %98 = vector.load %arg19[%c16, %c0_63] : memref<96x128xf32, #tpu.memory_space<vmem>>, vector<64x128xf32>
    tpu.vector_store %arg19[%c16, %c0_63], %93 {strides = array<i32>} : memref<96x128xf32, #tpu.memory_space<vmem>>, vector<64x128xf32>,
    %99 = tpu.iota {dimensions = array<i32: 0>} : vector<64x1xi32>
    %c7_i32 = arith.constant 7 : i32
    %100 = vector.broadcast %c7_i32 : i32 to vector<64x1xi32>
    %101 = arith.andi %99, %100 : vector<64x1xi32>
    %c0_i32_64 = arith.constant 0 : i32
    %102 = vector.broadcast %c0_i32_64 : i32 to vector<64x1xi32>
    %103 = arith.cmpi sgt, %101, %102 : vector<64x1xi32>
    %104 = arith.extui %103 : vector<64x1xi1> to vector<64x1xi32>
    %105 = arith.sitofp %104 : vector<64x1xi32> to vector<64x1xf32>
    %c7_i32_65 = arith.constant 7 : i32
    %106 = vector.broadcast %c7_i32_65 : i32 to vector<64x1xi32>
    %107 = arith.cmpi slt, %101, %106 : vector<64x1xi32>
    %108 = arith.extui %107 : vector<64x1xi1> to vector<64x1xi32>
    %109 = arith.sitofp %108 : vector<64x1xi32> to vector<64x1xf32>
    %c7_66 = arith.constant 7 : index
    %c0_67 = arith.constant 0 : index
    %110 = vector.load %arg19[%c7_66, %c0_67] : memref<96x128xf32, #tpu.memory_space<vmem>>, vector<64x128xf32>
    %111 = vector.broadcast %105 : vector<64x1xf32> to vector<64x128xf32>
    %112 = arith.mulf %110, %111 : vector<64x128xf32>
    %c8_68 = arith.constant 8 : index
    %c0_69 = arith.constant 0 : index
    %113 = vector.load %arg19[%c8_68, %c0_69] : memref<96x128xf32, #tpu.memory_space<vmem>>, vector<64x128xf32>
    %c9_70 = arith.constant 9 : index
    %c0_71 = arith.constant 0 : index
    %114 = vector.load %arg19[%c9_70, %c0_71] : memref<96x128xf32, #tpu.memory_space<vmem>>, vector<64x128xf32>
    %115 = vector.broadcast %109 : vector<64x1xf32> to vector<64x128xf32>
    %116 = arith.mulf %114, %115 : vector<64x128xf32>
    %c15 = arith.constant 15 : index
    %c0_72 = arith.constant 0 : index
    %117 = vector.load %arg19[%c15, %c0_72] : memref<96x128xf32, #tpu.memory_space<vmem>>, vector<64x128xf32>
    %118 = vector.broadcast %105 : vector<64x1xf32> to vector<64x128xf32>
    %119 = arith.mulf %117, %118 : vector<64x128xf32>
    %c16_73 = arith.constant 16 : index
    %c0_74 = arith.constant 0 : index
    %120 = vector.load %arg19[%c16_73, %c0_74] : memref<96x128xf32, #tpu.memory_space<vmem>>, vector<64x128xf32>
    %c17 = arith.constant 17 : index
    %c0_75 = arith.constant 0 : index
    %121 = vector.load %arg19[%c17, %c0_75] : memref<96x128xf32, #tpu.memory_space<vmem>>, vector<64x128xf32>
    %122 = vector.broadcast %109 : vector<64x1xf32> to vector<64x128xf32>
    %123 = arith.mulf %121, %122 : vector<64x128xf32>
    %c23_76 = arith.constant 23 : index
    %c0_77 = arith.constant 0 : index
    %124 = vector.load %arg19[%c23_76, %c0_77] : memref<96x128xf32, #tpu.memory_space<vmem>>, vector<64x128xf32>
    %125 = vector.broadcast %105 : vector<64x1xf32> to vector<64x128xf32>
    %126 = arith.mulf %124, %125 : vector<64x128xf32>
    %c24_78 = arith.constant 24 : index
    %c0_79 = arith.constant 0 : index
    %127 = vector.load %arg19[%c24_78, %c0_79] : memref<96x128xf32, #tpu.memory_space<vmem>>, vector<64x128xf32>
    %c25_80 = arith.constant 25 : index
    %c0_81 = arith.constant 0 : index
    %128 = vector.load %arg19[%c25_80, %c0_81] : memref<96x128xf32, #tpu.memory_space<vmem>>, vector<64x128xf32>
    %129 = vector.broadcast %109 : vector<64x1xf32> to vector<64x128xf32>
    %130 = arith.mulf %128, %129 : vector<64x128xf32>
    %131 = tpu.concatenate %112, %113, %116, %119, %120, %123, %126, %127, %130 in 1 : vector<64x128xf32>, vector<64x128xf32>, vector<64x128xf32>, vector<64x128xf32>, vector<64x128xf32>, vector<64x128xf32>, vector<64x128xf32>, vector<64x128xf32>, vector<64x128xf32> -> vector<64x1152xf32>
    %c0_82 = arith.constant 0 : index
    %c0_83 = arith.constant 0 : index
    %132 = vector.load %arg5[%c0_82, %c0_83] : memref<1152x256xf32, #tpu.memory_space<vmem>>, vector<1152x256xf32>
    %cst_84 = arith.constant dense<0.000000e+00> : vector<64x256xf32>
    %133 = tpu.matmul %131, %132, %cst_84 {dimension_numbers = #tpu.dot_dimension_numbers<[1], [0], [0], [1], [0, 0, 1, 1], [], []>} : vector<64x1152xf32>, vector<1152x256xf32>, vector<64x256xf32> -> vector<64x256xf32>
    %c0_85 = arith.constant 0 : index
    %c0_86 = arith.constant 0 : index
    %134 = vector.load %arg6[%c0_85, %c0_86] : memref<3x256xf32, #tpu.memory_space<vmem>>, vector<1x256xf32>
    %c1_87 = arith.constant 1 : index
    %c0_88 = arith.constant 0 : index
    %135 = vector.load %arg6[%c1_87, %c0_88] : memref<3x256xf32, #tpu.memory_space<vmem>>, vector<1x256xf32>
    %c2_89 = arith.constant 2 : index
    %c0_90 = arith.constant 0 : index
    %136 = vector.load %arg6[%c2_89, %c0_90] : memref<3x256xf32, #tpu.memory_space<vmem>>, vector<1x256xf32>
    %137 = vector.broadcast %134 : vector<1x256xf32> to vector<64x256xf32>
    %138 = arith.addf %133, %137 : vector<64x256xf32>
    %cst_91 = arith.constant 0.000000e+00 : f32
    %139 = vector.broadcast %cst_91 : f32 to vector<64x256xf32>
    %140 = arith.maximumf %138, %139 : vector<64x256xf32>
    %141 = vector.broadcast %135 : vector<1x256xf32> to vector<64x256xf32>
    %142 = arith.mulf %140, %141 : vector<64x256xf32>
    %143 = vector.broadcast %136 : vector<1x256xf32> to vector<64x256xf32>
    %144 = arith.addf %142, %143 : vector<64x256xf32>
    %c0_92 = arith.constant 0 : index
    %c0_93 = arith.constant 0 : index
    %145 = vector.load %arg7[%c0_92, %c0_93] : memref<64x64xf32, #tpu.memory_space<vmem>>, vector<64x64xf32>
    %cst_94 = arith.constant dense<0.000000e+00> : vector<64x256xf32>
    %146 = tpu.matmul %145, %144, %cst_94 {dimension_numbers = #tpu.dot_dimension_numbers<[1], [0], [0], [1], [0, 0, 1, 1], [], []>} : vector<64x64xf32>, vector<64x256xf32>, vector<64x256xf32> -> vector<64x256xf32>
    %147 = vector.extract_strided_slice %146 {offsets = [0, 0], sizes = [16, 256], strides = [1, 1]} : vector<64x256xf32> to vector<16x256xf32>
    %148 = vector.extract_strided_slice %146 {offsets = [16, 0], sizes = [16, 256], strides = [1, 1]} : vector<64x256xf32> to vector<16x256xf32>
    %149 = arith.maximumf %147, %148 : vector<16x256xf32>
    %150 = vector.extract_strided_slice %146 {offsets = [32, 0], sizes = [16, 256], strides = [1, 1]} : vector<64x256xf32> to vector<16x256xf32>
    %151 = vector.extract_strided_slice %146 {offsets = [48, 0], sizes = [16, 256], strides = [1, 1]} : vector<64x256xf32> to vector<16x256xf32>
    %152 = arith.maximumf %150, %151 : vector<16x256xf32>
    %153 = arith.maximumf %149, %152 : vector<16x256xf32>
    %c0_95 = arith.constant 0 : index
    %c0_96 = arith.constant 0 : index
    %154 = vector.load %arg8[%c0_95, %c0_96] : memref<256x128xf32, #tpu.memory_space<vmem>>, vector<256x128xf32>
    %cst_97 = arith.constant dense<0.000000e+00> : vector<16x128xf32>
    %155 = tpu.matmul %153, %154, %cst_97 {dimension_numbers = #tpu.dot_dimension_numbers<[1], [0], [0], [1], [0, 0, 1, 1], [], []>} : vector<16x256xf32>, vector<256x128xf32>, vector<16x128xf32> -> vector<16x128xf32>
    %c0_98 = arith.constant 0 : index
    %c0_99 = arith.constant 0 : index
    %156 = vector.load %arg9[%c0_98, %c0_99] : memref<1x128xf32, #tpu.memory_space<vmem>>, vector<1x128xf32>
    %157 = vector.broadcast %156 : vector<1x128xf32> to vector<16x128xf32>
    %158 = arith.addf %155, %157 : vector<16x128xf32>
    %cst_100 = arith.constant 0.000000e+00 : f32
    %159 = vector.broadcast %cst_100 : f32 to vector<16x128xf32>
    %160 = arith.maximumf %158, %159 : vector<16x128xf32>
    %cst_101 = arith.constant 0.000000e+00 : f32
    %161 = vector.broadcast %cst_101 : f32 to vector<8x128xf32>
    %c0_102 = arith.constant 0 : index
    %c0_103 = arith.constant 0 : index
    %162 = vector.load %arg20[%c0_102, %c0_103] : memref<32x128xf32, #tpu.memory_space<vmem>>, vector<8x128xf32>
    tpu.vector_store %arg20[%c0_102, %c0_103], %161 {strides = array<i32>} : memref<32x128xf32, #tpu.memory_space<vmem>>, vector<8x128xf32>,
    %cst_104 = arith.constant 0.000000e+00 : f32
    %163 = vector.broadcast %cst_104 : f32 to vector<8x128xf32>
    %c24_105 = arith.constant 24 : index
    %c0_106 = arith.constant 0 : index
    %164 = vector.load %arg20[%c24_105, %c0_106] : memref<32x128xf32, #tpu.memory_space<vmem>>, vector<8x128xf32>
    tpu.vector_store %arg20[%c24_105, %c0_106], %163 {strides = array<i32>} : memref<32x128xf32, #tpu.memory_space<vmem>>, vector<8x128xf32>,
    %c8_107 = arith.constant 8 : index
    %c0_108 = arith.constant 0 : index
    %165 = vector.load %arg20[%c8_107, %c0_108] : memref<32x128xf32, #tpu.memory_space<vmem>>, vector<16x128xf32>
    tpu.vector_store %arg20[%c8_107, %c0_108], %160 {strides = array<i32>} : memref<32x128xf32, #tpu.memory_space<vmem>>, vector<16x128xf32>,
    %166 = tpu.iota {dimensions = array<i32: 0>} : vector<16x1xi32>
    %c3_i32 = arith.constant 3 : i32
    %167 = vector.broadcast %c3_i32 : i32 to vector<16x1xi32>
    %168 = arith.andi %166, %167 : vector<16x1xi32>
    %c0_i32_109 = arith.constant 0 : i32
    %169 = vector.broadcast %c0_i32_109 : i32 to vector<16x1xi32>
    %170 = arith.cmpi sgt, %168, %169 : vector<16x1xi32>
    %171 = arith.extui %170 : vector<16x1xi1> to vector<16x1xi32>
    %172 = arith.sitofp %171 : vector<16x1xi32> to vector<16x1xf32>
    %c3_i32_110 = arith.constant 3 : i32
    %173 = vector.broadcast %c3_i32_110 : i32 to vector<16x1xi32>
    %174 = arith.cmpi slt, %168, %173 : vector<16x1xi32>
    %175 = arith.extui %174 : vector<16x1xi1> to vector<16x1xi32>
    %176 = arith.sitofp %175 : vector<16x1xi32> to vector<16x1xf32>
    %c3_111 = arith.constant 3 : index
    %c0_112 = arith.constant 0 : index
    %177 = vector.load %arg20[%c3_111, %c0_112] : memref<32x128xf32, #tpu.memory_space<vmem>>, vector<16x128xf32>
    %178 = vector.broadcast %172 : vector<16x1xf32> to vector<16x128xf32>
    %179 = arith.mulf %177, %178 : vector<16x128xf32>
    %c4_113 = arith.constant 4 : index
    %c0_114 = arith.constant 0 : index
    %180 = vector.load %arg20[%c4_113, %c0_114] : memref<32x128xf32, #tpu.memory_space<vmem>>, vector<16x128xf32>
    %c5_115 = arith.constant 5 : index
    %c0_116 = arith.constant 0 : index
    %181 = vector.load %arg20[%c5_115, %c0_116] : memref<32x128xf32, #tpu.memory_space<vmem>>, vector<16x128xf32>
    %182 = vector.broadcast %176 : vector<16x1xf32> to vector<16x128xf32>
    %183 = arith.mulf %181, %182 : vector<16x128xf32>
    %c7_117 = arith.constant 7 : index
    %c0_118 = arith.constant 0 : index
    %184 = vector.load %arg20[%c7_117, %c0_118] : memref<32x128xf32, #tpu.memory_space<vmem>>, vector<16x128xf32>
    %185 = vector.broadcast %172 : vector<16x1xf32> to vector<16x128xf32>
    %186 = arith.mulf %184, %185 : vector<16x128xf32>
    %c8_119 = arith.constant 8 : index
    %c0_120 = arith.constant 0 : index
    %187 = vector.load %arg20[%c8_119, %c0_120] : memref<32x128xf32, #tpu.memory_space<vmem>>, vector<16x128xf32>
    %c9_121 = arith.constant 9 : index
    %c0_122 = arith.constant 0 : index
    %188 = vector.load %arg20[%c9_121, %c0_122] : memref<32x128xf32, #tpu.memory_space<vmem>>, vector<16x128xf32>
    %189 = vector.broadcast %176 : vector<16x1xf32> to vector<16x128xf32>
    %190 = arith.mulf %188, %189 : vector<16x128xf32>
    %c11 = arith.constant 11 : index
    %c0_123 = arith.constant 0 : index
    %191 = vector.load %arg20[%c11, %c0_123] : memref<32x128xf32, #tpu.memory_space<vmem>>, vector<16x128xf32>
    %192 = vector.broadcast %172 : vector<16x1xf32> to vector<16x128xf32>
    %193 = arith.mulf %191, %192 : vector<16x128xf32>
    %c12 = arith.constant 12 : index
    %c0_124 = arith.constant 0 : index
    %194 = vector.load %arg20[%c12, %c0_124] : memref<32x128xf32, #tpu.memory_space<vmem>>, vector<16x128xf32>
    %c13 = arith.constant 13 : index
    %c0_125 = arith.constant 0 : index
    %195 = vector.load %arg20[%c13, %c0_125] : memref<32x128xf32, #tpu.memory_space<vmem>>, vector<16x128xf32>
    %196 = vector.broadcast %176 : vector<16x1xf32> to vector<16x128xf32>
    %197 = arith.mulf %195, %196 : vector<16x128xf32>
    %198 = tpu.concatenate %179, %180, %183, %186, %187, %190, %193, %194, %197 in 1 : vector<16x128xf32>, vector<16x128xf32>, vector<16x128xf32>, vector<16x128xf32>, vector<16x128xf32>, vector<16x128xf32>, vector<16x128xf32>, vector<16x128xf32>, vector<16x128xf32> -> vector<16x1152xf32>
    %c0_126 = arith.constant 0 : index
    %c0_127 = arith.constant 0 : index
    %199 = vector.load %arg10[%c0_126, %c0_127] : memref<1152x256xf32, #tpu.memory_space<vmem>>, vector<1152x256xf32>
    %cst_128 = arith.constant dense<0.000000e+00> : vector<16x256xf32>
    %200 = tpu.matmul %198, %199, %cst_128 {dimension_numbers = #tpu.dot_dimension_numbers<[1], [0], [0], [1], [0, 0, 1, 1], [], []>} : vector<16x1152xf32>, vector<1152x256xf32>, vector<16x256xf32> -> vector<16x256xf32>
    %c0_129 = arith.constant 0 : index
    %c0_130 = arith.constant 0 : index
    %201 = vector.load %arg11[%c0_129, %c0_130] : memref<3x256xf32, #tpu.memory_space<vmem>>, vector<1x256xf32>
    %c1_131 = arith.constant 1 : index
    %c0_132 = arith.constant 0 : index
    %202 = vector.load %arg11[%c1_131, %c0_132] : memref<3x256xf32, #tpu.memory_space<vmem>>, vector<1x256xf32>
    %c2_133 = arith.constant 2 : index
    %c0_134 = arith.constant 0 : index
    %203 = vector.load %arg11[%c2_133, %c0_134] : memref<3x256xf32, #tpu.memory_space<vmem>>, vector<1x256xf32>
    %204 = vector.broadcast %201 : vector<1x256xf32> to vector<16x256xf32>
    %205 = arith.addf %200, %204 : vector<16x256xf32>
    %cst_135 = arith.constant 0.000000e+00 : f32
    %206 = vector.broadcast %cst_135 : f32 to vector<16x256xf32>
    %207 = arith.maximumf %205, %206 : vector<16x256xf32>
    %208 = vector.broadcast %202 : vector<1x256xf32> to vector<16x256xf32>
    %209 = arith.mulf %207, %208 : vector<16x256xf32>
    %210 = vector.broadcast %203 : vector<1x256xf32> to vector<16x256xf32>
    %211 = arith.addf %209, %210 : vector<16x256xf32>
    %c0_136 = arith.constant 0 : index
    %c0_137 = arith.constant 0 : index
    %212 = vector.load %arg12[%c0_136, %c0_137] : memref<16x16xf32, #tpu.memory_space<vmem>>, vector<16x16xf32>
    %cst_138 = arith.constant dense<0.000000e+00> : vector<16x256xf32>
    %213 = tpu.matmul %212, %211, %cst_138 {dimension_numbers = #tpu.dot_dimension_numbers<[1], [0], [0], [1], [0, 0, 1, 1], [], []>} : vector<16x16xf32>, vector<16x256xf32>, vector<16x256xf32> -> vector<16x256xf32>
    %214 = vector.extract_strided_slice %213 {offsets = [0, 0], sizes = [4, 256], strides = [1, 1]} : vector<16x256xf32> to vector<4x256xf32>
    %215 = vector.extract_strided_slice %213 {offsets = [4, 0], sizes = [4, 256], strides = [1, 1]} : vector<16x256xf32> to vector<4x256xf32>
    %216 = arith.maximumf %214, %215 : vector<4x256xf32>
    %217 = vector.extract_strided_slice %213 {offsets = [8, 0], sizes = [4, 256], strides = [1, 1]} : vector<16x256xf32> to vector<4x256xf32>
    %218 = vector.extract_strided_slice %213 {offsets = [12, 0], sizes = [4, 256], strides = [1, 1]} : vector<16x256xf32> to vector<4x256xf32>
    %219 = arith.maximumf %217, %218 : vector<4x256xf32>
    %220 = arith.maximumf %216, %219 : vector<4x256xf32>
    %c0_139 = arith.constant 0 : index
    %c0_140 = arith.constant 0 : index
    %221 = vector.load %arg13[%c0_139, %c0_140] : memref<256x128xf32, #tpu.memory_space<vmem>>, vector<256x128xf32>
    %cst_141 = arith.constant dense<0.000000e+00> : vector<4x128xf32>
    %222 = tpu.matmul %220, %221, %cst_141 {dimension_numbers = #tpu.dot_dimension_numbers<[1], [0], [0], [1], [0, 0, 1, 1], [], []>} : vector<4x256xf32>, vector<256x128xf32>, vector<4x128xf32> -> vector<4x128xf32>
    %c0_142 = arith.constant 0 : index
    %c0_143 = arith.constant 0 : index
    %223 = vector.load %arg14[%c0_142, %c0_143] : memref<1x128xf32, #tpu.memory_space<vmem>>, vector<1x128xf32>
    %224 = vector.broadcast %223 : vector<1x128xf32> to vector<4x128xf32>
    %225 = arith.addf %222, %224 : vector<4x128xf32>
    %cst_144 = arith.constant 0.000000e+00 : f32
    %226 = vector.broadcast %cst_144 : f32 to vector<4x128xf32>
    %227 = arith.maximumf %225, %226 : vector<4x128xf32>
    %228 = vector.extract_strided_slice %227 {offsets = [0, 0], sizes = [1, 128], strides = [1, 1]} : vector<4x128xf32> to vector<1x128xf32>
    %229 = vector.extract_strided_slice %227 {offsets = [1, 0], sizes = [1, 128], strides = [1, 1]} : vector<4x128xf32> to vector<1x128xf32>
    %230 = arith.addf %228, %229 : vector<1x128xf32>
    %231 = vector.extract_strided_slice %227 {offsets = [2, 0], sizes = [1, 128], strides = [1, 1]} : vector<4x128xf32> to vector<1x128xf32>
    %232 = arith.addf %230, %231 : vector<1x128xf32>
    %233 = vector.extract_strided_slice %227 {offsets = [3, 0], sizes = [1, 128], strides = [1, 1]} : vector<4x128xf32> to vector<1x128xf32>
    %234 = arith.addf %232, %233 : vector<1x128xf32>
    %c0_145 = arith.constant 0 : index
    %c0_146 = arith.constant 0 : index
    %235 = vector.load %arg15[%c0_145, %c0_146] : memref<128x160xf32, #tpu.memory_space<vmem>>, vector<128x160xf32>
    %cst_147 = arith.constant dense<0.000000e+00> : vector<1x160xf32>
    %236 = tpu.matmul %234, %235, %cst_147 {dimension_numbers = #tpu.dot_dimension_numbers<[1], [0], [0], [1], [0, 0, 1, 1], [], []>} : vector<1x128xf32>, vector<128x160xf32>, vector<1x160xf32> -> vector<1x160xf32>
    %c0_148 = arith.constant 0 : index
    %c0_149 = arith.constant 0 : index
    %237 = vector.load %arg16[%c0_148, %c0_149] : memref<1x160xf32, #tpu.memory_space<vmem>>, vector<1x160xf32>
    %238 = arith.addf %236, %237 : vector<1x160xf32>
    %c0_150 = arith.constant 0 : index
    %c0_151 = arith.constant 0 : index
    %c0_152 = arith.constant 0 : index
    %239 = vector.load %arg17[%c0_150, %c0_151, %c0_152] : memref<1x1x160xf32, #tpu.memory_space<vmem>>, vector<1x1x160xf32>
    %240 = vector.shape_cast %239 : vector<1x1x160xf32> to vector<1x160xf32>
    %241 = vector.shape_cast %238 : vector<1x160xf32> to vector<1x1x160xf32>
    tpu.vector_store %arg17[%c0_150, %c0_151, %c0_152], %241 {strides = array<i32>} : memref<1x1x160xf32, #tpu.memory_space<vmem>>, vector<1x1x160xf32>,
    return
  }
  func.func @transform_0(%arg0: i32) -> (i32, i32, i32) {
    %c0_i32 = arith.constant 0 : i32
    %c0_i32_0 = arith.constant 0 : i32
    %c0_i32_1 = arith.constant 0 : i32
    return %arg0, %c0_i32, %c0_i32_0 : i32, i32, i32
  }
  func.func @transform_1(%arg0: i32) -> (i32, i32, i32) {
    %c0_i32 = arith.constant 0 : i32
    %c0_i32_0 = arith.constant 0 : i32
    %c0_i32_1 = arith.constant 0 : i32
    %c0_i32_2 = arith.constant 0 : i32
    return %c0_i32, %c0_i32_0, %c0_i32_1 : i32, i32, i32
  }
  func.func @transform_2(%arg0: i32) -> (i32, i32) {
    %c0_i32 = arith.constant 0 : i32
    %c0_i32_0 = arith.constant 0 : i32
    %c0_i32_1 = arith.constant 0 : i32
    return %c0_i32, %c0_i32_0 : i32, i32
  }
  func.func @transform_3(%arg0: i32) -> (i32, i32) {
    %c0_i32 = arith.constant 0 : i32
    %c0_i32_0 = arith.constant 0 : i32
    %c0_i32_1 = arith.constant 0 : i32
    return %c0_i32, %c0_i32_0 : i32, i32
  }
  func.func @transform_4(%arg0: i32) -> (i32, i32) {
    %c0_i32 = arith.constant 0 : i32
    %c0_i32_0 = arith.constant 0 : i32
    %c0_i32_1 = arith.constant 0 : i32
    return %c0_i32, %c0_i32_0 : i32, i32
  }
  func.func @transform_5(%arg0: i32) -> (i32, i32) {
    %c0_i32 = arith.constant 0 : i32
    %c0_i32_0 = arith.constant 0 : i32
    %c0_i32_1 = arith.constant 0 : i32
    return %c0_i32, %c0_i32_0 : i32, i32
  }
  func.func @transform_6(%arg0: i32) -> (i32, i32) {
    %c0_i32 = arith.constant 0 : i32
    %c0_i32_0 = arith.constant 0 : i32
    %c0_i32_1 = arith.constant 0 : i32
    return %c0_i32, %c0_i32_0 : i32, i32
  }
  func.func @transform_7(%arg0: i32) -> (i32, i32) {
    %c0_i32 = arith.constant 0 : i32
    %c0_i32_0 = arith.constant 0 : i32
    %c0_i32_1 = arith.constant 0 : i32
    return %c0_i32, %c0_i32_0 : i32, i32
  }
  func.func @transform_8(%arg0: i32) -> (i32, i32) {
    %c0_i32 = arith.constant 0 : i32
    %c0_i32_0 = arith.constant 0 : i32
    %c0_i32_1 = arith.constant 0 : i32
    return %c0_i32, %c0_i32_0 : i32, i32
  }
  func.func @transform_9(%arg0: i32) -> (i32, i32) {
    %c0_i32 = arith.constant 0 : i32
    %c0_i32_0 = arith.constant 0 : i32
    %c0_i32_1 = arith.constant 0 : i32
    return %c0_i32, %c0_i32_0 : i32, i32
  }
  func.func @transform_10(%arg0: i32) -> (i32, i32) {
    %c0_i32 = arith.constant 0 : i32
    %c0_i32_0 = arith.constant 0 : i32
    %c0_i32_1 = arith.constant 0 : i32
    return %c0_i32, %c0_i32_0 : i32, i32
  }
  func.func @transform_11(%arg0: i32) -> (i32, i32) {
    %c0_i32 = arith.constant 0 : i32
    %c0_i32_0 = arith.constant 0 : i32
    %c0_i32_1 = arith.constant 0 : i32
    return %c0_i32, %c0_i32_0 : i32, i32
  }
  func.func @transform_12(%arg0: i32) -> (i32, i32) {
    %c0_i32 = arith.constant 0 : i32
    %c0_i32_0 = arith.constant 0 : i32
    %c0_i32_1 = arith.constant 0 : i32
    return %c0_i32, %c0_i32_0 : i32, i32
  }
  func.func @transform_13(%arg0: i32) -> (i32, i32) {
    %c0_i32 = arith.constant 0 : i32
    %c0_i32_0 = arith.constant 0 : i32
    %c0_i32_1 = arith.constant 0 : i32
    return %c0_i32, %c0_i32_0 : i32, i32
  }
  func.func @transform_14(%arg0: i32) -> (i32, i32) {
    %c0_i32 = arith.constant 0 : i32
    %c0_i32_0 = arith.constant 0 : i32
    %c0_i32_1 = arith.constant 0 : i32
    return %c0_i32, %c0_i32_0 : i32, i32
  }
  func.func @transform_15(%arg0: i32) -> (i32, i32) {
    %c0_i32 = arith.constant 0 : i32
    %c0_i32_0 = arith.constant 0 : i32
    %c0_i32_1 = arith.constant 0 : i32
    return %c0_i32, %c0_i32_0 : i32, i32
  }
  func.func @transform_16(%arg0: i32) -> (i32, i32, i32) {
    %c0_i32 = arith.constant 0 : i32
    %c0_i32_0 = arith.constant 0 : i32
    %c0_i32_1 = arith.constant 0 : i32
    return %arg0, %c0_i32, %c0_i32_0 : i32, i32, i32
  }
}

</mosaic_0001>

<llo_original>
// kernel: tile.98
$region0: #{tile.98}
  #allocation0 [shape = 's32[1]{0}', space=sflag, size = 0x4, scoped, tag = 'scoped memory for tile.98']
  %s0 = inlined_call_operand.vmem [shape: f32[16], index: 0, kind: input, shape index: {}]
  %s1 = inlined_call_operand.vmem [shape: f32[16,16], index: 1, kind: output, shape index: {}]
  // Predicated region
  $region2: #{tile.98} parent=0 // pred_check
    _
  $region3: #{tile.98} parent=0 // pred_check_branch
    %3 = sbr.rel (0) target = $region5
  $region4: #{tile.98} parent=0 // pred_region
    _
  $region5: #{tile.98} parent=0 // pred_fallthru
    _
  %v4 = vld [vmem:[%s0] ss:$0 sm:$0xff]
  %5 = vst [vmem:[%s1] sm:$0xff] %v4
  %s6 = scalar_lea.vmem %s1, 8
  %7 = vst [vmem:[%s6] sm:$0xff] %v4

// kernel: tile.107
$region0: #{tile.107}
  %s0 = inlined_call_operand.vmem [shape: f32[16,16], index: 0, kind: input, shape index: {}]
  %s1 = inlined_call_operand.vmem [shape: f32[1,256], index: 1, kind: output, shape index: {}]
  $region1: #{tile.107} parent=0
    #allocation0 [shape = 'u8[8192]{0}', space=vmem, size = 0x2000, scoped, tag = 'scoped mem for output reshape']
    %s2 = smov 3
    %v3 = vld [vmem:[%s0] ss:$8 sm:%s2]
    %vm4 = vcmask 130048
    %5 = vst.msk [vmem:[#allocation0] ss:$8 sm:$0x3] %vm4, %v3
    %s6 = scalar_lea.vmem %s0, 7
    %s7 = smov 3
    %v8 = vld [vmem:[%s6] ss:$8 sm:%s7]
    %9 = vrot.lane.b32.xlu0 %v8, 112
    %v10 = vpop.permute.xlu0 %9
    %vm11 = vcmask 1048448
    %12 = vst.msk [vmem:[#allocation0] ss:$8 sm:$0x3] %vm11, %v10
    %s13 = scalar_lea.vmem %s0, 6
    %s14 = smov 3
    %v15 = vld [vmem:[%s13] ss:$8 sm:%s14]
    %16 = vrot.lane.b32.xlu0 %v15, 96
    %v17 = vpop.permute.xlu0 %16
    %vm18 = vcmask 917248
    %19 = vst.msk [vmem:[#allocation0] ss:$8 sm:$0x3] %vm18, %v17
    %s20 = scalar_lea.vmem %s0, 5
    %s21 = smov 3
    %v22 = vld [vmem:[%s20] ss:$8 sm:%s21]
    %23 = vrot.lane.b32.xlu0 %v22, 80
    %v24 = vpop.permute.xlu0 %23
    %vm25 = vcmask 786048
    %26 = vst.msk [vmem:[#allocation0] ss:$8 sm:$0x3] %vm25, %v24
    %s27 = scalar_lea.vmem %s0, 4
    %s28 = smov 3
    %v29 = vld [vmem:[%s27] ss:$8 sm:%s28]
    %30 = vrot.lane.b32.xlu0 %v29, 64
    %v31 = vpop.permute.xlu0 %30
    %vm32 = vcmask 654848
    %33 = vst.msk [vmem:[#allocation0] ss:$8 sm:$0x3] %vm32, %v31
    %s34 = scalar_lea.vmem %s0, 3
    %s35 = smov 3
    %v36 = vld [vmem:[%s34] ss:$8 sm:%s35]
    %37 = vrot.lane.b32.xlu0 %v36, 48
    %v38 = vpop.permute.xlu0 %37
    %vm39 = vcmask 523648
    %40 = vst.msk [vmem:[#allocation0] ss:$8 sm:$0x3] %vm39, %v38
    %s41 = scalar_lea.vmem %s0, 2
    %s42 = smov 3
    %v43 = vld [vmem:[%s41] ss:$8 sm:%s42]
    %44 = vrot.lane.b32.xlu0 %v43, 32
    %v45 = vpop.permute.xlu0 %44
    %vm46 = vcmask 392448
    %47 = vst.msk [vmem:[#allocation0] ss:$8 sm:$0x3] %vm46, %v45
    %s48 = scalar_lea.vmem %s0, 1
    %s49 = smov 3
    %v50 = vld [vmem:[%s48] ss:$8 sm:%s49]
    %51 = vrot.lane.b32.xlu0 %v50, 16
    %v52 = vpop.permute.xlu0 %51
    %vm53 = vcmask 261248
    %54 = vst.msk [vmem:[#allocation0] ss:$8 sm:$0x3] %vm53, %v52
    %s56 = sshllo.u32 0, 1
    %v58 = vld [vmem:[#allocation0] sm:%s56]
    %s59 = sshllo.u32 0, 1
    %60 = vst [vmem:[%s1] sm:%s59] %v58
    %s61 = scalar_lea.vmem [#allocation0], 8
    %v62 = vld [vmem:[%s61] sm:%s56]
    %s63 = sshllo.u32 0, 1
    %s64 = scalar_lea.vmem %s1, 1
    %65 = vst [vmem:[%s64] sm:%s63] %v62

// kernel: tile.72
$region0: #{tile.72}
  %s0 = inlined_call_operand.vmem [shape: f32[16,8], index: 0, kind: input, shape index: {}]
  %s1 = inlined_call_operand.vmem [shape: f32[1,128], index: 1, kind: output, shape index: {}]
  $region1: #{tile.72} parent=0
    #allocation0 [shape = 'u8[4096]{0}', space=vmem, size = 0x1000, scoped, tag = 'scoped mem for output reshape']
    %v2 = vld [vmem:[%s0] sm:$0x1]
    %vm3 = vcmask 64512
    %4 = vst.msk [vmem:[#allocation0] sm:$0x1] %vm3, %v2
    %s5 = scalar_lea.vmem %s0, 15
    %v6 = vld [vmem:[%s5] sm:$0x1]
    %7 = vrot.lane.b32.xlu0 %v6, 120
    %v8 = vpop.permute.xlu0 %7
    %vm9 = vcmask 1048512
    %10 = vst.msk [vmem:[#allocation0] sm:$0x1] %vm9, %v8
    %s11 = scalar_lea.vmem %s0, 14
    %v12 = vld [vmem:[%s11] sm:$0x1]
    %13 = vrot.lane.b32.xlu0 %v12, 112
    %v14 = vpop.permute.xlu0 %13
    %vm15 = vcmask 982912
    %16 = vst.msk [vmem:[#allocation0] sm:$0x1] %vm15, %v14
    %s17 = scalar_lea.vmem %s0, 13
    %v18 = vld [vmem:[%s17] sm:$0x1]
    %19 = vrot.lane.b32.xlu0 %v18, 104
    %v20 = vpop.permute.xlu0 %19
    %vm21 = vcmask 917312
    %22 = vst.msk [vmem:[#allocation0] sm:$0x1] %vm21, %v20
    %s23 = scalar_lea.vmem %s0, 12
    %v24 = vld [vmem:[%s23] sm:$0x1]
    %25 = vrot.lane.b32.xlu0 %v24, 96
    %v26 = vpop.permute.xlu0 %25
    %vm27 = vcmask 851712
    %28 = vst.msk [vmem:[#allocation0] sm:$0x1] %vm27, %v26
    %s29 = scalar_lea.vmem %s0, 11
    %v30 = vld [vmem:[%s29] sm:$0x1]
    %31 = vrot.lane.b32.xlu0 %v30, 88
    %v32 = vpop.permute.xlu0 %31
    %vm33 = vcmask 786112
    %34 = vst.msk [vmem:[#allocation0] sm:$0x1] %vm33, %v32
    %s35 = scalar_lea.vmem %s0, 10
    %v36 = vld [vmem:[%s35] sm:$0x1]
    %37 = vrot.lane.b32.xlu0 %v36, 80
    %v38 = vpop.permute.xlu0 %37
    %vm39 = vcmask 720512
    %40 = vst.msk [vmem:[#allocation0] sm:$0x1] %vm39, %v38
    %s41 = scalar_lea.vmem %s0, 9
    %v42 = vld [vmem:[%s41] sm:$0x1]
    %43 = vrot.lane.b32.xlu0 %v42, 72
    %v44 = vpop.permute.xlu0 %43
    %vm45 = vcmask 654912
    %46 = vst.msk [vmem:[#allocation0] sm:$0x1] %vm45, %v44
    %s47 = scalar_lea.vmem %s0, 8
    %v48 = vld [vmem:[%s47] sm:$0x1]
    %49 = vrot.lane.b32.xlu0 %v48, 64
    %v50 = vpop.permute.xlu0 %49
    %vm51 = vcmask 589312
    %52 = vst.msk [vmem:[#allocation0] sm:$0x1] %vm51, %v50
    %s53 = scalar_lea.vmem %s0, 7
    %v54 = vld [vmem:[%s53] sm:$0x1]
    %55 = vrot.lane.b32.xlu0 %v54, 56
    %v56 = vpop.permute.xlu0 %55
    %vm57 = vcmask 523712
    %58 = vst.msk [vmem:[#allocation0] sm:$0x1] %vm57, %v56
    %s59 = scalar_lea.vmem %s0, 6
    %v60 = vld [vmem:[%s59] sm:$0x1]
    %61 = vrot.lane.b32.xlu0 %v60, 48
    %v62 = vpop.permute.xlu0 %61
    %vm63 = vcmask 458112
    %64 = vst.msk [vmem:[#allocation0] sm:$0x1] %vm63, %v62
    %s65 = scalar_lea.vmem %s0, 5
    %v66 = vld [vmem:[%s65] sm:$0x1]
    %67 = vrot.lane.b32.xlu0 %v66, 40
    %v68 = vpop.permute.xlu0 %67
    %vm69 = vcmask 392512
    %70 = vst.msk [vmem:[#allocation0] sm:$0x1] %vm69, %v68
    %s71 = scalar_lea.vmem %s0, 4
    %v72 = vld [vmem:[%s71] sm:$0x1]
    %73 = vrot.lane.b32.xlu0 %v72, 32
    %v74 = vpop.permute.xlu0 %73
    %vm75 = vcmask 326912
    %76 = vst.msk [vmem:[#allocation0] sm:$0x1] %vm75, %v74
    %s77 = scalar_lea.vmem %s0, 3
    %v78 = vld [vmem:[%s77] sm:$0x1]
    %79 = vrot.lane.b32.xlu0 %v78, 24
    %v80 = vpop.permute.xlu0 %79
    %vm81 = vcmask 261312
    %82 = vst.msk [vmem:[#allocation0] sm:$0x1] %vm81, %v80
    %s83 = scalar_lea.vmem %s0, 2
    %v84 = vld [vmem:[%s83] sm:$0x1]
    %85 = vrot.lane.b32.xlu0 %v84, 16
    %v86 = vpop.permute.xlu0 %85
    %vm87 = vcmask 195712
    %88 = vst.msk [vmem:[#allocation0] sm:$0x1] %vm87, %v86
    %s89 = scalar_lea.vmem %s0, 1
    %v90 = vld [vmem:[%s89] sm:$0x1]
    %91 = vrot.lane.b32.xlu0 %v90, 8
    %v92 = vpop.permute.xlu0 %91
    %vm93 = vcmask 130112
    %94 = vst.msk [vmem:[#allocation0] sm:$0x1] %vm93, %v92
    %s96 = sshllo.u32 0, 1
    %v98 = vld [vmem:[#allocation0] sm:%s96]
    %s99 = sshllo.u32 0, 1
    %100 = vst [vmem:[%s1] sm:%s99] %v98

// kernel: tile.118
$region0: #{tile.118}
  #allocation0 [shape = 's32[1]{0}', space=sflag, size = 0x4, scoped, tag = 'scoped memory for tile.118']
  %s0 = inlined_call_operand.vmem [shape: f32[10], index: 0, kind: input, shape index: {}]
  %s1 = inlined_call_operand.vmem [shape: f32[16,10], index: 1, kind: output, shape index: {}]
  // Predicated region
  $region2: #{tile.118} parent=0 // pred_check
    _
  $region3: #{tile.118} parent=0 // pred_check_branch
    %3 = sbr.rel (0) target = $region5
  $region4: #{tile.118} parent=0 // pred_region
    _
  $region5: #{tile.118} parent=0 // pred_fallthru
    _
  %v4 = vld [vmem:[%s0] ss:$0 sm:$0xff]
  %5 = vst [vmem:[%s1] sm:$0xff] %v4
  %s6 = scalar_lea.vmem %s1, 8
  %7 = vst [vmem:[%s6] sm:$0xff] %v4

// kernel: tile.119
$region0: #{tile.119}
  %s0 = inlined_call_operand.vmem [shape: f32[16,10], index: 0, kind: input, shape index: {}]
  %s1 = inlined_call_operand.vmem [shape: f32[1,160], index: 1, kind: output, shape index: {}]
  $region1: #{tile.119} parent=0
    #allocation0 [shape = 'u8[8192]{0}', space=vmem, size = 0x2000, scoped, tag = 'scoped mem for output reshape']
    %v2 = vld [vmem:[%s0] sm:$0x1]
    %vm3 = vcmask 80896
    %4 = vst.msk [vmem:[#allocation0] sm:$0x1] %vm3, %v2
    %s5 = scalar_lea.vmem %s0, 12
    %v6 = vld [vmem:[%s5] sm:$0x1]
    %s7 = scalar_lea.vmem %s0, 12
    %v8 = vld [vmem:[%s7] sm:$0x1]
    %vm9 = vcmask 64512
    %v10 = vsel %vm9, %v8, %v6
    %11 = vrot.lane.b32.xlu0 %v10, 120
    %v12 = vpop.permute.xlu0 %11
    %vm13 = vcmask 15360
    %s14 = scalar_lea.vmem [#allocation0], 8
    %15 = vst.msk [vmem:[%s14] sm:$0x1] %vm13, %v12
    %vm16 = vcmask 1048512
    %17 = vst.msk [vmem:[#allocation0] sm:$0x1] %vm16, %v12
    %s18 = scalar_lea.vmem %s0, 11
    %v19 = vld [vmem:[%s18] sm:$0x1]
    %20 = vrot.lane.b32.xlu0 %v19, 110
    %v21 = vpop.permute.xlu0 %20
    %vm22 = vcmask 982896
    %23 = vst.msk [vmem:[#allocation0] sm:$0x1] %vm22, %v21
    %s24 = scalar_lea.vmem %s0, 10
    %v25 = vld [vmem:[%s24] sm:$0x1]
    %26 = vrot.lane.b32.xlu0 %v25, 100
    %v27 = vpop.permute.xlu0 %26
    %vm28 = vcmask 900896
    %29 = vst.msk [vmem:[#allocation0] sm:$0x1] %vm28, %v27
    %s30 = scalar_lea.vmem %s0, 9
    %v31 = vld [vmem:[%s30] sm:$0x1]
    %32 = vrot.lane.b32.xlu0 %v31, 90
    %v33 = vpop.permute.xlu0 %32
    %vm34 = vcmask 818896
    %35 = vst.msk [vmem:[#allocation0] sm:$0x1] %vm34, %v33
    %s36 = scalar_lea.vmem %s0, 8
    %v37 = vld [vmem:[%s36] sm:$0x1]
    %38 = vrot.lane.b32.xlu0 %v37, 80
    %v39 = vpop.permute.xlu0 %38
    %vm40 = vcmask 736896
    %41 = vst.msk [vmem:[#allocation0] sm:$0x1] %vm40, %v39
    %s42 = scalar_lea.vmem %s0, 7
    %v43 = vld [vmem:[%s42] sm:$0x1]
    %44 = vrot.lane.b32.xlu0 %v43, 70
    %v45 = vpop.permute.xlu0 %44
    %vm46 = vcmask 654896
    %47 = vst.msk [vmem:[#allocation0] sm:$0x1] %vm46, %v45
    %s48 = scalar_lea.vmem %s0, 6
    %v49 = vld [vmem:[%s48] sm:$0x1]
    %50 = vrot.lane.b32.xlu0 %v49, 60
    %v51 = vpop.permute.xlu0 %50
    %vm52 = vcmask 572896
    %53 = vst.msk [vmem:[#allocation0] sm:$0x1] %vm52, %v51
    %s54 = scalar_lea.vmem %s0, 5
    %v55 = vld [vmem:[%s54] sm:$0x1]
    %56 = vrot.lane.b32.xlu0 %v55, 50
    %v57 = vpop.permute.xlu0 %56
    %vm58 = vcmask 490896
    %59 = vst.msk [vmem:[#allocation0] sm:$0x1] %vm58, %v57
    %s60 = scalar_lea.vmem %s0, 4
    %v61 = vld [vmem:[%s60] sm:$0x1]
    %62 = vrot.lane.b32.xlu0 %v61, 40
    %v63 = vpop.permute.xlu0 %62
    %vm64 = vcmask 408896
    %65 = vst.msk [vmem:[#allocation0] sm:$0x1] %vm64, %v63
    %s66 = scalar_lea.vmem %s0, 3
    %v67 = vld [vmem:[%s66] sm:$0x1]
    %68 = vrot.lane.b32.xlu0 %v67, 30
    %v69 = vpop.permute.xlu0 %68
    %vm70 = vcmask 326896
    %71 = vst.msk [vmem:[#allocation0] sm:$0x1] %vm70, %v69
    %s72 = scalar_lea.vmem %s0, 15
    %v73 = vld [vmem:[%s72] sm:$0x1]
    %74 = vrot.lane.b32.xlu0 %v73, 22
    %v75 = vpop.permute.xlu0 %74
    %vm76 = vcmask 261296
    %s77 = scalar_lea.vmem [#allocation0], 8
    %78 = vst.msk [vmem:[%s77] sm:$0x1] %vm76, %v75
    %s79 = scalar_lea.vmem %s0, 2
    %v80 = vld [vmem:[%s79] sm:$0x1]
    %81 = vrot.lane.b32.xlu0 %v80, 20
    %v82 = vpop.permute.xlu0 %81
    %vm83 = vcmask 244896
    %84 = vst.msk [vmem:[#allocation0] sm:$0x1] %vm83, %v82
    %s85 = scalar_lea.vmem %s0, 14
    %v86 = vld [vmem:[%s85] sm:$0x1]
    %87 = vrot.lane.b32.xlu0 %v86, 12
    %v88 = vpop.permute.xlu0 %87
    %vm89 = vcmask 179296
    %s90 = scalar_lea.vmem [#allocation0], 8
    %91 = vst.msk [vmem:[%s90] sm:$0x1] %vm89, %v88
    %s92 = scalar_lea.vmem %s0, 1
    %v93 = vld [vmem:[%s92] sm:$0x1]
    %94 = vrot.lane.b32.xlu0 %v93, 10
    %v95 = vpop.permute.xlu0 %94
    %vm96 = vcmask 162896
    %97 = vst.msk [vmem:[#allocation0] sm:$0x1] %vm96, %v95
    %s98 = scalar_lea.vmem %s0, 13
    %v99 = vld [vmem:[%s98] sm:$0x1]
    %100 = vrot.lane.b32.xlu0 %v99, 2
    %v101 = vpop.permute.xlu0 %100
    %vm102 = vcmask 97296
    %s103 = scalar_lea.vmem [#allocation0], 8
    %104 = vst.msk [vmem:[%s103] sm:$0x1] %vm102, %v101
    %s106 = sshllo.u32 0, 1
    %v108 = vld [vmem:[#allocation0] sm:%s106]
    %s109 = sshllo.u32 0, 1
    %110 = vst [vmem:[%s1] sm:%s109] %v108
    %s111 = scalar_lea.vmem [#allocation0], 8
    %v112 = vld [vmem:[%s111] sm:%s106]
    %s113 = sshllo.u32 0, 1
    %s114 = scalar_lea.vmem %s1, 1
    %115 = vst [vmem:[%s114] sm:%s113] %v112

// kernel: forward.1
$region0: #{forward.1}
  #allocation0 [shape = 'u32[]', space=smem, size = 0x4, offset = 0x4, fixed_abs, tag = 'smem constant byte address 0x4 - core index']
  #allocation1 [shape = 'u32[144,128]{1,0:T(1,128)}', space=vmem, size = 0x12000, scoped, tag = 'internal scratch']
  #allocation2 [shape = 'f32[304,16]{1,0:T(8,128)}', space=vmem, size = 0x26000, scoped, tag = 'scratch operand']
  #allocation3 [shape = 'f32[96,128]{1,0:T(8,128)}', space=vmem, size = 0xc000, scoped, tag = 'scratch operand']
  #allocation4 [shape = 'f32[32,128]{1,0:T(8,128)}', space=vmem, size = 0x4000, scoped, tag = 'scratch operand']
  %s0 = inlined_call_operand.vmem [shape: f32[2,256,16], index: 0, kind: input, shape index: {}]
  %s1 = inlined_call_operand.vmem [shape: f32[9,16,128], index: 1, kind: input, shape index: {}]
  %s2 = inlined_call_operand.vmem [shape: f32[3,128], index: 2, kind: input, shape index: {}]
  %s3 = inlined_call_operand.vmem [shape: f32[256,256], index: 3, kind: input, shape index: {}]
  %s4 = inlined_call_operand.vmem [shape: f32[1152,256], index: 4, kind: input, shape index: {}]
  %s5 = inlined_call_operand.vmem [shape: f32[3,256], index: 5, kind: input, shape index: {}]
  %s6 = inlined_call_operand.vmem [shape: f32[64,64], index: 6, kind: input, shape index: {}]
  %s7 = inlined_call_operand.vmem [shape: f32[256,128], index: 7, kind: input, shape index: {}]
  %s8 = inlined_call_operand.vmem [shape: f32[1,128], index: 8, kind: input, shape index: {}]
  %s9 = inlined_call_operand.vmem [shape: f32[1152,256], index: 9, kind: input, shape index: {}]
  %s10 = inlined_call_operand.vmem [shape: f32[3,256], index: 10, kind: input, shape index: {}]
  %s11 = inlined_call_operand.vmem [shape: f32[16,16], index: 11, kind: input, shape index: {}]
  %s12 = inlined_call_operand.vmem [shape: f32[256,128], index: 12, kind: input, shape index: {}]
  %s13 = inlined_call_operand.vmem [shape: f32[1,128], index: 13, kind: input, shape index: {}]
  %s14 = inlined_call_operand.vmem [shape: f32[128,160], index: 14, kind: input, shape index: {}]
  %s15 = inlined_call_operand.vmem [shape: f32[1,160], index: 15, kind: input, shape index: {}]
  %s16 = inlined_call_operand.vmem [shape: f32[2,1,160], index: 16, kind: output, shape index: {}]
  %s17 = sld [smem:[#allocation0]]
  $region97: #{forward.1} parent=0
    _
  %s19 = ssub.s32 1, %s17
  %s20 = scalar_select 0, %s19, %s17
  loop: start=0, step=1, limit=4
  $region2: #{forward.1} parent=0 // loop_pre_header
    _
  $region3: #{forward.1} parent=0 // loop_header
    %s22 = sphi 0, %s26
    %p23 = scmp.ge.s32.totalorder %s22, 4
    %s32 = sphi 0, %s34
    %s35 = sphi 0, %s32
    %s36 = sphi 0, %s35
    %s52 = sphi 0, %s36
    %s56 = sphi 0, %s56
    %s58 = sphi 0, %s56
    %s59 = sphi 0, %s58
    %s73 = sphi 0, %s59
    %s77 = sphi 0, %s77
    %s79 = sphi 0, %s77
    %s80 = sphi 0, %s79
    %s94 = sphi 0, %s80
    %s98 = sphi 0, %s98
    %s100 = sphi 0, %s98
    %s101 = sphi 0, %s100
    %s115 = sphi 0, %s101
    %s119 = sphi 0, %s119
    %s121 = sphi 0, %s119
    %s122 = sphi 0, %s121
    %s136 = sphi 0, %s122
    %s140 = sphi 0, %s140
    %s142 = sphi 0, %s140
    %s143 = sphi 0, %s142
    %s157 = sphi 0, %s143
    %s161 = sphi 0, %s161
    %s163 = sphi 0, %s161
    %s164 = sphi 0, %s163
    %s178 = sphi 0, %s164
    %s182 = sphi 0, %s182
    %s184 = sphi 0, %s182
    %s185 = sphi 0, %s184
    %s199 = sphi 0, %s185
    %s203 = sphi 0, %s203
    %s205 = sphi 0, %s203
    %s206 = sphi 0, %s205
    %s220 = sphi 0, %s206
    %s224 = sphi 0, %s224
    %s226 = sphi 0, %s224
    %s227 = sphi 0, %s226
    %s241 = sphi 0, %s227
    %s245 = sphi 0, %s245
    %s247 = sphi 0, %s245
    %s248 = sphi 0, %s247
    %s262 = sphi 0, %s248
    %s266 = sphi 0, %s266
    %s268 = sphi 0, %s266
    %s269 = sphi 0, %s268
    %s283 = sphi 0, %s269
    %s287 = sphi 0, %s287
    %s289 = sphi 0, %s287
    %s290 = sphi 0, %s289
    %s304 = sphi 0, %s290
    %s308 = sphi 0, %s308
    %s310 = sphi 0, %s308
    %s311 = sphi 0, %s310
    %s325 = sphi 0, %s311
    %s329 = sphi 0, %s329
    %s331 = sphi 0, %s329
    %s332 = sphi 0, %s331
    %s346 = sphi 0, %s332
    %s350 = sphi 0, %s350
    %s352 = sphi 0, %s350
    %s353 = sphi 0, %s352
    %s367 = sphi 0, %s353
    %s373 = sphi 0, %s375
    %s376 = sphi 0, %s373
    %s377 = sphi 0, %s376
    %s393 = sphi 0, %s377
  $region4: #{forward.1} parent=0 // loop_header_branch
    %25 = sbr.rel (%p23) target = $region8
  $region5: #{forward.1} parent=0 // loop_body
    %s27 = ssub.s32 %s22, 1
    %s28 = ssub.s32 %s22, 2
    %s29 = sadd.s32 %s22, 1
    %s30 = ssub.s32 %s22, %s29
    %p31 = scmp.eq.s32.totalorder %s30, 0
    %s33 = sadd.s32 %s32, 1
    %s34 = scalar_select %p31, %s32, %s33
    %p37 = pneg %p31
    %p38 = scmp.eq.s32.totalorder %s22, 1
    %p39 = por %p37, %p38
    %p40 = scmp.ne.s32.totalorder %s32, %s35
    %p41 = scmp.eq.s32.totalorder %s22, 0
    %p42 = por %p40, %p41
    %p43 = scmp.ne.s32.totalorder %s32, %s35
    %p44 = scmp.eq.s32.totalorder %s27, 1
    %p45 = por %p43, %p44
    %p46 = scmp.ne.s32.totalorder %s35, %s36
    %p47 = scmp.eq.s32.totalorder %s27, 0
    %p48 = por %p46, %p47
    %p49 = scmp.ne.s32.totalorder %s35, %s36
    %p50 = scmp.eq.s32.totalorder %s28, 1
    %p51 = por %p49, %p50
    %p53 = scmp.ne.s32.totalorder %s36, %s52
    %p54 = scmp.eq.s32.totalorder %s28, 0
    %p55 = por %p53, %p54
    %s57 = sadd.s32 %s56, 1
    %p60 = scmp.eq.s32.totalorder %s22, 1
    %p61 = scmp.ne.s32.totalorder %s56, %s58
    %p62 = scmp.eq.s32.totalorder %s22, 0
    %p63 = por %p61, %p62
    %p64 = scmp.ne.s32.totalorder %s56, %s58
    %p65 = scmp.eq.s32.totalorder %s27, 1
    %p66 = por %p64, %p65
    %p67 = scmp.ne.s32.totalorder %s58, %s59
    %p68 = scmp.eq.s32.totalorder %s27, 0
    %p69 = por %p67, %p68
    %p70 = scmp.ne.s32.totalorder %s58, %s59
    %p71 = scmp.eq.s32.totalorder %s28, 1
    %p72 = por %p70, %p71
    %p74 = scmp.ne.s32.totalorder %s59, %s73
    %p75 = scmp.eq.s32.totalorder %s28, 0
    %p76 = por %p74, %p75
    %s78 = sadd.s32 %s77, 1
    %p81 = scmp.eq.s32.totalorder %s22, 1
    %p82 = scmp.ne.s32.totalorder %s77, %s79
    %p83 = scmp.eq.s32.totalorder %s22, 0
    %p84 = por %p82, %p83
    %p85 = scmp.ne.s32.totalorder %s77, %s79
    %p86 = scmp.eq.s32.totalorder %s27, 1
    %p87 = por %p85, %p86
    %p88 = scmp.ne.s32.totalorder %s79, %s80
    %p89 = scmp.eq.s32.totalorder %s27, 0
    %p90 = por %p88, %p89
    %p91 = scmp.ne.s32.totalorder %s79, %s80
    %p92 = scmp.eq.s32.totalorder %s28, 1
    %p93 = por %p91, %p92
    %p95 = scmp.ne.s32.totalorder %s80, %s94
    %p96 = scmp.eq.s32.totalorder %s28, 0
    %p97 = por %p95, %p96
    %s99 = sadd.s32 %s98, 1
    %p102 = scmp.eq.s32.totalorder %s22, 1
    %p103 = scmp.ne.s32.totalorder %s98, %s100
    %p104 = scmp.eq.s32.totalorder %s22, 0
    %p105 = por %p103, %p104
    %p106 = scmp.ne.s32.totalorder %s98, %s100
    %p107 = scmp.eq.s32.totalorder %s27, 1
    %p108 = por %p106, %p107
    %p109 = scmp.ne.s32.totalorder %s100, %s101
    %p110 = scmp.eq.s32.totalorder %s27, 0
    %p111 = por %p109, %p110
    %p112 = scmp.ne.s32.totalorder %s100, %s101
    %p113 = scmp.eq.s32.totalorder %s28, 1
    %p114 = por %p112, %p113
    %p116 = scmp.ne.s32.totalorder %s101, %s115
    %p117 = scmp.eq.s32.totalorder %s28, 0
    %p118 = por %p116, %p117
    %s120 = sadd.s32 %s119, 1
    %p123 = scmp.eq.s32.totalorder %s22, 1
    %p124 = scmp.ne.s32.totalorder %s119, %s121
    %p125 = scmp.eq.s32.totalorder %s22, 0
    %p126 = por %p124, %p125
    %p127 = scmp.ne.s32.totalorder %s119, %s121
    %p128 = scmp.eq.s32.totalorder %s27, 1
    %p129 = por %p127, %p128
    %p130 = scmp.ne.s32.totalorder %s121, %s122
    %p131 = scmp.eq.s32.totalorder %s27, 0
    %p132 = por %p130, %p131
    %p133 = scmp.ne.s32.totalorder %s121, %s122
    %p134 = scmp.eq.s32.totalorder %s28, 1
    %p135 = por %p133, %p134
    %p137 = scmp.ne.s32.totalorder %s122, %s136
    %p138 = scmp.eq.s32.totalorder %s28, 0
    %p139 = por %p137, %p138
    %s141 = sadd.s32 %s140, 1
    %p144 = scmp.eq.s32.totalorder %s22, 1
    %p145 = scmp.ne.s32.totalorder %s140, %s142
    %p146 = scmp.eq.s32.totalorder %s22, 0
    %p147 = por %p145, %p146
    %p148 = scmp.ne.s32.totalorder %s140, %s142
    %p149 = scmp.eq.s32.totalorder %s27, 1
    %p150 = por %p148, %p149
    %p151 = scmp.ne.s32.totalorder %s142, %s143
    %p152 = scmp.eq.s32.totalorder %s27, 0
    %p153 = por %p151, %p152
    %p154 = scmp.ne.s32.totalorder %s142, %s143
    %p155 = scmp.eq.s32.totalorder %s28, 1
    %p156 = por %p154, %p155
    %p158 = scmp.ne.s32.totalorder %s143, %s157
    %p159 = scmp.eq.s32.totalorder %s28, 0
    %p160 = por %p158, %p159
    %s162 = sadd.s32 %s161, 1
    %p165 = scmp.eq.s32.totalorder %s22, 1
    %p166 = scmp.ne.s32.totalorder %s161, %s163
    %p167 = scmp.eq.s32.totalorder %s22, 0
    %p168 = por %p166, %p167
    %p169 = scmp.ne.s32.totalorder %s161, %s163
    %p170 = scmp.eq.s32.totalorder %s27, 1
    %p171 = por %p169, %p170
    %p172 = scmp.ne.s32.totalorder %s163, %s164
    %p173 = scmp.eq.s32.totalorder %s27, 0
    %p174 = por %p172, %p173
    %p175 = scmp.ne.s32.totalorder %s163, %s164
    %p176 = scmp.eq.s32.totalorder %s28, 1
    %p177 = por %p175, %p176
    %p179 = scmp.ne.s32.totalorder %s164, %s178
    %p180 = scmp.eq.s32.totalorder %s28, 0
    %p181 = por %p179, %p180
    %s183 = sadd.s32 %s182, 1
    %p186 = scmp.eq.s32.totalorder %s22, 1
    %p187 = scmp.ne.s32.totalorder %s182, %s184
    %p188 = scmp.eq.s32.totalorder %s22, 0
    %p189 = por %p187, %p188
    %p190 = scmp.ne.s32.totalorder %s182, %s184
    %p191 = scmp.eq.s32.totalorder %s27, 1
    %p192 = por %p190, %p191
    %p193 = scmp.ne.s32.totalorder %s184, %s185
    %p194 = scmp.eq.s32.totalorder %s27, 0
    %p195 = por %p193, %p194
    %p196 = scmp.ne.s32.totalorder %s184, %s185
    %p197 = scmp.eq.s32.totalorder %s28, 1
    %p198 = por %p196, %p197
    %p200 = scmp.ne.s32.totalorder %s185, %s199
    %p201 = scmp.eq.s32.totalorder %s28, 0
    %p202 = por %p200, %p201
    %s204 = sadd.s32 %s203, 1
    %p207 = scmp.eq.s32.totalorder %s22, 1
    %p208 = scmp.ne.s32.totalorder %s203, %s205
    %p209 = scmp.eq.s32.totalorder %s22, 0
    %p210 = por %p208, %p209
    %p211 = scmp.ne.s32.totalorder %s203, %s205
    %p212 = scmp.eq.s32.totalorder %s27, 1
    %p213 = por %p211, %p212
    %p214 = scmp.ne.s32.totalorder %s205, %s206
    %p215 = scmp.eq.s32.totalorder %s27, 0
    %p216 = por %p214, %p215
    %p217 = scmp.ne.s32.totalorder %s205, %s206
    %p218 = scmp.eq.s32.totalorder %s28, 1
    %p219 = por %p217, %p218
    %p221 = scmp.ne.s32.totalorder %s206, %s220
    %p222 = scmp.eq.s32.totalorder %s28, 0
    %p223 = por %p221, %p222
    %s225 = sadd.s32 %s224, 1
    %p228 = scmp.eq.s32.totalorder %s22, 1
    %p229 = scmp.ne.s32.totalorder %s224, %s226
    %p230 = scmp.eq.s32.totalorder %s22, 0
    %p231 = por %p229, %p230
    %p232 = scmp.ne.s32.totalorder %s224, %s226
    %p233 = scmp.eq.s32.totalorder %s27, 1
    %p234 = por %p232, %p233
    %p235 = scmp.ne.s32.totalorder %s226, %s227
    %p236 = scmp.eq.s32.totalorder %s27, 0
    %p237 = por %p235, %p236
    %p238 = scmp.ne.s32.totalorder %s226, %s227
    %p239 = scmp.eq.s32.totalorder %s28, 1
    %p240 = por %p238, %p239
    %p242 = scmp.ne.s32.totalorder %s227, %s241
    %p243 = scmp.eq.s32.totalorder %s28, 0
    %p244 = por %p242, %p243
    %s246 = sadd.s32 %s245, 1
    %p249 = scmp.eq.s32.totalorder %s22, 1
    %p250 = scmp.ne.s32.totalorder %s245, %s247
    %p251 = scmp.eq.s32.totalorder %s22, 0
    %p252 = por %p250, %p251
    %p253 = scmp.ne.s32.totalorder %s245, %s247
    %p254 = scmp.eq.s32.totalorder %s27, 1
    %p255 = por %p253, %p254
    %p256 = scmp.ne.s32.totalorder %s247, %s248
    %p257 = scmp.eq.s32.totalorder %s27, 0
    %p258 = por %p256, %p257
    %p259 = scmp.ne.s32.totalorder %s247, %s248
    %p260 = scmp.eq.s32.totalorder %s28, 1
    %p261 = por %p259, %p260
    %p263 = scmp.ne.s32.totalorder %s248, %s262
    %p264 = scmp.eq.s32.totalorder %s28, 0
    %p265 = por %p263, %p264
    %s267 = sadd.s32 %s266, 1
    %p270 = scmp.eq.s32.totalorder %s22, 1
    %p271 = scmp.ne.s32.totalorder %s266, %s268
    %p272 = scmp.eq.s32.totalorder %s22, 0
    %p273 = por %p271, %p272
    %p274 = scmp.ne.s32.totalorder %s266, %s268
    %p275 = scmp.eq.s32.totalorder %s27, 1
    %p276 = por %p274, %p275
    %p277 = scmp.ne.s32.totalorder %s268, %s269
    %p278 = scmp.eq.s32.totalorder %s27, 0
    %p279 = por %p277, %p278
    %p280 = scmp.ne.s32.totalorder %s268, %s269
    %p281 = scmp.eq.s32.totalorder %s28, 1
    %p282 = por %p280, %p281
    %p284 = scmp.ne.s32.totalorder %s269, %s283
    %p285 = scmp.eq.s32.totalorder %s28, 0
    %p286 = por %p284, %p285
    %s288 = sadd.s32 %s287, 1
    %p291 = scmp.eq.s32.totalorder %s22, 1
    %p292 = scmp.ne.s32.totalorder %s287, %s289
    %p293 = scmp.eq.s32.totalorder %s22, 0
    %p294 = por %p292, %p293
    %p295 = scmp.ne.s32.totalorder %s287, %s289
    %p296 = scmp.eq.s32.totalorder %s27, 1
    %p297 = por %p295, %p296
    %p298 = scmp.ne.s32.totalorder %s289, %s290
    %p299 = scmp.eq.s32.totalorder %s27, 0
    %p300 = por %p298, %p299
    %p301 = scmp.ne.s32.totalorder %s289, %s290
    %p302 = scmp.eq.s32.totalorder %s28, 1
    %p303 = por %p301, %p302
    %p305 = scmp.ne.s32.totalorder %s290, %s304
    %p306 = scmp.eq.s32.totalorder %s28, 0
    %p307 = por %p305, %p306
    %s309 = sadd.s32 %s308, 1
    %p312 = scmp.eq.s32.totalorder %s22, 1
    %p313 = scmp.ne.s32.totalorder %s308, %s310
    %p314 = scmp.eq.s32.totalorder %s22, 0
    %p315 = por %p313, %p314
    %p316 = scmp.ne.s32.totalorder %s308, %s310
    %p317 = scmp.eq.s32.totalorder %s27, 1
    %p318 = por %p316, %p317
    %p319 = scmp.ne.s32.totalorder %s310, %s311
    %p320 = scmp.eq.s32.totalorder %s27, 0
    %p321 = por %p319, %p320
    %p322 = scmp.ne.s32.totalorder %s310, %s311
    %p323 = scmp.eq.s32.totalorder %s28, 1
    %p324 = por %p322, %p323
    %p326 = scmp.ne.s32.totalorder %s311, %s325
    %p327 = scmp.eq.s32.totalorder %s28, 0
    %p328 = por %p326, %p327
    %s330 = sadd.s32 %s329, 1
    %p333 = scmp.eq.s32.totalorder %s22, 1
    %p334 = scmp.ne.s32.totalorder %s329, %s331
    %p335 = scmp.eq.s32.totalorder %s22, 0
    %p336 = por %p334, %p335
    %p337 = scmp.ne.s32.totalorder %s329, %s331
    %p338 = scmp.eq.s32.totalorder %s27, 1
    %p339 = por %p337, %p338
    %p340 = scmp.ne.s32.totalorder %s331, %s332
    %p341 = scmp.eq.s32.totalorder %s27, 0
    %p342 = por %p340, %p341
    %p343 = scmp.ne.s32.totalorder %s331, %s332
    %p344 = scmp.eq.s32.totalorder %s28, 1
    %p345 = por %p343, %p344
    %p347 = scmp.ne.s32.totalorder %s332, %s346
    %p348 = scmp.eq.s32.totalorder %s28, 0
    %p349 = por %p347, %p348
    %s351 = sadd.s32 %s350, 1
    %p354 = scmp.eq.s32.totalorder %s22, 1
    %p355 = scmp.ne.s32.totalorder %s350, %s352
    %p356 = scmp.eq.s32.totalorder %s22, 0
    %p357 = por %p355, %p356
    %p358 = scmp.ne.s32.totalorder %s350, %s352
    %p359 = scmp.eq.s32.totalorder %s27, 1
    %p360 = por %p358, %p359
    %p361 = scmp.ne.s32.totalorder %s352, %s353
    %p362 = scmp.eq.s32.totalorder %s27, 0
    %p363 = por %p361, %p362
    %p364 = scmp.ne.s32.totalorder %s352, %s353
    %p365 = scmp.eq.s32.totalorder %s28, 1
    %p366 = por %p364, %p365
    %p368 = scmp.ne.s32.totalorder %s353, %s367
    %p369 = scmp.eq.s32.totalorder %s28, 0
    %p370 = por %p368, %p369
    %s371 = ssub.s32 %s22, %s29
    %p372 = scmp.eq.s32.totalorder %s371, 0
    %s374 = sadd.s32 %s373, 1
    %s375 = scalar_select %p372, %s373, %s374
    %p378 = pneg %p372
    %p379 = scmp.eq.s32.totalorder %s22, 1
    %p380 = por %p378, %p379
    %p381 = scmp.ne.s32.totalorder %s373, %s376
    %p382 = scmp.eq.s32.totalorder %s22, 0
    %p383 = por %p381, %p382
    %p384 = scmp.ne.s32.totalorder %s373, %s376
    %p385 = scmp.eq.s32.totalorder %s27, 1
    %p386 = por %p384, %p385
    %p387 = scmp.ne.s32.totalorder %s376, %s377
    %p388 = scmp.eq.s32.totalorder %s27, 0
    %p389 = por %p387, %p388
    %p390 = scmp.ne.s32.totalorder %s376, %s377
    %p391 = scmp.eq.s32.totalorder %s28, 1
    %p392 = por %p390, %p391
    %p394 = scmp.ne.s32.totalorder %s377, %s393
    %p395 = scmp.eq.s32.totalorder %s28, 0
    %p396 = por %p394, %p395
    %p397 = scmp.le.s32.totalorder 1, %s22
    %p398 = scmp.lt.s32.totalorder %s22, 3
    %p399 = pnand %p397, %p398
    %p400 = pneg %p399
    // Predicated region
    $region9: #{forward.1} parent=5 // pred_check
      _
    $region10: #{forward.1} parent=5 // pred_check_branch
      %402 = sbr.rel (%p399) target = $region12
    $region11: #{forward.1} parent=5 // pred_region
      %s403 = ssub.s32 %s22, 1
      // Predicated region
      $region13: #{forward.1} parent=11 // pred_check
        %p404 = pneg %p69
      $region14: #{forward.1} parent=11 // pred_check_branch
        %406 = sbr.rel (%p404) target = $region16
      $region15: #{forward.1} parent=11 // pred_region
        _
      $region16: #{forward.1} parent=11 // pred_fallthru
        _
      // Predicated region
      $region17: #{forward.1} parent=11 // pred_check
        %p407 = pneg %p90
      $region18: #{forward.1} parent=11 // pred_check_branch
        %409 = sbr.rel (%p407) target = $region20
      $region19: #{forward.1} parent=11 // pred_region
        _
      $region20: #{forward.1} parent=11 // pred_fallthru
        _
      // Predicated region
      $region21: #{forward.1} parent=11 // pred_check
        %p410 = pneg %p111
      $region22: #{forward.1} parent=11 // pred_check_branch
        %412 = sbr.rel (%p410) target = $region24
      $region23: #{forward.1} parent=11 // pred_region
        _
      $region24: #{forward.1} parent=11 // pred_fallthru
        _
      // Predicated region
      $region25: #{forward.1} parent=11 // pred_check
        %p413 = pneg %p132
      $region26: #{forward.1} parent=11 // pred_check_branch
        %415 = sbr.rel (%p413) target = $region28
      $region27: #{forward.1} parent=11 // pred_region
        _
      $region28: #{forward.1} parent=11 // pred_fallthru
        _
      // Predicated region
      $region29: #{forward.1} parent=11 // pred_check
        %p416 = pneg %p153
      $region30: #{forward.1} parent=11 // pred_check_branch
        %418 = sbr.rel (%p416) target = $region32
      $region31: #{forward.1} parent=11 // pred_region
        _
      $region32: #{forward.1} parent=11 // pred_fallthru
        _
      // Predicated region
      $region33: #{forward.1} parent=11 // pred_check
        %p419 = pneg %p174
      $region34: #{forward.1} parent=11 // pred_check_branch
        %421 = sbr.rel (%p419) target = $region36
      $region35: #{forward.1} parent=11 // pred_region
        _
      $region36: #{forward.1} parent=11 // pred_fallthru
        _
      // Predicated region
      $region37: #{forward.1} parent=11 // pred_check
        %p422 = pneg %p195
      $region38: #{forward.1} parent=11 // pred_check_branch
        %424 = sbr.rel (%p422) target = $region40
      $region39: #{forward.1} parent=11 // pred_region
        _
      $region40: #{forward.1} parent=11 // pred_fallthru
        _
      // Predicated region
      $region41: #{forward.1} parent=11 // pred_check
        %p425 = pneg %p216
      $region42: #{forward.1} parent=11 // pred_check_branch
        %427 = sbr.rel (%p425) target = $region44
      $region43: #{forward.1} parent=11 // pred_region
        _
      $region44: #{forward.1} parent=11 // pred_fallthru
        _
      // Predicated region
      $region45: #{forward.1} parent=11 // pred_check
        %p428 = pneg %p237
      $region46: #{forward.1} parent=11 // pred_check_branch
        %430 = sbr.rel (%p428) target = $region48
      $region47: #{forward.1} parent=11 // pred_region
        _
      $region48: #{forward.1} parent=11 // pred_fallthru
        _
      // Predicated region
      $region49: #{forward.1} parent=11 // pred_check
        %p431 = pneg %p258
      $region50: #{forward.1} parent=11 // pred_check_branch
        %433 = sbr.rel (%p431) target = $region52
      $region51: #{forward.1} parent=11 // pred_region
        _
      $region52: #{forward.1} parent=11 // pred_fallthru
        _
      // Predicated region
      $region53: #{forward.1} parent=11 // pred_check
        %p434 = pneg %p279
      $region54: #{forward.1} parent=11 // pred_check_branch
        %436 = sbr.rel (%p434) target = $region56
      $region55: #{forward.1} parent=11 // pred_region
        _
      $region56: #{forward.1} parent=11 // pred_fallthru
        _
      // Predicated region
      $region57: #{forward.1} parent=11 // pred_check
        %p437 = pneg %p300
      $region58: #{forward.1} parent=11 // pred_check_branch
        %439 = sbr.rel (%p437) target = $region60
      $region59: #{forward.1} parent=11 // pred_region
        _
      $region60: #{forward.1} parent=11 // pred_fallthru
        _
      // Predicated region
      $region61: #{forward.1} parent=11 // pred_check
        %p440 = pneg %p321
      $region62: #{forward.1} parent=11 // pred_check_branch
        %442 = sbr.rel (%p440) target = $region64
      $region63: #{forward.1} parent=11 // pred_region
        _
      $region64: #{forward.1} parent=11 // pred_fallthru
        _
      // Predicated region
      $region65: #{forward.1} parent=11 // pred_check
        %p443 = pneg %p342
      $region66: #{forward.1} parent=11 // pred_check_branch
        %445 = sbr.rel (%p443) target = $region68
      $region67: #{forward.1} parent=11 // pred_region
        _
      $region68: #{forward.1} parent=11 // pred_fallthru
        _
      // Predicated region
      $region69: #{forward.1} parent=11 // pred_check
        %p446 = pneg %p363
      $region70: #{forward.1} parent=11 // pred_check_branch
        %448 = sbr.rel (%p446) target = $region72
      $region71: #{forward.1} parent=11 // pred_region
        _
      $region72: #{forward.1} parent=11 // pred_fallthru
        _
    $region12: #{forward.1} parent=5 // pred_fallthru
      _
    %p449 = scmp.lt.s32.totalorder %s22, 2
    // Predicated region
    $region73: #{forward.1} parent=5 // pred_check
      %p450 = pneg %p449
    $region74: #{forward.1} parent=5 // pred_check_branch
      %452 = sbr.rel (%p450) target = $region76
    $region75: #{forward.1} parent=5 // pred_region
      // Predicated region
      $region77: #{forward.1} parent=75 // pred_check
        %p453 = pneg %p42
      $region78: #{forward.1} parent=75 // pred_check_branch
        %455 = sbr.rel (%p453) target = $region80
      $region79: #{forward.1} parent=75 // pred_region
        %p456 = scmp.lt.s32.totalorder %s22, 1
        %s457 = scalar_select %p456, %s22, 1
        %s458 = smul.addr %s457, 32
        %s459 = smul.addr %s458, 8
        %s460 = scalar_lea.vmem %s0, %s459
      $region80: #{forward.1} parent=75 // pred_fallthru
        _
    $region76: #{forward.1} parent=5 // pred_fallthru
      _
    %p461 = scmp.le.s32.totalorder 1, %s22
    %p462 = scmp.lt.s32.totalorder %s22, 3
    %p463 = pnand %p461, %p462
    %p464 = pneg %p463
    // Predicated region
    $region81: #{forward.1} parent=5 // pred_check
      _
    $region82: #{forward.1} parent=5 // pred_check_branch
      %466 = sbr.rel (%p463) target = $region84
    $region83: #{forward.1} parent=5 // pred_region
      %s467 = ssub.s32 %s22, 1
      %p468 = scmp.lt.s32.totalorder %s27, 1
      %s469 = scalar_select %p468, %s27, 1
      %s470 = smul.addr %s469, 32
      %s471 = smul.addr %s470, 8
      %s472 = scalar_lea.vmem %s0, %s471
      %p473 = pneg %p48
      %p474 = pneg %p45
      %p475 = pneg %p69
      %p476 = pneg %p66
      %p477 = pneg %p90
      %p478 = pneg %p87
      %p479 = pneg %p111
      %p480 = pneg %p108
      %p481 = pneg %p132
      %p482 = pneg %p129
      %p483 = pneg %p153
      %p484 = pneg %p150
      %p485 = pneg %p174
      %p486 = pneg %p171
      %p487 = pneg %p195
      %p488 = pneg %p192
      %p489 = pneg %p216
      %p490 = pneg %p213
      %p491 = pneg %p237
      %p492 = pneg %p234
      %p493 = pneg %p258
      %p494 = pneg %p255
      %p495 = pneg %p279
      %p496 = pneg %p276
      %p497 = pneg %p300
      %p498 = pneg %p297
      %p499 = pneg %p321
      %p500 = pneg %p318
      %p501 = pneg %p342
      %p502 = pneg %p339
      %p503 = pneg %p363
      %p504 = pneg %p360
      %p505 = pneg %p389
      %p506 = pneg %p386
      %p507 = scmp.lt.s32.totalorder %s27, 1
      %s508 = scalar_select %p507, %s27, 1
      %s509 = smul.addr %s508, 2
      %s510 = scalar_lea.vmem %s16, %s509
      %p511 = scmp.lt.s32.totalorder %s27, 1
      %s512 = scalar_select %p511, %s27, 1
      %s513 = smul.addr %s512, 32
      %s514 = smul.addr %s513, 8
      %s515 = scalar_lea.vmem %s0, %s514
      %p516 = scmp.lt.s32.totalorder %s27, 1
      %s517 = scalar_select %p516, %s27, 1
      %s518 = smul.addr %s517, 2
      %s519 = scalar_lea.vmem %s16, %s518
      %v520 = vld [vmem:[%s515] sm:$0xff]
      %v521 = vld [vmem:[%s515 + $0x8] sm:$0xff]
      %v522 = vld [vmem:[%s515 + $0x10] sm:$0xff]
      %v523 = vld [vmem:[%s515 + $0x18] sm:$0xff]
      %v524 = vld [vmem:[%s515 + $0x20] sm:$0xff]
      %v525 = vld [vmem:[%s515 + $0x28] sm:$0xff]
      %v526 = vld [vmem:[%s515 + $0x30] sm:$0xff]
      %v527 = vld [vmem:[%s515 + $0x38] sm:$0xff]
      %v528 = vld [vmem:[%s515 + $0x40] sm:$0xff]
      %v529 = vld [vmem:[%s515 + $0x48] sm:$0xff]
      %v530 = vld [vmem:[%s515 + $0x50] sm:$0xff]
      %v531 = vld [vmem:[%s515 + $0x58] sm:$0xff]
      %v532 = vld [vmem:[%s515 + $0x60] sm:$0xff]
      %v533 = vld [vmem:[%s515 + $0x68] sm:$0xff]
      %v534 = vld [vmem:[%s515 + $0x70] sm:$0xff]
      %v535 = vld [vmem:[%s515 + $0x78] sm:$0xff]
      %v536 = vld [vmem:[%s515 + $0x80] sm:$0xff]
      %v537 = vld [vmem:[%s515 + $0x88] sm:$0xff]
      %v538 = vld [vmem:[%s515 + $0x90] sm:$0xff]
      %v539 = vld [vmem:[%s515 + $0x98] sm:$0xff]
      %v540 = vld [vmem:[%s515 + $0xa0] sm:$0xff]
      %v541 = vld [vmem:[%s515 + $0xa8] sm:$0xff]
      %v542 = vld [vmem:[%s515 + $0xb0] sm:$0xff]
      %v543 = vld [vmem:[%s515 + $0xb8] sm:$0xff]
      %v544 = vld [vmem:[%s515 + $0xc0] sm:$0xff]
      %v545 = vld [vmem:[%s515 + $0xc8] sm:$0xff]
      %v546 = vld [vmem:[%s515 + $0xd0] sm:$0xff]
      %v547 = vld [vmem:[%s515 + $0xd8] sm:$0xff]
      %v548 = vld [vmem:[%s515 + $0xe0] sm:$0xff]
      %v549 = vld [vmem:[%s515 + $0xe8] sm:$0xff]
      %v550 = vld [vmem:[%s515 + $0xf0] sm:$0xff]
      %v551 = vld [vmem:[%s515 + $0xf8] sm:$0xff]
      %vm552 = vcmask 130048
      %553 = vst.msk [vmem:[#allocation2] sm:$0xff] %vm552, 0.0
      %554 = vst.msk [vmem:[#allocation2 + $0x8] sm:$0xff] %vm552, 0.0
      %555 = vst.msk [vmem:[#allocation2 + $0x10] sm:$0xff] %vm552, 0.0
      %556 = vst.msk [vmem:[#allocation2 + $0x118] sm:$0xff] %vm552, 0.0
      %557 = vst.msk [vmem:[#allocation2 + $0x120] sm:$0xff] %vm552, 0.0
      %558 = vst.msk [vmem:[#allocation2 + $0x128] sm:$0xff] %vm552, 0.0
      %559 = vst.msk [vmem:[#allocation2 + $0x18] sm:$0xff] %vm552, %v520
      %560 = vst.msk [vmem:[#allocation2 + $0x20] sm:$0xff] %vm552, %v521
      %561 = vst.msk [vmem:[#allocation2 + $0x28] sm:$0xff] %vm552, %v522
      %562 = vst.msk [vmem:[#allocation2 + $0x30] sm:$0xff] %vm552, %v523
      %563 = vst.msk [vmem:[#allocation2 + $0x38] sm:$0xff] %vm552, %v524
      %564 = vst.msk [vmem:[#allocation2 + $0x40] sm:$0xff] %vm552, %v525
      %565 = vst.msk [vmem:[#allocation2 + $0x48] sm:$0xff] %vm552, %v526
      %566 = vst.msk [vmem:[#allocation2 + $0x50] sm:$0xff] %vm552, %v527
      %567 = vst.msk [vmem:[#allocation2 + $0x58] sm:$0xff] %vm552, %v528
      %568 = vst.msk [vmem:[#allocation2 + $0x60] sm:$0xff] %vm552, %v529
      %569 = vst.msk [vmem:[#allocation2 + $0x68] sm:$0xff] %vm552, %v530
      %570 = vst.msk [vmem:[#allocation2 + $0x70] sm:$0xff] %vm552, %v531
      %571 = vst.msk [vmem:[#allocation2 + $0x78] sm:$0xff] %vm552, %v532
      %572 = vst.msk [vmem:[#allocation2 + $0x80] sm:$0xff] %vm552, %v533
      %573 = vst.msk [vmem:[#allocation2 + $0x88] sm:$0xff] %vm552, %v534
      %574 = vst.msk [vmem:[#allocation2 + $0x90] sm:$0xff] %vm552, %v535
      %575 = vst.msk [vmem:[#allocation2 + $0x98] sm:$0xff] %vm552, %v536
      %576 = vst.msk [vmem:[#allocation2 + $0xa0] sm:$0xff] %vm552, %v537
      %577 = vst.msk [vmem:[#allocation2 + $0xa8] sm:$0xff] %vm552, %v538
      %578 = vst.msk [vmem:[#allocation2 + $0xb0] sm:$0xff] %vm552, %v539
      %579 = vst.msk [vmem:[#allocation2 + $0xb8] sm:$0xff] %vm552, %v540
      %580 = vst.msk [vmem:[#allocation2 + $0xc0] sm:$0xff] %vm552, %v541
      %581 = vst.msk [vmem:[#allocation2 + $0xc8] sm:$0xff] %vm552, %v542
      %582 = vst.msk [vmem:[#allocation2 + $0xd0] sm:$0xff] %vm552, %v543
      %583 = vst.msk [vmem:[#allocation2 + $0xd8] sm:$0xff] %vm552, %v544
      %584 = vst.msk [vmem:[#allocation2 + $0xe0] sm:$0xff] %vm552, %v545
      %585 = vst.msk [vmem:[#allocation2 + $0xe8] sm:$0xff] %vm552, %v546
      %586 = vst.msk [vmem:[#allocation2 + $0xf0] sm:$0xff] %vm552, %v547
      %587 = vst.msk [vmem:[#allocation2 + $0xf8] sm:$0xff] %vm552, %v548
      %588 = vst.msk [vmem:[#allocation2 + $0x100] sm:$0xff] %vm552, %v549
      %589 = vst.msk [vmem:[#allocation2 + $0x108] sm:$0xff] %vm552, %v550
      %590 = vst.msk [vmem:[#allocation2 + $0x110] sm:$0xff] %vm552, %v551
      %v591 = vlaneseq
      %v592 = vshrl.u32 %v591, 7
      %v593 = vadd.s32 %v592, 8
      %v594 = vadd.s32 %v592, 16
      %v595 = vadd.s32 %v592, 24
      %v596 = vadd.s32 %v592, 32
      %v597 = vadd.s32 %v592, 40
      %v598 = vadd.s32 %v592, 48
      %v599 = vadd.s32 %v592, 56
      %v600 = vadd.s32 %v592, 64
      %v601 = vadd.s32 %v592, 72
      %v602 = vadd.s32 %v592, 80
      %v603 = vadd.s32 %v592, 88
      %v604 = vadd.s32 %v592, 96
      %v605 = vadd.s32 %v592, 104
      %v606 = vadd.s32 %v592, 112
      %v607 = vadd.s32 %v592, 120
      %v608 = vadd.s32 %v592, 128
      %v609 = vadd.s32 %v592, 136
      %v610 = vadd.s32 %v592, 144
      %v611 = vadd.s32 %v592, 152
      %v612 = vadd.s32 %v592, 160
      %v613 = vadd.s32 %v592, 168
      %v614 = vadd.s32 %v592, 176
      %v615 = vadd.s32 %v592, 184
      %v616 = vadd.s32 %v592, 192
      %v617 = vadd.s32 %v592, 200
      %v618 = vadd.s32 %v592, 208
      %v619 = vadd.s32 %v592, 216
      %v620 = vadd.s32 %v592, 224
      %v621 = vadd.s32 %v592, 232
      %v622 = vadd.s32 %v592, 240
      %v623 = vadd.s32 %v592, 248
      %v624 = vand.u32 %v592, 15
      %v625 = vand.u32 %v593, 15
      %v626 = vand.u32 %v594, 15
      %v627 = vand.u32 %v595, 15
      %v628 = vand.u32 %v596, 15
      %v629 = vand.u32 %v597, 15
      %v630 = vand.u32 %v598, 15
      %v631 = vand.u32 %v599, 15
      %v632 = vand.u32 %v600, 15
      %v633 = vand.u32 %v601, 15
      %v634 = vand.u32 %v602, 15
      %v635 = vand.u32 %v603, 15
      %v636 = vand.u32 %v604, 15
      %v637 = vand.u32 %v605, 15
      %v638 = vand.u32 %v606, 15
      %v639 = vand.u32 %v607, 15
      %v640 = vand.u32 %v608, 15
      %v641 = vand.u32 %v609, 15
      %v642 = vand.u32 %v610, 15
      %v643 = vand.u32 %v611, 15
      %v644 = vand.u32 %v612, 15
      %v645 = vand.u32 %v613, 15
      %v646 = vand.u32 %v614, 15
      %v647 = vand.u32 %v615, 15
      %v648 = vand.u32 %v616, 15
      %v649 = vand.u32 %v617, 15
      %v650 = vand.u32 %v618, 15
      %v651 = vand.u32 %v619, 15
      %v652 = vand.u32 %v620, 15
      %v653 = vand.u32 %v621, 15
      %v654 = vand.u32 %v622, 15
      %v655 = vand.u32 %v623, 15
      %vm656 = vcmp.gt.s32.totalorder %v624, 0
      %vm657 = vcmp.gt.s32.totalorder %v625, 0
      %vm658 = vcmp.gt.s32.totalorder %v626, 0
      %vm659 = vcmp.gt.s32.totalorder %v627, 0
      %vm660 = vcmp.gt.s32.totalorder %v628, 0
      %vm661 = vcmp.gt.s32.totalorder %v629, 0
      %vm662 = vcmp.gt.s32.totalorder %v630, 0
      %vm663 = vcmp.gt.s32.totalorder %v631, 0
      %vm664 = vcmp.gt.s32.totalorder %v632, 0
      %vm665 = vcmp.gt.s32.totalorder %v633, 0
      %vm666 = vcmp.gt.s32.totalorder %v634, 0
      %vm667 = vcmp.gt.s32.totalorder %v635, 0
      %vm668 = vcmp.gt.s32.totalorder %v636, 0
      %vm669 = vcmp.gt.s32.totalorder %v637, 0
      %vm670 = vcmp.gt.s32.totalorder %v638, 0
      %vm671 = vcmp.gt.s32.totalorder %v639, 0
      %vm672 = vcmp.gt.s32.totalorder %v640, 0
      %vm673 = vcmp.gt.s32.totalorder %v641, 0
      %vm674 = vcmp.gt.s32.totalorder %v642, 0
      %vm675 = vcmp.gt.s32.totalorder %v643, 0
      %vm676 = vcmp.gt.s32.totalorder %v644, 0
      %vm677 = vcmp.gt.s32.totalorder %v645, 0
      %vm678 = vcmp.gt.s32.totalorder %v646, 0
      %vm679 = vcmp.gt.s32.totalorder %v647, 0
      %vm680 = vcmp.gt.s32.totalorder %v648, 0
      %vm681 = vcmp.gt.s32.totalorder %v649, 0
      %vm682 = vcmp.gt.s32.totalorder %v650, 0
      %vm683 = vcmp.gt.s32.totalorder %v651, 0
      %vm684 = vcmp.gt.s32.totalorder %v652, 0
      %vm685 = vcmp.gt.s32.totalorder %v653, 0
      %vm686 = vcmp.gt.s32.totalorder %v654, 0
      %vm687 = vcmp.gt.s32.totalorder %v655, 0
      %v688 = vsel %vm656, 1, 0
      %v689 = vsel %vm657, 1, 0
      %v690 = vsel %vm658, 1, 0
      %v691 = vsel %vm659, 1, 0
      %v692 = vsel %vm660, 1, 0
      %v693 = vsel %vm661, 1, 0
      %v694 = vsel %vm662, 1, 0
      %v695 = vsel %vm663, 1, 0
      %v696 = vsel %vm664, 1, 0
      %v697 = vsel %vm665, 1, 0
      %v698 = vsel %vm666, 1, 0
      %v699 = vsel %vm667, 1, 0
      %v700 = vsel %vm668, 1, 0
      %v701 = vsel %vm669, 1, 0
      %v702 = vsel %vm670, 1, 0
      %v703 = vsel %vm671, 1, 0
      %v704 = vsel %vm672, 1, 0
      %v705 = vsel %vm673, 1, 0
      %v706 = vsel %vm674, 1, 0
      %v707 = vsel %vm675, 1, 0
      %v708 = vsel %vm676, 1, 0
      %v709 = vsel %vm677, 1, 0
      %v710 = vsel %vm678, 1, 0
      %v711 = vsel %vm679, 1, 0
      %v712 = vsel %vm680, 1, 0
      %v713 = vsel %vm681, 1, 0
      %v714 = vsel %vm682, 1, 0
      %v715 = vsel %vm683, 1, 0
      %v716 = vsel %vm684, 1, 0
      %v717 = vsel %vm685, 1, 0
      %v718 = vsel %vm686, 1, 0
      %v719 = vsel %vm687, 1, 0
      %v720 = vcvt.s32.f32 %v688
      %v721 = vcvt.s32.f32 %v689
      %v722 = vcvt.s32.f32 %v690
      %v723 = vcvt.s32.f32 %v691
      %v724 = vcvt.s32.f32 %v692
      %v725 = vcvt.s32.f32 %v693
      %v726 = vcvt.s32.f32 %v694
      %v727 = vcvt.s32.f32 %v695
      %v728 = vcvt.s32.f32 %v696
      %v729 = vcvt.s32.f32 %v697
      %v730 = vcvt.s32.f32 %v698
      %v731 = vcvt.s32.f32 %v699
      %v732 = vcvt.s32.f32 %v700
      %v733 = vcvt.s32.f32 %v701
      %v734 = vcvt.s32.f32 %v702
      %v735 = vcvt.s32.f32 %v703
      %v736 = vcvt.s32.f32 %v704
      %v737 = vcvt.s32.f32 %v705
      %v738 = vcvt.s32.f32 %v706
      %v739 = vcvt.s32.f32 %v707
      %v740 = vcvt.s32.f32 %v708
      %v741 = vcvt.s32.f32 %v709
      %v742 = vcvt.s32.f32 %v710
      %v743 = vcvt.s32.f32 %v711
      %v744 = vcvt.s32.f32 %v712
      %v745 = vcvt.s32.f32 %v713
      %v746 = vcvt.s32.f32 %v714
      %v747 = vcvt.s32.f32 %v715
      %v748 = vcvt.s32.f32 %v716
      %v749 = vcvt.s32.f32 %v717
      %v750 = vcvt.s32.f32 %v718
      %v751 = vcvt.s32.f32 %v719
      %vm752 = vcmp.lt.s32.totalorder %v624, 15
      %vm753 = vcmp.lt.s32.totalorder %v625, 15
      %vm754 = vcmp.lt.s32.totalorder %v626, 15
      %vm755 = vcmp.lt.s32.totalorder %v627, 15
      %vm756 = vcmp.lt.s32.totalorder %v628, 15
      %vm757 = vcmp.lt.s32.totalorder %v629, 15
      %vm758 = vcmp.lt.s32.totalorder %v630, 15
      %vm759 = vcmp.lt.s32.totalorder %v631, 15
      %vm760 = vcmp.lt.s32.totalorder %v632, 15
      %vm761 = vcmp.lt.s32.totalorder %v633, 15
      %vm762 = vcmp.lt.s32.totalorder %v634, 15
      %vm763 = vcmp.lt.s32.totalorder %v635, 15
      %vm764 = vcmp.lt.s32.totalorder %v636, 15
      %vm765 = vcmp.lt.s32.totalorder %v637, 15
      %vm766 = vcmp.lt.s32.totalorder %v638, 15
      %vm767 = vcmp.lt.s32.totalorder %v639, 15
      %vm768 = vcmp.lt.s32.totalorder %v640, 15
      %vm769 = vcmp.lt.s32.totalorder %v641, 15
      %vm770 = vcmp.lt.s32.totalorder %v642, 15
      %vm771 = vcmp.lt.s32.totalorder %v643, 15
      %vm772 = vcmp.lt.s32.totalorder %v644, 15
      %vm773 = vcmp.lt.s32.totalorder %v645, 15
      %vm774 = vcmp.lt.s32.totalorder %v646, 15
      %vm775 = vcmp.lt.s32.totalorder %v647, 15
      %vm776 = vcmp.lt.s32.totalorder %v648, 15
      %vm777 = vcmp.lt.s32.totalorder %v649, 15
      %vm778 = vcmp.lt.s32.totalorder %v650, 15
      %vm779 = vcmp.lt.s32.totalorder %v651, 15
      %vm780 = vcmp.lt.s32.totalorder %v652, 15
      %vm781 = vcmp.lt.s32.totalorder %v653, 15
      %vm782 = vcmp.lt.s32.totalorder %v654, 15
      %vm783 = vcmp.lt.s32.totalorder %v655, 15
      %v784 = vsel %vm752, 1, 0
      %v785 = vsel %vm753, 1, 0
      %v786 = vsel %vm754, 1, 0
      %v787 = vsel %vm755, 1, 0
      %v788 = vsel %vm756, 1, 0
      %v789 = vsel %vm757, 1, 0
      %v790 = vsel %vm758, 1, 0
      %v791 = vsel %vm759, 1, 0
      %v792 = vsel %vm760, 1, 0
      %v793 = vsel %vm761, 1, 0
      %v794 = vsel %vm762, 1, 0
      %v795 = vsel %vm763, 1, 0
      %v796 = vsel %vm764, 1, 0
      %v797 = vsel %vm765, 1, 0
      %v798 = vsel %vm766, 1, 0
      %v799 = vsel %vm767, 1, 0
      %v800 = vsel %vm768, 1, 0
      %v801 = vsel %vm769, 1, 0
      %v802 = vsel %vm770, 1, 0
      %v803 = vsel %vm771, 1, 0
      %v804 = vsel %vm772, 1, 0
      %v805 = vsel %vm773, 1, 0
      %v806 = vsel %vm774, 1, 0
      %v807 = vsel %vm775, 1, 0
      %v808 = vsel %vm776, 1, 0
      %v809 = vsel %vm777, 1, 0
      %v810 = vsel %vm778, 1, 0
      %v811 = vsel %vm779, 1, 0
      %v812 = vsel %vm780, 1, 0
      %v813 = vsel %vm781, 1, 0
      %v814 = vsel %vm782, 1, 0
      %v815 = vsel %vm783, 1, 0
      %v816 = vcvt.s32.f32 %v784
      %v817 = vcvt.s32.f32 %v785
      %v818 = vcvt.s32.f32 %v786
      %v819 = vcvt.s32.f32 %v787
      %v820 = vcvt.s32.f32 %v788
      %v821 = vcvt.s32.f32 %v789
      %v822 = vcvt.s32.f32 %v790
      %v823 = vcvt.s32.f32 %v791
      %v824 = vcvt.s32.f32 %v792
      %v825 = vcvt.s32.f32 %v793
      %v826 = vcvt.s32.f32 %v794
      %v827 = vcvt.s32.f32 %v795
      %v828 = vcvt.s32.f32 %v796
      %v829 = vcvt.s32.f32 %v797
      %v830 = vcvt.s32.f32 %v798
      %v831 = vcvt.s32.f32 %v799
      %v832 = vcvt.s32.f32 %v800
      %v833 = vcvt.s32.f32 %v801
      %v834 = vcvt.s32.f32 %v802
      %v835 = vcvt.s32.f32 %v803
      %v836 = vcvt.s32.f32 %v804
      %v837 = vcvt.s32.f32 %v805
      %v838 = vcvt.s32.f32 %v806
      %v839 = vcvt.s32.f32 %v807
      %v840 = vcvt.s32.f32 %v808
      %v841 = vcvt.s32.f32 %v809
      %v842 = vcvt.s32.f32 %v810
      %v843 = vcvt.s32.f32 %v811
      %v844 = vcvt.s32.f32 %v812
      %v845 = vcvt.s32.f32 %v813
      %v846 = vcvt.s32.f32 %v814
      %v847 = vcvt.s32.f32 %v815
      %v848 = vld [vmem:[#allocation2 + $0x7] sm:$0xff]
      %v849 = vld [vmem:[#allocation2 + $0xf] sm:$0xff]
      %v850 = vld [vmem:[#allocation2 + $0x17] sm:$0xff]
      %v851 = vld [vmem:[#allocation2 + $0x1f] sm:$0xff]
      %v852 = vld [vmem:[#allocation2 + $0x27] sm:$0xff]
      %v853 = vld [vmem:[#allocation2 + $0x2f] sm:$0xff]
      %v854 = vld [vmem:[#allocation2 + $0x37] sm:$0xff]
      %v855 = vld [vmem:[#allocation2 + $0x3f] sm:$0xff]
      %v856 = vld [vmem:[#allocation2 + $0x47] sm:$0xff]
      %v857 = vld [vmem:[#allocation2 + $0x4f] sm:$0xff]
      %v858 = vld [vmem:[#allocation2 + $0x57] sm:$0xff]
      %v859 = vld [vmem:[#allocation2 + $0x5f] sm:$0xff]
      %v860 = vld [vmem:[#allocation2 + $0x67] sm:$0xff]
      %v861 = vld [vmem:[#allocation2 + $0x6f] sm:$0xff]
      %v862 = vld [vmem:[#allocation2 + $0x77] sm:$0xff]
      %v863 = vld [vmem:[#allocation2 + $0x7f] sm:$0xff]
      %v864 = vld [vmem:[#allocation2 + $0x87] sm:$0xff]
      %v865 = vld [vmem:[#allocation2 + $0x8f] sm:$0xff]
      %v866 = vld [vmem:[#allocation2 + $0x97] sm:$0xff]
      %v867 = vld [vmem:[#allocation2 + $0x9f] sm:$0xff]
      %v868 = vld [vmem:[#allocation2 + $0xa7] sm:$0xff]
      %v869 = vld [vmem:[#allocation2 + $0xaf] sm:$0xff]
      %v870 = vld [vmem:[#allocation2 + $0xb7] sm:$0xff]
      %v871 = vld [vmem:[#allocation2 + $0xbf] sm:$0xff]
      %v872 = vld [vmem:[#allocation2 + $0xc7] sm:$0xff]
      %v873 = vld [vmem:[#allocation2 + $0xcf] sm:$0xff]
      %v874 = vld [vmem:[#allocation2 + $0xd7] sm:$0xff]
      %v875 = vld [vmem:[#allocation2 + $0xdf] sm:$0xff]
      %v876 = vld [vmem:[#allocation2 + $0xe7] sm:$0xff]
      %v877 = vld [vmem:[#allocation2 + $0xef] sm:$0xff]
      %v878 = vld [vmem:[#allocation2 + $0xf7] sm:$0xff]
      %v879 = vld [vmem:[#allocation2 + $0xff] sm:$0xff]
      %v880 = vmul.f32 %v848, %v720
      %v881 = vmul.f32 %v849, %v721
      %v882 = vmul.f32 %v850, %v722
      %v883 = vmul.f32 %v851, %v723
      %v884 = vmul.f32 %v852, %v724
      %v885 = vmul.f32 %v853, %v725
      %v886 = vmul.f32 %v854, %v726
      %v887 = vmul.f32 %v855, %v727
      %v888 = vmul.f32 %v856, %v728
      %v889 = vmul.f32 %v857, %v729
      %v890 = vmul.f32 %v858, %v730
      %v891 = vmul.f32 %v859, %v731
      %v892 = vmul.f32 %v860, %v732
      %v893 = vmul.f32 %v861, %v733
      %v894 = vmul.f32 %v862, %v734
      %v895 = vmul.f32 %v863, %v735
      %v896 = vmul.f32 %v864, %v736
      %v897 = vmul.f32 %v865, %v737
      %v898 = vmul.f32 %v866, %v738
      %v899 = vmul.f32 %v867, %v739
      %v900 = vmul.f32 %v868, %v740
      %v901 = vmul.f32 %v869, %v741
      %v902 = vmul.f32 %v870, %v742
      %v903 = vmul.f32 %v871, %v743
      %v904 = vmul.f32 %v872, %v744
      %v905 = vmul.f32 %v873, %v745
      %v906 = vmul.f32 %v874, %v746
      %v907 = vmul.f32 %v875, %v747
      %v908 = vmul.f32 %v876, %v748
      %v909 = vmul.f32 %v877, %v749
      %v910 = vmul.f32 %v878, %v750
      %v911 = vmul.f32 %v879, %v751
      %v912 = vld [vmem:[#allocation2 + $0x8] sm:$0xff]
      %v913 = vld [vmem:[#allocation2 + $0x10] sm:$0xff]
      %v914 = vld [vmem:[#allocation2 + $0x18] sm:$0xff]
      %v915 = vld [vmem:[#allocation2 + $0x20] sm:$0xff]
      %v916 = vld [vmem:[#allocation2 + $0x28] sm:$0xff]
      %v917 = vld [vmem:[#allocation2 + $0x30] sm:$0xff]
      %v918 = vld [vmem:[#allocation2 + $0x38] sm:$0xff]
      %v919 = vld [vmem:[#allocation2 + $0x40] sm:$0xff]
      %v920 = vld [vmem:[#allocation2 + $0x48] sm:$0xff]
      %v921 = vld [vmem:[#allocation2 + $0x50] sm:$0xff]
      %v922 = vld [vmem:[#allocation2 + $0x58] sm:$0xff]
      %v923 = vld [vmem:[#allocation2 + $0x60] sm:$0xff]
      %v924 = vld [vmem:[#allocation2 + $0x68] sm:$0xff]
      %v925 = vld [vmem:[#allocation2 + $0x70] sm:$0xff]
      %v926 = vld [vmem:[#allocation2 + $0x78] sm:$0xff]
      %v927 = vld [vmem:[#allocation2 + $0x80] sm:$0xff]
      %v928 = vld [vmem:[#allocation2 + $0x88] sm:$0xff]
      %v929 = vld [vmem:[#allocation2 + $0x90] sm:$0xff]
      %v930 = vld [vmem:[#allocation2 + $0x98] sm:$0xff]
      %v931 = vld [vmem:[#allocation2 + $0xa0] sm:$0xff]
      %v932 = vld [vmem:[#allocation2 + $0xa8] sm:$0xff]
      %v933 = vld [vmem:[#allocation2 + $0xb0] sm:$0xff]
      %v934 = vld [vmem:[#allocation2 + $0xb8] sm:$0xff]
      %v935 = vld [vmem:[#allocation2 + $0xc0] sm:$0xff]
      %v936 = vld [vmem:[#allocation2 + $0xc8] sm:$0xff]
      %v937 = vld [vmem:[#allocation2 + $0xd0] sm:$0xff]
      %v938 = vld [vmem:[#allocation2 + $0xd8] sm:$0xff]
      %v939 = vld [vmem:[#allocation2 + $0xe0] sm:$0xff]
      %v940 = vld [vmem:[#allocation2 + $0xe8] sm:$0xff]
      %v941 = vld [vmem:[#allocation2 + $0xf0] sm:$0xff]
      %v942 = vld [vmem:[#allocation2 + $0xf8] sm:$0xff]
      %v943 = vld [vmem:[#allocation2 + $0x100] sm:$0xff]
      %v944 = vld [vmem:[#allocation2 + $0x9] sm:$0xff]
      %v945 = vld [vmem:[#allocation2 + $0x11] sm:$0xff]
      %v946 = vld [vmem:[#allocation2 + $0x19] sm:$0xff]
      %v947 = vld [vmem:[#allocation2 + $0x21] sm:$0xff]
      %v948 = vld [vmem:[#allocation2 + $0x29] sm:$0xff]
      %v949 = vld [vmem:[#allocation2 + $0x31] sm:$0xff]
      %v950 = vld [vmem:[#allocation2 + $0x39] sm:$0xff]
      %v951 = vld [vmem:[#allocation2 + $0x41] sm:$0xff]
      %v952 = vld [vmem:[#allocation2 + $0x49] sm:$0xff]
      %v953 = vld [vmem:[#allocation2 + $0x51] sm:$0xff]
      %v954 = vld [vmem:[#allocation2 + $0x59] sm:$0xff]
      %v955 = vld [vmem:[#allocation2 + $0x61] sm:$0xff]
      %v956 = vld [vmem:[#allocation2 + $0x69] sm:$0xff]
      %v957 = vld [vmem:[#allocation2 + $0x71] sm:$0xff]
      %v958 = vld [vmem:[#allocation2 + $0x79] sm:$0xff]
      %v959 = vld [vmem:[#allocation2 + $0x81] sm:$0xff]
      %v960 = vld [vmem:[#allocation2 + $0x89] sm:$0xff]
      %v961 = vld [vmem:[#allocation2 + $0x91] sm:$0xff]
      %v962 = vld [vmem:[#allocation2 + $0x99] sm:$0xff]
      %v963 = vld [vmem:[#allocation2 + $0xa1] sm:$0xff]
      %v964 = vld [vmem:[#allocation2 + $0xa9] sm:$0xff]
      %v965 = vld [vmem:[#allocation2 + $0xb1] sm:$0xff]
      %v966 = vld [vmem:[#allocation2 + $0xb9] sm:$0xff]
      %v967 = vld [vmem:[#allocation2 + $0xc1] sm:$0xff]
      %v968 = vld [vmem:[#allocation2 + $0xc9] sm:$0xff]
      %v969 = vld [vmem:[#allocation2 + $0xd1] sm:$0xff]
      %v970 = vld [vmem:[#allocation2 + $0xd9] sm:$0xff]
      %v971 = vld [vmem:[#allocation2 + $0xe1] sm:$0xff]
      %v972 = vld [vmem:[#allocation2 + $0xe9] sm:$0xff]
      %v973 = vld [vmem:[#allocation2 + $0xf1] sm:$0xff]
      %v974 = vld [vmem:[#allocation2 + $0xf9] sm:$0xff]
      %v975 = vld [vmem:[#allocation2 + $0x101] sm:$0xff]
      %v976 = vmul.f32 %v944, %v816
      %v977 = vmul.f32 %v945, %v817
      %v978 = vmul.f32 %v946, %v818
      %v979 = vmul.f32 %v947, %v819
      %v980 = vmul.f32 %v948, %v820
      %v981 = vmul.f32 %v949, %v821
      %v982 = vmul.f32 %v950, %v822
      %v983 = vmul.f32 %v951, %v823
      %v984 = vmul.f32 %v952, %v824
      %v985 = vmul.f32 %v953, %v825
      %v986 = vmul.f32 %v954, %v826
      %v987 = vmul.f32 %v955, %v827
      %v988 = vmul.f32 %v956, %v828
      %v989 = vmul.f32 %v957, %v829
      %v990 = vmul.f32 %v958, %v830
      %v991 = vmul.f32 %v959, %v831
      %v992 = vmul.f32 %v960, %v832
      %v993 = vmul.f32 %v961, %v833
      %v994 = vmul.f32 %v962, %v834
      %v995 = vmul.f32 %v963, %v835
      %v996 = vmul.f32 %v964, %v836
      %v997 = vmul.f32 %v965, %v837
      %v998 = vmul.f32 %v966, %v838
      %v999 = vmul.f32 %v967, %v839
      %v1000 = vmul.f32 %v968, %v840
      %v1001 = vmul.f32 %v969, %v841
      %v1002 = vmul.f32 %v970, %v842
      %v1003 = vmul.f32 %v971, %v843
      %v1004 = vmul.f32 %v972, %v844
      %v1005 = vmul.f32 %v973, %v845
      %v1006 = vmul.f32 %v974, %v846
      %v1007 = vmul.f32 %v975, %v847
      %v1008 = vld [vmem:[#allocation2 + $0x107] sm:$0xff]
      %v1009 = vld [vmem:[#allocation2 + $0x10f] sm:$0xff]
      %v1010 = vmul.f32 %v850, %v720
      %v1011 = vmul.f32 %v851, %v721
      %v1012 = vmul.f32 %v852, %v722
      %v1013 = vmul.f32 %v853, %v723
      %v1014 = vmul.f32 %v854, %v724
      %v1015 = vmul.f32 %v855, %v725
      %v1016 = vmul.f32 %v856, %v726
      %v1017 = vmul.f32 %v857, %v727
      %v1018 = vmul.f32 %v858, %v728
      %v1019 = vmul.f32 %v859, %v729
      %v1020 = vmul.f32 %v860, %v730
      %v1021 = vmul.f32 %v861, %v731
      %v1022 = vmul.f32 %v862, %v732
      %v1023 = vmul.f32 %v863, %v733
      %v1024 = vmul.f32 %v864, %v734
      %v1025 = vmul.f32 %v865, %v735
      %v1026 = vmul.f32 %v866, %v736
      %v1027 = vmul.f32 %v867, %v737
      %v1028 = vmul.f32 %v868, %v738
      %v1029 = vmul.f32 %v869, %v739
      %v1030 = vmul.f32 %v870, %v740
      %v1031 = vmul.f32 %v871, %v741
      %v1032 = vmul.f32 %v872, %v742
      %v1033 = vmul.f32 %v873, %v743
      %v1034 = vmul.f32 %v874, %v744
      %v1035 = vmul.f32 %v875, %v745
      %v1036 = vmul.f32 %v876, %v746
      %v1037 = vmul.f32 %v877, %v747
      %v1038 = vmul.f32 %v878, %v748
      %v1039 = vmul.f32 %v879, %v749
      %v1040 = vmul.f32 %v1008, %v750
      %v1041 = vmul.f32 %v1009, %v751
      %v1042 = vld [vmem:[#allocation2 + $0x108] sm:$0xff]
      %v1043 = vld [vmem:[#allocation2 + $0x110] sm:$0xff]
      %v1044 = vld [vmem:[#allocation2 + $0x109] sm:$0xff]
      %v1045 = vld [vmem:[#allocation2 + $0x111] sm:$0xff]
      %v1046 = vmul.f32 %v946, %v816
      %v1047 = vmul.f32 %v947, %v817
      %v1048 = vmul.f32 %v948, %v818
      %v1049 = vmul.f32 %v949, %v819
      %v1050 = vmul.f32 %v950, %v820
      %v1051 = vmul.f32 %v951, %v821
      %v1052 = vmul.f32 %v952, %v822
      %v1053 = vmul.f32 %v953, %v823
      %v1054 = vmul.f32 %v954, %v824
      %v1055 = vmul.f32 %v955, %v825
      %v1056 = vmul.f32 %v956, %v826
      %v1057 = vmul.f32 %v957, %v827
      %v1058 = vmul.f32 %v958, %v828
      %v1059 = vmul.f32 %v959, %v829
      %v1060 = vmul.f32 %v960, %v830
      %v1061 = vmul.f32 %v961, %v831
      %v1062 = vmul.f32 %v962, %v832
      %v1063 = vmul.f32 %v963, %v833
      %v1064 = vmul.f32 %v964, %v834
      %v1065 = vmul.f32 %v965, %v835
      %v1066 = vmul.f32 %v966, %v836
      %v1067 = vmul.f32 %v967, %v837
      %v1068 = vmul.f32 %v968, %v838
      %v1069 = vmul.f32 %v969, %v839
      %v1070 = vmul.f32 %v970, %v840
      %v1071 = vmul.f32 %v971, %v841
      %v1072 = vmul.f32 %v972, %v842
      %v1073 = vmul.f32 %v973, %v843
      %v1074 = vmul.f32 %v974, %v844
      %v1075 = vmul.f32 %v975, %v845
      %v1076 = vmul.f32 %v1044, %v846
      %v1077 = vmul.f32 %v1045, %v847
      %v1078 = vld [vmem:[#allocation2 + $0x117] sm:$0xff]
      %v1079 = vld [vmem:[#allocation2 + $0x11f] sm:$0xff]
      %v1080 = vmul.f32 %v852, %v720
      %v1081 = vmul.f32 %v853, %v721
      %v1082 = vmul.f32 %v854, %v722
      %v1083 = vmul.f32 %v855, %v723
      %v1084 = vmul.f32 %v856, %v724
      %v1085 = vmul.f32 %v857, %v725
      %v1086 = vmul.f32 %v858, %v726
      %v1087 = vmul.f32 %v859, %v727
      %v1088 = vmul.f32 %v860, %v728
      %v1089 = vmul.f32 %v861, %v729
      %v1090 = vmul.f32 %v862, %v730
      %v1091 = vmul.f32 %v863, %v731
      %v1092 = vmul.f32 %v864, %v732
      %v1093 = vmul.f32 %v865, %v733
      %v1094 = vmul.f32 %v866, %v734
      %v1095 = vmul.f32 %v867, %v735
      %v1096 = vmul.f32 %v868, %v736
      %v1097 = vmul.f32 %v869, %v737
      %v1098 = vmul.f32 %v870, %v738
      %v1099 = vmul.f32 %v871, %v739
      %v1100 = vmul.f32 %v872, %v740
      %v1101 = vmul.f32 %v873, %v741
      %v1102 = vmul.f32 %v874, %v742
      %v1103 = vmul.f32 %v875, %v743
      %v1104 = vmul.f32 %v876, %v744
      %v1105 = vmul.f32 %v877, %v745
      %v1106 = vmul.f32 %v878, %v746
      %v1107 = vmul.f32 %v879, %v747
      %v1108 = vmul.f32 %v1008, %v748
      %v1109 = vmul.f32 %v1009, %v749
      %v1110 = vmul.f32 %v1078, %v750
      %v1111 = vmul.f32 %v1079, %v751
      %v1112 = vld [vmem:[#allocation2 + $0x118] sm:$0xff]
      %v1113 = vld [vmem:[#allocation2 + $0x120] sm:$0xff]
      %v1114 = vld [vmem:[#allocation2 + $0x119] sm:$0xff]
      %v1115 = vld [vmem:[#allocation2 + $0x121] sm:$0xff]
      %v1116 = vmul.f32 %v948, %v816
      %v1117 = vmul.f32 %v949, %v817
      %v1118 = vmul.f32 %v950, %v818
      %v1119 = vmul.f32 %v951, %v819
      %v1120 = vmul.f32 %v952, %v820
      %v1121 = vmul.f32 %v953, %v821
      %v1122 = vmul.f32 %v954, %v822
      %v1123 = vmul.f32 %v955, %v823
      %v1124 = vmul.f32 %v956, %v824
      %v1125 = vmul.f32 %v957, %v825
      %v1126 = vmul.f32 %v958, %v826
      %v1127 = vmul.f32 %v959, %v827
      %v1128 = vmul.f32 %v960, %v828
      %v1129 = vmul.f32 %v961, %v829
      %v1130 = vmul.f32 %v962, %v830
      %v1131 = vmul.f32 %v963, %v831
      %v1132 = vmul.f32 %v964, %v832
      %v1133 = vmul.f32 %v965, %v833
      %v1134 = vmul.f32 %v966, %v834
      %v1135 = vmul.f32 %v967, %v835
      %v1136 = vmul.f32 %v968, %v836
      %v1137 = vmul.f32 %v969, %v837
      %v1138 = vmul.f32 %v970, %v838
      %v1139 = vmul.f32 %v971, %v839
      %v1140 = vmul.f32 %v972, %v840
      %v1141 = vmul.f32 %v973, %v841
      %v1142 = vmul.f32 %v974, %v842
      %v1143 = vmul.f32 %v975, %v843
      %v1144 = vmul.f32 %v1044, %v844
      %v1145 = vmul.f32 %v1045, %v845
      %v1146 = vmul.f32 %v1114, %v846
      %v1147 = vmul.f32 %v1115, %v847
      %v1148 = vld [vmem:[%s1] sm:$0xff]
      %v1149 = vld [vmem:[%s1 + $0x8] sm:$0xff]
      %s1150 = scalar_lea.vmem %s1, 16
      %v1151 = vld [vmem:[%s1150] sm:$0xff]
      %v1152 = vld [vmem:[%s1150 + $0x8] sm:$0xff]
      %v1154 = vsel %vm552, %v912, 0
      %v1157 = vsel %vm552, %v913, 0
      %v1160 = vsel %vm552, %v914, 0
      %v1163 = vsel %vm552, %v915, 0
      %v1166 = vsel %vm552, %v916, 0
      %v1169 = vsel %vm552, %v917, 0
      %v1172 = vsel %vm552, %v918, 0
      %v1175 = vsel %vm552, %v919, 0
      %v1178 = vsel %vm552, %v920, 0
      %v1181 = vsel %vm552, %v921, 0
      %v1184 = vsel %vm552, %v922, 0
      %v1187 = vsel %vm552, %v923, 0
      %v1190 = vsel %vm552, %v924, 0
      %v1193 = vsel %vm552, %v925, 0
      %v1196 = vsel %vm552, %v926, 0
      %v1199 = vsel %vm552, %v927, 0
      %v1202 = vsel %vm552, %v928, 0
      %v1205 = vsel %vm552, %v929, 0
      %v1208 = vsel %vm552, %v930, 0
      %v1211 = vsel %vm552, %v931, 0
      %v1214 = vsel %vm552, %v932, 0
      %v1217 = vsel %vm552, %v933, 0
      %v1220 = vsel %vm552, %v934, 0
      %v1223 = vsel %vm552, %v935, 0
      %v1226 = vsel %vm552, %v936, 0
      %v1229 = vsel %vm552, %v937, 0
      %v1232 = vsel %vm552, %v938, 0
      %v1235 = vsel %vm552, %v939, 0
      %v1238 = vsel %vm552, %v940, 0
      %v1241 = vsel %vm552, %v941, 0
      %v1244 = vsel %vm552, %v942, 0
      %v1247 = vsel %vm552, %v943, 0
      %1249 = vmatprep.subr.mxu0 0.0
      %1250 = vmatpush1.msra.mxu0 %v1151
      %1251 = vmatprep.subr.mxu0 0.0
      %1252 = vmatpush1.msra.mxu0 %v1152
      %1253 = vmatprep.subr.mxu0 0.0
      %1254 = vmatpush1.msra.mxu0 0.0
      %1255 = vmatprep.subr.mxu0 0.0
      %1256 = vmatpush1.msra.mxu0 0.0
      %1257 = vmatprep.subr.mxu0 0.0
      %1258 = vmatpush1.msra.mxu0 0.0
      %1259 = vmatprep.subr.mxu0 0.0
      %1260 = vmatpush1.msra.mxu0 0.0
      %1261 = vmatprep.subr.mxu0 0.0
      %1262 = vmatpush1.msra.mxu0 0.0
      %1263 = vmatprep.subr.mxu0 0.0
      %1264 = vmatpush1.msra.mxu0 0.0
      %1265 = vmatprep.subr.mxu0 0.0
      %1266 = vmatpush1.msra.mxu0 0.0
      %1267 = vmatprep.subr.mxu0 0.0
      %1268 = vmatpush1.msra.mxu0 0.0
      %1269 = vmatprep.subr.mxu0 0.0
      %1270 = vmatpush1.msra.mxu0 0.0
      %1271 = vmatprep.subr.mxu0 0.0
      %1272 = vmatpush1.msra.mxu0 0.0
      %1273 = vmatprep.subr.mxu0 0.0
      %1274 = vmatpush1.msra.mxu0 0.0
      %1275 = vmatprep.subr.mxu0 0.0
      %1276 = vmatpush1.msra.mxu0 0.0
      %1277 = vmatprep.subr.mxu0 0.0
      %1278 = vmatpush1.msra.mxu0 0.0
      %1279 = vmatprep.subr.mxu0 0.0
      %1280 = vmatpush1.msra.mxu0 0.0
      %1281 = vmatprep.subr.mxu0 0.0
      %1282 = vmatpush1.msra.mxu0 0.0
      %1283 = vmatprep.subr.mxu0 0.0
      %1284 = vmatpush1.msra.mxu0 0.0
      %1285 = vmatprep.subr.mxu0 0.0
      %1286 = vmatpush1.msra.mxu0 0.0
      %1287 = vmatprep.subr.mxu0 0.0
      %1288 = vmatpush1.msra.mxu0 0.0
      %1289 = vmatprep.subr.mxu0 0.0
      %1290 = vmatpush1.msra.mxu0 0.0
      %1291 = vmatprep.subr.mxu0 0.0
      %1292 = vmatpush1.msra.mxu0 0.0
      %1293 = vmatprep.subr.mxu0 0.0
      %1294 = vmatpush1.msra.mxu0 0.0
      %1295 = vmatprep.subr.mxu0 0.0
      %1296 = vmatpush1.msra.mxu0 0.0
      %1297 = vmatprep.subr.mxu0 0.0
      %1298 = vmatpush1.msra.mxu0 0.0
      %1299 = vmatprep.subr.mxu0 0.0
      %1300 = vmatpush1.msra.mxu0 0.0
      %1301 = vmatprep.subr.mxu0 0.0
      %1302 = vmatpush1.msra.mxu0 0.0
      %1303 = vmatprep.subr.mxu0 0.0
      %1304 = vmatpush1.msra.mxu0 0.0
      %1305 = vmatprep.subr.mxu0 0.0
      %1306 = vmatpush1.msra.mxu0 0.0
      %1307 = vmatprep.subr.mxu0 0.0
      %1308 = vmatpush1.msra.mxu0 0.0
      %1309 = vmatprep.subr.mxu0 0.0
      %1310 = vmatpush1.msra.mxu0 0.0
      %1311 = vmatprep.subr.mxu0 0.0
      %1312 = vmatpush1.msra.mxu0 0.0
      %1313 = vmatprep.mubr.f32.mxu0 0.0
      %1314 = vmatmul.mubr.f32.gmra.mrb[0].mxu0 %v1154
      %v1315 = vpop.f32.mrb[0].mxu0
      %v1316 = vadd.f32 0.0, %v1315
      %v1317 = vpop.f32.mrb[0].mxu0
      %1318 = vmatprep.mubr.f32.mxu0 0.0
      %1319 = vmatmul.mubr.f32.gmra.mrb[0].mxu0 %v1157
      %v1320 = vpop.f32.mrb[0].mxu0
      %v1321 = vadd.f32 0.0, %v1320
      %v1322 = vpop.f32.mrb[0].mxu0
      %1323 = vmatprep.mubr.f32.mxu0 0.0
      %1324 = vmatmul.mubr.f32.gmra.mrb[0].mxu0 %v1160
      %v1325 = vpop.f32.mrb[0].mxu0
      %v1326 = vadd.f32 0.0, %v1325
      %v1327 = vpop.f32.mrb[0].mxu0
      %1328 = vmatprep.mubr.f32.mxu0 0.0
      %1329 = vmatmul.mubr.f32.gmra.mrb[0].mxu0 %v1163
      %v1330 = vpop.f32.mrb[0].mxu0
      %v1331 = vadd.f32 0.0, %v1330
      %v1332 = vpop.f32.mrb[0].mxu0
      %1333 = vmatprep.mubr.f32.mxu0 0.0
      %1334 = vmatmul.mubr.f32.gmra.mrb[0].mxu0 %v1166
      %v1335 = vpop.f32.mrb[0].mxu0
      %v1336 = vadd.f32 0.0, %v1335
      %v1337 = vpop.f32.mrb[0].mxu0
      %1338 = vmatprep.mubr.f32.mxu0 0.0
      %1339 = vmatmul.mubr.f32.gmra.mrb[0].mxu0 %v1169
      %v1340 = vpop.f32.mrb[0].mxu0
      %v1341 = vadd.f32 0.0, %v1340
      %v1342 = vpop.f32.mrb[0].mxu0
      %1343 = vmatprep.mubr.f32.mxu0 0.0
      %1344 = vmatmul.mubr.f32.gmra.mrb[0].mxu0 %v1172
      %v1345 = vpop.f32.mrb[0].mxu0
      %v1346 = vadd.f32 0.0, %v1345
      %v1347 = vpop.f32.mrb[0].mxu0
      %1348 = vmatprep.mubr.f32.mxu0 0.0
      %1349 = vmatmul.mubr.f32.gmra.mrb[0].mxu0 %v1175
      %v1350 = vpop.f32.mrb[0].mxu0
      %v1351 = vadd.f32 0.0, %v1350
      %v1352 = vpop.f32.mrb[0].mxu0
      %1353 = vmatprep.mubr.f32.mxu0 0.0
      %1354 = vmatmul.mubr.f32.gmra.mrb[0].mxu0 %v1178
      %v1355 = vpop.f32.mrb[0].mxu0
      %v1356 = vadd.f32 0.0, %v1355
      %v1357 = vpop.f32.mrb[0].mxu0
      %1358 = vmatprep.mubr.f32.mxu0 0.0
      %1359 = vmatmul.mubr.f32.gmra.mrb[0].mxu0 %v1181
      %v1360 = vpop.f32.mrb[0].mxu0
      %v1361 = vadd.f32 0.0, %v1360
      %v1362 = vpop.f32.mrb[0].mxu0
      %1363 = vmatprep.mubr.f32.mxu0 0.0
      %1364 = vmatmul.mubr.f32.gmra.mrb[0].mxu0 %v1184
      %v1365 = vpop.f32.mrb[0].mxu0
      %v1366 = vadd.f32 0.0, %v1365
      %v1367 = vpop.f32.mrb[0].mxu0
      %1368 = vmatprep.mubr.f32.mxu0 0.0
      %1369 = vmatmul.mubr.f32.gmra.mrb[0].mxu0 %v1187
      %v1370 = vpop.f32.mrb[0].mxu0
      %v1371 = vadd.f32 0.0, %v1370
      %v1372 = vpop.f32.mrb[0].mxu0
      %1373 = vmatprep.mubr.f32.mxu0 0.0
      %1374 = vmatmul.mubr.f32.gmra.mrb[0].mxu0 %v1190
      %v1375 = vpop.f32.mrb[0].mxu0
      %v1376 = vadd.f32 0.0, %v1375
      %v1377 = vpop.f32.mrb[0].mxu0
      %1378 = vmatprep.mubr.f32.mxu0 0.0
      %1379 = vmatmul.mubr.f32.gmra.mrb[0].mxu0 %v1193
      %v1380 = vpop.f32.mrb[0].mxu0
      %v1381 = vadd.f32 0.0, %v1380
      %v1382 = vpop.f32.mrb[0].mxu0
      %1383 = vmatprep.mubr.f32.mxu0 0.0
      %1384 = vmatmul.mubr.f32.gmra.mrb[0].mxu0 %v1196
      %v1385 = vpop.f32.mrb[0].mxu0
      %v1386 = vadd.f32 0.0, %v1385
      %v1387 = vpop.f32.mrb[0].mxu0
      %1388 = vmatprep.mubr.f32.mxu0 0.0
      %1389 = vmatmul.mubr.f32.gmra.mrb[0].mxu0 %v1199
      %v1390 = vpop.f32.mrb[0].mxu0
      %v1391 = vadd.f32 0.0, %v1390
      %v1392 = vpop.f32.mrb[0].mxu0
      %1393 = vmatprep.mubr.f32.mxu0 0.0
      %1394 = vmatmul.mubr.f32.gmra.mrb[0].mxu0 %v1202
      %v1395 = vpop.f32.mrb[0].mxu0
      %v1396 = vadd.f32 0.0, %v1395
      %v1397 = vpop.f32.mrb[0].mxu0
      %1398 = vmatprep.mubr.f32.mxu0 0.0
      %1399 = vmatmul.mubr.f32.gmra.mrb[0].mxu0 %v1205
      %v1400 = vpop.f32.mrb[0].mxu0
      %v1401 = vadd.f32 0.0, %v1400
      %v1402 = vpop.f32.mrb[0].mxu0
      %1403 = vmatprep.mubr.f32.mxu0 0.0
      %1404 = vmatmul.mubr.f32.gmra.mrb[0].mxu0 %v1208
      %v1405 = vpop.f32.mrb[0].mxu0
      %v1406 = vadd.f32 0.0, %v1405
      %v1407 = vpop.f32.mrb[0].mxu0
      %1408 = vmatprep.mubr.f32.mxu0 0.0
      %1409 = vmatmul.mubr.f32.gmra.mrb[0].mxu0 %v1211
      %v1410 = vpop.f32.mrb[0].mxu0
      %v1411 = vadd.f32 0.0, %v1410
      %v1412 = vpop.f32.mrb[0].mxu0
      %1413 = vmatprep.mubr.f32.mxu0 0.0
      %1414 = vmatmul.mubr.f32.gmra.mrb[0].mxu0 %v1214
      %v1415 = vpop.f32.mrb[0].mxu0
      %v1416 = vadd.f32 0.0, %v1415
      %v1417 = vpop.f32.mrb[0].mxu0
      %1418 = vmatprep.mubr.f32.mxu0 0.0
      %1419 = vmatmul.mubr.f32.gmra.mrb[0].mxu0 %v1217
      %v1420 = vpop.f32.mrb[0].mxu0
      %v1421 = vadd.f32 0.0, %v1420
      %v1422 = vpop.f32.mrb[0].mxu0
      %1423 = vmatprep.mubr.f32.mxu0 0.0
      %1424 = vmatmul.mubr.f32.gmra.mrb[0].mxu0 %v1220
      %v1425 = vpop.f32.mrb[0].mxu0
      %v1426 = vadd.f32 0.0, %v1425
      %v1427 = vpop.f32.mrb[0].mxu0
      %1428 = vmatprep.mubr.f32.mxu0 0.0
      %1429 = vmatmul.mubr.f32.gmra.mrb[0].mxu0 %v1223
      %v1430 = vpop.f32.mrb[0].mxu0
      %v1431 = vadd.f32 0.0, %v1430
      %v1432 = vpop.f32.mrb[0].mxu0
      %1433 = vmatprep.mubr.f32.mxu0 0.0
      %1434 = vmatmul.mubr.f32.gmra.mrb[0].mxu0 %v1226
      %v1435 = vpop.f32.mrb[0].mxu0
      %v1436 = vadd.f32 0.0, %v1435
      %v1437 = vpop.f32.mrb[0].mxu0
      %1438 = vmatprep.mubr.f32.mxu0 0.0
      %1439 = vmatmul.mubr.f32.gmra.mrb[0].mxu0 %v1229
      %v1440 = vpop.f32.mrb[0].mxu0
      %v1441 = vadd.f32 0.0, %v1440
      %v1442 = vpop.f32.mrb[0].mxu0
      %1443 = vmatprep.mubr.f32.mxu0 0.0
      %1444 = vmatmul.mubr.f32.gmra.mrb[0].mxu0 %v1232
      %v1445 = vpop.f32.mrb[0].mxu0
      %v1446 = vadd.f32 0.0, %v1445
      %v1447 = vpop.f32.mrb[0].mxu0
      %1448 = vmatprep.mubr.f32.mxu0 0.0
      %1449 = vmatmul.mubr.f32.gmra.mrb[0].mxu0 %v1235
      %v1450 = vpop.f32.mrb[0].mxu0
      %v1451 = vadd.f32 0.0, %v1450
      %v1452 = vpop.f32.mrb[0].mxu0
      %1453 = vmatprep.mubr.f32.mxu0 0.0
      %1454 = vmatmul.mubr.f32.gmra.mrb[0].mxu0 %v1238
      %v1455 = vpop.f32.mrb[0].mxu0
      %v1456 = vadd.f32 0.0, %v1455
      %v1457 = vpop.f32.mrb[0].mxu0
      %1458 = vmatprep.mubr.f32.mxu0 0.0
      %1459 = vmatmul.mubr.f32.gmra.mrb[0].mxu0 %v1241
      %v1460 = vpop.f32.mrb[0].mxu0
      %v1461 = vadd.f32 0.0, %v1460
      %v1462 = vpop.f32.mrb[0].mxu0
      %1463 = vmatprep.mubr.f32.mxu0 0.0
      %1464 = vmatmul.mubr.f32.gmra.mrb[0].mxu0 %v1244
      %v1465 = vpop.f32.mrb[0].mxu0
      %v1466 = vadd.f32 0.0, %v1465
      %v1467 = vpop.f32.mrb[0].mxu0
      %1468 = vmatprep.mubr.f32.mxu0 0.0
      %1469 = vmatmul.mubr.f32.gmra.mrb[0].mxu0 %v1247
      %v1470 = vpop.f32.mrb[0].mxu0
      %v1471 = vadd.f32 0.0, %v1470
      %v1472 = vpop.f32.mrb[0].mxu0
      %1473 = vdwg.mxu0
      %v1475 = vsel %vm552, %v880, 0
      %v1478 = vsel %vm552, %v881, 0
      %v1481 = vsel %vm552, %v882, 0
      %v1484 = vsel %vm552, %v883, 0
      %v1487 = vsel %vm552, %v884, 0
      %v1490 = vsel %vm552, %v885, 0
      %v1493 = vsel %vm552, %v886, 0
      %v1496 = vsel %vm552, %v887, 0
      %v1499 = vsel %vm552, %v888, 0
      %v1502 = vsel %vm552, %v889, 0
      %v1505 = vsel %vm552, %v890, 0
      %v1508 = vsel %vm552, %v891, 0
      %v1511 = vsel %vm552, %v892, 0
      %v1514 = vsel %vm552, %v893, 0
      %v1517 = vsel %vm552, %v894, 0
      %v1520 = vsel %vm552, %v895, 0
      %v1523 = vsel %vm552, %v896, 0
      %v1526 = vsel %vm552, %v897, 0
      %v1529 = vsel %vm552, %v898, 0
      %v1532 = vsel %vm552, %v899, 0
      %v1535 = vsel %vm552, %v900, 0
      %v1538 = vsel %vm552, %v901, 0
      %v1541 = vsel %vm552, %v902, 0
      %v1544 = vsel %vm552, %v903, 0
      %v1547 = vsel %vm552, %v904, 0
      %v1550 = vsel %vm552, %v905, 0
      %v1553 = vsel %vm552, %v906, 0
      %v1556 = vsel %vm552, %v907, 0
      %v1559 = vsel %vm552, %v908, 0
      %v1562 = vsel %vm552, %v909, 0
      %v1565 = vsel %vm552, %v910, 0
      %v1568 = vsel %vm552, %v911, 0
      %1570 = vmatprep.subr.mxu0 0.0
      %1571 = vmatpush1.msra.mxu0 %v1148
      %1572 = vmatprep.subr.mxu0 0.0
      %1573 = vmatpush1.msra.mxu0 %v1149
      %1574 = vmatprep.subr.mxu0 0.0
      %1575 = vmatpush1.msra.mxu0 0.0
      %1576 = vmatprep.subr.mxu0 0.0
      %1577 = vmatpush1.msra.mxu0 0.0
      %1578 = vmatprep.subr.mxu0 0.0
      %1579 = vmatpush1.msra.mxu0 0.0
      %1580 = vmatprep.subr.mxu0 0.0
      %1581 = vmatpush1.msra.mxu0 0.0
      %1582 = vmatprep.subr.mxu0 0.0
      %1583 = vmatpush1.msra.mxu0 0.0
      %1584 = vmatprep.subr.mxu0 0.0
      %1585 = vmatpush1.msra.mxu0 0.0
      %1586 = vmatprep.subr.mxu0 0.0
      %1587 = vmatpush1.msra.mxu0 0.0
      %1588 = vmatprep.subr.mxu0 0.0
      %1589 = vmatpush1.msra.mxu0 0.0
      %1590 = vmatprep.subr.mxu0 0.0
      %1591 = vmatpush1.msra.mxu0 0.0
      %1592 = vmatprep.subr.mxu0 0.0
      %1593 = vmatpush1.msra.mxu0 0.0
      %1594 = vmatprep.subr.mxu0 0.0
      %1595 = vmatpush1.msra.mxu0 0.0
      %1596 = vmatprep.subr.mxu0 0.0
      %1597 = vmatpush1.msra.mxu0 0.0
      %1598 = vmatprep.subr.mxu0 0.0
      %1599 = vmatpush1.msra.mxu0 0.0
      %1600 = vmatprep.subr.mxu0 0.0
      %1601 = vmatpush1.msra.mxu0 0.0
      %1602 = vmatprep.subr.mxu0 0.0
      %1603 = vmatpush1.msra.mxu0 0.0
      %1604 = vmatprep.subr.mxu0 0.0
      %1605 = vmatpush1.msra.mxu0 0.0
      %1606 = vmatprep.subr.mxu0 0.0
      %1607 = vmatpush1.msra.mxu0 0.0
      %1608 = vmatprep.subr.mxu0 0.0
      %1609 = vmatpush1.msra.mxu0 0.0
      %1610 = vmatprep.subr.mxu0 0.0
      %1611 = vmatpush1.msra.mxu0 0.0
      %1612 = vmatprep.subr.mxu0 0.0
      %1613 = vmatpush1.msra.mxu0 0.0
      %1614 = vmatprep.subr.mxu0 0.0
      %1615 = vmatpush1.msra.mxu0 0.0
      %1616 = vmatprep.subr.mxu0 0.0
      %1617 = vmatpush1.msra.mxu0 0.0
      %1618 = vmatprep.subr.mxu0 0.0
      %1619 = vmatpush1.msra.mxu0 0.0
      %1620 = vmatprep.subr.mxu0 0.0
      %1621 = vmatpush1.msra.mxu0 0.0
      %1622 = vmatprep.subr.mxu0 0.0
      %1623 = vmatpush1.msra.mxu0 0.0
      %1624 = vmatprep.subr.mxu0 0.0
      %1625 = vmatpush1.msra.mxu0 0.0
      %1626 = vmatprep.subr.mxu0 0.0
      %1627 = vmatpush1.msra.mxu0 0.0
      %1628 = vmatprep.subr.mxu0 0.0
      %1629 = vmatpush1.msra.mxu0 0.0
      %1630 = vmatprep.subr.mxu0 0.0
      %1631 = vmatpush1.msra.mxu0 0.0
      %1632 = vmatprep.subr.mxu0 0.0
      %1633 = vmatpush1.msra.mxu0 0.0
      %1634 = vmatprep.mubr.f32.mxu0 0.0
      %1635 = vmatmul.mubr.f32.gmra.mrb[0].mxu0 %v1475
      %v1636 = vpop.f32.mrb[0].mxu0
      %v1637 = vadd.f32 %v1316, %v1636
      %v1638 = vpop.f32.mrb[0].mxu0
      %1639 = vmatprep.mubr.f32.mxu0 0.0
      %1640 = vmatmul.mubr.f32.gmra.mrb[0].mxu0 %v1478
      %v1641 = vpop.f32.mrb[0].mxu0
      %v1642 = vadd.f32 %v1321, %v1641
      %v1643 = vpop.f32.mrb[0].mxu0
      %1644 = vmatprep.mubr.f32.mxu0 0.0
      %1645 = vmatmul.mubr.f32.gmra.mrb[0].mxu0 %v1481
      %v1646 = vpop.f32.mrb[0].mxu0
      %v1647 = vadd.f32 %v1326, %v1646
      %v1648 = vpop.f32.mrb[0].mxu0
      %1649 = vmatprep.mubr.f32.mxu0 0.0
      %1650 = vmatmul.mubr.f32.gmra.mrb[0].mxu0 %v1484
      %v1651 = vpop.f32.mrb[0].mxu0
      %v1652 = vadd.f32 %v1331, %v1651
      %v1653 = vpop.f32.mrb[0].mxu0
      %1654 = vmatprep.mubr.f32.mxu0 0.0
      %1655 = vmatmul.mubr.f32.gmra.mrb[0].mxu0 %v1487
      %v1656 = vpop.f32.mrb[0].mxu0
      %v1657 = vadd.f32 %v1336, %v1656
      %v1658 = vpop.f32.mrb[0].mxu0
      %1659 = vmatprep.mubr.f32.mxu0 0.0
      %1660 = vmatmul.mubr.f32.gmra.mrb[0].mxu0 %v1490
      %v1661 = vpop.f32.mrb[0].mxu0
      %v1662 = vadd.f32 %v1341, %v1661
      %v1663 = vpop.f32.mrb[0].mxu0
      %1664 = vmatprep.mubr.f32.mxu0 0.0
      %1665 = vmatmul.mubr.f32.gmra.mrb[0].mxu0 %v1493
      %v1666 = vpop.f32.mrb[0].mxu0
      %v1667 = vadd.f32 %v1346, %v1666
      %v1668 = vpop.f32.mrb[0].mxu0
      %1669 = vmatprep.mubr.f32.mxu0 0.0
      %1670 = vmatmul.mubr.f32.gmra.mrb[0].mxu0 %v1496
      %v1671 = vpop.f32.mrb[0].mxu0
      %v1672 = vadd.f32 %v1351, %v1671
      %v1673 = vpop.f32.mrb[0].mxu0
      %1674 = vmatprep.mubr.f32.mxu0 0.0
      %1675 = vmatmul.mubr.f32.gmra.mrb[0].mxu0 %v1499
      %v1676 = vpop.f32.mrb[0].mxu0
      %v1677 = vadd.f32 %v1356, %v1676
      %v1678 = vpop.f32.mrb[0].mxu0
      %1679 = vmatprep.mubr.f32.mxu0 0.0
      %1680 = vmatmul.mubr.f32.gmra.mrb[0].mxu0 %v1502
      %v1681 = vpop.f32.mrb[0].mxu0
      %v1682 = vadd.f32 %v1361, %v1681
      %v1683 = vpop.f32.mrb[0].mxu0
      %1684 = vmatprep.mubr.f32.mxu0 0.0
      %1685 = vmatmul.mubr.f32.gmra.mrb[0].mxu0 %v1505
      %v1686 = vpop.f32.mrb[0].mxu0
      %v1687 = vadd.f32 %v1366, %v1686
      %v1688 = vpop.f32.mrb[0].mxu0
      %1689 = vmatprep.mubr.f32.mxu0 0.0
      %1690 = vmatmul.mubr.f32.gmra.mrb[0].mxu0 %v1508
      %v1691 = vpop.f32.mrb[0].mxu0
      %v1692 = vadd.f32 %v1371, %v1691
      %v1693 = vpop.f32.mrb[0].mxu0
      %1694 = vmatprep.mubr.f32.mxu0 0.0
      %1695 = vmatmul.mubr.f32.gmra.mrb[0].mxu0 %v1511
      %v1696 = vpop.f32.mrb[0].mxu0
      %v1697 = vadd.f32 %v1376, %v1696
      %v1698 = vpop.f32.mrb[0].mxu0
      %1699 = vmatprep.mubr.f32.mxu0 0.0
      %1700 = vmatmul.mubr.f32.gmra.mrb[0].mxu0 %v1514
      %v1701 = vpop.f32.mrb[0].mxu0
      %v1702 = vadd.f32 %v1381, %v1701
      %v1703 = vpop.f32.mrb[0].mxu0
      %1704 = vmatprep.mubr.f32.mxu0 0.0
      %1705 = vmatmul.mubr.f32.gmra.mrb[0].mxu0 %v1517
      %v1706 = vpop.f32.mrb[0].mxu0
      %v1707 = vadd.f32 %v1386, %v1706
      %v1708 = vpop.f32.mrb[0].mxu0
      %1709 = vmatprep.mubr.f32.mxu0 0.0
      %1710 = vmatmul.mubr.f32.gmra.mrb[0].mxu0 %v1520
      %v1711 = vpop.f32.mrb[0].mxu0
      %v1712 = vadd.f32 %v1391, %v1711
      %v1713 = vpop.f32.mrb[0].mxu0
      %1714 = vmatprep.mubr.f32.mxu0 0.0
      %1715 = vmatmul.mubr.f32.gmra.mrb[0].mxu0 %v1523
      %v1716 = vpop.f32.mrb[0].mxu0
      %v1717 = vadd.f32 %v1396, %v1716
      %v1718 = vpop.f32.mrb[0].mxu0
      %1719 = vmatprep.mubr.f32.mxu0 0.0
      %1720 = vmatmul.mubr.f32.gmra.mrb[0].mxu0 %v1526
      %v1721 = vpop.f32.mrb[0].mxu0
      %v1722 = vadd.f32 %v1401, %v1721
      %v1723 = vpop.f32.mrb[0].mxu0
      %1724 = vmatprep.mubr.f32.mxu0 0.0
      %1725 = vmatmul.mubr.f32.gmra.mrb[0].mxu0 %v1529
      %v1726 = vpop.f32.mrb[0].mxu0
      %v1727 = vadd.f32 %v1406, %v1726
      %v1728 = vpop.f32.mrb[0].mxu0
      %1729 = vmatprep.mubr.f32.mxu0 0.0
      %1730 = vmatmul.mubr.f32.gmra.mrb[0].mxu0 %v1532
      %v1731 = vpop.f32.mrb[0].mxu0
      %v1732 = vadd.f32 %v1411, %v1731
      %v1733 = vpop.f32.mrb[0].mxu0
      %1734 = vmatprep.mubr.f32.mxu0 0.0
      %1735 = vmatmul.mubr.f32.gmra.mrb[0].mxu0 %v1535
      %v1736 = vpop.f32.mrb[0].mxu0
      %v1737 = vadd.f32 %v1416, %v1736
      %v1738 = vpop.f32.mrb[0].mxu0
      %1739 = vmatprep.mubr.f32.mxu0 0.0
      %1740 = vmatmul.mubr.f32.gmra.mrb[0].mxu0 %v1538
      %v1741 = vpop.f32.mrb[0].mxu0
      %v1742 = vadd.f32 %v1421, %v1741
      %v1743 = vpop.f32.mrb[0].mxu0
      %1744 = vmatprep.mubr.f32.mxu0 0.0
      %1745 = vmatmul.mubr.f32.gmra.mrb[0].mxu0 %v1541
      %v1746 = vpop.f32.mrb[0].mxu0
      %v1747 = vadd.f32 %v1426, %v1746
      %v1748 = vpop.f32.mrb[0].mxu0
      %1749 = vmatprep.mubr.f32.mxu0 0.0
      %1750 = vmatmul.mubr.f32.gmra.mrb[0].mxu0 %v1544
      %v1751 = vpop.f32.mrb[0].mxu0
      %v1752 = vadd.f32 %v1431, %v1751
      %v1753 = vpop.f32.mrb[0].mxu0
      %1754 = vmatprep.mubr.f32.mxu0 0.0
      %1755 = vmatmul.mubr.f32.gmra.mrb[0].mxu0 %v1547
      %v1756 = vpop.f32.mrb[0].mxu0
      %v1757 = vadd.f32 %v1436, %v1756
      %v1758 = vpop.f32.mrb[0].mxu0
      %1759 = vmatprep.mubr.f32.mxu0 0.0
      %1760 = vmatmul.mubr.f32.gmra.mrb[0].mxu0 %v1550
      %v1761 = vpop.f32.mrb[0].mxu0
      %v1762 = vadd.f32 %v1441, %v1761
      %v1763 = vpop.f32.mrb[0].mxu0
      %1764 = vmatprep.mubr.f32.mxu0 0.0
      %1765 = vmatmul.mubr.f32.gmra.mrb[0].mxu0 %v1553
      %v1766 = vpop.f32.mrb[0].mxu0
      %v1767 = vadd.f32 %v1446, %v1766
      %v1768 = vpop.f32.mrb[0].mxu0
      %1769 = vmatprep.mubr.f32.mxu0 0.0
      %1770 = vmatmul.mubr.f32.gmra.mrb[0].mxu0 %v1556
      %v1771 = vpop.f32.mrb[0].mxu0
      %v1772 = vadd.f32 %v1451, %v1771
      %v1773 = vpop.f32.mrb[0].mxu0
      %1774 = vmatprep.mubr.f32.mxu0 0.0
      %1775 = vmatmul.mubr.f32.gmra.mrb[0].mxu0 %v1559
      %v1776 = vpop.f32.mrb[0].mxu0
      %v1777 = vadd.f32 %v1456, %v1776
      %v1778 = vpop.f32.mrb[0].mxu0
      %1779 = vmatprep.mubr.f32.mxu0 0.0
      %1780 = vmatmul.mubr.f32.gmra.mrb[0].mxu0 %v1562
      %v1781 = vpop.f32.mrb[0].mxu0
      %v1782 = vadd.f32 %v1461, %v1781
      %v1783 = vpop.f32.mrb[0].mxu0
      %1784 = vmatprep.mubr.f32.mxu0 0.0
      %1785 = vmatmul.mubr.f32.gmra.mrb[0].mxu0 %v1565
      %v1786 = vpop.f32.mrb[0].mxu0
      %v1787 = vadd.f32 %v1466, %v1786
      %v1788 = vpop.f32.mrb[0].mxu0
      %1789 = vmatprep.mubr.f32.mxu0 0.0
      %1790 = vmatmul.mubr.f32.gmra.mrb[0].mxu0 %v1568
      %v1791 = vpop.f32.mrb[0].mxu0
      %v1792 = vadd.f32 %v1471, %v1791
      %v1793 = vpop.f32.mrb[0].mxu0
      %1794 = vdwg.mxu0
      %s1795 = scalar_lea.vmem %s1, 32
      %v1796 = vld [vmem:[%s1795] sm:$0xff]
      %v1797 = vld [vmem:[%s1795 + $0x8] sm:$0xff]
      %v1799 = vsel %vm552, %v976, 0
      %v1802 = vsel %vm552, %v977, 0
      %v1805 = vsel %vm552, %v978, 0
      %v1808 = vsel %vm552, %v979, 0
      %v1811 = vsel %vm552, %v980, 0
      %v1814 = vsel %vm552, %v981, 0
      %v1817 = vsel %vm552, %v982, 0
      %v1820 = vsel %vm552, %v983, 0
      %v1823 = vsel %vm552, %v984, 0
      %v1826 = vsel %vm552, %v985, 0
      %v1829 = vsel %vm552, %v986, 0
      %v1832 = vsel %vm552, %v987, 0
      %v1835 = vsel %vm552, %v988, 0
      %v1838 = vsel %vm552, %v989, 0
      %v1841 = vsel %vm552, %v990, 0
      %v1844 = vsel %vm552, %v991, 0
      %v1847 = vsel %vm552, %v992, 0
      %v1850 = vsel %vm552, %v993, 0
      %v1853 = vsel %vm552, %v994, 0
      %v1856 = vsel %vm552, %v995, 0
      %v1859 = vsel %vm552, %v996, 0
      %v1862 = vsel %vm552, %v997, 0
      %v1865 = vsel %vm552, %v998, 0
      %v1868 = vsel %vm552, %v999, 0
      %v1871 = vsel %vm552, %v1000, 0
      %v1874 = vsel %vm552, %v1001, 0
      %v1877 = vsel %vm552, %v1002, 0
      %v1880 = vsel %vm552, %v1003, 0
      %v1883 = vsel %vm552, %v1004, 0
      %v1886 = vsel %vm552, %v1005, 0
      %v1889 = vsel %vm552, %v1006, 0
      %v1892 = vsel %vm552, %v1007, 0
      %1894 = vmatprep.subr.mxu0 0.0
      %1895 = vmatpush1.msra.mxu0 %v1796
      %1896 = vmatprep.subr.mxu0 0.0
      %1897 = vmatpush1.msra.mxu0 %v1797
      %1898 = vmatprep.subr.mxu0 0.0
      %1899 = vmatpush1.msra.mxu0 0.0
      %1900 = vmatprep.subr.mxu0 0.0
      %1901 = vmatpush1.msra.mxu0 0.0
      %1902 = vmatprep.subr.mxu0 0.0
      %1903 = vmatpush1.msra.mxu0 0.0
      %1904 = vmatprep.subr.mxu0 0.0
      %1905 = vmatpush1.msra.mxu0 0.0
      %1906 = vmatprep.subr.mxu0 0.0
      %1907 = vmatpush1.msra.mxu0 0.0
      %1908 = vmatprep.subr.mxu0 0.0
      %1909 = vmatpush1.msra.mxu0 0.0
      %1910 = vmatprep.subr.mxu0 0.0
      %1911 = vmatpush1.msra.mxu0 0.0
      %1912 = vmatprep.subr.mxu0 0.0
      %1913 = vmatpush1.msra.mxu0 0.0
      %1914 = vmatprep.subr.mxu0 0.0
      %1915 = vmatpush1.msra.mxu0 0.0
      %1916 = vmatprep.subr.mxu0 0.0
      %1917 = vmatpush1.msra.mxu0 0.0
      %1918 = vmatprep.subr.mxu0 0.0
      %1919 = vmatpush1.msra.mxu0 0.0
      %1920 = vmatprep.subr.mxu0 0.0
      %1921 = vmatpush1.msra.mxu0 0.0
      %1922 = vmatprep.subr.mxu0 0.0
      %1923 = vmatpush1.msra.mxu0 0.0
      %1924 = vmatprep.subr.mxu0 0.0
      %1925 = vmatpush1.msra.mxu0 0.0
      %1926 = vmatprep.subr.mxu0 0.0
      %1927 = vmatpush1.msra.mxu0 0.0
      %1928 = vmatprep.subr.mxu0 0.0
      %1929 = vmatpush1.msra.mxu0 0.0
      %1930 = vmatprep.subr.mxu0 0.0
      %1931 = vmatpush1.msra.mxu0 0.0
      %1932 = vmatprep.subr.mxu0 0.0
      %1933 = vmatpush1.msra.mxu0 0.0
      %1934 = vmatprep.subr.mxu0 0.0
      %1935 = vmatpush1.msra.mxu0 0.0
      %1936 = vmatprep.subr.mxu0 0.0
      %1937 = vmatpush1.msra.mxu0 0.0
      %1938 = vmatprep.subr.mxu0 0.0
      %1939 = vmatpush1.msra.mxu0 0.0
      %1940 = vmatprep.subr.mxu0 0.0
      %1941 = vmatpush1.msra.mxu0 0.0
      %1942 = vmatprep.subr.mxu0 0.0
      %1943 = vmatpush1.msra.mxu0 0.0
      %1944 = vmatprep.subr.mxu0 0.0
      %1945 = vmatpush1.msra.mxu0 0.0
      %1946 = vmatprep.subr.mxu0 0.0
      %1947 = vmatpush1.msra.mxu0 0.0
      %1948 = vmatprep.subr.mxu0 0.0
      %1949 = vmatpush1.msra.mxu0 0.0
      %1950 = vmatprep.subr.mxu0 0.0
      %1951 = vmatpush1.msra.mxu0 0.0
      %1952 = vmatprep.subr.mxu0 0.0
      %1953 = vmatpush1.msra.mxu0 0.0
      %1954 = vmatprep.subr.mxu0 0.0
      %1955 = vmatpush1.msra.mxu0 0.0
      %1956 = vmatprep.subr.mxu0 0.0
      %1957 = vmatpush1.msra.mxu0 0.0
      %1958 = vmatprep.mubr.f32.mxu0 0.0
      %1959 = vmatmul.mubr.f32.gmra.mrb[0].mxu0 %v1799
      %v1960 = vpop.f32.mrb[0].mxu0
      %v1961 = vadd.f32 0.0, %v1960
      %v1962 = vpop.f32.mrb[0].mxu0
      %1963 = vmatprep.mubr.f32.mxu0 0.0
      %1964 = vmatmul.mubr.f32.gmra.mrb[0].mxu0 %v1802
      %v1965 = vpop.f32.mrb[0].mxu0
      %v1966 = vadd.f32 0.0, %v1965
      %v1967 = vpop.f32.mrb[0].mxu0
      %1968 = vmatprep.mubr.f32.mxu0 0.0
      %1969 = vmatmul.mubr.f32.gmra.mrb[0].mxu0 %v1805
      %v1970 = vpop.f32.mrb[0].mxu0
      %v1971 = vadd.f32 0.0, %v1970
      %v1972 = vpop.f32.mrb[0].mxu0
      %1973 = vmatprep.mubr.f32.mxu0 0.0
      %1974 = vmatmul.mubr.f32.gmra.mrb[0].mxu0 %v1808
      %v1975 = vpop.f32.mrb[0].mxu0
      %v1976 = vadd.f32 0.0, %v1975
      %v1977 = vpop.f32.mrb[0].mxu0
      %1978 = vmatprep.mubr.f32.mxu0 0.0
      %1979 = vmatmul.mubr.f32.gmra.mrb[0].mxu0 %v1811
      %v1980 = vpop.f32.mrb[0].mxu0
      %v1981 = vadd.f32 0.0, %v1980
      %v1982 = vpop.f32.mrb[0].mxu0
      %1983 = vmatprep.mubr.f32.mxu0 0.0
      %1984 = vmatmul.mubr.f32.gmra.mrb[0].mxu0 %v1814
      %v1985 = vpop.f32.mrb[0].mxu0
      %v1986 = vadd.f32 0.0, %v1985
      %v1987 = vpop.f32.mrb[0].mxu0
      %1988 = vmatprep.mubr.f32.mxu0 0.0
      %1989 = vmatmul.mubr.f32.gmra.mrb[0].mxu0 %v1817
      %v1990 = vpop.f32.mrb[0].mxu0
      %v1991 = vadd.f32 0.0, %v1990
      %v1992 = vpop.f32.mrb[0].mxu0
      %1993 = vmatprep.mubr.f32.mxu0 0.0
      %1994 = vmatmul.mubr.f32.gmra.mrb[0].mxu0 %v1820
      %v1995 = vpop.f32.mrb[0].mxu0
      %v1996 = vadd.f32 0.0, %v1995
      %v1997 = vpop.f32.mrb[0].mxu0
      %1998 = vmatprep.mubr.f32.mxu0 0.0
      %1999 = vmatmul.mubr.f32.gmra.mrb[0].mxu0 %v1823
      %v2000 = vpop.f32.mrb[0].mxu0
      %v2001 = vadd.f32 0.0, %v2000
      %v2002 = vpop.f32.mrb[0].mxu0
      %2003 = vmatprep.mubr.f32.mxu0 0.0
      %2004 = vmatmul.mubr.f32.gmra.mrb[0].mxu0 %v1826
      %v2005 = vpop.f32.mrb[0].mxu0
      %v2006 = vadd.f32 0.0, %v2005
      %v2007 = vpop.f32.mrb[0].mxu0
      %2008 = vmatprep.mubr.f32.mxu0 0.0
      %2009 = vmatmul.mubr.f32.gmra.mrb[0].mxu0 %v1829
      %v2010 = vpop.f32.mrb[0].mxu0
      %v2011 = vadd.f32 0.0, %v2010
      %v2012 = vpop.f32.mrb[0].mxu0
      %2013 = vmatprep.mubr.f32.mxu0 0.0
      %2014 = vmatmul.mubr.f32.gmra.mrb[0].mxu0 %v1832
      %v2015 = vpop.f32.mrb[0].mxu0
      %v2016 = vadd.f32 0.0, %v2015
      %v2017 = vpop.f32.mrb[0].mxu0
      %2018 = vmatprep.mubr.f32.mxu0 0.0
      %2019 = vmatmul.mubr.f32.gmra.mrb[0].mxu0 %v1835
      %v2020 = vpop.f32.mrb[0].mxu0
      %v2021 = vadd.f32 0.0, %v2020
      %v2022 = vpop.f32.mrb[0].mxu0
      %2023 = vmatprep.mubr.f32.mxu0 0.0
      %2024 = vmatmul.mubr.f32.gmra.mrb[0].mxu0 %v1838
      %v2025 = vpop.f32.mrb[0].mxu0
      %v2026 = vadd.f32 0.0, %v2025
      %v2027 = vpop.f32.mrb[0].mxu0
      %2028 = vmatprep.mubr.f32.mxu0 0.0
      %2029 = vmatmul.mubr.f32.gmra.mrb[0].mxu0 %v1841
      %v2030 = vpop.f32.mrb[0].mxu0
      %v2031 = vadd.f32 0.0, %v2030
      %v2032 = vpop.f32.mrb[0].mxu0
      %2033 = vmatprep.mubr.f32.mxu0 0.0
      %2034 = vmatmul.mubr.f32.gmra.mrb[0].mxu0 %v1844
      %v2035 = vpop.f32.mrb[0].mxu0
      %v2036 = vadd.f32 0.0, %v2035
      %v2037 = vpop.f32.mrb[0].mxu0
      %2038 = vmatprep.mubr.f32.mxu0 0.0
      %2039 = vmatmul.mubr.f32.gmra.mrb[0].mxu0 %v1847
      %v2040 = vpop.f32.mrb[0].mxu0
      %v2041 = vadd.f32 0.0, %v2040
      %v2042 = vpop.f32.mrb[0].mxu0
      %2043 = vmatprep.mubr.f32.mxu0 0.0
      %2044 = vmatmul.mubr.f32.gmra.mrb[0].mxu0 %v1850
      %v2045 = vpop.f32.mrb[0].mxu0
      %v2046 = vadd.f32 0.0, %v2045
      %v2047 = vpop.f32.mrb[0].mxu0
      %2048 = vmatprep.mubr.f32.mxu0 0.0
      %2049 = vmatmul.mubr.f32.gmra.mrb[0].mxu0 %v1853
      %v2050 = vpop.f32.mrb[0].mxu0
      %v2051 = vadd.f32 0.0, %v2050
      %v2052 = vpop.f32.mrb[0].mxu0
      %2053 = vmatprep.mubr.f32.mxu0 0.0
      %2054 = vmatmul.mubr.f32.gmra.mrb[0].mxu0 %v1856
      %v2055 = vpop.f32.mrb[0].mxu0
      %v2056 = vadd.f32 0.0, %v2055
      %v2057 = vpop.f32.mrb[0].mxu0
      %2058 = vmatprep.mubr.f32.mxu0 0.0
      %2059 = vmatmul.mubr.f32.gmra.mrb[0].mxu0 %v1859
      %v2060 = vpop.f32.mrb[0].mxu0
      %v2061 = vadd.f32 0.0, %v2060
      %v2062 = vpop.f32.mrb[0].mxu0
      %2063 = vmatprep.mubr.f32.mxu0 0.0
      %2064 = vmatmul.mubr.f32.gmra.mrb[0].mxu0 %v1862
      %v2065 = vpop.f32.mrb[0].mxu0
      %v2066 = vadd.f32 0.0, %v2065
      %v2067 = vpop.f32.mrb[0].mxu0
      %2068 = vmatprep.mubr.f32.mxu0 0.0
      %2069 = vmatmul.mubr.f32.gmra.mrb[0].mxu0 %v1865
      %v2070 = vpop.f32.mrb[0].mxu0
      %v2071 = vadd.f32 0.0, %v2070
      %v2072 = vpop.f32.mrb[0].mxu0
      %2073 = vmatprep.mubr.f32.mxu0 0.0
      %2074 = vmatmul.mubr.f32.gmra.mrb[0].mxu0 %v1868
      %v2075 = vpop.f32.mrb[0].mxu0
      %v2076 = vadd.f32 0.0, %v2075
      %v2077 = vpop.f32.mrb[0].mxu0
      %2078 = vmatprep.mubr.f32.mxu0 0.0
      %2079 = vmatmul.mubr.f32.gmra.mrb[0].mxu0 %v1871
      %v2080 = vpop.f32.mrb[0].mxu0
      %v2081 = vadd.f32 0.0, %v2080
      %v2082 = vpop.f32.mrb[0].mxu0
      %2083 = vmatprep.mubr.f32.mxu0 0.0
      %2084 = vmatmul.mubr.f32.gmra.mrb[0].mxu0 %v1874
      %v2085 = vpop.f32.mrb[0].mxu0
      %v2086 = vadd.f32 0.0, %v2085
      %v2087 = vpop.f32.mrb[0].mxu0
      %2088 = vmatprep.mubr.f32.mxu0 0.0
      %2089 = vmatmul.mubr.f32.gmra.mrb[0].mxu0 %v1877
      %v2090 = vpop.f32.mrb[0].mxu0
      %v2091 = vadd.f32 0.0, %v2090
      %v2092 = vpop.f32.mrb[0].mxu0
      %2093 = vmatprep.mubr.f32.mxu0 0.0
      %2094 = vmatmul.mubr.f32.gmra.mrb[0].mxu0 %v1880
      %v2095 = vpop.f32.mrb[0].mxu0
      %v2096 = vadd.f32 0.0, %v2095
      %v2097 = vpop.f32.mrb[0].mxu0
      %2098 = vmatprep.mubr.f32.mxu0 0.0
      %2099 = vmatmul.mubr.f32.gmra.mrb[0].mxu0 %v1883
      %v2100 = vpop.f32.mrb[0].mxu0
      %v2101 = vadd.f32 0.0, %v2100
      %v2102 = vpop.f32.mrb[0].mxu0
      %2103 = vmatprep.mubr.f32.mxu0 0.0
      %2104 = vmatmul.mubr.f32.gmra.mrb[0].mxu0 %v1886
      %v2105 = vpop.f32.mrb[0].mxu0
      %v2106 = vadd.f32 0.0, %v2105
      %v2107 = vpop.f32.mrb[0].mxu0
      %2108 = vmatprep.mubr.f32.mxu0 0.0
      %2109 = vmatmul.mubr.f32.gmra.mrb[0].mxu0 %v1889
      %v2110 = vpop.f32.mrb[0].mxu0
      %v2111 = vadd.f32 0.0, %v2110
      %v2112 = vpop.f32.mrb[0].mxu0
      %2113 = vmatprep.mubr.f32.mxu0 0.0
      %2114 = vmatmul.mubr.f32.gmra.mrb[0].mxu0 %v1892
      %v2115 = vpop.f32.mrb[0].mxu0
      %v2116 = vadd.f32 0.0, %v2115
      %v2117 = vpop.f32.mrb[0].mxu0
      %2118 = vdwg.mxu0
      %v2119 = vadd.f32 %v1637, %v1961
      %v2120 = vadd.f32 %v1642, %v1966
      %v2121 = vadd.f32 %v1647, %v1971
      %v2122 = vadd.f32 %v1652, %v1976
      %v2123 = vadd.f32 %v1657, %v1981
      %v2124 = vadd.f32 %v1662, %v1986
      %v2125 = vadd.f32 %v1667, %v1991
      %v2126 = vadd.f32 %v1672, %v1996
      %v2127 = vadd.f32 %v1677, %v2001
      %v2128 = vadd.f32 %v1682, %v2006
      %v2129 = vadd.f32 %v1687, %v2011
      %v2130 = vadd.f32 %v1692, %v2016
      %v2131 = vadd.f32 %v1697, %v2021
      %v2132 = vadd.f32 %v1702, %v2026
      %v2133 = vadd.f32 %v1707, %v2031
      %v2134 = vadd.f32 %v1712, %v2036
      %v2135 = vadd.f32 %v1717, %v2041
      %v2136 = vadd.f32 %v1722, %v2046
      %v2137 = vadd.f32 %v1727, %v2051
      %v2138 = vadd.f32 %v1732, %v2056
      %v2139 = vadd.f32 %v1737, %v2061
      %v2140 = vadd.f32 %v1742, %v2066
      %v2141 = vadd.f32 %v1747, %v2071
      %v2142 = vadd.f32 %v1752, %v2076
      %v2143 = vadd.f32 %v1757, %v2081
      %v2144 = vadd.f32 %v1762, %v2086
      %v2145 = vadd.f32 %v1767, %v2091
      %v2146 = vadd.f32 %v1772, %v2096
      %v2147 = vadd.f32 %v1777, %v2101
      %v2148 = vadd.f32 %v1782, %v2106
      %v2149 = vadd.f32 %v1787, %v2111
      %v2150 = vadd.f32 %v1792, %v2116
      %s2151 = scalar_lea.vmem %s1, 48
      %v2152 = vld [vmem:[%s2151] sm:$0xff]
      %v2153 = vld [vmem:[%s2151 + $0x8] sm:$0xff]
      %v2155 = vsel %vm552, %v1010, 0
      %v2158 = vsel %vm552, %v1011, 0
      %v2161 = vsel %vm552, %v1012, 0
      %v2164 = vsel %vm552, %v1013, 0
      %v2167 = vsel %vm552, %v1014, 0
      %v2170 = vsel %vm552, %v1015, 0
      %v2173 = vsel %vm552, %v1016, 0
      %v2176 = vsel %vm552, %v1017, 0
      %v2179 = vsel %vm552, %v1018, 0
      %v2182 = vsel %vm552, %v1019, 0
      %v2185 = vsel %vm552, %v1020, 0
      %v2188 = vsel %vm552, %v1021, 0
      %v2191 = vsel %vm552, %v1022, 0
      %v2194 = vsel %vm552, %v1023, 0
      %v2197 = vsel %vm552, %v1024, 0
      %v2200 = vsel %vm552, %v1025, 0
      %v2203 = vsel %vm552, %v1026, 0
      %v2206 = vsel %vm552, %v1027, 0
      %v2209 = vsel %vm552, %v1028, 0
      %v2212 = vsel %vm552, %v1029, 0
      %v2215 = vsel %vm552, %v1030, 0
      %v2218 = vsel %vm552, %v1031, 0
      %v2221 = vsel %vm552, %v1032, 0
      %v2224 = vsel %vm552, %v1033, 0
      %v2227 = vsel %vm552, %v1034, 0
      %v2230 = vsel %vm552, %v1035, 0
      %v2233 = vsel %vm552, %v1036, 0
      %v2236 = vsel %vm552, %v1037, 0
      %v2239 = vsel %vm552, %v1038, 0
      %v2242 = vsel %vm552, %v1039, 0
      %v2245 = vsel %vm552, %v1040, 0
      %v2248 = vsel %vm552, %v1041, 0
      %2250 = vmatprep.subr.mxu0 0.0
      %2251 = vmatpush1.msra.mxu0 %v2152
      %2252 = vmatprep.subr.mxu0 0.0
      %2253 = vmatpush1.msra.mxu0 %v2153
      %2254 = vmatprep.subr.mxu0 0.0
      %2255 = vmatpush1.msra.mxu0 0.0
      %2256 = vmatprep.subr.mxu0 0.0
      %2257 = vmatpush1.msra.mxu0 0.0
      %2258 = vmatprep.subr.mxu0 0.0
      %2259 = vmatpush1.msra.mxu0 0.0
      %2260 = vmatprep.subr.mxu0 0.0
      %2261 = vmatpush1.msra.mxu0 0.0
      %2262 = vmatprep.subr.mxu0 0.0
      %2263 = vmatpush1.msra.mxu0 0.0
      %2264 = vmatprep.subr.mxu0 0.0
      %2265 = vmatpush1.msra.mxu0 0.0
      %2266 = vmatprep.subr.mxu0 0.0
      %2267 = vmatpush1.msra.mxu0 0.0
      %2268 = vmatprep.subr.mxu0 0.0
      %2269 = vmatpush1.msra.mxu0 0.0
      %2270 = vmatprep.subr.mxu0 0.0
      %2271 = vmatpush1.msra.mxu0 0.0
      %2272 = vmatprep.subr.mxu0 0.0
      %2273 = vmatpush1.msra.mxu0 0.0
      %2274 = vmatprep.subr.mxu0 0.0
      %2275 = vmatpush1.msra.mxu0 0.0
      %2276 = vmatprep.subr.mxu0 0.0
      %2277 = vmatpush1.msra.mxu0 0.0
      %2278 = vmatprep.subr.mxu0 0.0
      %2279 = vmatpush1.msra.mxu0 0.0
      %2280 = vmatprep.subr.mxu0 0.0
      %2281 = vmatpush1.msra.mxu0 0.0
      %2282 = vmatprep.subr.mxu0 0.0
      %2283 = vmatpush1.msra.mxu0 0.0
      %2284 = vmatprep.subr.mxu0 0.0
      %2285 = vmatpush1.msra.mxu0 0.0
      %2286 = vmatprep.subr.mxu0 0.0
      %2287 = vmatpush1.msra.mxu0 0.0
      %2288 = vmatprep.subr.mxu0 0.0
      %2289 = vmatpush1.msra.mxu0 0.0
      %2290 = vmatprep.subr.mxu0 0.0
      %2291 = vmatpush1.msra.mxu0 0.0
      %2292 = vmatprep.subr.mxu0 0.0
      %2293 = vmatpush1.msra.mxu0 0.0
      %2294 = vmatprep.subr.mxu0 0.0
      %2295 = vmatpush1.msra.mxu0 0.0
      %2296 = vmatprep.subr.mxu0 0.0
      %2297 = vmatpush1.msra.mxu0 0.0
      %2298 = vmatprep.subr.mxu0 0.0
      %2299 = vmatpush1.msra.mxu0 0.0
      %2300 = vmatprep.subr.mxu0 0.0
      %2301 = vmatpush1.msra.mxu0 0.0
      %2302 = vmatprep.subr.mxu0 0.0
      %2303 = vmatpush1.msra.mxu0 0.0
      %2304 = vmatprep.subr.mxu0 0.0
      %2305 = vmatpush1.msra.mxu0 0.0
      %2306 = vmatprep.subr.mxu0 0.0
      %2307 = vmatpush1.msra.mxu0 0.0
      %2308 = vmatprep.subr.mxu0 0.0
      %2309 = vmatpush1.msra.mxu0 0.0
      %2310 = vmatprep.subr.mxu0 0.0
      %2311 = vmatpush1.msra.mxu0 0.0
      %2312 = vmatprep.subr.mxu0 0.0
      %2313 = vmatpush1.msra.mxu0 0.0
      %2314 = vmatprep.mubr.f32.mxu0 0.0
      %2315 = vmatmul.mubr.f32.gmra.mrb[0].mxu0 %v2155
      %v2316 = vpop.f32.mrb[0].mxu0
      %v2317 = vadd.f32 0.0, %v2316
      %v2318 = vpop.f32.mrb[0].mxu0
      %2319 = vmatprep.mubr.f32.mxu0 0.0
      %2320 = vmatmul.mubr.f32.gmra.mrb[0].mxu0 %v2158
      %v2321 = vpop.f32.mrb[0].mxu0
      %v2322 = vadd.f32 0.0, %v2321
      %v2323 = vpop.f32.mrb[0].mxu0
      %2324 = vmatprep.mubr.f32.mxu0 0.0
      %2325 = vmatmul.mubr.f32.gmra.mrb[0].mxu0 %v2161
      %v2326 = vpop.f32.mrb[0].mxu0
      %v2327 = vadd.f32 0.0, %v2326
      %v2328 = vpop.f32.mrb[0].mxu0
      %2329 = vmatprep.mubr.f32.mxu0 0.0
      %2330 = vmatmul.mubr.f32.gmra.mrb[0].mxu0 %v2164
      %v2331 = vpop.f32.mrb[0].mxu0
      %v2332 = vadd.f32 0.0, %v2331
      %v2333 = vpop.f32.mrb[0].mxu0
      %2334 = vmatprep.mubr.f32.mxu0 0.0
      %2335 = vmatmul.mubr.f32.gmra.mrb[0].mxu0 %v2167
      %v2336 = vpop.f32.mrb[0].mxu0
      %v2337 = vadd.f32 0.0, %v2336
      %v2338 = vpop.f32.mrb[0].mxu0
      %2339 = vmatprep.mubr.f32.mxu0 0.0
      %2340 = vmatmul.mubr.f32.gmra.mrb[0].mxu0 %v2170
      %v2341 = vpop.f32.mrb[0].mxu0
      %v2342 = vadd.f32 0.0, %v2341
      %v2343 = vpop.f32.mrb[0].mxu0
      %2344 = vmatprep.mubr.f32.mxu0 0.0
      %2345 = vmatmul.mubr.f32.gmra.mrb[0].mxu0 %v2173
      %v2346 = vpop.f32.mrb[0].mxu0
      %v2347 = vadd.f32 0.0, %v2346
      %v2348 = vpop.f32.mrb[0].mxu0
      %2349 = vmatprep.mubr.f32.mxu0 0.0
      %2350 = vmatmul.mubr.f32.gmra.mrb[0].mxu0 %v2176
      %v2351 = vpop.f32.mrb[0].mxu0
      %v2352 = vadd.f32 0.0, %v2351
      %v2353 = vpop.f32.mrb[0].mxu0
      %2354 = vmatprep.mubr.f32.mxu0 0.0
      %2355 = vmatmul.mubr.f32.gmra.mrb[0].mxu0 %v2179
      %v2356 = vpop.f32.mrb[0].mxu0
      %v2357 = vadd.f32 0.0, %v2356
      %v2358 = vpop.f32.mrb[0].mxu0
      %2359 = vmatprep.mubr.f32.mxu0 0.0
      %2360 = vmatmul.mubr.f32.gmra.mrb[0].mxu0 %v2182
      %v2361 = vpop.f32.mrb[0].mxu0
      %v2362 = vadd.f32 0.0, %v2361
      %v2363 = vpop.f32.mrb[0].mxu0
      %2364 = vmatprep.mubr.f32.mxu0 0.0
      %2365 = vmatmul.mubr.f32.gmra.mrb[0].mxu0 %v2185
      %v2366 = vpop.f32.mrb[0].mxu0
      %v2367 = vadd.f32 0.0, %v2366
      %v2368 = vpop.f32.mrb[0].mxu0
      %2369 = vmatprep.mubr.f32.mxu0 0.0
      %2370 = vmatmul.mubr.f32.gmra.mrb[0].mxu0 %v2188
      %v2371 = vpop.f32.mrb[0].mxu0
      %v2372 = vadd.f32 0.0, %v2371
      %v2373 = vpop.f32.mrb[0].mxu0
      %2374 = vmatprep.mubr.f32.mxu0 0.0
      %2375 = vmatmul.mubr.f32.gmra.mrb[0].mxu0 %v2191
      %v2376 = vpop.f32.mrb[0].mxu0
      %v2377 = vadd.f32 0.0, %v2376
      %v2378 = vpop.f32.mrb[0].mxu0
      %2379 = vmatprep.mubr.f32.mxu0 0.0
      %2380 = vmatmul.mubr.f32.gmra.mrb[0].mxu0 %v2194
      %v2381 = vpop.f32.mrb[0].mxu0
      %v2382 = vadd.f32 0.0, %v2381
      %v2383 = vpop.f32.mrb[0].mxu0
      %2384 = vmatprep.mubr.f32.mxu0 0.0
      %2385 = vmatmul.mubr.f32.gmra.mrb[0].mxu0 %v2197
      %v2386 = vpop.f32.mrb[0].mxu0
      %v2387 = vadd.f32 0.0, %v2386
      %v2388 = vpop.f32.mrb[0].mxu0
      %2389 = vmatprep.mubr.f32.mxu0 0.0
      %2390 = vmatmul.mubr.f32.gmra.mrb[0].mxu0 %v2200
      %v2391 = vpop.f32.mrb[0].mxu0
      %v2392 = vadd.f32 0.0, %v2391
      %v2393 = vpop.f32.mrb[0].mxu0
      %2394 = vmatprep.mubr.f32.mxu0 0.0
      %2395 = vmatmul.mubr.f32.gmra.mrb[0].mxu0 %v2203
      %v2396 = vpop.f32.mrb[0].mxu0
      %v2397 = vadd.f32 0.0, %v2396
      %v2398 = vpop.f32.mrb[0].mxu0
      %2399 = vmatprep.mubr.f32.mxu0 0.0
      %2400 = vmatmul.mubr.f32.gmra.mrb[0].mxu0 %v2206
      %v2401 = vpop.f32.mrb[0].mxu0
      %v2402 = vadd.f32 0.0, %v2401
      %v2403 = vpop.f32.mrb[0].mxu0
      %2404 = vmatprep.mubr.f32.mxu0 0.0
      %2405 = vmatmul.mubr.f32.gmra.mrb[0].mxu0 %v2209
      %v2406 = vpop.f32.mrb[0].mxu0
      %v2407 = vadd.f32 0.0, %v2406
      %v2408 = vpop.f32.mrb[0].mxu0
      %2409 = vmatprep.mubr.f32.mxu0 0.0
      %2410 = vmatmul.mubr.f32.gmra.mrb[0].mxu0 %v2212
      %v2411 = vpop.f32.mrb[0].mxu0
      %v2412 = vadd.f32 0.0, %v2411
      %v2413 = vpop.f32.mrb[0].mxu0
      %2414 = vmatprep.mubr.f32.mxu0 0.0
      %2415 = vmatmul.mubr.f32.gmra.mrb[0].mxu0 %v2215
      %v2416 = vpop.f32.mrb[0].mxu0
      %v2417 = vadd.f32 0.0, %v2416
      %v2418 = vpop.f32.mrb[0].mxu0
      %2419 = vmatprep.mubr.f32.mxu0 0.0
      %2420 = vmatmul.mubr.f32.gmra.mrb[0].mxu0 %v2218
      %v2421 = vpop.f32.mrb[0].mxu0
      %v2422 = vadd.f32 0.0, %v2421
      %v2423 = vpop.f32.mrb[0].mxu0
      %2424 = vmatprep.mubr.f32.mxu0 0.0
      %2425 = vmatmul.mubr.f32.gmra.mrb[0].mxu0 %v2221
      %v2426 = vpop.f32.mrb[0].mxu0
      %v2427 = vadd.f32 0.0, %v2426
      %v2428 = vpop.f32.mrb[0].mxu0
      %2429 = vmatprep.mubr.f32.mxu0 0.0
      %2430 = vmatmul.mubr.f32.gmra.mrb[0].mxu0 %v2224
      %v2431 = vpop.f32.mrb[0].mxu0
      %v2432 = vadd.f32 0.0, %v2431
      %v2433 = vpop.f32.mrb[0].mxu0
      %2434 = vmatprep.mubr.f32.mxu0 0.0
      %2435 = vmatmul.mubr.f32.gmra.mrb[0].mxu0 %v2227
      %v2436 = vpop.f32.mrb[0].mxu0
      %v2437 = vadd.f32 0.0, %v2436
      %v2438 = vpop.f32.mrb[0].mxu0
      %2439 = vmatprep.mubr.f32.mxu0 0.0
      %2440 = vmatmul.mubr.f32.gmra.mrb[0].mxu0 %v2230
      %v2441 = vpop.f32.mrb[0].mxu0
      %v2442 = vadd.f32 0.0, %v2441
      %v2443 = vpop.f32.mrb[0].mxu0
      %2444 = vmatprep.mubr.f32.mxu0 0.0
      %2445 = vmatmul.mubr.f32.gmra.mrb[0].mxu0 %v2233
      %v2446 = vpop.f32.mrb[0].mxu0
      %v2447 = vadd.f32 0.0, %v2446
      %v2448 = vpop.f32.mrb[0].mxu0
      %2449 = vmatprep.mubr.f32.mxu0 0.0
      %2450 = vmatmul.mubr.f32.gmra.mrb[0].mxu0 %v2236
      %v2451 = vpop.f32.mrb[0].mxu0
      %v2452 = vadd.f32 0.0, %v2451
      %v2453 = vpop.f32.mrb[0].mxu0
      %2454 = vmatprep.mubr.f32.mxu0 0.0
      %2455 = vmatmul.mubr.f32.gmra.mrb[0].mxu0 %v2239
      %v2456 = vpop.f32.mrb[0].mxu0
      %v2457 = vadd.f32 0.0, %v2456
      %v2458 = vpop.f32.mrb[0].mxu0
      %2459 = vmatprep.mubr.f32.mxu0 0.0
      %2460 = vmatmul.mubr.f32.gmra.mrb[0].mxu0 %v2242
      %v2461 = vpop.f32.mrb[0].mxu0
      %v2462 = vadd.f32 0.0, %v2461
      %v2463 = vpop.f32.mrb[0].mxu0
      %2464 = vmatprep.mubr.f32.mxu0 0.0
      %2465 = vmatmul.mubr.f32.gmra.mrb[0].mxu0 %v2245
      %v2466 = vpop.f32.mrb[0].mxu0
      %v2467 = vadd.f32 0.0, %v2466
      %v2468 = vpop.f32.mrb[0].mxu0
      %2469 = vmatprep.mubr.f32.mxu0 0.0
      %2470 = vmatmul.mubr.f32.gmra.mrb[0].mxu0 %v2248
      %v2471 = vpop.f32.mrb[0].mxu0
      %v2472 = vadd.f32 0.0, %v2471
      %v2473 = vpop.f32.mrb[0].mxu0
      %2474 = vdwg.mxu0
      %v2475 = vadd.f32 %v2119, %v2317
      %v2476 = vadd.f32 %v2120, %v2322
      %v2477 = vadd.f32 %v2121, %v2327
      %v2478 = vadd.f32 %v2122, %v2332
      %v2479 = vadd.f32 %v2123, %v2337
      %v2480 = vadd.f32 %v2124, %v2342
      %v2481 = vadd.f32 %v2125, %v2347
      %v2482 = vadd.f32 %v2126, %v2352
      %v2483 = vadd.f32 %v2127, %v2357
      %v2484 = vadd.f32 %v2128, %v2362
      %v2485 = vadd.f32 %v2129, %v2367
      %v2486 = vadd.f32 %v2130, %v2372
      %v2487 = vadd.f32 %v2131, %v2377
      %v2488 = vadd.f32 %v2132, %v2382
      %v2489 = vadd.f32 %v2133, %v2387
      %v2490 = vadd.f32 %v2134, %v2392
      %v2491 = vadd.f32 %v2135, %v2397
      %v2492 = vadd.f32 %v2136, %v2402
      %v2493 = vadd.f32 %v2137, %v2407
      %v2494 = vadd.f32 %v2138, %v2412
      %v2495 = vadd.f32 %v2139, %v2417
      %v2496 = vadd.f32 %v2140, %v2422
      %v2497 = vadd.f32 %v2141, %v2427
      %v2498 = vadd.f32 %v2142, %v2432
      %v2499 = vadd.f32 %v2143, %v2437
      %v2500 = vadd.f32 %v2144, %v2442
      %v2501 = vadd.f32 %v2145, %v2447
      %v2502 = vadd.f32 %v2146, %v2452
      %v2503 = vadd.f32 %v2147, %v2457
      %v2504 = vadd.f32 %v2148, %v2462
      %v2505 = vadd.f32 %v2149, %v2467
      %v2506 = vadd.f32 %v2150, %v2472
      %s2507 = scalar_lea.vmem %s1, 64
      %v2508 = vld [vmem:[%s2507] sm:$0xff]
      %v2509 = vld [vmem:[%s2507 + $0x8] sm:$0xff]
      %v2511 = vsel %vm552, %v1042, 0
      %v2514 = vsel %vm552, %v1043, 0
      %2516 = vmatprep.subr.mxu0 0.0
      %2517 = vmatpush1.msra.mxu0 %v2508
      %2518 = vmatprep.subr.mxu0 0.0
      %2519 = vmatpush1.msra.mxu0 %v2509
      %2520 = vmatprep.subr.mxu0 0.0
      %2521 = vmatpush1.msra.mxu0 0.0
      %2522 = vmatprep.subr.mxu0 0.0
      %2523 = vmatpush1.msra.mxu0 0.0
      %2524 = vmatprep.subr.mxu0 0.0
      %2525 = vmatpush1.msra.mxu0 0.0
      %2526 = vmatprep.subr.mxu0 0.0
      %2527 = vmatpush1.msra.mxu0 0.0
      %2528 = vmatprep.subr.mxu0 0.0
      %2529 = vmatpush1.msra.mxu0 0.0
      %2530 = vmatprep.subr.mxu0 0.0
      %2531 = vmatpush1.msra.mxu0 0.0
      %2532 = vmatprep.subr.mxu0 0.0
      %2533 = vmatpush1.msra.mxu0 0.0
      %2534 = vmatprep.subr.mxu0 0.0
      %2535 = vmatpush1.msra.mxu0 0.0
      %2536 = vmatprep.subr.mxu0 0.0
      %2537 = vmatpush1.msra.mxu0 0.0
      %2538 = vmatprep.subr.mxu0 0.0
      %2539 = vmatpush1.msra.mxu0 0.0
      %2540 = vmatprep.subr.mxu0 0.0
      %2541 = vmatpush1.msra.mxu0 0.0
      %2542 = vmatprep.subr.mxu0 0.0
      %2543 = vmatpush1.msra.mxu0 0.0
      %2544 = vmatprep.subr.mxu0 0.0
      %2545 = vmatpush1.msra.mxu0 0.0
      %2546 = vmatprep.subr.mxu0 0.0
      %2547 = vmatpush1.msra.mxu0 0.0
      %2548 = vmatprep.subr.mxu0 0.0
      %2549 = vmatpush1.msra.mxu0 0.0
      %2550 = vmatprep.subr.mxu0 0.0
      %2551 = vmatpush1.msra.mxu0 0.0
      %2552 = vmatprep.subr.mxu0 0.0
      %2553 = vmatpush1.msra.mxu0 0.0
      %2554 = vmatprep.subr.mxu0 0.0
      %2555 = vmatpush1.msra.mxu0 0.0
      %2556 = vmatprep.subr.mxu0 0.0
      %2557 = vmatpush1.msra.mxu0 0.0
      %2558 = vmatprep.subr.mxu0 0.0
      %2559 = vmatpush1.msra.mxu0 0.0
      %2560 = vmatprep.subr.mxu0 0.0
      %2561 = vmatpush1.msra.mxu0 0.0
      %2562 = vmatprep.subr.mxu0 0.0
      %2563 = vmatpush1.msra.mxu0 0.0
      %2564 = vmatprep.subr.mxu0 0.0
      %2565 = vmatpush1.msra.mxu0 0.0
      %2566 = vmatprep.subr.mxu0 0.0
      %2567 = vmatpush1.msra.mxu0 0.0
      %2568 = vmatprep.subr.mxu0 0.0
      %2569 = vmatpush1.msra.mxu0 0.0
      %2570 = vmatprep.subr.mxu0 0.0
      %2571 = vmatpush1.msra.mxu0 0.0
      %2572 = vmatprep.subr.mxu0 0.0
      %2573 = vmatpush1.msra.mxu0 0.0
      %2574 = vmatprep.subr.mxu0 0.0
      %2575 = vmatpush1.msra.mxu0 0.0
      %2576 = vmatprep.subr.mxu0 0.0
      %2577 = vmatpush1.msra.mxu0 0.0
      %2578 = vmatprep.subr.mxu0 0.0
      %2579 = vmatpush1.msra.mxu0 0.0
      %2580 = vmatprep.mubr.f32.mxu0 0.0
      %2581 = vmatmul.mubr.f32.gmra.mrb[0].mxu0 %v1160
      %v2582 = vpop.f32.mrb[0].mxu0
      %v2583 = vadd.f32 0.0, %v2582
      %v2584 = vpop.f32.mrb[0].mxu0
      %2585 = vmatprep.mubr.f32.mxu0 0.0
      %2586 = vmatmul.mubr.f32.gmra.mrb[0].mxu0 %v1163
      %v2587 = vpop.f32.mrb[0].mxu0
      %v2588 = vadd.f32 0.0, %v2587
      %v2589 = vpop.f32.mrb[0].mxu0
      %2590 = vmatprep.mubr.f32.mxu0 0.0
      %2591 = vmatmul.mubr.f32.gmra.mrb[0].mxu0 %v1166
      %v2592 = vpop.f32.mrb[0].mxu0
      %v2593 = vadd.f32 0.0, %v2592
      %v2594 = vpop.f32.mrb[0].mxu0
      %2595 = vmatprep.mubr.f32.mxu0 0.0
      %2596 = vmatmul.mubr.f32.gmra.mrb[0].mxu0 %v1169
      %v2597 = vpop.f32.mrb[0].mxu0
      %v2598 = vadd.f32 0.0, %v2597
      %v2599 = vpop.f32.mrb[0].mxu0
      %2600 = vmatprep.mubr.f32.mxu0 0.0
      %2601 = vmatmul.mubr.f32.gmra.mrb[0].mxu0 %v1172
      %v2602 = vpop.f32.mrb[0].mxu0
      %v2603 = vadd.f32 0.0, %v2602
      %v2604 = vpop.f32.mrb[0].mxu0
      %2605 = vmatprep.mubr.f32.mxu0 0.0
      %2606 = vmatmul.mubr.f32.gmra.mrb[0].mxu0 %v1175
      %v2607 = vpop.f32.mrb[0].mxu0
      %v2608 = vadd.f32 0.0, %v2607
      %v2609 = vpop.f32.mrb[0].mxu0
      %2610 = vmatprep.mubr.f32.mxu0 0.0
      %2611 = vmatmul.mubr.f32.gmra.mrb[0].mxu0 %v1178
      %v2612 = vpop.f32.mrb[0].mxu0
      %v2613 = vadd.f32 0.0, %v2612
      %v2614 = vpop.f32.mrb[0].mxu0
      %2615 = vmatprep.mubr.f32.mxu0 0.0
      %2616 = vmatmul.mubr.f32.gmra.mrb[0].mxu0 %v1181
      %v2617 = vpop.f32.mrb[0].mxu0
      %v2618 = vadd.f32 0.0, %v2617
      %v2619 = vpop.f32.mrb[0].mxu0
      %2620 = vmatprep.mubr.f32.mxu0 0.0
      %2621 = vmatmul.mubr.f32.gmra.mrb[0].mxu0 %v1184
      %v2622 = vpop.f32.mrb[0].mxu0
      %v2623 = vadd.f32 0.0, %v2622
      %v2624 = vpop.f32.mrb[0].mxu0
      %2625 = vmatprep.mubr.f32.mxu0 0.0
      %2626 = vmatmul.mubr.f32.gmra.mrb[0].mxu0 %v1187
      %v2627 = vpop.f32.mrb[0].mxu0
      %v2628 = vadd.f32 0.0, %v2627
      %v2629 = vpop.f32.mrb[0].mxu0
      %2630 = vmatprep.mubr.f32.mxu0 0.0
      %2631 = vmatmul.mubr.f32.gmra.mrb[0].mxu0 %v1190
      %v2632 = vpop.f32.mrb[0].mxu0
      %v2633 = vadd.f32 0.0, %v2632
      %v2634 = vpop.f32.mrb[0].mxu0
      %2635 = vmatprep.mubr.f32.mxu0 0.0
      %2636 = vmatmul.mubr.f32.gmra.mrb[0].mxu0 %v1193
      %v2637 = vpop.f32.mrb[0].mxu0
      %v2638 = vadd.f32 0.0, %v2637
      %v2639 = vpop.f32.mrb[0].mxu0
      %2640 = vmatprep.mubr.f32.mxu0 0.0
      %2641 = vmatmul.mubr.f32.gmra.mrb[0].mxu0 %v1196
      %v2642 = vpop.f32.mrb[0].mxu0
      %v2643 = vadd.f32 0.0, %v2642
      %v2644 = vpop.f32.mrb[0].mxu0
      %2645 = vmatprep.mubr.f32.mxu0 0.0
      %2646 = vmatmul.mubr.f32.gmra.mrb[0].mxu0 %v1199
      %v2647 = vpop.f32.mrb[0].mxu0
      %v2648 = vadd.f32 0.0, %v2647
      %v2649 = vpop.f32.mrb[0].mxu0
      %2650 = vmatprep.mubr.f32.mxu0 0.0
      %2651 = vmatmul.mubr.f32.gmra.mrb[0].mxu0 %v1202
      %v2652 = vpop.f32.mrb[0].mxu0
      %v2653 = vadd.f32 0.0, %v2652
      %v2654 = vpop.f32.mrb[0].mxu0
      %2655 = vmatprep.mubr.f32.mxu0 0.0
      %2656 = vmatmul.mubr.f32.gmra.mrb[0].mxu0 %v1205
      %v2657 = vpop.f32.mrb[0].mxu0
      %v2658 = vadd.f32 0.0, %v2657
      %v2659 = vpop.f32.mrb[0].mxu0
      %2660 = vmatprep.mubr.f32.mxu0 0.0
      %2661 = vmatmul.mubr.f32.gmra.mrb[0].mxu0 %v1208
      %v2662 = vpop.f32.mrb[0].mxu0
      %v2663 = vadd.f32 0.0, %v2662
      %v2664 = vpop.f32.mrb[0].mxu0
      %2665 = vmatprep.mubr.f32.mxu0 0.0
      %2666 = vmatmul.mubr.f32.gmra.mrb[0].mxu0 %v1211
      %v2667 = vpop.f32.mrb[0].mxu0
      %v2668 = vadd.f32 0.0, %v2667
      %v2669 = vpop.f32.mrb[0].mxu0
      %2670 = vmatprep.mubr.f32.mxu0 0.0
      %2671 = vmatmul.mubr.f32.gmra.mrb[0].mxu0 %v1214
      %v2672 = vpop.f32.mrb[0].mxu0
      %v2673 = vadd.f32 0.0, %v2672
      %v2674 = vpop.f32.mrb[0].mxu0
      %2675 = vmatprep.mubr.f32.mxu0 0.0
      %2676 = vmatmul.mubr.f32.gmra.mrb[0].mxu0 %v1217
      %v2677 = vpop.f32.mrb[0].mxu0
      %v2678 = vadd.f32 0.0, %v2677
      %v2679 = vpop.f32.mrb[0].mxu0
      %2680 = vmatprep.mubr.f32.mxu0 0.0
      %2681 = vmatmul.mubr.f32.gmra.mrb[0].mxu0 %v1220
      %v2682 = vpop.f32.mrb[0].mxu0
      %v2683 = vadd.f32 0.0, %v2682
      %v2684 = vpop.f32.mrb[0].mxu0
      %2685 = vmatprep.mubr.f32.mxu0 0.0
      %2686 = vmatmul.mubr.f32.gmra.mrb[0].mxu0 %v1223
      %v2687 = vpop.f32.mrb[0].mxu0
      %v2688 = vadd.f32 0.0, %v2687
      %v2689 = vpop.f32.mrb[0].mxu0
      %2690 = vmatprep.mubr.f32.mxu0 0.0
      %2691 = vmatmul.mubr.f32.gmra.mrb[0].mxu0 %v1226
      %v2692 = vpop.f32.mrb[0].mxu0
      %v2693 = vadd.f32 0.0, %v2692
      %v2694 = vpop.f32.mrb[0].mxu0
      %2695 = vmatprep.mubr.f32.mxu0 0.0
      %2696 = vmatmul.mubr.f32.gmra.mrb[0].mxu0 %v1229
      %v2697 = vpop.f32.mrb[0].mxu0
      %v2698 = vadd.f32 0.0, %v2697
      %v2699 = vpop.f32.mrb[0].mxu0
      %2700 = vmatprep.mubr.f32.mxu0 0.0
      %2701 = vmatmul.mubr.f32.gmra.mrb[0].mxu0 %v1232
      %v2702 = vpop.f32.mrb[0].mxu0
      %v2703 = vadd.f32 0.0, %v2702
      %v2704 = vpop.f32.mrb[0].mxu0
      %2705 = vmatprep.mubr.f32.mxu0 0.0
      %2706 = vmatmul.mubr.f32.gmra.mrb[0].mxu0 %v1235
      %v2707 = vpop.f32.mrb[0].mxu0
      %v2708 = vadd.f32 0.0, %v2707
      %v2709 = vpop.f32.mrb[0].mxu0
      %2710 = vmatprep.mubr.f32.mxu0 0.0
      %2711 = vmatmul.mubr.f32.gmra.mrb[0].mxu0 %v1238
      %v2712 = vpop.f32.mrb[0].mxu0
      %v2713 = vadd.f32 0.0, %v2712
      %v2714 = vpop.f32.mrb[0].mxu0
      %2715 = vmatprep.mubr.f32.mxu0 0.0
      %2716 = vmatmul.mubr.f32.gmra.mrb[0].mxu0 %v1241
      %v2717 = vpop.f32.mrb[0].mxu0
      %v2718 = vadd.f32 0.0, %v2717
      %v2719 = vpop.f32.mrb[0].mxu0
      %2720 = vmatprep.mubr.f32.mxu0 0.0
      %2721 = vmatmul.mubr.f32.gmra.mrb[0].mxu0 %v1244
      %v2722 = vpop.f32.mrb[0].mxu0
      %v2723 = vadd.f32 0.0, %v2722
      %v2724 = vpop.f32.mrb[0].mxu0
      %2725 = vmatprep.mubr.f32.mxu0 0.0
      %2726 = vmatmul.mubr.f32.gmra.mrb[0].mxu0 %v1247
      %v2727 = vpop.f32.mrb[0].mxu0
      %v2728 = vadd.f32 0.0, %v2727
      %v2729 = vpop.f32.mrb[0].mxu0
      %2730 = vmatprep.mubr.f32.mxu0 0.0
      %2731 = vmatmul.mubr.f32.gmra.mrb[0].mxu0 %v2511
      %v2732 = vpop.f32.mrb[0].mxu0
      %v2733 = vadd.f32 0.0, %v2732
      %v2734 = vpop.f32.mrb[0].mxu0
      %2735 = vmatprep.mubr.f32.mxu0 0.0
      %2736 = vmatmul.mubr.f32.gmra.mrb[0].mxu0 %v2514
      %v2737 = vpop.f32.mrb[0].mxu0
      %v2738 = vadd.f32 0.0, %v2737
      %v2739 = vpop.f32.mrb[0].mxu0
      %2740 = vdwg.mxu0
      %v2741 = vadd.f32 %v2475, %v2583
      %v2742 = vadd.f32 %v2476, %v2588
      %v2743 = vadd.f32 %v2477, %v2593
      %v2744 = vadd.f32 %v2478, %v2598
      %v2745 = vadd.f32 %v2479, %v2603
      %v2746 = vadd.f32 %v2480, %v2608
      %v2747 = vadd.f32 %v2481, %v2613
      %v2748 = vadd.f32 %v2482, %v2618
      %v2749 = vadd.f32 %v2483, %v2623
      %v2750 = vadd.f32 %v2484, %v2628
      %v2751 = vadd.f32 %v2485, %v2633
      %v2752 = vadd.f32 %v2486, %v2638
      %v2753 = vadd.f32 %v2487, %v2643
      %v2754 = vadd.f32 %v2488, %v2648
      %v2755 = vadd.f32 %v2489, %v2653
      %v2756 = vadd.f32 %v2490, %v2658
      %v2757 = vadd.f32 %v2491, %v2663
      %v2758 = vadd.f32 %v2492, %v2668
      %v2759 = vadd.f32 %v2493, %v2673
      %v2760 = vadd.f32 %v2494, %v2678
      %v2761 = vadd.f32 %v2495, %v2683
      %v2762 = vadd.f32 %v2496, %v2688
      %v2763 = vadd.f32 %v2497, %v2693
      %v2764 = vadd.f32 %v2498, %v2698
      %v2765 = vadd.f32 %v2499, %v2703
      %v2766 = vadd.f32 %v2500, %v2708
      %v2767 = vadd.f32 %v2501, %v2713
      %v2768 = vadd.f32 %v2502, %v2718
      %v2769 = vadd.f32 %v2503, %v2723
      %v2770 = vadd.f32 %v2504, %v2728
      %v2771 = vadd.f32 %v2505, %v2733
      %v2772 = vadd.f32 %v2506, %v2738
      %s2773 = scalar_lea.vmem %s1, 80
      %v2774 = vld [vmem:[%s2773] sm:$0xff]
      %v2775 = vld [vmem:[%s2773 + $0x8] sm:$0xff]
      %v2777 = vsel %vm552, %v1046, 0
      %v2780 = vsel %vm552, %v1047, 0
      %v2783 = vsel %vm552, %v1048, 0
      %v2786 = vsel %vm552, %v1049, 0
      %v2789 = vsel %vm552, %v1050, 0
      %v2792 = vsel %vm552, %v1051, 0
      %v2795 = vsel %vm552, %v1052, 0
      %v2798 = vsel %vm552, %v1053, 0
      %v2801 = vsel %vm552, %v1054, 0
      %v2804 = vsel %vm552, %v1055, 0
      %v2807 = vsel %vm552, %v1056, 0
      %v2810 = vsel %vm552, %v1057, 0
      %v2813 = vsel %vm552, %v1058, 0
      %v2816 = vsel %vm552, %v1059, 0
      %v2819 = vsel %vm552, %v1060, 0
      %v2822 = vsel %vm552, %v1061, 0
      %v2825 = vsel %vm552, %v1062, 0
      %v2828 = vsel %vm552, %v1063, 0
      %v2831 = vsel %vm552, %v1064, 0
      %v2834 = vsel %vm552, %v1065, 0
      %v2837 = vsel %vm552, %v1066, 0
      %v2840 = vsel %vm552, %v1067, 0
      %v2843 = vsel %vm552, %v1068, 0
      %v2846 = vsel %vm552, %v1069, 0
      %v2849 = vsel %vm552, %v1070, 0
      %v2852 = vsel %vm552, %v1071, 0
      %v2855 = vsel %vm552, %v1072, 0
      %v2858 = vsel %vm552, %v1073, 0
      %v2861 = vsel %vm552, %v1074, 0
      %v2864 = vsel %vm552, %v1075, 0
      %v2867 = vsel %vm552, %v1076, 0
      %v2870 = vsel %vm552, %v1077, 0
      %2872 = vmatprep.subr.mxu0 0.0
      %2873 = vmatpush1.msra.mxu0 %v2774
      %2874 = vmatprep.subr.mxu0 0.0
      %2875 = vmatpush1.msra.mxu0 %v2775
      %2876 = vmatprep.subr.mxu0 0.0
      %2877 = vmatpush1.msra.mxu0 0.0
      %2878 = vmatprep.subr.mxu0 0.0
      %2879 = vmatpush1.msra.mxu0 0.0
      %2880 = vmatprep.subr.mxu0 0.0
      %2881 = vmatpush1.msra.mxu0 0.0
      %2882 = vmatprep.subr.mxu0 0.0
      %2883 = vmatpush1.msra.mxu0 0.0
      %2884 = vmatprep.subr.mxu0 0.0
      %2885 = vmatpush1.msra.mxu0 0.0
      %2886 = vmatprep.subr.mxu0 0.0
      %2887 = vmatpush1.msra.mxu0 0.0
      %2888 = vmatprep.subr.mxu0 0.0
      %2889 = vmatpush1.msra.mxu0 0.0
      %2890 = vmatprep.subr.mxu0 0.0
      %2891 = vmatpush1.msra.mxu0 0.0
      %2892 = vmatprep.subr.mxu0 0.0
      %2893 = vmatpush1.msra.mxu0 0.0
      %2894 = vmatprep.subr.mxu0 0.0
      %2895 = vmatpush1.msra.mxu0 0.0
      %2896 = vmatprep.subr.mxu0 0.0
      %2897 = vmatpush1.msra.mxu0 0.0
      %2898 = vmatprep.subr.mxu0 0.0
      %2899 = vmatpush1.msra.mxu0 0.0
      %2900 = vmatprep.subr.mxu0 0.0
      %2901 = vmatpush1.msra.mxu0 0.0
      %2902 = vmatprep.subr.mxu0 0.0
      %2903 = vmatpush1.msra.mxu0 0.0
      %2904 = vmatprep.subr.mxu0 0.0
      %2905 = vmatpush1.msra.mxu0 0.0
      %2906 = vmatprep.subr.mxu0 0.0
      %2907 = vmatpush1.msra.mxu0 0.0
      %2908 = vmatprep.subr.mxu0 0.0
      %2909 = vmatpush1.msra.mxu0 0.0
      %2910 = vmatprep.subr.mxu0 0.0
      %2911 = vmatpush1.msra.mxu0 0.0
      %2912 = vmatprep.subr.mxu0 0.0
      %2913 = vmatpush1.msra.mxu0 0.0
      %2914 = vmatprep.subr.mxu0 0.0
      %2915 = vmatpush1.msra.mxu0 0.0
      %2916 = vmatprep.subr.mxu0 0.0
      %2917 = vmatpush1.msra.mxu0 0.0
      %2918 = vmatprep.subr.mxu0 0.0
      %2919 = vmatpush1.msra.mxu0 0.0
      %2920 = vmatprep.subr.mxu0 0.0
      %2921 = vmatpush1.msra.mxu0 0.0
      %2922 = vmatprep.subr.mxu0 0.0
      %2923 = vmatpush1.msra.mxu0 0.0
      %2924 = vmatprep.subr.mxu0 0.0
      %2925 = vmatpush1.msra.mxu0 0.0
      %2926 = vmatprep.subr.mxu0 0.0
      %2927 = vmatpush1.msra.mxu0 0.0
      %2928 = vmatprep.subr.mxu0 0.0
      %2929 = vmatpush1.msra.mxu0 0.0
      %2930 = vmatprep.subr.mxu0 0.0
      %2931 = vmatpush1.msra.mxu0 0.0
      %2932 = vmatprep.subr.mxu0 0.0
      %2933 = vmatpush1.msra.mxu0 0.0
      %2934 = vmatprep.subr.mxu0 0.0
      %2935 = vmatpush1.msra.mxu0 0.0
      %2936 = vmatprep.mubr.f32.mxu0 0.0
      %2937 = vmatmul.mubr.f32.gmra.mrb[0].mxu0 %v2777
      %v2938 = vpop.f32.mrb[0].mxu0
      %v2939 = vadd.f32 0.0, %v2938
      %v2940 = vpop.f32.mrb[0].mxu0
      %2941 = vmatprep.mubr.f32.mxu0 0.0
      %2942 = vmatmul.mubr.f32.gmra.mrb[0].mxu0 %v2780
      %v2943 = vpop.f32.mrb[0].mxu0
      %v2944 = vadd.f32 0.0, %v2943
      %v2945 = vpop.f32.mrb[0].mxu0
      %2946 = vmatprep.mubr.f32.mxu0 0.0
      %2947 = vmatmul.mubr.f32.gmra.mrb[0].mxu0 %v2783
      %v2948 = vpop.f32.mrb[0].mxu0
      %v2949 = vadd.f32 0.0, %v2948
      %v2950 = vpop.f32.mrb[0].mxu0
      %2951 = vmatprep.mubr.f32.mxu0 0.0
      %2952 = vmatmul.mubr.f32.gmra.mrb[0].mxu0 %v2786
      %v2953 = vpop.f32.mrb[0].mxu0
      %v2954 = vadd.f32 0.0, %v2953
      %v2955 = vpop.f32.mrb[0].mxu0
      %2956 = vmatprep.mubr.f32.mxu0 0.0
      %2957 = vmatmul.mubr.f32.gmra.mrb[0].mxu0 %v2789
      %v2958 = vpop.f32.mrb[0].mxu0
      %v2959 = vadd.f32 0.0, %v2958
      %v2960 = vpop.f32.mrb[0].mxu0
      %2961 = vmatprep.mubr.f32.mxu0 0.0
      %2962 = vmatmul.mubr.f32.gmra.mrb[0].mxu0 %v2792
      %v2963 = vpop.f32.mrb[0].mxu0
      %v2964 = vadd.f32 0.0, %v2963
      %v2965 = vpop.f32.mrb[0].mxu0
      %2966 = vmatprep.mubr.f32.mxu0 0.0
      %2967 = vmatmul.mubr.f32.gmra.mrb[0].mxu0 %v2795
      %v2968 = vpop.f32.mrb[0].mxu0
      %v2969 = vadd.f32 0.0, %v2968
      %v2970 = vpop.f32.mrb[0].mxu0
      %2971 = vmatprep.mubr.f32.mxu0 0.0
      %2972 = vmatmul.mubr.f32.gmra.mrb[0].mxu0 %v2798
      %v2973 = vpop.f32.mrb[0].mxu0
      %v2974 = vadd.f32 0.0, %v2973
      %v2975 = vpop.f32.mrb[0].mxu0
      %2976 = vmatprep.mubr.f32.mxu0 0.0
      %2977 = vmatmul.mubr.f32.gmra.mrb[0].mxu0 %v2801
      %v2978 = vpop.f32.mrb[0].mxu0
      %v2979 = vadd.f32 0.0, %v2978
      %v2980 = vpop.f32.mrb[0].mxu0
      %2981 = vmatprep.mubr.f32.mxu0 0.0
      %2982 = vmatmul.mubr.f32.gmra.mrb[0].mxu0 %v2804
      %v2983 = vpop.f32.mrb[0].mxu0
      %v2984 = vadd.f32 0.0, %v2983
      %v2985 = vpop.f32.mrb[0].mxu0
      %2986 = vmatprep.mubr.f32.mxu0 0.0
      %2987 = vmatmul.mubr.f32.gmra.mrb[0].mxu0 %v2807
      %v2988 = vpop.f32.mrb[0].mxu0
      %v2989 = vadd.f32 0.0, %v2988
      %v2990 = vpop.f32.mrb[0].mxu0
      %2991 = vmatprep.mubr.f32.mxu0 0.0
      %2992 = vmatmul.mubr.f32.gmra.mrb[0].mxu0 %v2810
      %v2993 = vpop.f32.mrb[0].mxu0
      %v2994 = vadd.f32 0.0, %v2993
      %v2995 = vpop.f32.mrb[0].mxu0
      %2996 = vmatprep.mubr.f32.mxu0 0.0
      %2997 = vmatmul.mubr.f32.gmra.mrb[0].mxu0 %v2813
      %v2998 = vpop.f32.mrb[0].mxu0
      %v2999 = vadd.f32 0.0, %v2998
      %v3000 = vpop.f32.mrb[0].mxu0
      %3001 = vmatprep.mubr.f32.mxu0 0.0
      %3002 = vmatmul.mubr.f32.gmra.mrb[0].mxu0 %v2816
      %v3003 = vpop.f32.mrb[0].mxu0
      %v3004 = vadd.f32 0.0, %v3003
      %v3005 = vpop.f32.mrb[0].mxu0
      %3006 = vmatprep.mubr.f32.mxu0 0.0
      %3007 = vmatmul.mubr.f32.gmra.mrb[0].mxu0 %v2819
      %v3008 = vpop.f32.mrb[0].mxu0
      %v3009 = vadd.f32 0.0, %v3008
      %v3010 = vpop.f32.mrb[0].mxu0
      %3011 = vmatprep.mubr.f32.mxu0 0.0
      %3012 = vmatmul.mubr.f32.gmra.mrb[0].mxu0 %v2822
      %v3013 = vpop.f32.mrb[0].mxu0
      %v3014 = vadd.f32 0.0, %v3013
      %v3015 = vpop.f32.mrb[0].mxu0
      %3016 = vmatprep.mubr.f32.mxu0 0.0
      %3017 = vmatmul.mubr.f32.gmra.mrb[0].mxu0 %v2825
      %v3018 = vpop.f32.mrb[0].mxu0
      %v3019 = vadd.f32 0.0, %v3018
      %v3020 = vpop.f32.mrb[0].mxu0
      %3021 = vmatprep.mubr.f32.mxu0 0.0
      %3022 = vmatmul.mubr.f32.gmra.mrb[0].mxu0 %v2828
      %v3023 = vpop.f32.mrb[0].mxu0
      %v3024 = vadd.f32 0.0, %v3023
      %v3025 = vpop.f32.mrb[0].mxu0
      %3026 = vmatprep.mubr.f32.mxu0 0.0
      %3027 = vmatmul.mubr.f32.gmra.mrb[0].mxu0 %v2831
      %v3028 = vpop.f32.mrb[0].mxu0
      %v3029 = vadd.f32 0.0, %v3028
      %v3030 = vpop.f32.mrb[0].mxu0
      %3031 = vmatprep.mubr.f32.mxu0 0.0
      %3032 = vmatmul.mubr.f32.gmra.mrb[0].mxu0 %v2834
      %v3033 = vpop.f32.mrb[0].mxu0
      %v3034 = vadd.f32 0.0, %v3033
      %v3035 = vpop.f32.mrb[0].mxu0
      %3036 = vmatprep.mubr.f32.mxu0 0.0
      %3037 = vmatmul.mubr.f32.gmra.mrb[0].mxu0 %v2837
      %v3038 = vpop.f32.mrb[0].mxu0
      %v3039 = vadd.f32 0.0, %v3038
      %v3040 = vpop.f32.mrb[0].mxu0
      %3041 = vmatprep.mubr.f32.mxu0 0.0
      %3042 = vmatmul.mubr.f32.gmra.mrb[0].mxu0 %v2840
      %v3043 = vpop.f32.mrb[0].mxu0
      %v3044 = vadd.f32 0.0, %v3043
      %v3045 = vpop.f32.mrb[0].mxu0
      %3046 = vmatprep.mubr.f32.mxu0 0.0
      %3047 = vmatmul.mubr.f32.gmra.mrb[0].mxu0 %v2843
      %v3048 = vpop.f32.mrb[0].mxu0
      %v3049 = vadd.f32 0.0, %v3048
      %v3050 = vpop.f32.mrb[0].mxu0
      %3051 = vmatprep.mubr.f32.mxu0 0.0
      %3052 = vmatmul.mubr.f32.gmra.mrb[0].mxu0 %v2846
      %v3053 = vpop.f32.mrb[0].mxu0
      %v3054 = vadd.f32 0.0, %v3053
      %v3055 = vpop.f32.mrb[0].mxu0
      %3056 = vmatprep.mubr.f32.mxu0 0.0
      %3057 = vmatmul.mubr.f32.gmra.mrb[0].mxu0 %v2849
      %v3058 = vpop.f32.mrb[0].mxu0
      %v3059 = vadd.f32 0.0, %v3058
      %v3060 = vpop.f32.mrb[0].mxu0
      %3061 = vmatprep.mubr.f32.mxu0 0.0
      %3062 = vmatmul.mubr.f32.gmra.mrb[0].mxu0 %v2852
      %v3063 = vpop.f32.mrb[0].mxu0
      %v3064 = vadd.f32 0.0, %v3063
      %v3065 = vpop.f32.mrb[0].mxu0
      %3066 = vmatprep.mubr.f32.mxu0 0.0
      %3067 = vmatmul.mubr.f32.gmra.mrb[0].mxu0 %v2855
      %v3068 = vpop.f32.mrb[0].mxu0
      %v3069 = vadd.f32 0.0, %v3068
      %v3070 = vpop.f32.mrb[0].mxu0
      %3071 = vmatprep.mubr.f32.mxu0 0.0
      %3072 = vmatmul.mubr.f32.gmra.mrb[0].mxu0 %v2858
      %v3073 = vpop.f32.mrb[0].mxu0
      %v3074 = vadd.f32 0.0, %v3073
      %v3075 = vpop.f32.mrb[0].mxu0
      %3076 = vmatprep.mubr.f32.mxu0 0.0
      %3077 = vmatmul.mubr.f32.gmra.mrb[0].mxu0 %v2861
      %v3078 = vpop.f32.mrb[0].mxu0
      %v3079 = vadd.f32 0.0, %v3078
      %v3080 = vpop.f32.mrb[0].mxu0
      %3081 = vmatprep.mubr.f32.mxu0 0.0
      %3082 = vmatmul.mubr.f32.gmra.mrb[0].mxu0 %v2864
      %v3083 = vpop.f32.mrb[0].mxu0
      %v3084 = vadd.f32 0.0, %v3083
      %v3085 = vpop.f32.mrb[0].mxu0
      %3086 = vmatprep.mubr.f32.mxu0 0.0
      %3087 = vmatmul.mubr.f32.gmra.mrb[0].mxu0 %v2867
      %v3088 = vpop.f32.mrb[0].mxu0
      %v3089 = vadd.f32 0.0, %v3088
      %v3090 = vpop.f32.mrb[0].mxu0
      %3091 = vmatprep.mubr.f32.mxu0 0.0
      %3092 = vmatmul.mubr.f32.gmra.mrb[0].mxu0 %v2870
      %v3093 = vpop.f32.mrb[0].mxu0
      %v3094 = vadd.f32 0.0, %v3093
      %v3095 = vpop.f32.mrb[0].mxu0
      %3096 = vdwg.mxu0
      %v3097 = vadd.f32 %v2741, %v2939
      %v3098 = vadd.f32 %v2742, %v2944
      %v3099 = vadd.f32 %v2743, %v2949
      %v3100 = vadd.f32 %v2744, %v2954
      %v3101 = vadd.f32 %v2745, %v2959
      %v3102 = vadd.f32 %v2746, %v2964
      %v3103 = vadd.f32 %v2747, %v2969
      %v3104 = vadd.f32 %v2748, %v2974
      %v3105 = vadd.f32 %v2749, %v2979
      %v3106 = vadd.f32 %v2750, %v2984
      %v3107 = vadd.f32 %v2751, %v2989
      %v3108 = vadd.f32 %v2752, %v2994
      %v3109 = vadd.f32 %v2753, %v2999
      %v3110 = vadd.f32 %v2754, %v3004
      %v3111 = vadd.f32 %v2755, %v3009
      %v3112 = vadd.f32 %v2756, %v3014
      %v3113 = vadd.f32 %v2757, %v3019
      %v3114 = vadd.f32 %v2758, %v3024
      %v3115 = vadd.f32 %v2759, %v3029
      %v3116 = vadd.f32 %v2760, %v3034
      %v3117 = vadd.f32 %v2761, %v3039
      %v3118 = vadd.f32 %v2762, %v3044
      %v3119 = vadd.f32 %v2763, %v3049
      %v3120 = vadd.f32 %v2764, %v3054
      %v3121 = vadd.f32 %v2765, %v3059
      %v3122 = vadd.f32 %v2766, %v3064
      %v3123 = vadd.f32 %v2767, %v3069
      %v3124 = vadd.f32 %v2768, %v3074
      %v3125 = vadd.f32 %v2769, %v3079
      %v3126 = vadd.f32 %v2770, %v3084
      %v3127 = vadd.f32 %v2771, %v3089
      %v3128 = vadd.f32 %v2772, %v3094
      %s3129 = scalar_lea.vmem %s1, 96
      %v3130 = vld [vmem:[%s3129] sm:$0xff]
      %v3131 = vld [vmem:[%s3129 + $0x8] sm:$0xff]
      %v3133 = vsel %vm552, %v1080, 0
      %v3136 = vsel %vm552, %v1081, 0
      %v3139 = vsel %vm552, %v1082, 0
      %v3142 = vsel %vm552, %v1083, 0
      %v3145 = vsel %vm552, %v1084, 0
      %v3148 = vsel %vm552, %v1085, 0
      %v3151 = vsel %vm552, %v1086, 0
      %v3154 = vsel %vm552, %v1087, 0
      %v3157 = vsel %vm552, %v1088, 0
      %v3160 = vsel %vm552, %v1089, 0
      %v3163 = vsel %vm552, %v1090, 0
      %v3166 = vsel %vm552, %v1091, 0
      %v3169 = vsel %vm552, %v1092, 0
      %v3172 = vsel %vm552, %v1093, 0
      %v3175 = vsel %vm552, %v1094, 0
      %v3178 = vsel %vm552, %v1095, 0
      %v3181 = vsel %vm552, %v1096, 0
      %v3184 = vsel %vm552, %v1097, 0
      %v3187 = vsel %vm552, %v1098, 0
      %v3190 = vsel %vm552, %v1099, 0
      %v3193 = vsel %vm552, %v1100, 0
      %v3196 = vsel %vm552, %v1101, 0
      %v3199 = vsel %vm552, %v1102, 0
      %v3202 = vsel %vm552, %v1103, 0
      %v3205 = vsel %vm552, %v1104, 0
      %v3208 = vsel %vm552, %v1105, 0
      %v3211 = vsel %vm552, %v1106, 0
      %v3214 = vsel %vm552, %v1107, 0
      %v3217 = vsel %vm552, %v1108, 0
      %v3220 = vsel %vm552, %v1109, 0
      %v3223 = vsel %vm552, %v1110, 0
      %v3226 = vsel %vm552, %v1111, 0
      %3228 = vmatprep.subr.mxu0 0.0
      %3229 = vmatpush1.msra.mxu0 %v3130
      %3230 = vmatprep.subr.mxu0 0.0
      %3231 = vmatpush1.msra.mxu0 %v3131
      %3232 = vmatprep.subr.mxu0 0.0
      %3233 = vmatpush1.msra.mxu0 0.0
      %3234 = vmatprep.subr.mxu0 0.0
      %3235 = vmatpush1.msra.mxu0 0.0
      %3236 = vmatprep.subr.mxu0 0.0
      %3237 = vmatpush1.msra.mxu0 0.0
      %3238 = vmatprep.subr.mxu0 0.0
      %3239 = vmatpush1.msra.mxu0 0.0
      %3240 = vmatprep.subr.mxu0 0.0
      %3241 = vmatpush1.msra.mxu0 0.0
      %3242 = vmatprep.subr.mxu0 0.0
      %3243 = vmatpush1.msra.mxu0 0.0
      %3244 = vmatprep.subr.mxu0 0.0
      %3245 = vmatpush1.msra.mxu0 0.0
      %3246 = vmatprep.subr.mxu0 0.0
      %3247 = vmatpush1.msra.mxu0 0.0
      %3248 = vmatprep.subr.mxu0 0.0
      %3249 = vmatpush1.msra.mxu0 0.0
      %3250 = vmatprep.subr.mxu0 0.0
      %3251 = vmatpush1.msra.mxu0 0.0
      %3252 = vmatprep.subr.mxu0 0.0
      %3253 = vmatpush1.msra.mxu0 0.0
      %3254 = vmatprep.subr.mxu0 0.0
      %3255 = vmatpush1.msra.mxu0 0.0
      %3256 = vmatprep.subr.mxu0 0.0
      %3257 = vmatpush1.msra.mxu0 0.0
      %3258 = vmatprep.subr.mxu0 0.0
      %3259 = vmatpush1.msra.mxu0 0.0
      %3260 = vmatprep.subr.mxu0 0.0
      %3261 = vmatpush1.msra.mxu0 0.0
      %3262 = vmatprep.subr.mxu0 0.0
      %3263 = vmatpush1.msra.mxu0 0.0
      %3264 = vmatprep.subr.mxu0 0.0
      %3265 = vmatpush1.msra.mxu0 0.0
      %3266 = vmatprep.subr.mxu0 0.0
      %3267 = vmatpush1.msra.mxu0 0.0
      %3268 = vmatprep.subr.mxu0 0.0
      %3269 = vmatpush1.msra.mxu0 0.0
      %3270 = vmatprep.subr.mxu0 0.0
      %3271 = vmatpush1.msra.mxu0 0.0
      %3272 = vmatprep.subr.mxu0 0.0
      %3273 = vmatpush1.msra.mxu0 0.0
      %3274 = vmatprep.subr.mxu0 0.0
      %3275 = vmatpush1.msra.mxu0 0.0
      %3276 = vmatprep.subr.mxu0 0.0
      %3277 = vmatpush1.msra.mxu0 0.0
      %3278 = vmatprep.subr.mxu0 0.0
      %3279 = vmatpush1.msra.mxu0 0.0
      %3280 = vmatprep.subr.mxu0 0.0
      %3281 = vmatpush1.msra.mxu0 0.0
      %3282 = vmatprep.subr.mxu0 0.0
      %3283 = vmatpush1.msra.mxu0 0.0
      %3284 = vmatprep.subr.mxu0 0.0
      %3285 = vmatpush1.msra.mxu0 0.0
      %3286 = vmatprep.subr.mxu0 0.0
      %3287 = vmatpush1.msra.mxu0 0.0
      %3288 = vmatprep.subr.mxu0 0.0
      %3289 = vmatpush1.msra.mxu0 0.0
      %3290 = vmatprep.subr.mxu0 0.0
      %3291 = vmatpush1.msra.mxu0 0.0
      %3292 = vmatprep.mubr.f32.mxu0 0.0
      %3293 = vmatmul.mubr.f32.gmra.mrb[0].mxu0 %v3133
      %v3294 = vpop.f32.mrb[0].mxu0
      %v3295 = vadd.f32 0.0, %v3294
      %v3296 = vpop.f32.mrb[0].mxu0
      %3297 = vmatprep.mubr.f32.mxu0 0.0
      %3298 = vmatmul.mubr.f32.gmra.mrb[0].mxu0 %v3136
      %v3299 = vpop.f32.mrb[0].mxu0
      %v3300 = vadd.f32 0.0, %v3299
      %v3301 = vpop.f32.mrb[0].mxu0
      %3302 = vmatprep.mubr.f32.mxu0 0.0
      %3303 = vmatmul.mubr.f32.gmra.mrb[0].mxu0 %v3139
      %v3304 = vpop.f32.mrb[0].mxu0
      %v3305 = vadd.f32 0.0, %v3304
      %v3306 = vpop.f32.mrb[0].mxu0
      %3307 = vmatprep.mubr.f32.mxu0 0.0
      %3308 = vmatmul.mubr.f32.gmra.mrb[0].mxu0 %v3142
      %v3309 = vpop.f32.mrb[0].mxu0
      %v3310 = vadd.f32 0.0, %v3309
      %v3311 = vpop.f32.mrb[0].mxu0
      %3312 = vmatprep.mubr.f32.mxu0 0.0
      %3313 = vmatmul.mubr.f32.gmra.mrb[0].mxu0 %v3145
      %v3314 = vpop.f32.mrb[0].mxu0
      %v3315 = vadd.f32 0.0, %v3314
      %v3316 = vpop.f32.mrb[0].mxu0
      %3317 = vmatprep.mubr.f32.mxu0 0.0
      %3318 = vmatmul.mubr.f32.gmra.mrb[0].mxu0 %v3148
      %v3319 = vpop.f32.mrb[0].mxu0
      %v3320 = vadd.f32 0.0, %v3319
      %v3321 = vpop.f32.mrb[0].mxu0
      %3322 = vmatprep.mubr.f32.mxu0 0.0
      %3323 = vmatmul.mubr.f32.gmra.mrb[0].mxu0 %v3151
      %v3324 = vpop.f32.mrb[0].mxu0
      %v3325 = vadd.f32 0.0, %v3324
      %v3326 = vpop.f32.mrb[0].mxu0
      %3327 = vmatprep.mubr.f32.mxu0 0.0
      %3328 = vmatmul.mubr.f32.gmra.mrb[0].mxu0 %v3154
      %v3329 = vpop.f32.mrb[0].mxu0
      %v3330 = vadd.f32 0.0, %v3329
      %v3331 = vpop.f32.mrb[0].mxu0
      %3332 = vmatprep.mubr.f32.mxu0 0.0
      %3333 = vmatmul.mubr.f32.gmra.mrb[0].mxu0 %v3157
      %v3334 = vpop.f32.mrb[0].mxu0
      %v3335 = vadd.f32 0.0, %v3334
      %v3336 = vpop.f32.mrb[0].mxu0
      %3337 = vmatprep.mubr.f32.mxu0 0.0
      %3338 = vmatmul.mubr.f32.gmra.mrb[0].mxu0 %v3160
      %v3339 = vpop.f32.mrb[0].mxu0
      %v3340 = vadd.f32 0.0, %v3339
      %v3341 = vpop.f32.mrb[0].mxu0
      %3342 = vmatprep.mubr.f32.mxu0 0.0
      %3343 = vmatmul.mubr.f32.gmra.mrb[0].mxu0 %v3163
      %v3344 = vpop.f32.mrb[0].mxu0
      %v3345 = vadd.f32 0.0, %v3344
      %v3346 = vpop.f32.mrb[0].mxu0
      %3347 = vmatprep.mubr.f32.mxu0 0.0
      %3348 = vmatmul.mubr.f32.gmra.mrb[0].mxu0 %v3166
      %v3349 = vpop.f32.mrb[0].mxu0
      %v3350 = vadd.f32 0.0, %v3349
      %v3351 = vpop.f32.mrb[0].mxu0
      %3352 = vmatprep.mubr.f32.mxu0 0.0
      %3353 = vmatmul.mubr.f32.gmra.mrb[0].mxu0 %v3169
      %v3354 = vpop.f32.mrb[0].mxu0
      %v3355 = vadd.f32 0.0, %v3354
      %v3356 = vpop.f32.mrb[0].mxu0
      %3357 = vmatprep.mubr.f32.mxu0 0.0
      %3358 = vmatmul.mubr.f32.gmra.mrb[0].mxu0 %v3172
      %v3359 = vpop.f32.mrb[0].mxu0
      %v3360 = vadd.f32 0.0, %v3359
      %v3361 = vpop.f32.mrb[0].mxu0
      %3362 = vmatprep.mubr.f32.mxu0 0.0
      %3363 = vmatmul.mubr.f32.gmra.mrb[0].mxu0 %v3175
      %v3364 = vpop.f32.mrb[0].mxu0
      %v3365 = vadd.f32 0.0, %v3364
      %v3366 = vpop.f32.mrb[0].mxu0
      %3367 = vmatprep.mubr.f32.mxu0 0.0
      %3368 = vmatmul.mubr.f32.gmra.mrb[0].mxu0 %v3178
      %v3369 = vpop.f32.mrb[0].mxu0
      %v3370 = vadd.f32 0.0, %v3369
      %v3371 = vpop.f32.mrb[0].mxu0
      %3372 = vmatprep.mubr.f32.mxu0 0.0
      %3373 = vmatmul.mubr.f32.gmra.mrb[0].mxu0 %v3181
      %v3374 = vpop.f32.mrb[0].mxu0
      %v3375 = vadd.f32 0.0, %v3374
      %v3376 = vpop.f32.mrb[0].mxu0
      %3377 = vmatprep.mubr.f32.mxu0 0.0
      %3378 = vmatmul.mubr.f32.gmra.mrb[0].mxu0 %v3184
      %v3379 = vpop.f32.mrb[0].mxu0
      %v3380 = vadd.f32 0.0, %v3379
      %v3381 = vpop.f32.mrb[0].mxu0
      %3382 = vmatprep.mubr.f32.mxu0 0.0
      %3383 = vmatmul.mubr.f32.gmra.mrb[0].mxu0 %v3187
      %v3384 = vpop.f32.mrb[0].mxu0
      %v3385 = vadd.f32 0.0, %v3384
      %v3386 = vpop.f32.mrb[0].mxu0
      %3387 = vmatprep.mubr.f32.mxu0 0.0
      %3388 = vmatmul.mubr.f32.gmra.mrb[0].mxu0 %v3190
      %v3389 = vpop.f32.mrb[0].mxu0
      %v3390 = vadd.f32 0.0, %v3389
      %v3391 = vpop.f32.mrb[0].mxu0
      %3392 = vmatprep.mubr.f32.mxu0 0.0
      %3393 = vmatmul.mubr.f32.gmra.mrb[0].mxu0 %v3193
      %v3394 = vpop.f32.mrb[0].mxu0
      %v3395 = vadd.f32 0.0, %v3394
      %v3396 = vpop.f32.mrb[0].mxu0
      %3397 = vmatprep.mubr.f32.mxu0 0.0
      %3398 = vmatmul.mubr.f32.gmra.mrb[0].mxu0 %v3196
      %v3399 = vpop.f32.mrb[0].mxu0
      %v3400 = vadd.f32 0.0, %v3399
      %v3401 = vpop.f32.mrb[0].mxu0
      %3402 = vmatprep.mubr.f32.mxu0 0.0
      %3403 = vmatmul.mubr.f32.gmra.mrb[0].mxu0 %v3199
      %v3404 = vpop.f32.mrb[0].mxu0
      %v3405 = vadd.f32 0.0, %v3404
      %v3406 = vpop.f32.mrb[0].mxu0
      %3407 = vmatprep.mubr.f32.mxu0 0.0
      %3408 = vmatmul.mubr.f32.gmra.mrb[0].mxu0 %v3202
      %v3409 = vpop.f32.mrb[0].mxu0
      %v3410 = vadd.f32 0.0, %v3409
      %v3411 = vpop.f32.mrb[0].mxu0
      %3412 = vmatprep.mubr.f32.mxu0 0.0
      %3413 = vmatmul.mubr.f32.gmra.mrb[0].mxu0 %v3205
      %v3414 = vpop.f32.mrb[0].mxu0
      %v3415 = vadd.f32 0.0, %v3414
      %v3416 = vpop.f32.mrb[0].mxu0
      %3417 = vmatprep.mubr.f32.mxu0 0.0
      %3418 = vmatmul.mubr.f32.gmra.mrb[0].mxu0 %v3208
      %v3419 = vpop.f32.mrb[0].mxu0
      %v3420 = vadd.f32 0.0, %v3419
      %v3421 = vpop.f32.mrb[0].mxu0
      %3422 = vmatprep.mubr.f32.mxu0 0.0
      %3423 = vmatmul.mubr.f32.gmra.mrb[0].mxu0 %v3211
      %v3424 = vpop.f32.mrb[0].mxu0
      %v3425 = vadd.f32 0.0, %v3424
      %v3426 = vpop.f32.mrb[0].mxu0
      %3427 = vmatprep.mubr.f32.mxu0 0.0
      %3428 = vmatmul.mubr.f32.gmra.mrb[0].mxu0 %v3214
      %v3429 = vpop.f32.mrb[0].mxu0
      %v3430 = vadd.f32 0.0, %v3429
      %v3431 = vpop.f32.mrb[0].mxu0
      %3432 = vmatprep.mubr.f32.mxu0 0.0
      %3433 = vmatmul.mubr.f32.gmra.mrb[0].mxu0 %v3217
      %v3434 = vpop.f32.mrb[0].mxu0
      %v3435 = vadd.f32 0.0, %v3434
      %v3436 = vpop.f32.mrb[0].mxu0
      %3437 = vmatprep.mubr.f32.mxu0 0.0
      %3438 = vmatmul.mubr.f32.gmra.mrb[0].mxu0 %v3220
      %v3439 = vpop.f32.mrb[0].mxu0
      %v3440 = vadd.f32 0.0, %v3439
      %v3441 = vpop.f32.mrb[0].mxu0
      %3442 = vmatprep.mubr.f32.mxu0 0.0
      %3443 = vmatmul.mubr.f32.gmra.mrb[0].mxu0 %v3223
      %v3444 = vpop.f32.mrb[0].mxu0
      %v3445 = vadd.f32 0.0, %v3444
      %v3446 = vpop.f32.mrb[0].mxu0
      %3447 = vmatprep.mubr.f32.mxu0 0.0
      %3448 = vmatmul.mubr.f32.gmra.mrb[0].mxu0 %v3226
      %v3449 = vpop.f32.mrb[0].mxu0
      %v3450 = vadd.f32 0.0, %v3449
      %v3451 = vpop.f32.mrb[0].mxu0
      %3452 = vdwg.mxu0
      %v3453 = vadd.f32 %v3097, %v3295
      %v3454 = vadd.f32 %v3098, %v3300
      %v3455 = vadd.f32 %v3099, %v3305
      %v3456 = vadd.f32 %v3100, %v3310
      %v3457 = vadd.f32 %v3101, %v3315
      %v3458 = vadd.f32 %v3102, %v3320
      %v3459 = vadd.f32 %v3103, %v3325
      %v3460 = vadd.f32 %v3104, %v3330
      %v3461 = vadd.f32 %v3105, %v3335
      %v3462 = vadd.f32 %v3106, %v3340
      %v3463 = vadd.f32 %v3107, %v3345
      %v3464 = vadd.f32 %v3108, %v3350
      %v3465 = vadd.f32 %v3109, %v3355
      %v3466 = vadd.f32 %v3110, %v3360
      %v3467 = vadd.f32 %v3111, %v3365
      %v3468 = vadd.f32 %v3112, %v3370
      %v3469 = vadd.f32 %v3113, %v3375
      %v3470 = vadd.f32 %v3114, %v3380
      %v3471 = vadd.f32 %v3115, %v3385
      %v3472 = vadd.f32 %v3116, %v3390
      %v3473 = vadd.f32 %v3117, %v3395
      %v3474 = vadd.f32 %v3118, %v3400
      %v3475 = vadd.f32 %v3119, %v3405
      %v3476 = vadd.f32 %v3120, %v3410
      %v3477 = vadd.f32 %v3121, %v3415
      %v3478 = vadd.f32 %v3122, %v3420
      %v3479 = vadd.f32 %v3123, %v3425
      %v3480 = vadd.f32 %v3124, %v3430
      %v3481 = vadd.f32 %v3125, %v3435
      %v3482 = vadd.f32 %v3126, %v3440
      %v3483 = vadd.f32 %v3127, %v3445
      %v3484 = vadd.f32 %v3128, %v3450
      %s3485 = scalar_lea.vmem %s1, 112
      %v3486 = vld [vmem:[%s3485] sm:$0xff]
      %v3487 = vld [vmem:[%s3485 + $0x8] sm:$0xff]
      %v3489 = vsel %vm552, %v1112, 0
      %v3492 = vsel %vm552, %v1113, 0
      %3494 = vmatprep.subr.mxu0 0.0
      %3495 = vmatpush1.msra.mxu0 %v3486
      %3496 = vmatprep.subr.mxu0 0.0
      %3497 = vmatpush1.msra.mxu0 %v3487
      %3498 = vmatprep.subr.mxu0 0.0
      %3499 = vmatpush1.msra.mxu0 0.0
      %3500 = vmatprep.subr.mxu0 0.0
      %3501 = vmatpush1.msra.mxu0 0.0
      %3502 = vmatprep.subr.mxu0 0.0
      %3503 = vmatpush1.msra.mxu0 0.0
      %3504 = vmatprep.subr.mxu0 0.0
      %3505 = vmatpush1.msra.mxu0 0.0
      %3506 = vmatprep.subr.mxu0 0.0
      %3507 = vmatpush1.msra.mxu0 0.0
      %3508 = vmatprep.subr.mxu0 0.0
      %3509 = vmatpush1.msra.mxu0 0.0
      %3510 = vmatprep.subr.mxu0 0.0
      %3511 = vmatpush1.msra.mxu0 0.0
      %3512 = vmatprep.subr.mxu0 0.0
      %3513 = vmatpush1.msra.mxu0 0.0
      %3514 = vmatprep.subr.mxu0 0.0
      %3515 = vmatpush1.msra.mxu0 0.0
      %3516 = vmatprep.subr.mxu0 0.0
      %3517 = vmatpush1.msra.mxu0 0.0
      %3518 = vmatprep.subr.mxu0 0.0
      %3519 = vmatpush1.msra.mxu0 0.0
      %3520 = vmatprep.subr.mxu0 0.0
      %3521 = vmatpush1.msra.mxu0 0.0
      %3522 = vmatprep.subr.mxu0 0.0
      %3523 = vmatpush1.msra.mxu0 0.0
      %3524 = vmatprep.subr.mxu0 0.0
      %3525 = vmatpush1.msra.mxu0 0.0
      %3526 = vmatprep.subr.mxu0 0.0
      %3527 = vmatpush1.msra.mxu0 0.0
      %3528 = vmatprep.subr.mxu0 0.0
      %3529 = vmatpush1.msra.mxu0 0.0
      %3530 = vmatprep.subr.mxu0 0.0
      %3531 = vmatpush1.msra.mxu0 0.0
      %3532 = vmatprep.subr.mxu0 0.0
      %3533 = vmatpush1.msra.mxu0 0.0
      %3534 = vmatprep.subr.mxu0 0.0
      %3535 = vmatpush1.msra.mxu0 0.0
      %3536 = vmatprep.subr.mxu0 0.0
      %3537 = vmatpush1.msra.mxu0 0.0
      %3538 = vmatprep.subr.mxu0 0.0
      %3539 = vmatpush1.msra.mxu0 0.0
      %3540 = vmatprep.subr.mxu0 0.0
      %3541 = vmatpush1.msra.mxu0 0.0
      %3542 = vmatprep.subr.mxu0 0.0
      %3543 = vmatpush1.msra.mxu0 0.0
      %3544 = vmatprep.subr.mxu0 0.0
      %3545 = vmatpush1.msra.mxu0 0.0
      %3546 = vmatprep.subr.mxu0 0.0
      %3547 = vmatpush1.msra.mxu0 0.0
      %3548 = vmatprep.subr.mxu0 0.0
      %3549 = vmatpush1.msra.mxu0 0.0
      %3550 = vmatprep.subr.mxu0 0.0
      %3551 = vmatpush1.msra.mxu0 0.0
      %3552 = vmatprep.subr.mxu0 0.0
      %3553 = vmatpush1.msra.mxu0 0.0
      %3554 = vmatprep.subr.mxu0 0.0
      %3555 = vmatpush1.msra.mxu0 0.0
      %3556 = vmatprep.subr.mxu0 0.0
      %3557 = vmatpush1.msra.mxu0 0.0
      %3558 = vmatprep.mubr.f32.mxu0 0.0
      %3559 = vmatmul.mubr.f32.gmra.mrb[0].mxu0 %v1166
      %v3560 = vpop.f32.mrb[0].mxu0
      %v3561 = vadd.f32 0.0, %v3560
      %v3562 = vpop.f32.mrb[0].mxu0
      %3563 = vmatprep.mubr.f32.mxu0 0.0
      %3564 = vmatmul.mubr.f32.gmra.mrb[0].mxu0 %v1169
      %v3565 = vpop.f32.mrb[0].mxu0
      %v3566 = vadd.f32 0.0, %v3565
      %v3567 = vpop.f32.mrb[0].mxu0
      %3568 = vmatprep.mubr.f32.mxu0 0.0
      %3569 = vmatmul.mubr.f32.gmra.mrb[0].mxu0 %v1172
      %v3570 = vpop.f32.mrb[0].mxu0
      %v3571 = vadd.f32 0.0, %v3570
      %v3572 = vpop.f32.mrb[0].mxu0
      %3573 = vmatprep.mubr.f32.mxu0 0.0
      %3574 = vmatmul.mubr.f32.gmra.mrb[0].mxu0 %v1175
      %v3575 = vpop.f32.mrb[0].mxu0
      %v3576 = vadd.f32 0.0, %v3575
      %v3577 = vpop.f32.mrb[0].mxu0
      %3578 = vmatprep.mubr.f32.mxu0 0.0
      %3579 = vmatmul.mubr.f32.gmra.mrb[0].mxu0 %v1178
      %v3580 = vpop.f32.mrb[0].mxu0
      %v3581 = vadd.f32 0.0, %v3580
      %v3582 = vpop.f32.mrb[0].mxu0
      %3583 = vmatprep.mubr.f32.mxu0 0.0
      %3584 = vmatmul.mubr.f32.gmra.mrb[0].mxu0 %v1181
      %v3585 = vpop.f32.mrb[0].mxu0
      %v3586 = vadd.f32 0.0, %v3585
      %v3587 = vpop.f32.mrb[0].mxu0
      %3588 = vmatprep.mubr.f32.mxu0 0.0
      %3589 = vmatmul.mubr.f32.gmra.mrb[0].mxu0 %v1184
      %v3590 = vpop.f32.mrb[0].mxu0
      %v3591 = vadd.f32 0.0, %v3590
      %v3592 = vpop.f32.mrb[0].mxu0
      %3593 = vmatprep.mubr.f32.mxu0 0.0
      %3594 = vmatmul.mubr.f32.gmra.mrb[0].mxu0 %v1187
      %v3595 = vpop.f32.mrb[0].mxu0
      %v3596 = vadd.f32 0.0, %v3595
      %v3597 = vpop.f32.mrb[0].mxu0
      %3598 = vmatprep.mubr.f32.mxu0 0.0
      %3599 = vmatmul.mubr.f32.gmra.mrb[0].mxu0 %v1190
      %v3600 = vpop.f32.mrb[0].mxu0
      %v3601 = vadd.f32 0.0, %v3600
      %v3602 = vpop.f32.mrb[0].mxu0
      %3603 = vmatprep.mubr.f32.mxu0 0.0
      %3604 = vmatmul.mubr.f32.gmra.mrb[0].mxu0 %v1193
      %v3605 = vpop.f32.mrb[0].mxu0
      %v3606 = vadd.f32 0.0, %v3605
      %v3607 = vpop.f32.mrb[0].mxu0
      %3608 = vmatprep.mubr.f32.mxu0 0.0
      %3609 = vmatmul.mubr.f32.gmra.mrb[0].mxu0 %v1196
      %v3610 = vpop.f32.mrb[0].mxu0
      %v3611 = vadd.f32 0.0, %v3610
      %v3612 = vpop.f32.mrb[0].mxu0
      %3613 = vmatprep.mubr.f32.mxu0 0.0
      %3614 = vmatmul.mubr.f32.gmra.mrb[0].mxu0 %v1199
      %v3615 = vpop.f32.mrb[0].mxu0
      %v3616 = vadd.f32 0.0, %v3615
      %v3617 = vpop.f32.mrb[0].mxu0
      %3618 = vmatprep.mubr.f32.mxu0 0.0
      %3619 = vmatmul.mubr.f32.gmra.mrb[0].mxu0 %v1202
      %v3620 = vpop.f32.mrb[0].mxu0
      %v3621 = vadd.f32 0.0, %v3620
      %v3622 = vpop.f32.mrb[0].mxu0
      %3623 = vmatprep.mubr.f32.mxu0 0.0
      %3624 = vmatmul.mubr.f32.gmra.mrb[0].mxu0 %v1205
      %v3625 = vpop.f32.mrb[0].mxu0
      %v3626 = vadd.f32 0.0, %v3625
      %v3627 = vpop.f32.mrb[0].mxu0
      %3628 = vmatprep.mubr.f32.mxu0 0.0
      %3629 = vmatmul.mubr.f32.gmra.mrb[0].mxu0 %v1208
      %v3630 = vpop.f32.mrb[0].mxu0
      %v3631 = vadd.f32 0.0, %v3630
      %v3632 = vpop.f32.mrb[0].mxu0
      %3633 = vmatprep.mubr.f32.mxu0 0.0
      %3634 = vmatmul.mubr.f32.gmra.mrb[0].mxu0 %v1211
      %v3635 = vpop.f32.mrb[0].mxu0
      %v3636 = vadd.f32 0.0, %v3635
      %v3637 = vpop.f32.mrb[0].mxu0
      %3638 = vmatprep.mubr.f32.mxu0 0.0
      %3639 = vmatmul.mubr.f32.gmra.mrb[0].mxu0 %v1214
      %v3640 = vpop.f32.mrb[0].mxu0
      %v3641 = vadd.f32 0.0, %v3640
      %v3642 = vpop.f32.mrb[0].mxu0
      %3643 = vmatprep.mubr.f32.mxu0 0.0
      %3644 = vmatmul.mubr.f32.gmra.mrb[0].mxu0 %v1217
      %v3645 = vpop.f32.mrb[0].mxu0
      %v3646 = vadd.f32 0.0, %v3645
      %v3647 = vpop.f32.mrb[0].mxu0
      %3648 = vmatprep.mubr.f32.mxu0 0.0
      %3649 = vmatmul.mubr.f32.gmra.mrb[0].mxu0 %v1220
      %v3650 = vpop.f32.mrb[0].mxu0
      %v3651 = vadd.f32 0.0, %v3650
      %v3652 = vpop.f32.mrb[0].mxu0
      %3653 = vmatprep.mubr.f32.mxu0 0.0
      %3654 = vmatmul.mubr.f32.gmra.mrb[0].mxu0 %v1223
      %v3655 = vpop.f32.mrb[0].mxu0
      %v3656 = vadd.f32 0.0, %v3655
      %v3657 = vpop.f32.mrb[0].mxu0
      %3658 = vmatprep.mubr.f32.mxu0 0.0
      %3659 = vmatmul.mubr.f32.gmra.mrb[0].mxu0 %v1226
      %v3660 = vpop.f32.mrb[0].mxu0
      %v3661 = vadd.f32 0.0, %v3660
      %v3662 = vpop.f32.mrb[0].mxu0
      %3663 = vmatprep.mubr.f32.mxu0 0.0
      %3664 = vmatmul.mubr.f32.gmra.mrb[0].mxu0 %v1229
      %v3665 = vpop.f32.mrb[0].mxu0
      %v3666 = vadd.f32 0.0, %v3665
      %v3667 = vpop.f32.mrb[0].mxu0
      %3668 = vmatprep.mubr.f32.mxu0 0.0
      %3669 = vmatmul.mubr.f32.gmra.mrb[0].mxu0 %v1232
      %v3670 = vpop.f32.mrb[0].mxu0
      %v3671 = vadd.f32 0.0, %v3670
      %v3672 = vpop.f32.mrb[0].mxu0
      %3673 = vmatprep.mubr.f32.mxu0 0.0
      %3674 = vmatmul.mubr.f32.gmra.mrb[0].mxu0 %v1235
      %v3675 = vpop.f32.mrb[0].mxu0
      %v3676 = vadd.f32 0.0, %v3675
      %v3677 = vpop.f32.mrb[0].mxu0
      %3678 = vmatprep.mubr.f32.mxu0 0.0
      %3679 = vmatmul.mubr.f32.gmra.mrb[0].mxu0 %v1238
      %v3680 = vpop.f32.mrb[0].mxu0
      %v3681 = vadd.f32 0.0, %v3680
      %v3682 = vpop.f32.mrb[0].mxu0
      %3683 = vmatprep.mubr.f32.mxu0 0.0
      %3684 = vmatmul.mubr.f32.gmra.mrb[0].mxu0 %v1241
      %v3685 = vpop.f32.mrb[0].mxu0
      %v3686 = vadd.f32 0.0, %v3685
      %v3687 = vpop.f32.mrb[0].mxu0
      %3688 = vmatprep.mubr.f32.mxu0 0.0
      %3689 = vmatmul.mubr.f32.gmra.mrb[0].mxu0 %v1244
      %v3690 = vpop.f32.mrb[0].mxu0
      %v3691 = vadd.f32 0.0, %v3690
      %v3692 = vpop.f32.mrb[0].mxu0
      %3693 = vmatprep.mubr.f32.mxu0 0.0
      %3694 = vmatmul.mubr.f32.gmra.mrb[0].mxu0 %v1247
      %v3695 = vpop.f32.mrb[0].mxu0
      %v3696 = vadd.f32 0.0, %v3695
      %v3697 = vpop.f32.mrb[0].mxu0
      %3698 = vmatprep.mubr.f32.mxu0 0.0
      %3699 = vmatmul.mubr.f32.gmra.mrb[0].mxu0 %v2511
      %v3700 = vpop.f32.mrb[0].mxu0
      %v3701 = vadd.f32 0.0, %v3700
      %v3702 = vpop.f32.mrb[0].mxu0
      %3703 = vmatprep.mubr.f32.mxu0 0.0
      %3704 = vmatmul.mubr.f32.gmra.mrb[0].mxu0 %v2514
      %v3705 = vpop.f32.mrb[0].mxu0
      %v3706 = vadd.f32 0.0, %v3705
      %v3707 = vpop.f32.mrb[0].mxu0
      %3708 = vmatprep.mubr.f32.mxu0 0.0
      %3709 = vmatmul.mubr.f32.gmra.mrb[0].mxu0 %v3489
      %v3710 = vpop.f32.mrb[0].mxu0
      %v3711 = vadd.f32 0.0, %v3710
      %v3712 = vpop.f32.mrb[0].mxu0
      %3713 = vmatprep.mubr.f32.mxu0 0.0
      %3714 = vmatmul.mubr.f32.gmra.mrb[0].mxu0 %v3492
      %v3715 = vpop.f32.mrb[0].mxu0
      %v3716 = vadd.f32 0.0, %v3715
      %v3717 = vpop.f32.mrb[0].mxu0
      %3718 = vdwg.mxu0
      %v3719 = vadd.f32 %v3453, %v3561
      %v3720 = vadd.f32 %v3454, %v3566
      %v3721 = vadd.f32 %v3455, %v3571
      %v3722 = vadd.f32 %v3456, %v3576
      %v3723 = vadd.f32 %v3457, %v3581
      %v3724 = vadd.f32 %v3458, %v3586
      %v3725 = vadd.f32 %v3459, %v3591
      %v3726 = vadd.f32 %v3460, %v3596
      %v3727 = vadd.f32 %v3461, %v3601
      %v3728 = vadd.f32 %v3462, %v3606
      %v3729 = vadd.f32 %v3463, %v3611
      %v3730 = vadd.f32 %v3464, %v3616
      %v3731 = vadd.f32 %v3465, %v3621
      %v3732 = vadd.f32 %v3466, %v3626
      %v3733 = vadd.f32 %v3467, %v3631
      %v3734 = vadd.f32 %v3468, %v3636
      %v3735 = vadd.f32 %v3469, %v3641
      %v3736 = vadd.f32 %v3470, %v3646
      %v3737 = vadd.f32 %v3471, %v3651
      %v3738 = vadd.f32 %v3472, %v3656
      %v3739 = vadd.f32 %v3473, %v3661
      %v3740 = vadd.f32 %v3474, %v3666
      %v3741 = vadd.f32 %v3475, %v3671
      %v3742 = vadd.f32 %v3476, %v3676
      %v3743 = vadd.f32 %v3477, %v3681
      %v3744 = vadd.f32 %v3478, %v3686
      %v3745 = vadd.f32 %v3479, %v3691
      %v3746 = vadd.f32 %v3480, %v3696
      %v3747 = vadd.f32 %v3481, %v3701
      %v3748 = vadd.f32 %v3482, %v3706
      %v3749 = vadd.f32 %v3483, %v3711
      %v3750 = vadd.f32 %v3484, %v3716
      %s3751 = scalar_lea.vmem %s1, 128
      %v3752 = vld [vmem:[%s3751] sm:$0xff]
      %v3753 = vld [vmem:[%s3751 + $0x8] sm:$0xff]
      %v3755 = vsel %vm552, %v1116, 0
      %v3758 = vsel %vm552, %v1117, 0
      %v3761 = vsel %vm552, %v1118, 0
      %v3764 = vsel %vm552, %v1119, 0
      %v3767 = vsel %vm552, %v1120, 0
      %v3770 = vsel %vm552, %v1121, 0
      %v3773 = vsel %vm552, %v1122, 0
      %v3776 = vsel %vm552, %v1123, 0
      %v3779 = vsel %vm552, %v1124, 0
      %v3782 = vsel %vm552, %v1125, 0
      %v3785 = vsel %vm552, %v1126, 0
      %v3788 = vsel %vm552, %v1127, 0
      %v3791 = vsel %vm552, %v1128, 0
      %v3794 = vsel %vm552, %v1129, 0
      %v3797 = vsel %vm552, %v1130, 0
      %v3800 = vsel %vm552, %v1131, 0
      %v3803 = vsel %vm552, %v1132, 0
      %v3806 = vsel %vm552, %v1133, 0
      %v3809 = vsel %vm552, %v1134, 0
      %v3812 = vsel %vm552, %v1135, 0
      %v3815 = vsel %vm552, %v1136, 0
      %v3818 = vsel %vm552, %v1137, 0
      %v3821 = vsel %vm552, %v1138, 0
      %v3824 = vsel %vm552, %v1139, 0
      %v3827 = vsel %vm552, %v1140, 0
      %v3830 = vsel %vm552, %v1141, 0
      %v3833 = vsel %vm552, %v1142, 0
      %v3836 = vsel %vm552, %v1143, 0
      %v3839 = vsel %vm552, %v1144, 0
      %v3842 = vsel %vm552, %v1145, 0
      %v3845 = vsel %vm552, %v1146, 0
      %v3848 = vsel %vm552, %v1147, 0
      %3850 = vmatprep.subr.mxu0 0.0
      %3851 = vmatpush1.msra.mxu0 %v3752
      %3852 = vmatprep.subr.mxu0 0.0
      %3853 = vmatpush1.msra.mxu0 %v3753
      %3854 = vmatprep.subr.mxu0 0.0
      %3855 = vmatpush1.msra.mxu0 0.0
      %3856 = vmatprep.subr.mxu0 0.0
      %3857 = vmatpush1.msra.mxu0 0.0
      %3858 = vmatprep.subr.mxu0 0.0
      %3859 = vmatpush1.msra.mxu0 0.0
      %3860 = vmatprep.subr.mxu0 0.0
      %3861 = vmatpush1.msra.mxu0 0.0
      %3862 = vmatprep.subr.mxu0 0.0
      %3863 = vmatpush1.msra.mxu0 0.0
      %3864 = vmatprep.subr.mxu0 0.0
      %3865 = vmatpush1.msra.mxu0 0.0
      %3866 = vmatprep.subr.mxu0 0.0
      %3867 = vmatpush1.msra.mxu0 0.0
      %3868 = vmatprep.subr.mxu0 0.0
      %3869 = vmatpush1.msra.mxu0 0.0
      %3870 = vmatprep.subr.mxu0 0.0
      %3871 = vmatpush1.msra.mxu0 0.0
      %3872 = vmatprep.subr.mxu0 0.0
      %3873 = vmatpush1.msra.mxu0 0.0
      %3874 = vmatprep.subr.mxu0 0.0
      %3875 = vmatpush1.msra.mxu0 0.0
      %3876 = vmatprep.subr.mxu0 0.0
      %3877 = vmatpush1.msra.mxu0 0.0
      %3878 = vmatprep.subr.mxu0 0.0
      %3879 = vmatpush1.msra.mxu0 0.0
      %3880 = vmatprep.subr.mxu0 0.0
      %3881 = vmatpush1.msra.mxu0 0.0
      %3882 = vmatprep.subr.mxu0 0.0
      %3883 = vmatpush1.msra.mxu0 0.0
      %3884 = vmatprep.subr.mxu0 0.0
      %3885 = vmatpush1.msra.mxu0 0.0
      %3886 = vmatprep.subr.mxu0 0.0
      %3887 = vmatpush1.msra.mxu0 0.0
      %3888 = vmatprep.subr.mxu0 0.0
      %3889 = vmatpush1.msra.mxu0 0.0
      %3890 = vmatprep.subr.mxu0 0.0
      %3891 = vmatpush1.msra.mxu0 0.0
      %3892 = vmatprep.subr.mxu0 0.0
      %3893 = vmatpush1.msra.mxu0 0.0
      %3894 = vmatprep.subr.mxu0 0.0
      %3895 = vmatpush1.msra.mxu0 0.0
      %3896 = vmatprep.subr.mxu0 0.0
      %3897 = vmatpush1.msra.mxu0 0.0
      %3898 = vmatprep.subr.mxu0 0.0
      %3899 = vmatpush1.msra.mxu0 0.0
      %3900 = vmatprep.subr.mxu0 0.0
      %3901 = vmatpush1.msra.mxu0 0.0
      %3902 = vmatprep.subr.mxu0 0.0
      %3903 = vmatpush1.msra.mxu0 0.0
      %3904 = vmatprep.subr.mxu0 0.0
      %3905 = vmatpush1.msra.mxu0 0.0
      %3906 = vmatprep.subr.mxu0 0.0
      %3907 = vmatpush1.msra.mxu0 0.0
      %3908 = vmatprep.subr.mxu0 0.0
      %3909 = vmatpush1.msra.mxu0 0.0
      %3910 = vmatprep.subr.mxu0 0.0
      %3911 = vmatpush1.msra.mxu0 0.0
      %3912 = vmatprep.subr.mxu0 0.0
      %3913 = vmatpush1.msra.mxu0 0.0
      %3914 = vmatprep.mubr.f32.mxu0 0.0
      %3915 = vmatmul.mubr.f32.gmra.mrb[0].mxu0 %v3755
      %v3916 = vpop.f32.mrb[0].mxu0
      %v3917 = vadd.f32 0.0, %v3916
      %v3918 = vpop.f32.mrb[0].mxu0
      %3919 = vmatprep.mubr.f32.mxu0 0.0
      %3920 = vmatmul.mubr.f32.gmra.mrb[0].mxu0 %v3758
      %v3921 = vpop.f32.mrb[0].mxu0
      %v3922 = vadd.f32 0.0, %v3921
      %v3923 = vpop.f32.mrb[0].mxu0
      %3924 = vmatprep.mubr.f32.mxu0 0.0
      %3925 = vmatmul.mubr.f32.gmra.mrb[0].mxu0 %v3761
      %v3926 = vpop.f32.mrb[0].mxu0
      %v3927 = vadd.f32 0.0, %v3926
      %v3928 = vpop.f32.mrb[0].mxu0
      %3929 = vmatprep.mubr.f32.mxu0 0.0
      %3930 = vmatmul.mubr.f32.gmra.mrb[0].mxu0 %v3764
      %v3931 = vpop.f32.mrb[0].mxu0
      %v3932 = vadd.f32 0.0, %v3931
      %v3933 = vpop.f32.mrb[0].mxu0
      %3934 = vmatprep.mubr.f32.mxu0 0.0
      %3935 = vmatmul.mubr.f32.gmra.mrb[0].mxu0 %v3767
      %v3936 = vpop.f32.mrb[0].mxu0
      %v3937 = vadd.f32 0.0, %v3936
      %v3938 = vpop.f32.mrb[0].mxu0
      %3939 = vmatprep.mubr.f32.mxu0 0.0
      %3940 = vmatmul.mubr.f32.gmra.mrb[0].mxu0 %v3770
      %v3941 = vpop.f32.mrb[0].mxu0
      %v3942 = vadd.f32 0.0, %v3941
      %v3943 = vpop.f32.mrb[0].mxu0
      %3944 = vmatprep.mubr.f32.mxu0 0.0
      %3945 = vmatmul.mubr.f32.gmra.mrb[0].mxu0 %v3773
      %v3946 = vpop.f32.mrb[0].mxu0
      %v3947 = vadd.f32 0.0, %v3946
      %v3948 = vpop.f32.mrb[0].mxu0
      %3949 = vmatprep.mubr.f32.mxu0 0.0
      %3950 = vmatmul.mubr.f32.gmra.mrb[0].mxu0 %v3776
      %v3951 = vpop.f32.mrb[0].mxu0
      %v3952 = vadd.f32 0.0, %v3951
      %v3953 = vpop.f32.mrb[0].mxu0
      %3954 = vmatprep.mubr.f32.mxu0 0.0
      %3955 = vmatmul.mubr.f32.gmra.mrb[0].mxu0 %v3779
      %v3956 = vpop.f32.mrb[0].mxu0
      %v3957 = vadd.f32 0.0, %v3956
      %v3958 = vpop.f32.mrb[0].mxu0
      %3959 = vmatprep.mubr.f32.mxu0 0.0
      %3960 = vmatmul.mubr.f32.gmra.mrb[0].mxu0 %v3782
      %v3961 = vpop.f32.mrb[0].mxu0
      %v3962 = vadd.f32 0.0, %v3961
      %v3963 = vpop.f32.mrb[0].mxu0
      %3964 = vmatprep.mubr.f32.mxu0 0.0
      %3965 = vmatmul.mubr.f32.gmra.mrb[0].mxu0 %v3785
      %v3966 = vpop.f32.mrb[0].mxu0
      %v3967 = vadd.f32 0.0, %v3966
      %v3968 = vpop.f32.mrb[0].mxu0
      %3969 = vmatprep.mubr.f32.mxu0 0.0
      %3970 = vmatmul.mubr.f32.gmra.mrb[0].mxu0 %v3788
      %v3971 = vpop.f32.mrb[0].mxu0
      %v3972 = vadd.f32 0.0, %v3971
      %v3973 = vpop.f32.mrb[0].mxu0
      %3974 = vmatprep.mubr.f32.mxu0 0.0
      %3975 = vmatmul.mubr.f32.gmra.mrb[0].mxu0 %v3791
      %v3976 = vpop.f32.mrb[0].mxu0
      %v3977 = vadd.f32 0.0, %v3976
      %v3978 = vpop.f32.mrb[0].mxu0
      %3979 = vmatprep.mubr.f32.mxu0 0.0
      %3980 = vmatmul.mubr.f32.gmra.mrb[0].mxu0 %v3794
      %v3981 = vpop.f32.mrb[0].mxu0
      %v3982 = vadd.f32 0.0, %v3981
      %v3983 = vpop.f32.mrb[0].mxu0
      %3984 = vmatprep.mubr.f32.mxu0 0.0
      %3985 = vmatmul.mubr.f32.gmra.mrb[0].mxu0 %v3797
      %v3986 = vpop.f32.mrb[0].mxu0
      %v3987 = vadd.f32 0.0, %v3986
      %v3988 = vpop.f32.mrb[0].mxu0
      %3989 = vmatprep.mubr.f32.mxu0 0.0
      %3990 = vmatmul.mubr.f32.gmra.mrb[0].mxu0 %v3800
      %v3991 = vpop.f32.mrb[0].mxu0
      %v3992 = vadd.f32 0.0, %v3991
      %v3993 = vpop.f32.mrb[0].mxu0
      %3994 = vmatprep.mubr.f32.mxu0 0.0
      %3995 = vmatmul.mubr.f32.gmra.mrb[0].mxu0 %v3803
      %v3996 = vpop.f32.mrb[0].mxu0
      %v3997 = vadd.f32 0.0, %v3996
      %v3998 = vpop.f32.mrb[0].mxu0
      %3999 = vmatprep.mubr.f32.mxu0 0.0
      %4000 = vmatmul.mubr.f32.gmra.mrb[0].mxu0 %v3806
      %v4001 = vpop.f32.mrb[0].mxu0
      %v4002 = vadd.f32 0.0, %v4001
      %v4003 = vpop.f32.mrb[0].mxu0
      %4004 = vmatprep.mubr.f32.mxu0 0.0
      %4005 = vmatmul.mubr.f32.gmra.mrb[0].mxu0 %v3809
      %v4006 = vpop.f32.mrb[0].mxu0
      %v4007 = vadd.f32 0.0, %v4006
      %v4008 = vpop.f32.mrb[0].mxu0
      %4009 = vmatprep.mubr.f32.mxu0 0.0
      %4010 = vmatmul.mubr.f32.gmra.mrb[0].mxu0 %v3812
      %v4011 = vpop.f32.mrb[0].mxu0
      %v4012 = vadd.f32 0.0, %v4011
      %v4013 = vpop.f32.mrb[0].mxu0
      %4014 = vmatprep.mubr.f32.mxu0 0.0
      %4015 = vmatmul.mubr.f32.gmra.mrb[0].mxu0 %v3815
      %v4016 = vpop.f32.mrb[0].mxu0
      %v4017 = vadd.f32 0.0, %v4016
      %v4018 = vpop.f32.mrb[0].mxu0
      %4019 = vmatprep.mubr.f32.mxu0 0.0
      %4020 = vmatmul.mubr.f32.gmra.mrb[0].mxu0 %v3818
      %v4021 = vpop.f32.mrb[0].mxu0
      %v4022 = vadd.f32 0.0, %v4021
      %v4023 = vpop.f32.mrb[0].mxu0
      %4024 = vmatprep.mubr.f32.mxu0 0.0
      %4025 = vmatmul.mubr.f32.gmra.mrb[0].mxu0 %v3821
      %v4026 = vpop.f32.mrb[0].mxu0
      %v4027 = vadd.f32 0.0, %v4026
      %v4028 = vpop.f32.mrb[0].mxu0
      %4029 = vmatprep.mubr.f32.mxu0 0.0
      %4030 = vmatmul.mubr.f32.gmra.mrb[0].mxu0 %v3824
      %v4031 = vpop.f32.mrb[0].mxu0
      %v4032 = vadd.f32 0.0, %v4031
      %v4033 = vpop.f32.mrb[0].mxu0
      %4034 = vmatprep.mubr.f32.mxu0 0.0
      %4035 = vmatmul.mubr.f32.gmra.mrb[0].mxu0 %v3827
      %v4036 = vpop.f32.mrb[0].mxu0
      %v4037 = vadd.f32 0.0, %v4036
      %v4038 = vpop.f32.mrb[0].mxu0
      %4039 = vmatprep.mubr.f32.mxu0 0.0
      %4040 = vmatmul.mubr.f32.gmra.mrb[0].mxu0 %v3830
      %v4041 = vpop.f32.mrb[0].mxu0
      %v4042 = vadd.f32 0.0, %v4041
      %v4043 = vpop.f32.mrb[0].mxu0
      %4044 = vmatprep.mubr.f32.mxu0 0.0
      %4045 = vmatmul.mubr.f32.gmra.mrb[0].mxu0 %v3833
      %v4046 = vpop.f32.mrb[0].mxu0
      %v4047 = vadd.f32 0.0, %v4046
      %v4048 = vpop.f32.mrb[0].mxu0
      %4049 = vmatprep.mubr.f32.mxu0 0.0
      %4050 = vmatmul.mubr.f32.gmra.mrb[0].mxu0 %v3836
      %v4051 = vpop.f32.mrb[0].mxu0
      %v4052 = vadd.f32 0.0, %v4051
      %v4053 = vpop.f32.mrb[0].mxu0
      %4054 = vmatprep.mubr.f32.mxu0 0.0
      %4055 = vmatmul.mubr.f32.gmra.mrb[0].mxu0 %v3839
      %v4056 = vpop.f32.mrb[0].mxu0
      %v4057 = vadd.f32 0.0, %v4056
      %v4058 = vpop.f32.mrb[0].mxu0
      %4059 = vmatprep.mubr.f32.mxu0 0.0
      %4060 = vmatmul.mubr.f32.gmra.mrb[0].mxu0 %v3842
      %v4061 = vpop.f32.mrb[0].mxu0
      %v4062 = vadd.f32 0.0, %v4061
      %v4063 = vpop.f32.mrb[0].mxu0
      %4064 = vmatprep.mubr.f32.mxu0 0.0
      %4065 = vmatmul.mubr.f32.gmra.mrb[0].mxu0 %v3845
      %v4066 = vpop.f32.mrb[0].mxu0
      %v4067 = vadd.f32 0.0, %v4066
      %v4068 = vpop.f32.mrb[0].mxu0
      %4069 = vmatprep.mubr.f32.mxu0 0.0
      %4070 = vmatmul.mubr.f32.gmra.mrb[0].mxu0 %v3848
      %v4071 = vpop.f32.mrb[0].mxu0
      %v4072 = vadd.f32 0.0, %v4071
      %v4073 = vpop.f32.mrb[0].mxu0
      %4074 = vdwg.mxu0
      %v4075 = vadd.f32 %v3719, %v3917
      %v4076 = vadd.f32 %v3720, %v3922
      %v4077 = vadd.f32 %v3721, %v3927
      %v4078 = vadd.f32 %v3722, %v3932
      %v4079 = vadd.f32 %v3723, %v3937
      %v4080 = vadd.f32 %v3724, %v3942
      %v4081 = vadd.f32 %v3725, %v3947
      %v4082 = vadd.f32 %v3726, %v3952
      %v4083 = vadd.f32 %v3727, %v3957
      %v4084 = vadd.f32 %v3728, %v3962
      %v4085 = vadd.f32 %v3729, %v3967
      %v4086 = vadd.f32 %v3730, %v3972
      %v4087 = vadd.f32 %v3731, %v3977
      %v4088 = vadd.f32 %v3732, %v3982
      %v4089 = vadd.f32 %v3733, %v3987
      %v4090 = vadd.f32 %v3734, %v3992
      %v4091 = vadd.f32 %v3735, %v3997
      %v4092 = vadd.f32 %v3736, %v4002
      %v4093 = vadd.f32 %v3737, %v4007
      %v4094 = vadd.f32 %v3738, %v4012
      %v4095 = vadd.f32 %v3739, %v4017
      %v4096 = vadd.f32 %v3740, %v4022
      %v4097 = vadd.f32 %v3741, %v4027
      %v4098 = vadd.f32 %v3742, %v4032
      %v4099 = vadd.f32 %v3743, %v4037
      %v4100 = vadd.f32 %v3744, %v4042
      %v4101 = vadd.f32 %v3745, %v4047
      %v4102 = vadd.f32 %v3746, %v4052
      %v4103 = vadd.f32 %v3747, %v4057
      %v4104 = vadd.f32 %v3748, %v4062
      %v4105 = vadd.f32 %v3749, %v4067
      %v4106 = vadd.f32 %v3750, %v4072
      %v4107 = vld [vmem:[%s2] sm:$0x1]
      %v4108 = vld [vmem:[%s2 + $0x1] sm:$0x1]
      %v4109 = vld [vmem:[%s2 + $0x2] sm:$0x1]
      %v4110 = vlaneseq
      %v4111 = vshrl.u32 %v4110, 7
      %v4112 = vsub.s32 0, %v4111
      %v4113 = vrot.slane %v4107, %v4112
      %v4114 = vadd.f32 %v4075, %v4113
      %v4115 = vadd.f32 %v4076, %v4113
      %v4116 = vadd.f32 %v4077, %v4113
      %v4117 = vadd.f32 %v4078, %v4113
      %v4118 = vadd.f32 %v4079, %v4113
      %v4119 = vadd.f32 %v4080, %v4113
      %v4120 = vadd.f32 %v4081, %v4113
      %v4121 = vadd.f32 %v4082, %v4113
      %v4122 = vadd.f32 %v4083, %v4113
      %v4123 = vadd.f32 %v4084, %v4113
      %v4124 = vadd.f32 %v4085, %v4113
      %v4125 = vadd.f32 %v4086, %v4113
      %v4126 = vadd.f32 %v4087, %v4113
      %v4127 = vadd.f32 %v4088, %v4113
      %v4128 = vadd.f32 %v4089, %v4113
      %v4129 = vadd.f32 %v4090, %v4113
      %v4130 = vadd.f32 %v4091, %v4113
      %v4131 = vadd.f32 %v4092, %v4113
      %v4132 = vadd.f32 %v4093, %v4113
      %v4133 = vadd.f32 %v4094, %v4113
      %v4134 = vadd.f32 %v4095, %v4113
      %v4135 = vadd.f32 %v4096, %v4113
      %v4136 = vadd.f32 %v4097, %v4113
      %v4137 = vadd.f32 %v4098, %v4113
      %v4138 = vadd.f32 %v4099, %v4113
      %v4139 = vadd.f32 %v4100, %v4113
      %v4140 = vadd.f32 %v4101, %v4113
      %v4141 = vadd.f32 %v4102, %v4113
      %v4142 = vadd.f32 %v4103, %v4113
      %v4143 = vadd.f32 %v4104, %v4113
      %v4144 = vadd.f32 %v4105, %v4113
      %v4145 = vadd.f32 %v4106, %v4113
      %v4146 = vmax.f32 %v4114, 0.0
      %v4147 = vmax.f32 %v4115, 0.0
      %v4148 = vmax.f32 %v4116, 0.0
      %v4149 = vmax.f32 %v4117, 0.0
      %v4150 = vmax.f32 %v4118, 0.0
      %v4151 = vmax.f32 %v4119, 0.0
      %v4152 = vmax.f32 %v4120, 0.0
      %v4153 = vmax.f32 %v4121, 0.0
      %v4154 = vmax.f32 %v4122, 0.0
      %v4155 = vmax.f32 %v4123, 0.0
      %v4156 = vmax.f32 %v4124, 0.0
      %v4157 = vmax.f32 %v4125, 0.0
      %v4158 = vmax.f32 %v4126, 0.0
      %v4159 = vmax.f32 %v4127, 0.0
      %v4160 = vmax.f32 %v4128, 0.0
      %v4161 = vmax.f32 %v4129, 0.0
      %v4162 = vmax.f32 %v4130, 0.0
      %v4163 = vmax.f32 %v4131, 0.0
      %v4164 = vmax.f32 %v4132, 0.0
      %v4165 = vmax.f32 %v4133, 0.0
      %v4166 = vmax.f32 %v4134, 0.0
      %v4167 = vmax.f32 %v4135, 0.0
      %v4168 = vmax.f32 %v4136, 0.0
      %v4169 = vmax.f32 %v4137, 0.0
      %v4170 = vmax.f32 %v4138, 0.0
      %v4171 = vmax.f32 %v4139, 0.0
      %v4172 = vmax.f32 %v4140, 0.0
      %v4173 = vmax.f32 %v4141, 0.0
      %v4174 = vmax.f32 %v4142, 0.0
      %v4175 = vmax.f32 %v4143, 0.0
      %v4176 = vmax.f32 %v4144, 0.0
      %v4177 = vmax.f32 %v4145, 0.0
      %v4178 = vlaneseq
      %v4179 = vshrl.u32 %v4178, 7
      %v4180 = vsub.s32 0, %v4179
      %v4181 = vrot.slane %v4108, %v4180
      %v4182 = vmul.f32 %v4146, %v4181
      %v4183 = vmul.f32 %v4147, %v4181
      %v4184 = vmul.f32 %v4148, %v4181
      %v4185 = vmul.f32 %v4149, %v4181
      %v4186 = vmul.f32 %v4150, %v4181
      %v4187 = vmul.f32 %v4151, %v4181
      %v4188 = vmul.f32 %v4152, %v4181
      %v4189 = vmul.f32 %v4153, %v4181
      %v4190 = vmul.f32 %v4154, %v4181
      %v4191 = vmul.f32 %v4155, %v4181
      %v4192 = vmul.f32 %v4156, %v4181
      %v4193 = vmul.f32 %v4157, %v4181
      %v4194 = vmul.f32 %v4158, %v4181
      %v4195 = vmul.f32 %v4159, %v4181
      %v4196 = vmul.f32 %v4160, %v4181
      %v4197 = vmul.f32 %v4161, %v4181
      %v4198 = vmul.f32 %v4162, %v4181
      %v4199 = vmul.f32 %v4163, %v4181
      %v4200 = vmul.f32 %v4164, %v4181
      %v4201 = vmul.f32 %v4165, %v4181
      %v4202 = vmul.f32 %v4166, %v4181
      %v4203 = vmul.f32 %v4167, %v4181
      %v4204 = vmul.f32 %v4168, %v4181
      %v4205 = vmul.f32 %v4169, %v4181
      %v4206 = vmul.f32 %v4170, %v4181
      %v4207 = vmul.f32 %v4171, %v4181
      %v4208 = vmul.f32 %v4172, %v4181
      %v4209 = vmul.f32 %v4173, %v4181
      %v4210 = vmul.f32 %v4174, %v4181
      %v4211 = vmul.f32 %v4175, %v4181
      %v4212 = vmul.f32 %v4176, %v4181
      %v4213 = vmul.f32 %v4177, %v4181
      %v4214 = vlaneseq
      %v4215 = vshrl.u32 %v4214, 7
      %v4216 = vsub.s32 0, %v4215
      %v4217 = vrot.slane %v4109, %v4216
      %v4218 = vadd.f32 %v4182, %v4217
      %v4219 = vadd.f32 %v4183, %v4217
      %v4220 = vadd.f32 %v4184, %v4217
      %v4221 = vadd.f32 %v4185, %v4217
      %v4222 = vadd.f32 %v4186, %v4217
      %v4223 = vadd.f32 %v4187, %v4217
      %v4224 = vadd.f32 %v4188, %v4217
      %v4225 = vadd.f32 %v4189, %v4217
      %v4226 = vadd.f32 %v4190, %v4217
      %v4227 = vadd.f32 %v4191, %v4217
      %v4228 = vadd.f32 %v4192, %v4217
      %v4229 = vadd.f32 %v4193, %v4217
      %v4230 = vadd.f32 %v4194, %v4217
      %v4231 = vadd.f32 %v4195, %v4217
      %v4232 = vadd.f32 %v4196, %v4217
      %v4233 = vadd.f32 %v4197, %v4217
      %v4234 = vadd.f32 %v4198, %v4217
      %v4235 = vadd.f32 %v4199, %v4217
      %v4236 = vadd.f32 %v4200, %v4217
      %v4237 = vadd.f32 %v4201, %v4217
      %v4238 = vadd.f32 %v4202, %v4217
      %v4239 = vadd.f32 %v4203, %v4217
      %v4240 = vadd.f32 %v4204, %v4217
      %v4241 = vadd.f32 %v4205, %v4217
      %v4242 = vadd.f32 %v4206, %v4217
      %v4243 = vadd.f32 %v4207, %v4217
      %v4244 = vadd.f32 %v4208, %v4217
      %v4245 = vadd.f32 %v4209, %v4217
      %v4246 = vadd.f32 %v4210, %v4217
      %v4247 = vadd.f32 %v4211, %v4217
      %v4248 = vadd.f32 %v4212, %v4217
      %v4249 = vadd.f32 %v4213, %v4217
      %v4250 = vld [vmem:[%s3] sm:$0xff]
      %v4251 = vld [vmem:[%s3 + $0x8] sm:$0xff]
      %v4252 = vld [vmem:[%s3 + $0x10] sm:$0xff]
      %v4253 = vld [vmem:[%s3 + $0x18] sm:$0xff]
      %v4254 = vld [vmem:[%s3 + $0x20] sm:$0xff]
      %v4255 = vld [vmem:[%s3 + $0x28] sm:$0xff]
      %v4256 = vld [vmem:[%s3 + $0x30] sm:$0xff]
      %v4257 = vld [vmem:[%s3 + $0x38] sm:$0xff]
      %v4258 = vld [vmem:[%s3 + $0x40] sm:$0xff]
      %v4259 = vld [vmem:[%s3 + $0x48] sm:$0xff]
      %v4260 = vld [vmem:[%s3 + $0x50] sm:$0xff]
      %v4261 = vld [vmem:[%s3 + $0x58] sm:$0xff]
      %v4262 = vld [vmem:[%s3 + $0x60] sm:$0xff]
      %v4263 = vld [vmem:[%s3 + $0x68] sm:$0xff]
      %v4264 = vld [vmem:[%s3 + $0x70] sm:$0xff]
      %v4265 = vld [vmem:[%s3 + $0x78] sm:$0xff]
      %v4266 = vld [vmem:[%s3 + $0x80] sm:$0xff]
      %v4267 = vld [vmem:[%s3 + $0x88] sm:$0xff]
      %v4268 = vld [vmem:[%s3 + $0x90] sm:$0xff]
      %v4269 = vld [vmem:[%s3 + $0x98] sm:$0xff]
      %v4270 = vld [vmem:[%s3 + $0xa0] sm:$0xff]
      %v4271 = vld [vmem:[%s3 + $0xa8] sm:$0xff]
      %v4272 = vld [vmem:[%s3 + $0xb0] sm:$0xff]
      %v4273 = vld [vmem:[%s3 + $0xb8] sm:$0xff]
      %v4274 = vld [vmem:[%s3 + $0xc0] sm:$0xff]
      %v4275 = vld [vmem:[%s3 + $0xc8] sm:$0xff]
      %v4276 = vld [vmem:[%s3 + $0xd0] sm:$0xff]
      %v4277 = vld [vmem:[%s3 + $0xd8] sm:$0xff]
      %v4278 = vld [vmem:[%s3 + $0xe0] sm:$0xff]
      %v4279 = vld [vmem:[%s3 + $0xe8] sm:$0xff]
      %v4280 = vld [vmem:[%s3 + $0xf0] sm:$0xff]
      %v4281 = vld [vmem:[%s3 + $0xf8] sm:$0xff]
      %v4282 = vld [vmem:[%s3 + $0x100] sm:$0xff]
      %v4283 = vld [vmem:[%s3 + $0x108] sm:$0xff]
      %v4284 = vld [vmem:[%s3 + $0x110] sm:$0xff]
      %v4285 = vld [vmem:[%s3 + $0x118] sm:$0xff]
      %v4286 = vld [vmem:[%s3 + $0x120] sm:$0xff]
      %v4287 = vld [vmem:[%s3 + $0x128] sm:$0xff]
      %v4288 = vld [vmem:[%s3 + $0x130] sm:$0xff]
      %v4289 = vld [vmem:[%s3 + $0x138] sm:$0xff]
      %v4290 = vld [vmem:[%s3 + $0x140] sm:$0xff]
      %v4291 = vld [vmem:[%s3 + $0x148] sm:$0xff]
      %v4292 = vld [vmem:[%s3 + $0x150] sm:$0xff]
      %v4293 = vld [vmem:[%s3 + $0x158] sm:$0xff]
      %v4294 = vld [vmem:[%s3 + $0x160] sm:$0xff]
      %v4295 = vld [vmem:[%s3 + $0x168] sm:$0xff]
      %v4296 = vld [vmem:[%s3 + $0x170] sm:$0xff]
      %v4297 = vld [vmem:[%s3 + $0x178] sm:$0xff]
      %v4298 = vld [vmem:[%s3 + $0x180] sm:$0xff]
      %v4299 = vld [vmem:[%s3 + $0x188] sm:$0xff]
      %v4300 = vld [vmem:[%s3 + $0x190] sm:$0xff]
      %v4301 = vld [vmem:[%s3 + $0x198] sm:$0xff]
      %v4302 = vld [vmem:[%s3 + $0x1a0] sm:$0xff]
      %v4303 = vld [vmem:[%s3 + $0x1a8] sm:$0xff]
      %v4304 = vld [vmem:[%s3 + $0x1b0] sm:$0xff]
      %v4305 = vld [vmem:[%s3 + $0x1b8] sm:$0xff]
      %v4306 = vld [vmem:[%s3 + $0x1c0] sm:$0xff]
      %v4307 = vld [vmem:[%s3 + $0x1c8] sm:$0xff]
      %v4308 = vld [vmem:[%s3 + $0x1d0] sm:$0xff]
      %v4309 = vld [vmem:[%s3 + $0x1d8] sm:$0xff]
      %v4310 = vld [vmem:[%s3 + $0x1e0] sm:$0xff]
      %v4311 = vld [vmem:[%s3 + $0x1e8] sm:$0xff]
      %v4312 = vld [vmem:[%s3 + $0x1f0] sm:$0xff]
      %v4313 = vld [vmem:[%s3 + $0x1f8] sm:$0xff]
      %4314 = vmatprep.subr.mxu0 0.0
      %4315 = vmatpush1.msra.mxu0 %v4218
      %4316 = vmatprep.subr.mxu0 0.0
      %4317 = vmatpush1.msra.mxu0 %v4219
      %4318 = vmatprep.subr.mxu0 0.0
      %4319 = vmatpush1.msra.mxu0 %v4220
      %4320 = vmatprep.subr.mxu0 0.0
      %4321 = vmatpush1.msra.mxu0 %v4221
      %4322 = vmatprep.subr.mxu0 0.0
      %4323 = vmatpush1.msra.mxu0 %v4222
      %4324 = vmatprep.subr.mxu0 0.0
      %4325 = vmatpush1.msra.mxu0 %v4223
      %4326 = vmatprep.subr.mxu0 0.0
      %4327 = vmatpush1.msra.mxu0 %v4224
      %4328 = vmatprep.subr.mxu0 0.0
      %4329 = vmatpush1.msra.mxu0 %v4225
      %4330 = vmatprep.subr.mxu0 0.0
      %4331 = vmatpush1.msra.mxu0 %v4226
      %4332 = vmatprep.subr.mxu0 0.0
      %4333 = vmatpush1.msra.mxu0 %v4227
      %4334 = vmatprep.subr.mxu0 0.0
      %4335 = vmatpush1.msra.mxu0 %v4228
      %4336 = vmatprep.subr.mxu0 0.0
      %4337 = vmatpush1.msra.mxu0 %v4229
      %4338 = vmatprep.subr.mxu0 0.0
      %4339 = vmatpush1.msra.mxu0 %v4230
      %4340 = vmatprep.subr.mxu0 0.0
      %4341 = vmatpush1.msra.mxu0 %v4231
      %4342 = vmatprep.subr.mxu0 0.0
      %4343 = vmatpush1.msra.mxu0 %v4232
      %4344 = vmatprep.subr.mxu0 0.0
      %4345 = vmatpush1.msra.mxu0 %v4233
      %4346 = vmatprep.subr.mxu0 0.0
      %4347 = vmatpush1.msra.mxu0 %v4234
      %4348 = vmatprep.subr.mxu0 0.0
      %4349 = vmatpush1.msra.mxu0 %v4235
      %4350 = vmatprep.subr.mxu0 0.0
      %4351 = vmatpush1.msra.mxu0 %v4236
      %4352 = vmatprep.subr.mxu0 0.0
      %4353 = vmatpush1.msra.mxu0 %v4237
      %4354 = vmatprep.subr.mxu0 0.0
      %4355 = vmatpush1.msra.mxu0 %v4238
      %4356 = vmatprep.subr.mxu0 0.0
      %4357 = vmatpush1.msra.mxu0 %v4239
      %4358 = vmatprep.subr.mxu0 0.0
      %4359 = vmatpush1.msra.mxu0 %v4240
      %4360 = vmatprep.subr.mxu0 0.0
      %4361 = vmatpush1.msra.mxu0 %v4241
      %4362 = vmatprep.subr.mxu0 0.0
      %4363 = vmatpush1.msra.mxu0 %v4242
      %4364 = vmatprep.subr.mxu0 0.0
      %4365 = vmatpush1.msra.mxu0 %v4243
      %4366 = vmatprep.subr.mxu0 0.0
      %4367 = vmatpush1.msra.mxu0 %v4244
      %4368 = vmatprep.subr.mxu0 0.0
      %4369 = vmatpush1.msra.mxu0 %v4245
      %4370 = vmatprep.subr.mxu0 0.0
      %4371 = vmatpush1.msra.mxu0 %v4246
      %4372 = vmatprep.subr.mxu0 0.0
      %4373 = vmatpush1.msra.mxu0 %v4247
      %4374 = vmatprep.subr.mxu0 0.0
      %4375 = vmatpush1.msra.mxu0 %v4248
      %4376 = vmatprep.subr.mxu0 0.0
      %4377 = vmatpush1.msra.mxu0 %v4249
      %4378 = vmatprep.mubr.f32.mxu0 %v4251
      %4379 = vmatmul.mubr.f32.gmra.mrb[0].mxu0 %v4250
      %v4380 = vpop.f32.mrb[0].mxu0
      %v4381 = vadd.f32 0.0, %v4380
      %v4382 = vpop.f32.mrb[0].mxu0
      %4383 = vmatprep.mubr.f32.mxu0 %v4253
      %4384 = vmatmul.mubr.f32.gmra.mrb[0].mxu0 %v4252
      %v4385 = vpop.f32.mrb[0].mxu0
      %v4386 = vadd.f32 0.0, %v4385
      %v4387 = vpop.f32.mrb[0].mxu0
      %4388 = vmatprep.mubr.f32.mxu0 %v4255
      %4389 = vmatmul.mubr.f32.gmra.mrb[0].mxu0 %v4254
      %v4390 = vpop.f32.mrb[0].mxu0
      %v4391 = vadd.f32 0.0, %v4390
      %v4392 = vpop.f32.mrb[0].mxu0
      %4393 = vmatprep.mubr.f32.mxu0 %v4257
      %4394 = vmatmul.mubr.f32.gmra.mrb[0].mxu0 %v4256
      %v4395 = vpop.f32.mrb[0].mxu0
      %v4396 = vadd.f32 0.0, %v4395
      %v4397 = vpop.f32.mrb[0].mxu0
      %4398 = vmatprep.mubr.f32.mxu0 %v4259
      %4399 = vmatmul.mubr.f32.gmra.mrb[0].mxu0 %v4258
      %v4400 = vpop.f32.mrb[0].mxu0
      %v4401 = vadd.f32 0.0, %v4400
      %v4402 = vpop.f32.mrb[0].mxu0
      %4403 = vmatprep.mubr.f32.mxu0 %v4261
      %4404 = vmatmul.mubr.f32.gmra.mrb[0].mxu0 %v4260
      %v4405 = vpop.f32.mrb[0].mxu0
      %v4406 = vadd.f32 0.0, %v4405
      %v4407 = vpop.f32.mrb[0].mxu0
      %4408 = vmatprep.mubr.f32.mxu0 %v4263
      %4409 = vmatmul.mubr.f32.gmra.mrb[0].mxu0 %v4262
      %v4410 = vpop.f32.mrb[0].mxu0
      %v4411 = vadd.f32 0.0, %v4410
      %v4412 = vpop.f32.mrb[0].mxu0
      %4413 = vmatprep.mubr.f32.mxu0 %v4265
      %4414 = vmatmul.mubr.f32.gmra.mrb[0].mxu0 %v4264
      %v4415 = vpop.f32.mrb[0].mxu0
      %v4416 = vadd.f32 0.0, %v4415
      %v4417 = vpop.f32.mrb[0].mxu0
      %4418 = vmatprep.mubr.f32.mxu0 %v4267
      %4419 = vmatmul.mubr.f32.gmra.mrb[0].mxu0 %v4266
      %v4420 = vpop.f32.mrb[0].mxu0
      %v4421 = vadd.f32 0.0, %v4420
      %v4422 = vpop.f32.mrb[0].mxu0
      %4423 = vmatprep.mubr.f32.mxu0 %v4269
      %4424 = vmatmul.mubr.f32.gmra.mrb[0].mxu0 %v4268
      %v4425 = vpop.f32.mrb[0].mxu0
      %v4426 = vadd.f32 0.0, %v4425
      %v4427 = vpop.f32.mrb[0].mxu0
      %4428 = vmatprep.mubr.f32.mxu0 %v4271
      %4429 = vmatmul.mubr.f32.gmra.mrb[0].mxu0 %v4270
      %v4430 = vpop.f32.mrb[0].mxu0
      %v4431 = vadd.f32 0.0, %v4430
      %v4432 = vpop.f32.mrb[0].mxu0
      %4433 = vmatprep.mubr.f32.mxu0 %v4273
      %4434 = vmatmul.mubr.f32.gmra.mrb[0].mxu0 %v4272
      %v4435 = vpop.f32.mrb[0].mxu0
      %v4436 = vadd.f32 0.0, %v4435
      %v4437 = vpop.f32.mrb[0].mxu0
      %4438 = vmatprep.mubr.f32.mxu0 %v4275
      %4439 = vmatmul.mubr.f32.gmra.mrb[0].mxu0 %v4274
      %v4440 = vpop.f32.mrb[0].mxu0
      %v4441 = vadd.f32 0.0, %v4440
      %v4442 = vpop.f32.mrb[0].mxu0
      %4443 = vmatprep.mubr.f32.mxu0 %v4277
      %4444 = vmatmul.mubr.f32.gmra.mrb[0].mxu0 %v4276
      %v4445 = vpop.f32.mrb[0].mxu0
      %v4446 = vadd.f32 0.0, %v4445
      %v4447 = vpop.f32.mrb[0].mxu0
      %4448 = vmatprep.mubr.f32.mxu0 %v4279
      %4449 = vmatmul.mubr.f32.gmra.mrb[0].mxu0 %v4278
      %v4450 = vpop.f32.mrb[0].mxu0
      %v4451 = vadd.f32 0.0, %v4450
      %v4452 = vpop.f32.mrb[0].mxu0
      %4453 = vmatprep.mubr.f32.mxu0 %v4281
      %4454 = vmatmul.mubr.f32.gmra.mrb[0].mxu0 %v4280
      %v4455 = vpop.f32.mrb[0].mxu0
      %v4456 = vadd.f32 0.0, %v4455
      %v4457 = vpop.f32.mrb[0].mxu0
      %4458 = vmatprep.mubr.f32.mxu0 %v4283
      %4459 = vmatmul.mubr.f32.gmra.mrb[0].mxu0 %v4282
      %v4460 = vpop.f32.mrb[0].mxu0
      %v4461 = vadd.f32 0.0, %v4460
      %v4462 = vpop.f32.mrb[0].mxu0
      %4463 = vmatprep.mubr.f32.mxu0 %v4285
      %4464 = vmatmul.mubr.f32.gmra.mrb[0].mxu0 %v4284
      %v4465 = vpop.f32.mrb[0].mxu0
      %v4466 = vadd.f32 0.0, %v4465
      %v4467 = vpop.f32.mrb[0].mxu0
      %4468 = vmatprep.mubr.f32.mxu0 %v4287
      %4469 = vmatmul.mubr.f32.gmra.mrb[0].mxu0 %v4286
      %v4470 = vpop.f32.mrb[0].mxu0
      %v4471 = vadd.f32 0.0, %v4470
      %v4472 = vpop.f32.mrb[0].mxu0
      %4473 = vmatprep.mubr.f32.mxu0 %v4289
      %4474 = vmatmul.mubr.f32.gmra.mrb[0].mxu0 %v4288
      %v4475 = vpop.f32.mrb[0].mxu0
      %v4476 = vadd.f32 0.0, %v4475
      %v4477 = vpop.f32.mrb[0].mxu0
      %4478 = vmatprep.mubr.f32.mxu0 %v4291
      %4479 = vmatmul.mubr.f32.gmra.mrb[0].mxu0 %v4290
      %v4480 = vpop.f32.mrb[0].mxu0
      %v4481 = vadd.f32 0.0, %v4480
      %v4482 = vpop.f32.mrb[0].mxu0
      %4483 = vmatprep.mubr.f32.mxu0 %v4293
      %4484 = vmatmul.mubr.f32.gmra.mrb[0].mxu0 %v4292
      %v4485 = vpop.f32.mrb[0].mxu0
      %v4486 = vadd.f32 0.0, %v4485
      %v4487 = vpop.f32.mrb[0].mxu0
      %4488 = vmatprep.mubr.f32.mxu0 %v4295
      %4489 = vmatmul.mubr.f32.gmra.mrb[0].mxu0 %v4294
      %v4490 = vpop.f32.mrb[0].mxu0
      %v4491 = vadd.f32 0.0, %v4490
      %v4492 = vpop.f32.mrb[0].mxu0
      %4493 = vmatprep.mubr.f32.mxu0 %v4297
      %4494 = vmatmul.mubr.f32.gmra.mrb[0].mxu0 %v4296
      %v4495 = vpop.f32.mrb[0].mxu0
      %v4496 = vadd.f32 0.0, %v4495
      %v4497 = vpop.f32.mrb[0].mxu0
      %4498 = vmatprep.mubr.f32.mxu0 %v4299
      %4499 = vmatmul.mubr.f32.gmra.mrb[0].mxu0 %v4298
      %v4500 = vpop.f32.mrb[0].mxu0
      %v4501 = vadd.f32 0.0, %v4500
      %v4502 = vpop.f32.mrb[0].mxu0
      %4503 = vmatprep.mubr.f32.mxu0 %v4301
      %4504 = vmatmul.mubr.f32.gmra.mrb[0].mxu0 %v4300
      %v4505 = vpop.f32.mrb[0].mxu0
      %v4506 = vadd.f32 0.0, %v4505
      %v4507 = vpop.f32.mrb[0].mxu0
      %4508 = vmatprep.mubr.f32.mxu0 %v4303
      %4509 = vmatmul.mubr.f32.gmra.mrb[0].mxu0 %v4302
      %v4510 = vpop.f32.mrb[0].mxu0
      %v4511 = vadd.f32 0.0, %v4510
      %v4512 = vpop.f32.mrb[0].mxu0
      %4513 = vmatprep.mubr.f32.mxu0 %v4305
      %4514 = vmatmul.mubr.f32.gmra.mrb[0].mxu0 %v4304
      %v4515 = vpop.f32.mrb[0].mxu0
      %v4516 = vadd.f32 0.0, %v4515
      %v4517 = vpop.f32.mrb[0].mxu0
      %4518 = vmatprep.mubr.f32.mxu0 %v4307
      %4519 = vmatmul.mubr.f32.gmra.mrb[0].mxu0 %v4306
      %v4520 = vpop.f32.mrb[0].mxu0
      %v4521 = vadd.f32 0.0, %v4520
      %v4522 = vpop.f32.mrb[0].mxu0
      %4523 = vmatprep.mubr.f32.mxu0 %v4309
      %4524 = vmatmul.mubr.f32.gmra.mrb[0].mxu0 %v4308
      %v4525 = vpop.f32.mrb[0].mxu0
      %v4526 = vadd.f32 0.0, %v4525
      %v4527 = vpop.f32.mrb[0].mxu0
      %4528 = vmatprep.mubr.f32.mxu0 %v4311
      %4529 = vmatmul.mubr.f32.gmra.mrb[0].mxu0 %v4310
      %v4530 = vpop.f32.mrb[0].mxu0
      %v4531 = vadd.f32 0.0, %v4530
      %v4532 = vpop.f32.mrb[0].mxu0
      %4533 = vmatprep.mubr.f32.mxu0 %v4313
      %4534 = vmatmul.mubr.f32.gmra.mrb[0].mxu0 %v4312
      %v4535 = vpop.f32.mrb[0].mxu0
      %v4536 = vadd.f32 0.0, %v4535
      %v4537 = vpop.f32.mrb[0].mxu0
      %4538 = vdwg.mxu0
      %v4539 = vmax.f32 %v4381, %v4421
      %v4540 = vmax.f32 %v4386, %v4426
      %v4541 = vmax.f32 %v4391, %v4431
      %v4542 = vmax.f32 %v4396, %v4436
      %v4543 = vmax.f32 %v4401, %v4441
      %v4544 = vmax.f32 %v4406, %v4446
      %v4545 = vmax.f32 %v4411, %v4451
      %v4546 = vmax.f32 %v4416, %v4456
      %v4547 = vmax.f32 %v4461, %v4501
      %v4548 = vmax.f32 %v4466, %v4506
      %v4549 = vmax.f32 %v4471, %v4511
      %v4550 = vmax.f32 %v4476, %v4516
      %v4551 = vmax.f32 %v4481, %v4521
      %v4552 = vmax.f32 %v4486, %v4526
      %v4553 = vmax.f32 %v4491, %v4531
      %v4554 = vmax.f32 %v4496, %v4536
      %v4555 = vmax.f32 %v4539, %v4547
      %v4556 = vmax.f32 %v4540, %v4548
      %v4557 = vmax.f32 %v4541, %v4549
      %v4558 = vmax.f32 %v4542, %v4550
      %v4559 = vmax.f32 %v4543, %v4551
      %v4560 = vmax.f32 %v4544, %v4552
      %v4561 = vmax.f32 %v4545, %v4553
      %v4562 = vmax.f32 %v4546, %v4554
      %4563 = vst [vmem:[#allocation3] sm:$0xff] 0.0
      %4564 = vst [vmem:[#allocation3 + $0x8] sm:$0xff] 0.0
      %4565 = vst [vmem:[#allocation3 + $0x50] sm:$0xff] 0.0
      %4566 = vst [vmem:[#allocation3 + $0x58] sm:$0xff] 0.0
      %4567 = vst [vmem:[#allocation3 + $0x10] sm:$0xff] %v4555
      %4568 = vst [vmem:[#allocation3 + $0x18] sm:$0xff] %v4556
      %4569 = vst [vmem:[#allocation3 + $0x20] sm:$0xff] %v4557
      %4570 = vst [vmem:[#allocation3 + $0x28] sm:$0xff] %v4558
      %4571 = vst [vmem:[#allocation3 + $0x30] sm:$0xff] %v4559
      %4572 = vst [vmem:[#allocation3 + $0x38] sm:$0xff] %v4560
      %4573 = vst [vmem:[#allocation3 + $0x40] sm:$0xff] %v4561
      %4574 = vst [vmem:[#allocation3 + $0x48] sm:$0xff] %v4562
      %v4575 = vand.u32 %v592, 7
      %v4576 = vand.u32 %v593, 7
      %v4577 = vand.u32 %v594, 7
      %v4578 = vand.u32 %v595, 7
      %v4579 = vand.u32 %v596, 7
      %v4580 = vand.u32 %v597, 7
      %v4581 = vand.u32 %v598, 7
      %v4582 = vand.u32 %v599, 7
      %vm4583 = vcmp.gt.s32.totalorder %v4575, 0
      %vm4584 = vcmp.gt.s32.totalorder %v4576, 0
      %vm4585 = vcmp.gt.s32.totalorder %v4577, 0
      %vm4586 = vcmp.gt.s32.totalorder %v4578, 0
      %vm4587 = vcmp.gt.s32.totalorder %v4579, 0
      %vm4588 = vcmp.gt.s32.totalorder %v4580, 0
      %vm4589 = vcmp.gt.s32.totalorder %v4581, 0
      %vm4590 = vcmp.gt.s32.totalorder %v4582, 0
      %v4591 = vsel %vm4583, 1, 0
      %v4592 = vsel %vm4584, 1, 0
      %v4593 = vsel %vm4585, 1, 0
      %v4594 = vsel %vm4586, 1, 0
      %v4595 = vsel %vm4587, 1, 0
      %v4596 = vsel %vm4588, 1, 0
      %v4597 = vsel %vm4589, 1, 0
      %v4598 = vsel %vm4590, 1, 0
      %v4599 = vcvt.s32.f32 %v4591
      %v4600 = vcvt.s32.f32 %v4592
      %v4601 = vcvt.s32.f32 %v4593
      %v4602 = vcvt.s32.f32 %v4594
      %v4603 = vcvt.s32.f32 %v4595
      %v4604 = vcvt.s32.f32 %v4596
      %v4605 = vcvt.s32.f32 %v4597
      %v4606 = vcvt.s32.f32 %v4598
      %vm4607 = vcmp.lt.s32.totalorder %v4575, 7
      %vm4608 = vcmp.lt.s32.totalorder %v4576, 7
      %vm4609 = vcmp.lt.s32.totalorder %v4577, 7
      %vm4610 = vcmp.lt.s32.totalorder %v4578, 7
      %vm4611 = vcmp.lt.s32.totalorder %v4579, 7
      %vm4612 = vcmp.lt.s32.totalorder %v4580, 7
      %vm4613 = vcmp.lt.s32.totalorder %v4581, 7
      %vm4614 = vcmp.lt.s32.totalorder %v4582, 7
      %v4615 = vsel %vm4607, 1, 0
      %v4616 = vsel %vm4608, 1, 0
      %v4617 = vsel %vm4609, 1, 0
      %v4618 = vsel %vm4610, 1, 0
      %v4619 = vsel %vm4611, 1, 0
      %v4620 = vsel %vm4612, 1, 0
      %v4621 = vsel %vm4613, 1, 0
      %v4622 = vsel %vm4614, 1, 0
      %v4623 = vcvt.s32.f32 %v4615
      %v4624 = vcvt.s32.f32 %v4616
      %v4625 = vcvt.s32.f32 %v4617
      %v4626 = vcvt.s32.f32 %v4618
      %v4627 = vcvt.s32.f32 %v4619
      %v4628 = vcvt.s32.f32 %v4620
      %v4629 = vcvt.s32.f32 %v4621
      %v4630 = vcvt.s32.f32 %v4622
      %v4631 = vld [vmem:[#allocation3 + $0x7] sm:$0xff]
      %v4632 = vld [vmem:[#allocation3 + $0xf] sm:$0xff]
      %v4633 = vld [vmem:[#allocation3 + $0x17] sm:$0xff]
      %v4634 = vld [vmem:[#allocation3 + $0x1f] sm:$0xff]
      %v4635 = vld [vmem:[#allocation3 + $0x27] sm:$0xff]
      %v4636 = vld [vmem:[#allocation3 + $0x2f] sm:$0xff]
      %v4637 = vld [vmem:[#allocation3 + $0x37] sm:$0xff]
      %v4638 = vld [vmem:[#allocation3 + $0x3f] sm:$0xff]
      %v4639 = vmul.f32 %v4631, %v4599
      %v4640 = vmul.f32 %v4632, %v4600
      %v4641 = vmul.f32 %v4633, %v4601
      %v4642 = vmul.f32 %v4634, %v4602
      %v4643 = vmul.f32 %v4635, %v4603
      %v4644 = vmul.f32 %v4636, %v4604
      %v4645 = vmul.f32 %v4637, %v4605
      %v4646 = vmul.f32 %v4638, %v4606
      %v4647 = vld [vmem:[#allocation3 + $0x8] sm:$0xff]
      %v4648 = vld [vmem:[#allocation3 + $0x10] sm:$0xff]
      %v4649 = vld [vmem:[#allocation3 + $0x18] sm:$0xff]
      %v4650 = vld [vmem:[#allocation3 + $0x20] sm:$0xff]
      %v4651 = vld [vmem:[#allocation3 + $0x28] sm:$0xff]
      %v4652 = vld [vmem:[#allocation3 + $0x30] sm:$0xff]
      %v4653 = vld [vmem:[#allocation3 + $0x38] sm:$0xff]
      %v4654 = vld [vmem:[#allocation3 + $0x40] sm:$0xff]
      %v4655 = vld [vmem:[#allocation3 + $0x9] sm:$0xff]
      %v4656 = vld [vmem:[#allocation3 + $0x11] sm:$0xff]
      %v4657 = vld [vmem:[#allocation3 + $0x19] sm:$0xff]
      %v4658 = vld [vmem:[#allocation3 + $0x21] sm:$0xff]
      %v4659 = vld [vmem:[#allocation3 + $0x29] sm:$0xff]
      %v4660 = vld [vmem:[#allocation3 + $0x31] sm:$0xff]
      %v4661 = vld [vmem:[#allocation3 + $0x39] sm:$0xff]
      %v4662 = vld [vmem:[#allocation3 + $0x41] sm:$0xff]
      %v4663 = vmul.f32 %v4655, %v4623
      %v4664 = vmul.f32 %v4656, %v4624
      %v4665 = vmul.f32 %v4657, %v4625
      %v4666 = vmul.f32 %v4658, %v4626
      %v4667 = vmul.f32 %v4659, %v4627
      %v4668 = vmul.f32 %v4660, %v4628
      %v4669 = vmul.f32 %v4661, %v4629
      %v4670 = vmul.f32 %v4662, %v4630
      %v4671 = vld [vmem:[#allocation3 + $0x47] sm:$0xff]
      %v4672 = vmul.f32 %v4632, %v4599
      %v4673 = vmul.f32 %v4633, %v4600
      %v4674 = vmul.f32 %v4634, %v4601
      %v4675 = vmul.f32 %v4635, %v4602
      %v4676 = vmul.f32 %v4636, %v4603
      %v4677 = vmul.f32 %v4637, %v4604
      %v4678 = vmul.f32 %v4638, %v4605
      %v4679 = vmul.f32 %v4671, %v4606
      %v4680 = vld [vmem:[#allocation3 + $0x48] sm:$0xff]
      %v4681 = vld [vmem:[#allocation3 + $0x49] sm:$0xff]
      %v4682 = vmul.f32 %v4656, %v4623
      %v4683 = vmul.f32 %v4657, %v4624
      %v4684 = vmul.f32 %v4658, %v4625
      %v4685 = vmul.f32 %v4659, %v4626
      %v4686 = vmul.f32 %v4660, %v4627
      %v4687 = vmul.f32 %v4661, %v4628
      %v4688 = vmul.f32 %v4662, %v4629
      %v4689 = vmul.f32 %v4681, %v4630
      %v4690 = vld [vmem:[#allocation3 + $0x4f] sm:$0xff]
      %v4691 = vmul.f32 %v4633, %v4599
      %v4692 = vmul.f32 %v4634, %v4600
      %v4693 = vmul.f32 %v4635, %v4601
      %v4694 = vmul.f32 %v4636, %v4602
      %v4695 = vmul.f32 %v4637, %v4603
      %v4696 = vmul.f32 %v4638, %v4604
      %v4697 = vmul.f32 %v4671, %v4605
      %v4698 = vmul.f32 %v4690, %v4606
      %v4699 = vld [vmem:[#allocation3 + $0x50] sm:$0xff]
      %v4700 = vld [vmem:[#allocation3 + $0x51] sm:$0xff]
      %v4701 = vmul.f32 %v4657, %v4623
      %v4702 = vmul.f32 %v4658, %v4624
      %v4703 = vmul.f32 %v4659, %v4625
      %v4704 = vmul.f32 %v4660, %v4626
      %v4705 = vmul.f32 %v4661, %v4627
      %v4706 = vmul.f32 %v4662, %v4628
      %v4707 = vmul.f32 %v4681, %v4629
      %v4708 = vmul.f32 %v4700, %v4630
      %v4709 = vld [vmem:[%s4] sm:$0xff]
      %v4710 = vld [vmem:[%s4 + $0x8] sm:$0xff]
      %v4711 = vld [vmem:[%s4 + $0x10] sm:$0xff]
      %v4712 = vld [vmem:[%s4 + $0x18] sm:$0xff]
      %v4713 = vld [vmem:[%s4 + $0x20] sm:$0xff]
      %v4714 = vld [vmem:[%s4 + $0x28] sm:$0xff]
      %v4715 = vld [vmem:[%s4 + $0x30] sm:$0xff]
      %v4716 = vld [vmem:[%s4 + $0x38] sm:$0xff]
      %v4717 = vld [vmem:[%s4 + $0x40] sm:$0xff]
      %v4718 = vld [vmem:[%s4 + $0x48] sm:$0xff]
      %v4719 = vld [vmem:[%s4 + $0x50] sm:$0xff]
      %v4720 = vld [vmem:[%s4 + $0x58] sm:$0xff]
      %v4721 = vld [vmem:[%s4 + $0x60] sm:$0xff]
      %v4722 = vld [vmem:[%s4 + $0x68] sm:$0xff]
      %v4723 = vld [vmem:[%s4 + $0x70] sm:$0xff]
      %v4724 = vld [vmem:[%s4 + $0x78] sm:$0xff]
      %v4725 = vld [vmem:[%s4 + $0x80] sm:$0xff]
      %v4726 = vld [vmem:[%s4 + $0x88] sm:$0xff]
      %v4727 = vld [vmem:[%s4 + $0x90] sm:$0xff]
      %v4728 = vld [vmem:[%s4 + $0x98] sm:$0xff]
      %v4729 = vld [vmem:[%s4 + $0xa0] sm:$0xff]
      %v4730 = vld [vmem:[%s4 + $0xa8] sm:$0xff]
      %v4731 = vld [vmem:[%s4 + $0xb0] sm:$0xff]
      %v4732 = vld [vmem:[%s4 + $0xb8] sm:$0xff]
      %v4733 = vld [vmem:[%s4 + $0xc0] sm:$0xff]
      %v4734 = vld [vmem:[%s4 + $0xc8] sm:$0xff]
      %v4735 = vld [vmem:[%s4 + $0xd0] sm:$0xff]
      %v4736 = vld [vmem:[%s4 + $0xd8] sm:$0xff]
      %v4737 = vld [vmem:[%s4 + $0xe0] sm:$0xff]
      %v4738 = vld [vmem:[%s4 + $0xe8] sm:$0xff]
      %v4739 = vld [vmem:[%s4 + $0xf0] sm:$0xff]
      %v4740 = vld [vmem:[%s4 + $0xf8] sm:$0xff]
      %v4741 = vld [vmem:[%s4 + $0x100] sm:$0xff]
      %v4742 = vld [vmem:[%s4 + $0x108] sm:$0xff]
      %v4743 = vld [vmem:[%s4 + $0x110] sm:$0xff]
      %v4744 = vld [vmem:[%s4 + $0x118] sm:$0xff]
      %v4745 = vld [vmem:[%s4 + $0x120] sm:$0xff]
      %v4746 = vld [vmem:[%s4 + $0x128] sm:$0xff]
      %v4747 = vld [vmem:[%s4 + $0x130] sm:$0xff]
      %v4748 = vld [vmem:[%s4 + $0x138] sm:$0xff]
      %v4749 = vld [vmem:[%s4 + $0x140] sm:$0xff]
      %v4750 = vld [vmem:[%s4 + $0x148] sm:$0xff]
      %v4751 = vld [vmem:[%s4 + $0x150] sm:$0xff]
      %v4752 = vld [vmem:[%s4 + $0x158] sm:$0xff]
      %v4753 = vld [vmem:[%s4 + $0x160] sm:$0xff]
      %v4754 = vld [vmem:[%s4 + $0x168] sm:$0xff]
      %v4755 = vld [vmem:[%s4 + $0x170] sm:$0xff]
      %v4756 = vld [vmem:[%s4 + $0x178] sm:$0xff]
      %v4757 = vld [vmem:[%s4 + $0x180] sm:$0xff]
      %v4758 = vld [vmem:[%s4 + $0x188] sm:$0xff]
      %v4759 = vld [vmem:[%s4 + $0x190] sm:$0xff]
      %v4760 = vld [vmem:[%s4 + $0x198] sm:$0xff]
      %v4761 = vld [vmem:[%s4 + $0x1a0] sm:$0xff]
      %v4762 = vld [vmem:[%s4 + $0x1a8] sm:$0xff]
      %v4763 = vld [vmem:[%s4 + $0x1b0] sm:$0xff]
      %v4764 = vld [vmem:[%s4 + $0x1b8] sm:$0xff]
      %v4765 = vld [vmem:[%s4 + $0x1c0] sm:$0xff]
      %v4766 = vld [vmem:[%s4 + $0x1c8] sm:$0xff]
      %v4767 = vld [vmem:[%s4 + $0x1d0] sm:$0xff]
      %v4768 = vld [vmem:[%s4 + $0x1d8] sm:$0xff]
      %v4769 = vld [vmem:[%s4 + $0x1e0] sm:$0xff]
      %v4770 = vld [vmem:[%s4 + $0x1e8] sm:$0xff]
      %v4771 = vld [vmem:[%s4 + $0x1f0] sm:$0xff]
      %v4772 = vld [vmem:[%s4 + $0x1f8] sm:$0xff]
      %v4773 = vld [vmem:[%s4 + $0x200] sm:$0xff]
      %v4774 = vld [vmem:[%s4 + $0x208] sm:$0xff]
      %v4775 = vld [vmem:[%s4 + $0x210] sm:$0xff]
      %v4776 = vld [vmem:[%s4 + $0x218] sm:$0xff]
      %v4777 = vld [vmem:[%s4 + $0x220] sm:$0xff]
      %v4778 = vld [vmem:[%s4 + $0x228] sm:$0xff]
      %v4779 = vld [vmem:[%s4 + $0x230] sm:$0xff]
      %v4780 = vld [vmem:[%s4 + $0x238] sm:$0xff]
      %v4781 = vld [vmem:[%s4 + $0x240] sm:$0xff]
      %v4782 = vld [vmem:[%s4 + $0x248] sm:$0xff]
      %v4783 = vld [vmem:[%s4 + $0x250] sm:$0xff]
      %v4784 = vld [vmem:[%s4 + $0x258] sm:$0xff]
      %v4785 = vld [vmem:[%s4 + $0x260] sm:$0xff]
      %v4786 = vld [vmem:[%s4 + $0x268] sm:$0xff]
      %v4787 = vld [vmem:[%s4 + $0x270] sm:$0xff]
      %v4788 = vld [vmem:[%s4 + $0x278] sm:$0xff]
      %v4789 = vld [vmem:[%s4 + $0x280] sm:$0xff]
      %v4790 = vld [vmem:[%s4 + $0x288] sm:$0xff]
      %v4791 = vld [vmem:[%s4 + $0x290] sm:$0xff]
      %v4792 = vld [vmem:[%s4 + $0x298] sm:$0xff]
      %v4793 = vld [vmem:[%s4 + $0x2a0] sm:$0xff]
      %v4794 = vld [vmem:[%s4 + $0x2a8] sm:$0xff]
      %v4795 = vld [vmem:[%s4 + $0x2b0] sm:$0xff]
      %v4796 = vld [vmem:[%s4 + $0x2b8] sm:$0xff]
      %v4797 = vld [vmem:[%s4 + $0x2c0] sm:$0xff]
      %v4798 = vld [vmem:[%s4 + $0x2c8] sm:$0xff]
      %v4799 = vld [vmem:[%s4 + $0x2d0] sm:$0xff]
      %v4800 = vld [vmem:[%s4 + $0x2d8] sm:$0xff]
      %v4801 = vld [vmem:[%s4 + $0x2e0] sm:$0xff]
      %v4802 = vld [vmem:[%s4 + $0x2e8] sm:$0xff]
      %v4803 = vld [vmem:[%s4 + $0x2f0] sm:$0xff]
      %v4804 = vld [vmem:[%s4 + $0x2f8] sm:$0xff]
      %v4805 = vld [vmem:[%s4 + $0x300] sm:$0xff]
      %v4806 = vld [vmem:[%s4 + $0x308] sm:$0xff]
      %v4807 = vld [vmem:[%s4 + $0x310] sm:$0xff]
      %v4808 = vld [vmem:[%s4 + $0x318] sm:$0xff]
      %v4809 = vld [vmem:[%s4 + $0x320] sm:$0xff]
      %v4810 = vld [vmem:[%s4 + $0x328] sm:$0xff]
      %v4811 = vld [vmem:[%s4 + $0x330] sm:$0xff]
      %v4812 = vld [vmem:[%s4 + $0x338] sm:$0xff]
      %v4813 = vld [vmem:[%s4 + $0x340] sm:$0xff]
      %v4814 = vld [vmem:[%s4 + $0x348] sm:$0xff]
      %v4815 = vld [vmem:[%s4 + $0x350] sm:$0xff]
      %v4816 = vld [vmem:[%s4 + $0x358] sm:$0xff]
      %v4817 = vld [vmem:[%s4 + $0x360] sm:$0xff]
      %v4818 = vld [vmem:[%s4 + $0x368] sm:$0xff]
      %v4819 = vld [vmem:[%s4 + $0x370] sm:$0xff]
      %v4820 = vld [vmem:[%s4 + $0x378] sm:$0xff]
      %v4821 = vld [vmem:[%s4 + $0x380] sm:$0xff]
      %v4822 = vld [vmem:[%s4 + $0x388] sm:$0xff]
      %v4823 = vld [vmem:[%s4 + $0x390] sm:$0xff]
      %v4824 = vld [vmem:[%s4 + $0x398] sm:$0xff]
      %v4825 = vld [vmem:[%s4 + $0x3a0] sm:$0xff]
      %v4826 = vld [vmem:[%s4 + $0x3a8] sm:$0xff]
      %v4827 = vld [vmem:[%s4 + $0x3b0] sm:$0xff]
      %v4828 = vld [vmem:[%s4 + $0x3b8] sm:$0xff]
      %v4829 = vld [vmem:[%s4 + $0x3c0] sm:$0xff]
      %v4830 = vld [vmem:[%s4 + $0x3c8] sm:$0xff]
      %v4831 = vld [vmem:[%s4 + $0x3d0] sm:$0xff]
      %v4832 = vld [vmem:[%s4 + $0x3d8] sm:$0xff]
      %v4833 = vld [vmem:[%s4 + $0x3e0] sm:$0xff]
      %v4834 = vld [vmem:[%s4 + $0x3e8] sm:$0xff]
      %v4835 = vld [vmem:[%s4 + $0x3f0] sm:$0xff]
      %v4836 = vld [vmem:[%s4 + $0x3f8] sm:$0xff]
      %v4837 = vld [vmem:[%s4 + $0x400] sm:$0xff]
      %v4838 = vld [vmem:[%s4 + $0x408] sm:$0xff]
      %v4839 = vld [vmem:[%s4 + $0x410] sm:$0xff]
      %v4840 = vld [vmem:[%s4 + $0x418] sm:$0xff]
      %v4841 = vld [vmem:[%s4 + $0x420] sm:$0xff]
      %v4842 = vld [vmem:[%s4 + $0x428] sm:$0xff]
      %v4843 = vld [vmem:[%s4 + $0x430] sm:$0xff]
      %v4844 = vld [vmem:[%s4 + $0x438] sm:$0xff]
      %v4845 = vld [vmem:[%s4 + $0x440] sm:$0xff]
      %v4846 = vld [vmem:[%s4 + $0x448] sm:$0xff]
      %v4847 = vld [vmem:[%s4 + $0x450] sm:$0xff]
      %v4848 = vld [vmem:[%s4 + $0x458] sm:$0xff]
      %v4849 = vld [vmem:[%s4 + $0x460] sm:$0xff]
      %v4850 = vld [vmem:[%s4 + $0x468] sm:$0xff]
      %v4851 = vld [vmem:[%s4 + $0x470] sm:$0xff]
      %v4852 = vld [vmem:[%s4 + $0x478] sm:$0xff]
      %v4853 = vld [vmem:[%s4 + $0x480] sm:$0xff]
      %v4854 = vld [vmem:[%s4 + $0x488] sm:$0xff]
      %v4855 = vld [vmem:[%s4 + $0x490] sm:$0xff]
      %v4856 = vld [vmem:[%s4 + $0x498] sm:$0xff]
      %v4857 = vld [vmem:[%s4 + $0x4a0] sm:$0xff]
      %v4858 = vld [vmem:[%s4 + $0x4a8] sm:$0xff]
      %v4859 = vld [vmem:[%s4 + $0x4b0] sm:$0xff]
      %v4860 = vld [vmem:[%s4 + $0x4b8] sm:$0xff]
      %v4861 = vld [vmem:[%s4 + $0x4c0] sm:$0xff]
      %v4862 = vld [vmem:[%s4 + $0x4c8] sm:$0xff]
      %v4863 = vld [vmem:[%s4 + $0x4d0] sm:$0xff]
      %v4864 = vld [vmem:[%s4 + $0x4d8] sm:$0xff]
      %v4865 = vld [vmem:[%s4 + $0x4e0] sm:$0xff]
      %v4866 = vld [vmem:[%s4 + $0x4e8] sm:$0xff]
      %v4867 = vld [vmem:[%s4 + $0x4f0] sm:$0xff]
      %v4868 = vld [vmem:[%s4 + $0x4f8] sm:$0xff]
      %v4869 = vld [vmem:[%s4 + $0x500] sm:$0xff]
      %v4870 = vld [vmem:[%s4 + $0x508] sm:$0xff]
      %v4871 = vld [vmem:[%s4 + $0x510] sm:$0xff]
      %v4872 = vld [vmem:[%s4 + $0x518] sm:$0xff]
      %v4873 = vld [vmem:[%s4 + $0x520] sm:$0xff]
      %v4874 = vld [vmem:[%s4 + $0x528] sm:$0xff]
      %v4875 = vld [vmem:[%s4 + $0x530] sm:$0xff]
      %v4876 = vld [vmem:[%s4 + $0x538] sm:$0xff]
      %v4877 = vld [vmem:[%s4 + $0x540] sm:$0xff]
      %v4878 = vld [vmem:[%s4 + $0x548] sm:$0xff]
      %v4879 = vld [vmem:[%s4 + $0x550] sm:$0xff]
      %v4880 = vld [vmem:[%s4 + $0x558] sm:$0xff]
      %v4881 = vld [vmem:[%s4 + $0x560] sm:$0xff]
      %v4882 = vld [vmem:[%s4 + $0x568] sm:$0xff]
      %v4883 = vld [vmem:[%s4 + $0x570] sm:$0xff]
      %v4884 = vld [vmem:[%s4 + $0x578] sm:$0xff]
      %v4885 = vld [vmem:[%s4 + $0x580] sm:$0xff]
      %v4886 = vld [vmem:[%s4 + $0x588] sm:$0xff]
      %v4887 = vld [vmem:[%s4 + $0x590] sm:$0xff]
      %v4888 = vld [vmem:[%s4 + $0x598] sm:$0xff]
      %v4889 = vld [vmem:[%s4 + $0x5a0] sm:$0xff]
      %v4890 = vld [vmem:[%s4 + $0x5a8] sm:$0xff]
      %v4891 = vld [vmem:[%s4 + $0x5b0] sm:$0xff]
      %v4892 = vld [vmem:[%s4 + $0x5b8] sm:$0xff]
      %v4893 = vld [vmem:[%s4 + $0x5c0] sm:$0xff]
      %v4894 = vld [vmem:[%s4 + $0x5c8] sm:$0xff]
      %v4895 = vld [vmem:[%s4 + $0x5d0] sm:$0xff]
      %v4896 = vld [vmem:[%s4 + $0x5d8] sm:$0xff]
      %v4897 = vld [vmem:[%s4 + $0x5e0] sm:$0xff]
      %v4898 = vld [vmem:[%s4 + $0x5e8] sm:$0xff]
      %v4899 = vld [vmem:[%s4 + $0x5f0] sm:$0xff]
      %v4900 = vld [vmem:[%s4 + $0x5f8] sm:$0xff]
      %v4901 = vld [vmem:[%s4 + $0x600] sm:$0xff]
      %v4902 = vld [vmem:[%s4 + $0x608] sm:$0xff]
      %v4903 = vld [vmem:[%s4 + $0x610] sm:$0xff]
      %v4904 = vld [vmem:[%s4 + $0x618] sm:$0xff]
      %v4905 = vld [vmem:[%s4 + $0x620] sm:$0xff]
      %v4906 = vld [vmem:[%s4 + $0x628] sm:$0xff]
      %v4907 = vld [vmem:[%s4 + $0x630] sm:$0xff]
      %v4908 = vld [vmem:[%s4 + $0x638] sm:$0xff]
      %v4909 = vld [vmem:[%s4 + $0x640] sm:$0xff]
      %v4910 = vld [vmem:[%s4 + $0x648] sm:$0xff]
      %v4911 = vld [vmem:[%s4 + $0x650] sm:$0xff]
      %v4912 = vld [vmem:[%s4 + $0x658] sm:$0xff]
      %v4913 = vld [vmem:[%s4 + $0x660] sm:$0xff]
      %v4914 = vld [vmem:[%s4 + $0x668] sm:$0xff]
      %v4915 = vld [vmem:[%s4 + $0x670] sm:$0xff]
      %v4916 = vld [vmem:[%s4 + $0x678] sm:$0xff]
      %v4917 = vld [vmem:[%s4 + $0x680] sm:$0xff]
      %v4918 = vld [vmem:[%s4 + $0x688] sm:$0xff]
      %v4919 = vld [vmem:[%s4 + $0x690] sm:$0xff]
      %v4920 = vld [vmem:[%s4 + $0x698] sm:$0xff]
      %v4921 = vld [vmem:[%s4 + $0x6a0] sm:$0xff]
      %v4922 = vld [vmem:[%s4 + $0x6a8] sm:$0xff]
      %v4923 = vld [vmem:[%s4 + $0x6b0] sm:$0xff]
      %v4924 = vld [vmem:[%s4 + $0x6b8] sm:$0xff]
      %v4925 = vld [vmem:[%s4 + $0x6c0] sm:$0xff]
      %v4926 = vld [vmem:[%s4 + $0x6c8] sm:$0xff]
      %v4927 = vld [vmem:[%s4 + $0x6d0] sm:$0xff]
      %v4928 = vld [vmem:[%s4 + $0x6d8] sm:$0xff]
      %v4929 = vld [vmem:[%s4 + $0x6e0] sm:$0xff]
      %v4930 = vld [vmem:[%s4 + $0x6e8] sm:$0xff]
      %v4931 = vld [vmem:[%s4 + $0x6f0] sm:$0xff]
      %v4932 = vld [vmem:[%s4 + $0x6f8] sm:$0xff]
      %v4933 = vld [vmem:[%s4 + $0x700] sm:$0xff]
      %v4934 = vld [vmem:[%s4 + $0x708] sm:$0xff]
      %v4935 = vld [vmem:[%s4 + $0x710] sm:$0xff]
      %v4936 = vld [vmem:[%s4 + $0x718] sm:$0xff]
      %v4937 = vld [vmem:[%s4 + $0x720] sm:$0xff]
      %v4938 = vld [vmem:[%s4 + $0x728] sm:$0xff]
      %v4939 = vld [vmem:[%s4 + $0x730] sm:$0xff]
      %v4940 = vld [vmem:[%s4 + $0x738] sm:$0xff]
      %v4941 = vld [vmem:[%s4 + $0x740] sm:$0xff]
      %v4942 = vld [vmem:[%s4 + $0x748] sm:$0xff]
      %v4943 = vld [vmem:[%s4 + $0x750] sm:$0xff]
      %v4944 = vld [vmem:[%s4 + $0x758] sm:$0xff]
      %v4945 = vld [vmem:[%s4 + $0x760] sm:$0xff]
      %v4946 = vld [vmem:[%s4 + $0x768] sm:$0xff]
      %v4947 = vld [vmem:[%s4 + $0x770] sm:$0xff]
      %v4948 = vld [vmem:[%s4 + $0x778] sm:$0xff]
      %v4949 = vld [vmem:[%s4 + $0x780] sm:$0xff]
      %v4950 = vld [vmem:[%s4 + $0x788] sm:$0xff]
      %v4951 = vld [vmem:[%s4 + $0x790] sm:$0xff]
      %v4952 = vld [vmem:[%s4 + $0x798] sm:$0xff]
      %v4953 = vld [vmem:[%s4 + $0x7a0] sm:$0xff]
      %v4954 = vld [vmem:[%s4 + $0x7a8] sm:$0xff]
      %v4955 = vld [vmem:[%s4 + $0x7b0] sm:$0xff]
      %v4956 = vld [vmem:[%s4 + $0x7b8] sm:$0xff]
      %v4957 = vld [vmem:[%s4 + $0x7c0] sm:$0xff]
      %v4958 = vld [vmem:[%s4 + $0x7c8] sm:$0xff]
      %v4959 = vld [vmem:[%s4 + $0x7d0] sm:$0xff]
      %v4960 = vld [vmem:[%s4 + $0x7d8] sm:$0xff]
      %v4961 = vld [vmem:[%s4 + $0x7e0] sm:$0xff]
      %v4962 = vld [vmem:[%s4 + $0x7e8] sm:$0xff]
      %v4963 = vld [vmem:[%s4 + $0x7f0] sm:$0xff]
      %v4964 = vld [vmem:[%s4 + $0x7f8] sm:$0xff]
      %v4965 = vld [vmem:[%s4 + $0x800] sm:$0xff]
      %v4966 = vld [vmem:[%s4 + $0x808] sm:$0xff]
      %v4967 = vld [vmem:[%s4 + $0x810] sm:$0xff]
      %v4968 = vld [vmem:[%s4 + $0x818] sm:$0xff]
      %v4969 = vld [vmem:[%s4 + $0x820] sm:$0xff]
      %v4970 = vld [vmem:[%s4 + $0x828] sm:$0xff]
      %v4971 = vld [vmem:[%s4 + $0x830] sm:$0xff]
      %v4972 = vld [vmem:[%s4 + $0x838] sm:$0xff]
      %v4973 = vld [vmem:[%s4 + $0x840] sm:$0xff]
      %v4974 = vld [vmem:[%s4 + $0x848] sm:$0xff]
      %v4975 = vld [vmem:[%s4 + $0x850] sm:$0xff]
      %v4976 = vld [vmem:[%s4 + $0x858] sm:$0xff]
      %v4977 = vld [vmem:[%s4 + $0x860] sm:$0xff]
      %v4978 = vld [vmem:[%s4 + $0x868] sm:$0xff]
      %v4979 = vld [vmem:[%s4 + $0x870] sm:$0xff]
      %v4980 = vld [vmem:[%s4 + $0x878] sm:$0xff]
      %v4981 = vld [vmem:[%s4 + $0x880] sm:$0xff]
      %v4982 = vld [vmem:[%s4 + $0x888] sm:$0xff]
      %v4983 = vld [vmem:[%s4 + $0x890] sm:$0xff]
      %v4984 = vld [vmem:[%s4 + $0x898] sm:$0xff]
      %v4985 = vld [vmem:[%s4 + $0x8a0] sm:$0xff]
      %v4986 = vld [vmem:[%s4 + $0x8a8] sm:$0xff]
      %v4987 = vld [vmem:[%s4 + $0x8b0] sm:$0xff]
      %v4988 = vld [vmem:[%s4 + $0x8b8] sm:$0xff]
      %v4989 = vld [vmem:[%s4 + $0x8c0] sm:$0xff]
      %v4990 = vld [vmem:[%s4 + $0x8c8] sm:$0xff]
      %v4991 = vld [vmem:[%s4 + $0x8d0] sm:$0xff]
      %v4992 = vld [vmem:[%s4 + $0x8d8] sm:$0xff]
      %v4993 = vld [vmem:[%s4 + $0x8e0] sm:$0xff]
      %v4994 = vld [vmem:[%s4 + $0x8e8] sm:$0xff]
      %v4995 = vld [vmem:[%s4 + $0x8f0] sm:$0xff]
      %v4996 = vld [vmem:[%s4 + $0x8f8] sm:$0xff]
      %v4997 = vld [vmem:[%s5] ss:$4 sm:$0x3]
      %s4998 = scalar_lea.vmem %s5, 1
      %v4999 = vld [vmem:[%s4998] ss:$4 sm:$0x3]
      %s5000 = scalar_lea.vmem %s5, 2
      %v5001 = vld [vmem:[%s5000] ss:$4 sm:$0x3]
      %v5003 = vlaneseq
      %v5004 = vshrl.u32 %v5003, 7
      %v5005 = vsub.s32 0, %v5004
      %v5006 = vrot.slane %v4997, %v5005
      %v5007 = vlaneseq
      %v5008 = vshrl.u32 %v5007, 7
      %v5009 = vsub.s32 1, %v5008
      %v5010 = vrot.slane %v4997, %v5009
      %5013 = vmatprep.subr.mxu0 %v4710
      %5014 = vmatpush1.msra.mxu0 %v4709
      %5015 = vmatprep.subr.mxu0 %v4712
      %5016 = vmatpush1.msra.mxu0 %v4711
      %5017 = vmatprep.subr.mxu0 %v4714
      %5018 = vmatpush1.msra.mxu0 %v4713
      %5019 = vmatprep.subr.mxu0 %v4716
      %5020 = vmatpush1.msra.mxu0 %v4715
      %5021 = vmatprep.subr.mxu0 %v4718
      %5022 = vmatpush1.msra.mxu0 %v4717
      %5023 = vmatprep.subr.mxu0 %v4720
      %5024 = vmatpush1.msra.mxu0 %v4719
      %5025 = vmatprep.subr.mxu0 %v4722
      %5026 = vmatpush1.msra.mxu0 %v4721
      %5027 = vmatprep.subr.mxu0 %v4724
      %5028 = vmatpush1.msra.mxu0 %v4723
      %5029 = vmatprep.subr.mxu0 %v4726
      %5030 = vmatpush1.msra.mxu0 %v4725
      %5031 = vmatprep.subr.mxu0 %v4728
      %5032 = vmatpush1.msra.mxu0 %v4727
      %5033 = vmatprep.subr.mxu0 %v4730
      %5034 = vmatpush1.msra.mxu0 %v4729
      %5035 = vmatprep.subr.mxu0 %v4732
      %5036 = vmatpush1.msra.mxu0 %v4731
      %5037 = vmatprep.subr.mxu0 %v4734
      %5038 = vmatpush1.msra.mxu0 %v4733
      %5039 = vmatprep.subr.mxu0 %v4736
      %5040 = vmatpush1.msra.mxu0 %v4735
      %5041 = vmatprep.subr.mxu0 %v4738
      %5042 = vmatpush1.msra.mxu0 %v4737
      %5043 = vmatprep.subr.mxu0 %v4740
      %5044 = vmatpush1.msra.mxu0 %v4739
      %5045 = vmatprep.subr.mxu0 %v4742
      %5046 = vmatpush1.msra.mxu0 %v4741
      %5047 = vmatprep.subr.mxu0 %v4744
      %5048 = vmatpush1.msra.mxu0 %v4743
      %5049 = vmatprep.subr.mxu0 %v4746
      %5050 = vmatpush1.msra.mxu0 %v4745
      %5051 = vmatprep.subr.mxu0 %v4748
      %5052 = vmatpush1.msra.mxu0 %v4747
      %5053 = vmatprep.subr.mxu0 %v4750
      %5054 = vmatpush1.msra.mxu0 %v4749
      %5055 = vmatprep.subr.mxu0 %v4752
      %5056 = vmatpush1.msra.mxu0 %v4751
      %5057 = vmatprep.subr.mxu0 %v4754
      %5058 = vmatpush1.msra.mxu0 %v4753
      %5059 = vmatprep.subr.mxu0 %v4756
      %5060 = vmatpush1.msra.mxu0 %v4755
      %5061 = vmatprep.subr.mxu0 %v4758
      %5062 = vmatpush1.msra.mxu0 %v4757
      %5063 = vmatprep.subr.mxu0 %v4760
      %5064 = vmatpush1.msra.mxu0 %v4759
      %5065 = vmatprep.subr.mxu0 %v4762
      %5066 = vmatpush1.msra.mxu0 %v4761
      %5067 = vmatprep.subr.mxu0 %v4764
      %5068 = vmatpush1.msra.mxu0 %v4763
      %5069 = vmatprep.subr.mxu0 %v4766
      %5070 = vmatpush1.msra.mxu0 %v4765
      %5071 = vmatprep.subr.mxu0 %v4768
      %5072 = vmatpush1.msra.mxu0 %v4767
      %5073 = vmatprep.subr.mxu0 %v4770
      %5074 = vmatpush1.msra.mxu0 %v4769
      %5075 = vmatprep.subr.mxu0 %v4772
      %5076 = vmatpush1.msra.mxu0 %v4771
      %5077 = vmatprep.mubr.f32.mxu0 %v4647
      %5078 = vmatmul.mubr.f32.gmra.mrb[0].mxu0 %v4639
      %v5079 = vpop.f32.mrb[0].mxu0
      %v5080 = vadd.f32 %v5006, %v5079
      %v5081 = vpop.f32.mrb[0].mxu0
      %v5082 = vadd.f32 %v5010, %v5081
      %5083 = vmatprep.mubr.f32.mxu0 %v4648
      %5084 = vmatmul.mubr.f32.gmra.mrb[0].mxu0 %v4640
      %v5085 = vpop.f32.mrb[0].mxu0
      %v5086 = vadd.f32 %v5006, %v5085
      %v5087 = vpop.f32.mrb[0].mxu0
      %v5088 = vadd.f32 %v5010, %v5087
      %5089 = vmatprep.mubr.f32.mxu0 %v4649
      %5090 = vmatmul.mubr.f32.gmra.mrb[0].mxu0 %v4641
      %v5091 = vpop.f32.mrb[0].mxu0
      %v5092 = vadd.f32 %v5006, %v5091
      %v5093 = vpop.f32.mrb[0].mxu0
      %v5094 = vadd.f32 %v5010, %v5093
      %5095 = vmatprep.mubr.f32.mxu0 %v4650
      %5096 = vmatmul.mubr.f32.gmra.mrb[0].mxu0 %v4642
      %v5097 = vpop.f32.mrb[0].mxu0
      %v5098 = vadd.f32 %v5006, %v5097
      %v5099 = vpop.f32.mrb[0].mxu0
      %v5100 = vadd.f32 %v5010, %v5099
      %5101 = vmatprep.mubr.f32.mxu0 %v4651
      %5102 = vmatmul.mubr.f32.gmra.mrb[0].mxu0 %v4643
      %v5103 = vpop.f32.mrb[0].mxu0
      %v5104 = vadd.f32 %v5006, %v5103
      %v5105 = vpop.f32.mrb[0].mxu0
      %v5106 = vadd.f32 %v5010, %v5105
      %5107 = vmatprep.mubr.f32.mxu0 %v4652
      %5108 = vmatmul.mubr.f32.gmra.mrb[0].mxu0 %v4644
      %v5109 = vpop.f32.mrb[0].mxu0
      %v5110 = vadd.f32 %v5006, %v5109
      %v5111 = vpop.f32.mrb[0].mxu0
      %v5112 = vadd.f32 %v5010, %v5111
      %5113 = vmatprep.mubr.f32.mxu0 %v4653
      %5114 = vmatmul.mubr.f32.gmra.mrb[0].mxu0 %v4645
      %v5115 = vpop.f32.mrb[0].mxu0
      %v5116 = vadd.f32 %v5006, %v5115
      %v5117 = vpop.f32.mrb[0].mxu0
      %v5118 = vadd.f32 %v5010, %v5117
      %5119 = vmatprep.mubr.f32.mxu0 %v4654
      %5120 = vmatmul.mubr.f32.gmra.mrb[0].mxu0 %v4646
      %v5121 = vpop.f32.mrb[0].mxu0
      %v5122 = vadd.f32 %v5006, %v5121
      %v5123 = vpop.f32.mrb[0].mxu0
      %v5124 = vadd.f32 %v5010, %v5123
      %5125 = vdwg.mxu0
      %5126 = vmatprep.subr.mxu0 %v4774
      %5127 = vmatpush1.msra.mxu0 %v4773
      %5128 = vmatprep.subr.mxu0 %v4776
      %5129 = vmatpush1.msra.mxu0 %v4775
      %5130 = vmatprep.subr.mxu0 %v4778
      %5131 = vmatpush1.msra.mxu0 %v4777
      %5132 = vmatprep.subr.mxu0 %v4780
      %5133 = vmatpush1.msra.mxu0 %v4779
      %5134 = vmatprep.subr.mxu0 %v4782
      %5135 = vmatpush1.msra.mxu0 %v4781
      %5136 = vmatprep.subr.mxu0 %v4784
      %5137 = vmatpush1.msra.mxu0 %v4783
      %5138 = vmatprep.subr.mxu0 %v4786
      %5139 = vmatpush1.msra.mxu0 %v4785
      %5140 = vmatprep.subr.mxu0 %v4788
      %5141 = vmatpush1.msra.mxu0 %v4787
      %5142 = vmatprep.subr.mxu0 %v4790
      %5143 = vmatpush1.msra.mxu0 %v4789
      %5144 = vmatprep.subr.mxu0 %v4792
      %5145 = vmatpush1.msra.mxu0 %v4791
      %5146 = vmatprep.subr.mxu0 %v4794
      %5147 = vmatpush1.msra.mxu0 %v4793
      %5148 = vmatprep.subr.mxu0 %v4796
      %5149 = vmatpush1.msra.mxu0 %v4795
      %5150 = vmatprep.subr.mxu0 %v4798
      %5151 = vmatpush1.msra.mxu0 %v4797
      %5152 = vmatprep.subr.mxu0 %v4800
      %5153 = vmatpush1.msra.mxu0 %v4799
      %5154 = vmatprep.subr.mxu0 %v4802
      %5155 = vmatpush1.msra.mxu0 %v4801
      %5156 = vmatprep.subr.mxu0 %v4804
      %5157 = vmatpush1.msra.mxu0 %v4803
      %5158 = vmatprep.subr.mxu0 %v4806
      %5159 = vmatpush1.msra.mxu0 %v4805
      %5160 = vmatprep.subr.mxu0 %v4808
      %5161 = vmatpush1.msra.mxu0 %v4807
      %5162 = vmatprep.subr.mxu0 %v4810
      %5163 = vmatpush1.msra.mxu0 %v4809
      %5164 = vmatprep.subr.mxu0 %v4812
      %5165 = vmatpush1.msra.mxu0 %v4811
      %5166 = vmatprep.subr.mxu0 %v4814
      %5167 = vmatpush1.msra.mxu0 %v4813
      %5168 = vmatprep.subr.mxu0 %v4816
      %5169 = vmatpush1.msra.mxu0 %v4815
      %5170 = vmatprep.subr.mxu0 %v4818
      %5171 = vmatpush1.msra.mxu0 %v4817
      %5172 = vmatprep.subr.mxu0 %v4820
      %5173 = vmatpush1.msra.mxu0 %v4819
      %5174 = vmatprep.subr.mxu0 %v4822
      %5175 = vmatpush1.msra.mxu0 %v4821
      %5176 = vmatprep.subr.mxu0 %v4824
      %5177 = vmatpush1.msra.mxu0 %v4823
      %5178 = vmatprep.subr.mxu0 %v4826
      %5179 = vmatpush1.msra.mxu0 %v4825
      %5180 = vmatprep.subr.mxu0 %v4828
      %5181 = vmatpush1.msra.mxu0 %v4827
      %5182 = vmatprep.subr.mxu0 %v4830
      %5183 = vmatpush1.msra.mxu0 %v4829
      %5184 = vmatprep.subr.mxu0 %v4832
      %5185 = vmatpush1.msra.mxu0 %v4831
      %5186 = vmatprep.subr.mxu0 %v4834
      %5187 = vmatpush1.msra.mxu0 %v4833
      %5188 = vmatprep.subr.mxu0 %v4836
      %5189 = vmatpush1.msra.mxu0 %v4835
      %5190 = vmatprep.mubr.f32.mxu0 %v4672
      %5191 = vmatmul.mubr.f32.gmra.mrb[0].mxu0 %v4663
      %v5192 = vpop.f32.mrb[0].mxu0
      %v5193 = vadd.f32 %v5080, %v5192
      %v5194 = vpop.f32.mrb[0].mxu0
      %v5195 = vadd.f32 %v5082, %v5194
      %5196 = vmatprep.mubr.f32.mxu0 %v4673
      %5197 = vmatmul.mubr.f32.gmra.mrb[0].mxu0 %v4664
      %v5198 = vpop.f32.mrb[0].mxu0
      %v5199 = vadd.f32 %v5086, %v5198
      %v5200 = vpop.f32.mrb[0].mxu0
      %v5201 = vadd.f32 %v5088, %v5200
      %5202 = vmatprep.mubr.f32.mxu0 %v4674
      %5203 = vmatmul.mubr.f32.gmra.mrb[0].mxu0 %v4665
      %v5204 = vpop.f32.mrb[0].mxu0
      %v5205 = vadd.f32 %v5092, %v5204
      %v5206 = vpop.f32.mrb[0].mxu0
      %v5207 = vadd.f32 %v5094, %v5206
      %5208 = vmatprep.mubr.f32.mxu0 %v4675
      %5209 = vmatmul.mubr.f32.gmra.mrb[0].mxu0 %v4666
      %v5210 = vpop.f32.mrb[0].mxu0
      %v5211 = vadd.f32 %v5098, %v5210
      %v5212 = vpop.f32.mrb[0].mxu0
      %v5213 = vadd.f32 %v5100, %v5212
      %5214 = vmatprep.mubr.f32.mxu0 %v4676
      %5215 = vmatmul.mubr.f32.gmra.mrb[0].mxu0 %v4667
      %v5216 = vpop.f32.mrb[0].mxu0
      %v5217 = vadd.f32 %v5104, %v5216
      %v5218 = vpop.f32.mrb[0].mxu0
      %v5219 = vadd.f32 %v5106, %v5218
      %5220 = vmatprep.mubr.f32.mxu0 %v4677
      %5221 = vmatmul.mubr.f32.gmra.mrb[0].mxu0 %v4668
      %v5222 = vpop.f32.mrb[0].mxu0
      %v5223 = vadd.f32 %v5110, %v5222
      %v5224 = vpop.f32.mrb[0].mxu0
      %v5225 = vadd.f32 %v5112, %v5224
      %5226 = vmatprep.mubr.f32.mxu0 %v4678
      %5227 = vmatmul.mubr.f32.gmra.mrb[0].mxu0 %v4669
      %v5228 = vpop.f32.mrb[0].mxu0
      %v5229 = vadd.f32 %v5116, %v5228
      %v5230 = vpop.f32.mrb[0].mxu0
      %v5231 = vadd.f32 %v5118, %v5230
      %5232 = vmatprep.mubr.f32.mxu0 %v4679
      %5233 = vmatmul.mubr.f32.gmra.mrb[0].mxu0 %v4670
      %v5234 = vpop.f32.mrb[0].mxu0
      %v5235 = vadd.f32 %v5122, %v5234
      %v5236 = vpop.f32.mrb[0].mxu0
      %v5237 = vadd.f32 %v5124, %v5236
      %5238 = vdwg.mxu0
      %5239 = vmatprep.subr.mxu0 %v4838
      %5240 = vmatpush1.msra.mxu0 %v4837
      %5241 = vmatprep.subr.mxu0 %v4840
      %5242 = vmatpush1.msra.mxu0 %v4839
      %5243 = vmatprep.subr.mxu0 %v4842
      %5244 = vmatpush1.msra.mxu0 %v4841
      %5245 = vmatprep.subr.mxu0 %v4844
      %5246 = vmatpush1.msra.mxu0 %v4843
      %5247 = vmatprep.subr.mxu0 %v4846
      %5248 = vmatpush1.msra.mxu0 %v4845
      %5249 = vmatprep.subr.mxu0 %v4848
      %5250 = vmatpush1.msra.mxu0 %v4847
      %5251 = vmatprep.subr.mxu0 %v4850
      %5252 = vmatpush1.msra.mxu0 %v4849
      %5253 = vmatprep.subr.mxu0 %v4852
      %5254 = vmatpush1.msra.mxu0 %v4851
      %5255 = vmatprep.subr.mxu0 %v4854
      %5256 = vmatpush1.msra.mxu0 %v4853
      %5257 = vmatprep.subr.mxu0 %v4856
      %5258 = vmatpush1.msra.mxu0 %v4855
      %5259 = vmatprep.subr.mxu0 %v4858
      %5260 = vmatpush1.msra.mxu0 %v4857
      %5261 = vmatprep.subr.mxu0 %v4860
      %5262 = vmatpush1.msra.mxu0 %v4859
      %5263 = vmatprep.subr.mxu0 %v4862
      %5264 = vmatpush1.msra.mxu0 %v4861
      %5265 = vmatprep.subr.mxu0 %v4864
      %5266 = vmatpush1.msra.mxu0 %v4863
      %5267 = vmatprep.subr.mxu0 %v4866
      %5268 = vmatpush1.msra.mxu0 %v4865
      %5269 = vmatprep.subr.mxu0 %v4868
      %5270 = vmatpush1.msra.mxu0 %v4867
      %5271 = vmatprep.subr.mxu0 %v4870
      %5272 = vmatpush1.msra.mxu0 %v4869
      %5273 = vmatprep.subr.mxu0 %v4872
      %5274 = vmatpush1.msra.mxu0 %v4871
      %5275 = vmatprep.subr.mxu0 %v4874
      %5276 = vmatpush1.msra.mxu0 %v4873
      %5277 = vmatprep.subr.mxu0 %v4876
      %5278 = vmatpush1.msra.mxu0 %v4875
      %5279 = vmatprep.subr.mxu0 %v4878
      %5280 = vmatpush1.msra.mxu0 %v4877
      %5281 = vmatprep.subr.mxu0 %v4880
      %5282 = vmatpush1.msra.mxu0 %v4879
      %5283 = vmatprep.subr.mxu0 %v4882
      %5284 = vmatpush1.msra.mxu0 %v4881
      %5285 = vmatprep.subr.mxu0 %v4884
      %5286 = vmatpush1.msra.mxu0 %v4883
      %5287 = vmatprep.subr.mxu0 %v4886
      %5288 = vmatpush1.msra.mxu0 %v4885
      %5289 = vmatprep.subr.mxu0 %v4888
      %5290 = vmatpush1.msra.mxu0 %v4887
      %5291 = vmatprep.subr.mxu0 %v4890
      %5292 = vmatpush1.msra.mxu0 %v4889
      %5293 = vmatprep.subr.mxu0 %v4892
      %5294 = vmatpush1.msra.mxu0 %v4891
      %5295 = vmatprep.subr.mxu0 %v4894
      %5296 = vmatpush1.msra.mxu0 %v4893
      %5297 = vmatprep.subr.mxu0 %v4896
      %5298 = vmatpush1.msra.mxu0 %v4895
      %5299 = vmatprep.subr.mxu0 %v4898
      %5300 = vmatpush1.msra.mxu0 %v4897
      %5301 = vmatprep.subr.mxu0 %v4900
      %5302 = vmatpush1.msra.mxu0 %v4899
      %5303 = vmatprep.mubr.f32.mxu0 %v4682
      %5304 = vmatmul.mubr.f32.gmra.mrb[0].mxu0 %v4648
      %v5305 = vpop.f32.mrb[0].mxu0
      %v5306 = vadd.f32 %v5193, %v5305
      %v5307 = vpop.f32.mrb[0].mxu0
      %v5308 = vadd.f32 %v5195, %v5307
      %5309 = vmatprep.mubr.f32.mxu0 %v4683
      %5310 = vmatmul.mubr.f32.gmra.mrb[0].mxu0 %v4649
      %v5311 = vpop.f32.mrb[0].mxu0
      %v5312 = vadd.f32 %v5199, %v5311
      %v5313 = vpop.f32.mrb[0].mxu0
      %v5314 = vadd.f32 %v5201, %v5313
      %5315 = vmatprep.mubr.f32.mxu0 %v4684
      %5316 = vmatmul.mubr.f32.gmra.mrb[0].mxu0 %v4650
      %v5317 = vpop.f32.mrb[0].mxu0
      %v5318 = vadd.f32 %v5205, %v5317
      %v5319 = vpop.f32.mrb[0].mxu0
      %v5320 = vadd.f32 %v5207, %v5319
      %5321 = vmatprep.mubr.f32.mxu0 %v4685
      %5322 = vmatmul.mubr.f32.gmra.mrb[0].mxu0 %v4651
      %v5323 = vpop.f32.mrb[0].mxu0
      %v5324 = vadd.f32 %v5211, %v5323
      %v5325 = vpop.f32.mrb[0].mxu0
      %v5326 = vadd.f32 %v5213, %v5325
      %5327 = vmatprep.mubr.f32.mxu0 %v4686
      %5328 = vmatmul.mubr.f32.gmra.mrb[0].mxu0 %v4652
      %v5329 = vpop.f32.mrb[0].mxu0
      %v5330 = vadd.f32 %v5217, %v5329
      %v5331 = vpop.f32.mrb[0].mxu0
      %v5332 = vadd.f32 %v5219, %v5331
      %5333 = vmatprep.mubr.f32.mxu0 %v4687
      %5334 = vmatmul.mubr.f32.gmra.mrb[0].mxu0 %v4653
      %v5335 = vpop.f32.mrb[0].mxu0
      %v5336 = vadd.f32 %v5223, %v5335
      %v5337 = vpop.f32.mrb[0].mxu0
      %v5338 = vadd.f32 %v5225, %v5337
      %5339 = vmatprep.mubr.f32.mxu0 %v4688
      %5340 = vmatmul.mubr.f32.gmra.mrb[0].mxu0 %v4654
      %v5341 = vpop.f32.mrb[0].mxu0
      %v5342 = vadd.f32 %v5229, %v5341
      %v5343 = vpop.f32.mrb[0].mxu0
      %v5344 = vadd.f32 %v5231, %v5343
      %5345 = vmatprep.mubr.f32.mxu0 %v4689
      %5346 = vmatmul.mubr.f32.gmra.mrb[0].mxu0 %v4680
      %v5347 = vpop.f32.mrb[0].mxu0
      %v5348 = vadd.f32 %v5235, %v5347
      %v5349 = vpop.f32.mrb[0].mxu0
      %v5350 = vadd.f32 %v5237, %v5349
      %5351 = vdwg.mxu0
      %5352 = vmatprep.subr.mxu0 %v4902
      %5353 = vmatpush1.msra.mxu0 %v4901
      %5354 = vmatprep.subr.mxu0 %v4904
      %5355 = vmatpush1.msra.mxu0 %v4903
      %5356 = vmatprep.subr.mxu0 %v4906
      %5357 = vmatpush1.msra.mxu0 %v4905
      %5358 = vmatprep.subr.mxu0 %v4908
      %5359 = vmatpush1.msra.mxu0 %v4907
      %5360 = vmatprep.subr.mxu0 %v4910
      %5361 = vmatpush1.msra.mxu0 %v4909
      %5362 = vmatprep.subr.mxu0 %v4912
      %5363 = vmatpush1.msra.mxu0 %v4911
      %5364 = vmatprep.subr.mxu0 %v4914
      %5365 = vmatpush1.msra.mxu0 %v4913
      %5366 = vmatprep.subr.mxu0 %v4916
      %5367 = vmatpush1.msra.mxu0 %v4915
      %5368 = vmatprep.subr.mxu0 %v4918
      %5369 = vmatpush1.msra.mxu0 %v4917
      %5370 = vmatprep.subr.mxu0 %v4920
      %5371 = vmatpush1.msra.mxu0 %v4919
      %5372 = vmatprep.subr.mxu0 %v4922
      %5373 = vmatpush1.msra.mxu0 %v4921
      %5374 = vmatprep.subr.mxu0 %v4924
      %5375 = vmatpush1.msra.mxu0 %v4923
      %5376 = vmatprep.subr.mxu0 %v4926
      %5377 = vmatpush1.msra.mxu0 %v4925
      %5378 = vmatprep.subr.mxu0 %v4928
      %5379 = vmatpush1.msra.mxu0 %v4927
      %5380 = vmatprep.subr.mxu0 %v4930
      %5381 = vmatpush1.msra.mxu0 %v4929
      %5382 = vmatprep.subr.mxu0 %v4932
      %5383 = vmatpush1.msra.mxu0 %v4931
      %5384 = vmatprep.subr.mxu0 %v4934
      %5385 = vmatpush1.msra.mxu0 %v4933
      %5386 = vmatprep.subr.mxu0 %v4936
      %5387 = vmatpush1.msra.mxu0 %v4935
      %5388 = vmatprep.subr.mxu0 %v4938
      %5389 = vmatpush1.msra.mxu0 %v4937
      %5390 = vmatprep.subr.mxu0 %v4940
      %5391 = vmatpush1.msra.mxu0 %v4939
      %5392 = vmatprep.subr.mxu0 %v4942
      %5393 = vmatpush1.msra.mxu0 %v4941
      %5394 = vmatprep.subr.mxu0 %v4944
      %5395 = vmatpush1.msra.mxu0 %v4943
      %5396 = vmatprep.subr.mxu0 %v4946
      %5397 = vmatpush1.msra.mxu0 %v4945
      %5398 = vmatprep.subr.mxu0 %v4948
      %5399 = vmatpush1.msra.mxu0 %v4947
      %5400 = vmatprep.subr.mxu0 %v4950
      %5401 = vmatpush1.msra.mxu0 %v4949
      %5402 = vmatprep.subr.mxu0 %v4952
      %5403 = vmatpush1.msra.mxu0 %v4951
      %5404 = vmatprep.subr.mxu0 %v4954
      %5405 = vmatpush1.msra.mxu0 %v4953
      %5406 = vmatprep.subr.mxu0 %v4956
      %5407 = vmatpush1.msra.mxu0 %v4955
      %5408 = vmatprep.subr.mxu0 %v4958
      %5409 = vmatpush1.msra.mxu0 %v4957
      %5410 = vmatprep.subr.mxu0 %v4960
      %5411 = vmatpush1.msra.mxu0 %v4959
      %5412 = vmatprep.subr.mxu0 %v4962
      %5413 = vmatpush1.msra.mxu0 %v4961
      %5414 = vmatprep.subr.mxu0 %v4964
      %5415 = vmatpush1.msra.mxu0 %v4963
      %5416 = vmatprep.mubr.f32.mxu0 %v4649
      %5417 = vmatmul.mubr.f32.gmra.mrb[0].mxu0 %v4691
      %v5418 = vpop.f32.mrb[0].mxu0
      %v5419 = vadd.f32 %v5306, %v5418
      %v5420 = vpop.f32.mrb[0].mxu0
      %v5421 = vadd.f32 %v5308, %v5420
      %5422 = vmatprep.mubr.f32.mxu0 %v4650
      %5423 = vmatmul.mubr.f32.gmra.mrb[0].mxu0 %v4692
      %v5424 = vpop.f32.mrb[0].mxu0
      %v5425 = vadd.f32 %v5312, %v5424
      %v5426 = vpop.f32.mrb[0].mxu0
      %v5427 = vadd.f32 %v5314, %v5426
      %5428 = vmatprep.mubr.f32.mxu0 %v4651
      %5429 = vmatmul.mubr.f32.gmra.mrb[0].mxu0 %v4693
      %v5430 = vpop.f32.mrb[0].mxu0
      %v5431 = vadd.f32 %v5318, %v5430
      %v5432 = vpop.f32.mrb[0].mxu0
      %v5433 = vadd.f32 %v5320, %v5432
      %5434 = vmatprep.mubr.f32.mxu0 %v4652
      %5435 = vmatmul.mubr.f32.gmra.mrb[0].mxu0 %v4694
      %v5436 = vpop.f32.mrb[0].mxu0
      %v5437 = vadd.f32 %v5324, %v5436
      %v5438 = vpop.f32.mrb[0].mxu0
      %v5439 = vadd.f32 %v5326, %v5438
      %5440 = vmatprep.mubr.f32.mxu0 %v4653
      %5441 = vmatmul.mubr.f32.gmra.mrb[0].mxu0 %v4695
      %v5442 = vpop.f32.mrb[0].mxu0
      %v5443 = vadd.f32 %v5330, %v5442
      %v5444 = vpop.f32.mrb[0].mxu0
      %v5445 = vadd.f32 %v5332, %v5444
      %5446 = vmatprep.mubr.f32.mxu0 %v4654
      %5447 = vmatmul.mubr.f32.gmra.mrb[0].mxu0 %v4696
      %v5448 = vpop.f32.mrb[0].mxu0
      %v5449 = vadd.f32 %v5336, %v5448
      %v5450 = vpop.f32.mrb[0].mxu0
      %v5451 = vadd.f32 %v5338, %v5450
      %5452 = vmatprep.mubr.f32.mxu0 %v4680
      %5453 = vmatmul.mubr.f32.gmra.mrb[0].mxu0 %v4697
      %v5454 = vpop.f32.mrb[0].mxu0
      %v5455 = vadd.f32 %v5342, %v5454
      %v5456 = vpop.f32.mrb[0].mxu0
      %v5457 = vadd.f32 %v5344, %v5456
      %5458 = vmatprep.mubr.f32.mxu0 %v4699
      %5459 = vmatmul.mubr.f32.gmra.mrb[0].mxu0 %v4698
      %v5460 = vpop.f32.mrb[0].mxu0
      %v5461 = vadd.f32 %v5348, %v5460
      %v5462 = vpop.f32.mrb[0].mxu0
      %v5463 = vadd.f32 %v5350, %v5462
      %5464 = vdwg.mxu0
      %5465 = vmatprep.subr.mxu0 %v4966
      %5466 = vmatpush1.msra.mxu0 %v4965
      %5467 = vmatprep.subr.mxu0 %v4968
      %5468 = vmatpush1.msra.mxu0 %v4967
      %5469 = vmatprep.subr.mxu0 %v4970
      %5470 = vmatpush1.msra.mxu0 %v4969
      %5471 = vmatprep.subr.mxu0 %v4972
      %5472 = vmatpush1.msra.mxu0 %v4971
      %5473 = vmatprep.subr.mxu0 %v4974
      %5474 = vmatpush1.msra.mxu0 %v4973
      %5475 = vmatprep.subr.mxu0 %v4976
      %5476 = vmatpush1.msra.mxu0 %v4975
      %5477 = vmatprep.subr.mxu0 %v4978
      %5478 = vmatpush1.msra.mxu0 %v4977
      %5479 = vmatprep.subr.mxu0 %v4980
      %5480 = vmatpush1.msra.mxu0 %v4979
      %5481 = vmatprep.subr.mxu0 %v4982
      %5482 = vmatpush1.msra.mxu0 %v4981
      %5483 = vmatprep.subr.mxu0 %v4984
      %5484 = vmatpush1.msra.mxu0 %v4983
      %5485 = vmatprep.subr.mxu0 %v4986
      %5486 = vmatpush1.msra.mxu0 %v4985
      %5487 = vmatprep.subr.mxu0 %v4988
      %5488 = vmatpush1.msra.mxu0 %v4987
      %5489 = vmatprep.subr.mxu0 %v4990
      %5490 = vmatpush1.msra.mxu0 %v4989
      %5491 = vmatprep.subr.mxu0 %v4992
      %5492 = vmatpush1.msra.mxu0 %v4991
      %5493 = vmatprep.subr.mxu0 %v4994
      %5494 = vmatpush1.msra.mxu0 %v4993
      %5495 = vmatprep.subr.mxu0 %v4996
      %5496 = vmatpush1.msra.mxu0 %v4995
      %5497 = vmatprep.subr.mxu0 0.0
      %5498 = vmatpush1.msra.mxu0 0.0
      %5499 = vmatprep.subr.mxu0 0.0
      %5500 = vmatpush1.msra.mxu0 0.0
      %5501 = vmatprep.subr.mxu0 0.0
      %5502 = vmatpush1.msra.mxu0 0.0
      %5503 = vmatprep.subr.mxu0 0.0
      %5504 = vmatpush1.msra.mxu0 0.0
      %5505 = vmatprep.subr.mxu0 0.0
      %5506 = vmatpush1.msra.mxu0 0.0
      %5507 = vmatprep.subr.mxu0 0.0
      %5508 = vmatpush1.msra.mxu0 0.0
      %5509 = vmatprep.subr.mxu0 0.0
      %5510 = vmatpush1.msra.mxu0 0.0
      %5511 = vmatprep.subr.mxu0 0.0
      %5512 = vmatpush1.msra.mxu0 0.0
      %5513 = vmatprep.subr.mxu0 0.0
      %5514 = vmatpush1.msra.mxu0 0.0
      %5515 = vmatprep.subr.mxu0 0.0
      %5516 = vmatpush1.msra.mxu0 0.0
      %5517 = vmatprep.subr.mxu0 0.0
      %5518 = vmatpush1.msra.mxu0 0.0
      %5519 = vmatprep.subr.mxu0 0.0
      %5520 = vmatpush1.msra.mxu0 0.0
      %5521 = vmatprep.subr.mxu0 0.0
      %5522 = vmatpush1.msra.mxu0 0.0
      %5523 = vmatprep.subr.mxu0 0.0
      %5524 = vmatpush1.msra.mxu0 0.0
      %5525 = vmatprep.subr.mxu0 0.0
      %5526 = vmatpush1.msra.mxu0 0.0
      %5527 = vmatprep.subr.mxu0 0.0
      %5528 = vmatpush1.msra.mxu0 0.0
      %5529 = vmatprep.mubr.f32.mxu0 0.0
      %5530 = vmatmul.mubr.f32.gmra.mrb[0].mxu0 %v4701
      %v5531 = vpop.f32.mrb[0].mxu0
      %v5532 = vadd.f32 %v5419, %v5531
      %v5533 = vpop.f32.mrb[0].mxu0
      %v5534 = vadd.f32 %v5421, %v5533
      %5535 = vmatprep.mubr.f32.mxu0 0.0
      %5536 = vmatmul.mubr.f32.gmra.mrb[0].mxu0 %v4702
      %v5537 = vpop.f32.mrb[0].mxu0
      %v5538 = vadd.f32 %v5425, %v5537
      %v5539 = vpop.f32.mrb[0].mxu0
      %v5540 = vadd.f32 %v5427, %v5539
      %5541 = vmatprep.mubr.f32.mxu0 0.0
      %5542 = vmatmul.mubr.f32.gmra.mrb[0].mxu0 %v4703
      %v5543 = vpop.f32.mrb[0].mxu0
      %v5544 = vadd.f32 %v5431, %v5543
      %v5545 = vpop.f32.mrb[0].mxu0
      %v5546 = vadd.f32 %v5433, %v5545
      %5547 = vmatprep.mubr.f32.mxu0 0.0
      %5548 = vmatmul.mubr.f32.gmra.mrb[0].mxu0 %v4704
      %v5549 = vpop.f32.mrb[0].mxu0
      %v5550 = vadd.f32 %v5437, %v5549
      %v5551 = vpop.f32.mrb[0].mxu0
      %v5552 = vadd.f32 %v5439, %v5551
      %5553 = vmatprep.mubr.f32.mxu0 0.0
      %5554 = vmatmul.mubr.f32.gmra.mrb[0].mxu0 %v4705
      %v5555 = vpop.f32.mrb[0].mxu0
      %v5556 = vadd.f32 %v5443, %v5555
      %v5557 = vpop.f32.mrb[0].mxu0
      %v5558 = vadd.f32 %v5445, %v5557
      %5559 = vmatprep.mubr.f32.mxu0 0.0
      %5560 = vmatmul.mubr.f32.gmra.mrb[0].mxu0 %v4706
      %v5561 = vpop.f32.mrb[0].mxu0
      %v5562 = vadd.f32 %v5449, %v5561
      %v5563 = vpop.f32.mrb[0].mxu0
      %v5564 = vadd.f32 %v5451, %v5563
      %5565 = vmatprep.mubr.f32.mxu0 0.0
      %5566 = vmatmul.mubr.f32.gmra.mrb[0].mxu0 %v4707
      %v5567 = vpop.f32.mrb[0].mxu0
      %v5568 = vadd.f32 %v5455, %v5567
      %v5569 = vpop.f32.mrb[0].mxu0
      %v5570 = vadd.f32 %v5457, %v5569
      %5571 = vmatprep.mubr.f32.mxu0 0.0
      %5572 = vmatmul.mubr.f32.gmra.mrb[0].mxu0 %v4708
      %v5573 = vpop.f32.mrb[0].mxu0
      %v5574 = vadd.f32 %v5461, %v5573
      %v5575 = vpop.f32.mrb[0].mxu0
      %v5576 = vadd.f32 %v5463, %v5575
      %5577 = vdwg.mxu0
      %v5578 = vmax.f32 %v5532, 0.0
      %v5579 = vmax.f32 %v5534, 0.0
      %v5580 = vmax.f32 %v5538, 0.0
      %v5581 = vmax.f32 %v5540, 0.0
      %v5582 = vmax.f32 %v5544, 0.0
      %v5583 = vmax.f32 %v5546, 0.0
      %v5584 = vmax.f32 %v5550, 0.0
      %v5585 = vmax.f32 %v5552, 0.0
      %v5586 = vmax.f32 %v5556, 0.0
      %v5587 = vmax.f32 %v5558, 0.0
      %v5588 = vmax.f32 %v5562, 0.0
      %v5589 = vmax.f32 %v5564, 0.0
      %v5590 = vmax.f32 %v5568, 0.0
      %v5591 = vmax.f32 %v5570, 0.0
      %v5592 = vmax.f32 %v5574, 0.0
      %v5593 = vmax.f32 %v5576, 0.0
      %v5595 = vlaneseq
      %v5596 = vshrl.u32 %v5595, 7
      %v5597 = vsub.s32 0, %v5596
      %v5598 = vrot.slane %v4999, %v5597
      %v5599 = vlaneseq
      %v5600 = vshrl.u32 %v5599, 7
      %v5601 = vsub.s32 1, %v5600
      %v5602 = vrot.slane %v4999, %v5601
      %v5605 = vmul.f32 %v5578, %v5598
      %v5606 = vmul.f32 %v5579, %v5602
      %v5607 = vmul.f32 %v5580, %v5598
      %v5608 = vmul.f32 %v5581, %v5602
      %v5609 = vmul.f32 %v5582, %v5598
      %v5610 = vmul.f32 %v5583, %v5602
      %v5611 = vmul.f32 %v5584, %v5598
      %v5612 = vmul.f32 %v5585, %v5602
      %v5613 = vmul.f32 %v5586, %v5598
      %v5614 = vmul.f32 %v5587, %v5602
      %v5615 = vmul.f32 %v5588, %v5598
      %v5616 = vmul.f32 %v5589, %v5602
      %v5617 = vmul.f32 %v5590, %v5598
      %v5618 = vmul.f32 %v5591, %v5602
      %v5619 = vmul.f32 %v5592, %v5598
      %v5620 = vmul.f32 %v5593, %v5602
      %v5622 = vlaneseq
      %v5623 = vshrl.u32 %v5622, 7
      %v5624 = vsub.s32 0, %v5623
      %v5625 = vrot.slane %v5001, %v5624
      %v5626 = vlaneseq
      %v5627 = vshrl.u32 %v5626, 7
      %v5628 = vsub.s32 1, %v5627
      %v5629 = vrot.slane %v5001, %v5628
      %v5632 = vadd.f32 %v5605, %v5625
      %v5633 = vadd.f32 %v5606, %v5629
      %v5634 = vadd.f32 %v5607, %v5625
      %v5635 = vadd.f32 %v5608, %v5629
      %v5636 = vadd.f32 %v5609, %v5625
      %v5637 = vadd.f32 %v5610, %v5629
      %v5638 = vadd.f32 %v5611, %v5625
      %v5639 = vadd.f32 %v5612, %v5629
      %v5640 = vadd.f32 %v5613, %v5625
      %v5641 = vadd.f32 %v5614, %v5629
      %v5642 = vadd.f32 %v5615, %v5625
      %v5643 = vadd.f32 %v5616, %v5629
      %v5644 = vadd.f32 %v5617, %v5625
      %v5645 = vadd.f32 %v5618, %v5629
      %v5646 = vadd.f32 %v5619, %v5625
      %v5647 = vadd.f32 %v5620, %v5629
      %v5648 = vld [vmem:[%s6] sm:$0xff]
      %v5649 = vld [vmem:[%s6 + $0x8] sm:$0xff]
      %v5650 = vld [vmem:[%s6 + $0x10] sm:$0xff]
      %v5651 = vld [vmem:[%s6 + $0x18] sm:$0xff]
      %v5652 = vld [vmem:[%s6 + $0x20] sm:$0xff]
      %v5653 = vld [vmem:[%s6 + $0x28] sm:$0xff]
      %v5654 = vld [vmem:[%s6 + $0x30] sm:$0xff]
      %v5655 = vld [vmem:[%s6 + $0x38] sm:$0xff]
      %vm5656 = vcmask 523264
      %v5658 = vsel %vm5656, %v5648, 0
      %v5661 = vsel %vm5656, %v5649, 0
      %v5664 = vsel %vm5656, %v5650, 0
      %v5667 = vsel %vm5656, %v5651, 0
      %v5670 = vsel %vm5656, %v5652, 0
      %v5673 = vsel %vm5656, %v5653, 0
      %v5676 = vsel %vm5656, %v5654, 0
      %v5679 = vsel %vm5656, %v5655, 0
      %5681 = vmatprep.subr.mxu0 %v5633
      %5682 = vmatpush1.msra.mxu0 %v5632
      %5683 = vmatprep.subr.mxu0 %v5635
      %5684 = vmatpush1.msra.mxu0 %v5634
      %5685 = vmatprep.subr.mxu0 %v5637
      %5686 = vmatpush1.msra.mxu0 %v5636
      %5687 = vmatprep.subr.mxu0 %v5639
      %5688 = vmatpush1.msra.mxu0 %v5638
      %5689 = vmatprep.subr.mxu0 %v5641
      %5690 = vmatpush1.msra.mxu0 %v5640
      %5691 = vmatprep.subr.mxu0 %v5643
      %5692 = vmatpush1.msra.mxu0 %v5642
      %5693 = vmatprep.subr.mxu0 %v5645
      %5694 = vmatpush1.msra.mxu0 %v5644
      %5695 = vmatprep.subr.mxu0 %v5647
      %5696 = vmatpush1.msra.mxu0 %v5646
      %5697 = vmatprep.subr.mxu0 0.0
      %5698 = vmatpush1.msra.mxu0 0.0
      %5699 = vmatprep.subr.mxu0 0.0
      %5700 = vmatpush1.msra.mxu0 0.0
      %5701 = vmatprep.subr.mxu0 0.0
      %5702 = vmatpush1.msra.mxu0 0.0
      %5703 = vmatprep.subr.mxu0 0.0
      %5704 = vmatpush1.msra.mxu0 0.0
      %5705 = vmatprep.subr.mxu0 0.0
      %5706 = vmatpush1.msra.mxu0 0.0
      %5707 = vmatprep.subr.mxu0 0.0
      %5708 = vmatpush1.msra.mxu0 0.0
      %5709 = vmatprep.subr.mxu0 0.0
      %5710 = vmatpush1.msra.mxu0 0.0
      %5711 = vmatprep.subr.mxu0 0.0
      %5712 = vmatpush1.msra.mxu0 0.0
      %5713 = vmatprep.subr.mxu0 0.0
      %5714 = vmatpush1.msra.mxu0 0.0
      %5715 = vmatprep.subr.mxu0 0.0
      %5716 = vmatpush1.msra.mxu0 0.0
      %5717 = vmatprep.subr.mxu0 0.0
      %5718 = vmatpush1.msra.mxu0 0.0
      %5719 = vmatprep.subr.mxu0 0.0
      %5720 = vmatpush1.msra.mxu0 0.0
      %5721 = vmatprep.subr.mxu0 0.0
      %5722 = vmatpush1.msra.mxu0 0.0
      %5723 = vmatprep.subr.mxu0 0.0
      %5724 = vmatpush1.msra.mxu0 0.0
      %5725 = vmatprep.subr.mxu0 0.0
      %5726 = vmatpush1.msra.mxu0 0.0
      %5727 = vmatprep.subr.mxu0 0.0
      %5728 = vmatpush1.msra.mxu0 0.0
      %5729 = vmatprep.subr.mxu0 0.0
      %5730 = vmatpush1.msra.mxu0 0.0
      %5731 = vmatprep.subr.mxu0 0.0
      %5732 = vmatpush1.msra.mxu0 0.0
      %5733 = vmatprep.subr.mxu0 0.0
      %5734 = vmatpush1.msra.mxu0 0.0
      %5735 = vmatprep.subr.mxu0 0.0
      %5736 = vmatpush1.msra.mxu0 0.0
      %5737 = vmatprep.subr.mxu0 0.0
      %5738 = vmatpush1.msra.mxu0 0.0
      %5739 = vmatprep.subr.mxu0 0.0
      %5740 = vmatpush1.msra.mxu0 0.0
      %5741 = vmatprep.subr.mxu0 0.0
      %5742 = vmatpush1.msra.mxu0 0.0
      %5743 = vmatprep.subr.mxu0 0.0
      %5744 = vmatpush1.msra.mxu0 0.0
      %5745 = vmatprep.mubr.f32.mxu0 0.0
      %5746 = vmatmul.mubr.f32.gmra.mrb[0].mxu0 %v5658
      %v5747 = vpop.f32.mrb[0].mxu0
      %v5748 = vadd.f32 0.0, %v5747
      %v5749 = vpop.f32.mrb[0].mxu0
      %v5750 = vadd.f32 0.0, %v5749
      %5751 = vmatprep.mubr.f32.mxu0 0.0
      %5752 = vmatmul.mubr.f32.gmra.mrb[0].mxu0 %v5661
      %v5753 = vpop.f32.mrb[0].mxu0
      %v5754 = vadd.f32 0.0, %v5753
      %v5755 = vpop.f32.mrb[0].mxu0
      %v5756 = vadd.f32 0.0, %v5755
      %5757 = vmatprep.mubr.f32.mxu0 0.0
      %5758 = vmatmul.mubr.f32.gmra.mrb[0].mxu0 %v5664
      %v5759 = vpop.f32.mrb[0].mxu0
      %v5760 = vadd.f32 0.0, %v5759
      %v5761 = vpop.f32.mrb[0].mxu0
      %v5762 = vadd.f32 0.0, %v5761
      %5763 = vmatprep.mubr.f32.mxu0 0.0
      %5764 = vmatmul.mubr.f32.gmra.mrb[0].mxu0 %v5667
      %v5765 = vpop.f32.mrb[0].mxu0
      %v5766 = vadd.f32 0.0, %v5765
      %v5767 = vpop.f32.mrb[0].mxu0
      %v5768 = vadd.f32 0.0, %v5767
      %5769 = vmatprep.mubr.f32.mxu0 0.0
      %5770 = vmatmul.mubr.f32.gmra.mrb[0].mxu0 %v5670
      %v5771 = vpop.f32.mrb[0].mxu0
      %v5772 = vadd.f32 0.0, %v5771
      %v5773 = vpop.f32.mrb[0].mxu0
      %v5774 = vadd.f32 0.0, %v5773
      %5775 = vmatprep.mubr.f32.mxu0 0.0
      %5776 = vmatmul.mubr.f32.gmra.mrb[0].mxu0 %v5673
      %v5777 = vpop.f32.mrb[0].mxu0
      %v5778 = vadd.f32 0.0, %v5777
      %v5779 = vpop.f32.mrb[0].mxu0
      %v5780 = vadd.f32 0.0, %v5779
      %5781 = vmatprep.mubr.f32.mxu0 0.0
      %5782 = vmatmul.mubr.f32.gmra.mrb[0].mxu0 %v5676
      %v5783 = vpop.f32.mrb[0].mxu0
      %v5784 = vadd.f32 0.0, %v5783
      %v5785 = vpop.f32.mrb[0].mxu0
      %v5786 = vadd.f32 0.0, %v5785
      %5787 = vmatprep.mubr.f32.mxu0 0.0
      %5788 = vmatmul.mubr.f32.gmra.mrb[0].mxu0 %v5679
      %v5789 = vpop.f32.mrb[0].mxu0
      %v5790 = vadd.f32 0.0, %v5789
      %v5791 = vpop.f32.mrb[0].mxu0
      %v5792 = vadd.f32 0.0, %v5791
      %5793 = vdwg.mxu0
      %v5794 = vmax.f32 %v5748, %v5760
      %v5795 = vmax.f32 %v5750, %v5762
      %v5796 = vmax.f32 %v5754, %v5766
      %v5797 = vmax.f32 %v5756, %v5768
      %v5798 = vmax.f32 %v5772, %v5784
      %v5799 = vmax.f32 %v5774, %v5786
      %v5800 = vmax.f32 %v5778, %v5790
      %v5801 = vmax.f32 %v5780, %v5792
      %v5802 = vmax.f32 %v5794, %v5798
      %v5803 = vmax.f32 %v5795, %v5799
      %v5804 = vmax.f32 %v5796, %v5800
      %v5805 = vmax.f32 %v5797, %v5801
      %v5806 = vld [vmem:[%s7] sm:$0xff]
      %v5807 = vld [vmem:[%s7 + $0x8] sm:$0xff]
      %v5808 = vld [vmem:[%s7 + $0x10] sm:$0xff]
      %v5809 = vld [vmem:[%s7 + $0x18] sm:$0xff]
      %v5810 = vld [vmem:[%s7 + $0x20] sm:$0xff]
      %v5811 = vld [vmem:[%s7 + $0x28] sm:$0xff]
      %v5812 = vld [vmem:[%s7 + $0x30] sm:$0xff]
      %v5813 = vld [vmem:[%s7 + $0x38] sm:$0xff]
      %v5814 = vld [vmem:[%s7 + $0x40] sm:$0xff]
      %v5815 = vld [vmem:[%s7 + $0x48] sm:$0xff]
      %v5816 = vld [vmem:[%s7 + $0x50] sm:$0xff]
      %v5817 = vld [vmem:[%s7 + $0x58] sm:$0xff]
      %v5818 = vld [vmem:[%s7 + $0x60] sm:$0xff]
      %v5819 = vld [vmem:[%s7 + $0x68] sm:$0xff]
      %v5820 = vld [vmem:[%s7 + $0x70] sm:$0xff]
      %v5821 = vld [vmem:[%s7 + $0x78] sm:$0xff]
      %v5822 = vld [vmem:[%s7 + $0x80] sm:$0xff]
      %v5823 = vld [vmem:[%s7 + $0x88] sm:$0xff]
      %v5824 = vld [vmem:[%s7 + $0x90] sm:$0xff]
      %v5825 = vld [vmem:[%s7 + $0x98] sm:$0xff]
      %v5826 = vld [vmem:[%s7 + $0xa0] sm:$0xff]
      %v5827 = vld [vmem:[%s7 + $0xa8] sm:$0xff]
      %v5828 = vld [vmem:[%s7 + $0xb0] sm:$0xff]
      %v5829 = vld [vmem:[%s7 + $0xb8] sm:$0xff]
      %v5830 = vld [vmem:[%s7 + $0xc0] sm:$0xff]
      %v5831 = vld [vmem:[%s7 + $0xc8] sm:$0xff]
      %v5832 = vld [vmem:[%s7 + $0xd0] sm:$0xff]
      %v5833 = vld [vmem:[%s7 + $0xd8] sm:$0xff]
      %v5834 = vld [vmem:[%s7 + $0xe0] sm:$0xff]
      %v5835 = vld [vmem:[%s7 + $0xe8] sm:$0xff]
      %v5836 = vld [vmem:[%s7 + $0xf0] sm:$0xff]
      %v5837 = vld [vmem:[%s7 + $0xf8] sm:$0xff]
      %v5838 = vld [vmem:[%s8] sm:$0x1]
      %v5840 = vlaneseq
      %v5841 = vshrl.u32 %v5840, 7
      %v5842 = vsub.s32 0, %v5841
      %v5843 = vrot.slane %v5838, %v5842
      %5845 = vmatprep.subr.mxu0 0.0
      %5846 = vmatpush1.msra.mxu0 %v5806
      %5847 = vmatprep.subr.mxu0 0.0
      %5848 = vmatpush1.msra.mxu0 %v5807
      %5849 = vmatprep.subr.mxu0 0.0
      %5850 = vmatpush1.msra.mxu0 %v5808
      %5851 = vmatprep.subr.mxu0 0.0
      %5852 = vmatpush1.msra.mxu0 %v5809
      %5853 = vmatprep.subr.mxu0 0.0
      %5854 = vmatpush1.msra.mxu0 %v5810
      %5855 = vmatprep.subr.mxu0 0.0
      %5856 = vmatpush1.msra.mxu0 %v5811
      %5857 = vmatprep.subr.mxu0 0.0
      %5858 = vmatpush1.msra.mxu0 %v5812
      %5859 = vmatprep.subr.mxu0 0.0
      %5860 = vmatpush1.msra.mxu0 %v5813
      %5861 = vmatprep.subr.mxu0 0.0
      %5862 = vmatpush1.msra.mxu0 %v5814
      %5863 = vmatprep.subr.mxu0 0.0
      %5864 = vmatpush1.msra.mxu0 %v5815
      %5865 = vmatprep.subr.mxu0 0.0
      %5866 = vmatpush1.msra.mxu0 %v5816
      %5867 = vmatprep.subr.mxu0 0.0
      %5868 = vmatpush1.msra.mxu0 %v5817
      %5869 = vmatprep.subr.mxu0 0.0
      %5870 = vmatpush1.msra.mxu0 %v5818
      %5871 = vmatprep.subr.mxu0 0.0
      %5872 = vmatpush1.msra.mxu0 %v5819
      %5873 = vmatprep.subr.mxu0 0.0
      %5874 = vmatpush1.msra.mxu0 %v5820
      %5875 = vmatprep.subr.mxu0 0.0
      %5876 = vmatpush1.msra.mxu0 %v5821
      %5877 = vmatprep.subr.mxu0 0.0
      %5878 = vmatpush1.msra.mxu0 %v5822
      %5879 = vmatprep.subr.mxu0 0.0
      %5880 = vmatpush1.msra.mxu0 %v5823
      %5881 = vmatprep.subr.mxu0 0.0
      %5882 = vmatpush1.msra.mxu0 %v5824
      %5883 = vmatprep.subr.mxu0 0.0
      %5884 = vmatpush1.msra.mxu0 %v5825
      %5885 = vmatprep.subr.mxu0 0.0
      %5886 = vmatpush1.msra.mxu0 %v5826
      %5887 = vmatprep.subr.mxu0 0.0
      %5888 = vmatpush1.msra.mxu0 %v5827
      %5889 = vmatprep.subr.mxu0 0.0
      %5890 = vmatpush1.msra.mxu0 %v5828
      %5891 = vmatprep.subr.mxu0 0.0
      %5892 = vmatpush1.msra.mxu0 %v5829
      %5893 = vmatprep.subr.mxu0 0.0
      %5894 = vmatpush1.msra.mxu0 %v5830
      %5895 = vmatprep.subr.mxu0 0.0
      %5896 = vmatpush1.msra.mxu0 %v5831
      %5897 = vmatprep.subr.mxu0 0.0
      %5898 = vmatpush1.msra.mxu0 %v5832
      %5899 = vmatprep.subr.mxu0 0.0
      %5900 = vmatpush1.msra.mxu0 %v5833
      %5901 = vmatprep.subr.mxu0 0.0
      %5902 = vmatpush1.msra.mxu0 %v5834
      %5903 = vmatprep.subr.mxu0 0.0
      %5904 = vmatpush1.msra.mxu0 %v5835
      %5905 = vmatprep.subr.mxu0 0.0
      %5906 = vmatpush1.msra.mxu0 %v5836
      %5907 = vmatprep.subr.mxu0 0.0
      %5908 = vmatpush1.msra.mxu0 %v5837
      %5909 = vmatprep.mubr.f32.mxu0 %v5803
      %5910 = vmatmul.mubr.f32.gmra.mrb[0].mxu0 %v5802
      %v5911 = vpop.f32.mrb[0].mxu0
      %v5912 = vadd.f32 %v5843, %v5911
      %v5913 = vpop.f32.mrb[0].mxu0
      %5914 = vmatprep.mubr.f32.mxu0 %v5805
      %5915 = vmatmul.mubr.f32.gmra.mrb[0].mxu0 %v5804
      %v5916 = vpop.f32.mrb[0].mxu0
      %v5917 = vadd.f32 %v5843, %v5916
      %v5918 = vpop.f32.mrb[0].mxu0
      %5919 = vdwg.mxu0
      %v5920 = vmax.f32 %v5912, 0.0
      %v5921 = vmax.f32 %v5917, 0.0
      %5922 = vst [vmem:[#allocation4] sm:$0xff] 0.0
      %5923 = vst [vmem:[#allocation4 + $0x18] sm:$0xff] 0.0
      %5924 = vst [vmem:[#allocation4 + $0x8] sm:$0xff] %v5920
      %5925 = vst [vmem:[#allocation4 + $0x10] sm:$0xff] %v5921
      %v5926 = vand.u32 %v592, 3
      %v5927 = vand.u32 %v593, 3
      %vm5928 = vcmp.gt.s32.totalorder %v5926, 0
      %vm5929 = vcmp.gt.s32.totalorder %v5927, 0
      %v5930 = vsel %vm5928, 1, 0
      %v5931 = vsel %vm5929, 1, 0
      %v5932 = vcvt.s32.f32 %v5930
      %v5933 = vcvt.s32.f32 %v5931
      %vm5934 = vcmp.lt.s32.totalorder %v5926, 3
      %vm5935 = vcmp.lt.s32.totalorder %v5927, 3
      %v5936 = vsel %vm5934, 1, 0
      %v5937 = vsel %vm5935, 1, 0
      %v5938 = vcvt.s32.f32 %v5936
      %v5939 = vcvt.s32.f32 %v5937
      %v5940 = vld [vmem:[#allocation4 + $0x3] sm:$0xff]
      %v5941 = vld [vmem:[#allocation4 + $0xb] sm:$0xff]
      %v5942 = vmul.f32 %v5940, %v5932
      %v5943 = vmul.f32 %v5941, %v5933
      %v5944 = vld [vmem:[#allocation4 + $0x4] sm:$0xff]
      %v5945 = vld [vmem:[#allocation4 + $0xc] sm:$0xff]
      %v5946 = vld [vmem:[#allocation4 + $0x5] sm:$0xff]
      %v5947 = vld [vmem:[#allocation4 + $0xd] sm:$0xff]
      %v5948 = vmul.f32 %v5946, %v5938
      %v5949 = vmul.f32 %v5947, %v5939
      %v5950 = vld [vmem:[#allocation4 + $0x7] sm:$0xff]
      %v5951 = vld [vmem:[#allocation4 + $0xf] sm:$0xff]
      %v5952 = vmul.f32 %v5950, %v5932
      %v5953 = vmul.f32 %v5951, %v5933
      %v5954 = vld [vmem:[#allocation4 + $0x8] sm:$0xff]
      %v5955 = vld [vmem:[#allocation4 + $0x10] sm:$0xff]
      %v5956 = vld [vmem:[#allocation4 + $0x9] sm:$0xff]
      %v5957 = vld [vmem:[#allocation4 + $0x11] sm:$0xff]
      %v5958 = vmul.f32 %v5956, %v5938
      %v5959 = vmul.f32 %v5957, %v5939
      %v5960 = vld [vmem:[#allocation4 + $0x13] sm:$0xff]
      %v5961 = vmul.f32 %v5941, %v5932
      %v5962 = vmul.f32 %v5960, %v5933
      %v5963 = vld [vmem:[#allocation4 + $0x14] sm:$0xff]
      %v5964 = vld [vmem:[#allocation4 + $0x15] sm:$0xff]
      %v5965 = vmul.f32 %v5947, %v5938
      %v5966 = vmul.f32 %v5964, %v5939
      %v5967 = vld [vmem:[%s9] sm:$0xff]
      %v5968 = vld [vmem:[%s9 + $0x8] sm:$0xff]
      %v5969 = vld [vmem:[%s9 + $0x10] sm:$0xff]
      %v5970 = vld [vmem:[%s9 + $0x18] sm:$0xff]
      %v5971 = vld [vmem:[%s9 + $0x20] sm:$0xff]
      %v5972 = vld [vmem:[%s9 + $0x28] sm:$0xff]
      %v5973 = vld [vmem:[%s9 + $0x30] sm:$0xff]
      %v5974 = vld [vmem:[%s9 + $0x38] sm:$0xff]
      %v5975 = vld [vmem:[%s9 + $0x40] sm:$0xff]
      %v5976 = vld [vmem:[%s9 + $0x48] sm:$0xff]
      %v5977 = vld [vmem:[%s9 + $0x50] sm:$0xff]
      %v5978 = vld [vmem:[%s9 + $0x58] sm:$0xff]
      %v5979 = vld [vmem:[%s9 + $0x60] sm:$0xff]
      %v5980 = vld [vmem:[%s9 + $0x68] sm:$0xff]
      %v5981 = vld [vmem:[%s9 + $0x70] sm:$0xff]
      %v5982 = vld [vmem:[%s9 + $0x78] sm:$0xff]
      %v5983 = vld [vmem:[%s9 + $0x80] sm:$0xff]
      %v5984 = vld [vmem:[%s9 + $0x88] sm:$0xff]
      %v5985 = vld [vmem:[%s9 + $0x90] sm:$0xff]
      %v5986 = vld [vmem:[%s9 + $0x98] sm:$0xff]
      %v5987 = vld [vmem:[%s9 + $0xa0] sm:$0xff]
      %v5988 = vld [vmem:[%s9 + $0xa8] sm:$0xff]
      %v5989 = vld [vmem:[%s9 + $0xb0] sm:$0xff]
      %v5990 = vld [vmem:[%s9 + $0xb8] sm:$0xff]
      %v5991 = vld [vmem:[%s9 + $0xc0] sm:$0xff]
      %v5992 = vld [vmem:[%s9 + $0xc8] sm:$0xff]
      %v5993 = vld [vmem:[%s9 + $0xd0] sm:$0xff]
      %v5994 = vld [vmem:[%s9 + $0xd8] sm:$0xff]
      %v5995 = vld [vmem:[%s9 + $0xe0] sm:$0xff]
      %v5996 = vld [vmem:[%s9 + $0xe8] sm:$0xff]
      %v5997 = vld [vmem:[%s9 + $0xf0] sm:$0xff]
      %v5998 = vld [vmem:[%s9 + $0xf8] sm:$0xff]
      %v5999 = vld [vmem:[%s9 + $0x100] sm:$0xff]
      %v6000 = vld [vmem:[%s9 + $0x108] sm:$0xff]
      %v6001 = vld [vmem:[%s9 + $0x110] sm:$0xff]
      %v6002 = vld [vmem:[%s9 + $0x118] sm:$0xff]
      %v6003 = vld [vmem:[%s9 + $0x120] sm:$0xff]
      %v6004 = vld [vmem:[%s9 + $0x128] sm:$0xff]
      %v6005 = vld [vmem:[%s9 + $0x130] sm:$0xff]
      %v6006 = vld [vmem:[%s9 + $0x138] sm:$0xff]
      %v6007 = vld [vmem:[%s9 + $0x140] sm:$0xff]
      %v6008 = vld [vmem:[%s9 + $0x148] sm:$0xff]
      %v6009 = vld [vmem:[%s9 + $0x150] sm:$0xff]
      %v6010 = vld [vmem:[%s9 + $0x158] sm:$0xff]
      %v6011 = vld [vmem:[%s9 + $0x160] sm:$0xff]
      %v6012 = vld [vmem:[%s9 + $0x168] sm:$0xff]
      %v6013 = vld [vmem:[%s9 + $0x170] sm:$0xff]
      %v6014 = vld [vmem:[%s9 + $0x178] sm:$0xff]
      %v6015 = vld [vmem:[%s9 + $0x180] sm:$0xff]
      %v6016 = vld [vmem:[%s9 + $0x188] sm:$0xff]
      %v6017 = vld [vmem:[%s9 + $0x190] sm:$0xff]
      %v6018 = vld [vmem:[%s9 + $0x198] sm:$0xff]
      %v6019 = vld [vmem:[%s9 + $0x1a0] sm:$0xff]
      %v6020 = vld [vmem:[%s9 + $0x1a8] sm:$0xff]
      %v6021 = vld [vmem:[%s9 + $0x1b0] sm:$0xff]
      %v6022 = vld [vmem:[%s9 + $0x1b8] sm:$0xff]
      %v6023 = vld [vmem:[%s9 + $0x1c0] sm:$0xff]
      %v6024 = vld [vmem:[%s9 + $0x1c8] sm:$0xff]
      %v6025 = vld [vmem:[%s9 + $0x1d0] sm:$0xff]
      %v6026 = vld [vmem:[%s9 + $0x1d8] sm:$0xff]
      %v6027 = vld [vmem:[%s9 + $0x1e0] sm:$0xff]
      %v6028 = vld [vmem:[%s9 + $0x1e8] sm:$0xff]
      %v6029 = vld [vmem:[%s9 + $0x1f0] sm:$0xff]
      %v6030 = vld [vmem:[%s9 + $0x1f8] sm:$0xff]
      %v6031 = vld [vmem:[%s9 + $0x200] sm:$0xff]
      %v6032 = vld [vmem:[%s9 + $0x208] sm:$0xff]
      %v6033 = vld [vmem:[%s9 + $0x210] sm:$0xff]
      %v6034 = vld [vmem:[%s9 + $0x218] sm:$0xff]
      %v6035 = vld [vmem:[%s9 + $0x220] sm:$0xff]
      %v6036 = vld [vmem:[%s9 + $0x228] sm:$0xff]
      %v6037 = vld [vmem:[%s9 + $0x230] sm:$0xff]
      %v6038 = vld [vmem:[%s9 + $0x238] sm:$0xff]
      %v6039 = vld [vmem:[%s9 + $0x240] sm:$0xff]
      %v6040 = vld [vmem:[%s9 + $0x248] sm:$0xff]
      %v6041 = vld [vmem:[%s9 + $0x250] sm:$0xff]
      %v6042 = vld [vmem:[%s9 + $0x258] sm:$0xff]
      %v6043 = vld [vmem:[%s9 + $0x260] sm:$0xff]
      %v6044 = vld [vmem:[%s9 + $0x268] sm:$0xff]
      %v6045 = vld [vmem:[%s9 + $0x270] sm:$0xff]
      %v6046 = vld [vmem:[%s9 + $0x278] sm:$0xff]
      %v6047 = vld [vmem:[%s9 + $0x280] sm:$0xff]
      %v6048 = vld [vmem:[%s9 + $0x288] sm:$0xff]
      %v6049 = vld [vmem:[%s9 + $0x290] sm:$0xff]
      %v6050 = vld [vmem:[%s9 + $0x298] sm:$0xff]
      %v6051 = vld [vmem:[%s9 + $0x2a0] sm:$0xff]
      %v6052 = vld [vmem:[%s9 + $0x2a8] sm:$0xff]
      %v6053 = vld [vmem:[%s9 + $0x2b0] sm:$0xff]
      %v6054 = vld [vmem:[%s9 + $0x2b8] sm:$0xff]
      %v6055 = vld [vmem:[%s9 + $0x2c0] sm:$0xff]
      %v6056 = vld [vmem:[%s9 + $0x2c8] sm:$0xff]
      %v6057 = vld [vmem:[%s9 + $0x2d0] sm:$0xff]
      %v6058 = vld [vmem:[%s9 + $0x2d8] sm:$0xff]
      %v6059 = vld [vmem:[%s9 + $0x2e0] sm:$0xff]
      %v6060 = vld [vmem:[%s9 + $0x2e8] sm:$0xff]
      %v6061 = vld [vmem:[%s9 + $0x2f0] sm:$0xff]
      %v6062 = vld [vmem:[%s9 + $0x2f8] sm:$0xff]
      %v6063 = vld [vmem:[%s9 + $0x300] sm:$0xff]
      %v6064 = vld [vmem:[%s9 + $0x308] sm:$0xff]
      %v6065 = vld [vmem:[%s9 + $0x310] sm:$0xff]
      %v6066 = vld [vmem:[%s9 + $0x318] sm:$0xff]
      %v6067 = vld [vmem:[%s9 + $0x320] sm:$0xff]
      %v6068 = vld [vmem:[%s9 + $0x328] sm:$0xff]
      %v6069 = vld [vmem:[%s9 + $0x330] sm:$0xff]
      %v6070 = vld [vmem:[%s9 + $0x338] sm:$0xff]
      %v6071 = vld [vmem:[%s9 + $0x340] sm:$0xff]
      %v6072 = vld [vmem:[%s9 + $0x348] sm:$0xff]
      %v6073 = vld [vmem:[%s9 + $0x350] sm:$0xff]
      %v6074 = vld [vmem:[%s9 + $0x358] sm:$0xff]
      %v6075 = vld [vmem:[%s9 + $0x360] sm:$0xff]
      %v6076 = vld [vmem:[%s9 + $0x368] sm:$0xff]
      %v6077 = vld [vmem:[%s9 + $0x370] sm:$0xff]
      %v6078 = vld [vmem:[%s9 + $0x378] sm:$0xff]
      %v6079 = vld [vmem:[%s9 + $0x380] sm:$0xff]
      %v6080 = vld [vmem:[%s9 + $0x388] sm:$0xff]
      %v6081 = vld [vmem:[%s9 + $0x390] sm:$0xff]
      %v6082 = vld [vmem:[%s9 + $0x398] sm:$0xff]
      %v6083 = vld [vmem:[%s9 + $0x3a0] sm:$0xff]
      %v6084 = vld [vmem:[%s9 + $0x3a8] sm:$0xff]
      %v6085 = vld [vmem:[%s9 + $0x3b0] sm:$0xff]
      %v6086 = vld [vmem:[%s9 + $0x3b8] sm:$0xff]
      %v6087 = vld [vmem:[%s9 + $0x3c0] sm:$0xff]
      %v6088 = vld [vmem:[%s9 + $0x3c8] sm:$0xff]
      %v6089 = vld [vmem:[%s9 + $0x3d0] sm:$0xff]
      %v6090 = vld [vmem:[%s9 + $0x3d8] sm:$0xff]
      %v6091 = vld [vmem:[%s9 + $0x3e0] sm:$0xff]
      %v6092 = vld [vmem:[%s9 + $0x3e8] sm:$0xff]
      %v6093 = vld [vmem:[%s9 + $0x3f0] sm:$0xff]
      %v6094 = vld [vmem:[%s9 + $0x3f8] sm:$0xff]
      %v6095 = vld [vmem:[%s9 + $0x400] sm:$0xff]
      %v6096 = vld [vmem:[%s9 + $0x408] sm:$0xff]
      %v6097 = vld [vmem:[%s9 + $0x410] sm:$0xff]
      %v6098 = vld [vmem:[%s9 + $0x418] sm:$0xff]
      %v6099 = vld [vmem:[%s9 + $0x420] sm:$0xff]
      %v6100 = vld [vmem:[%s9 + $0x428] sm:$0xff]
      %v6101 = vld [vmem:[%s9 + $0x430] sm:$0xff]
      %v6102 = vld [vmem:[%s9 + $0x438] sm:$0xff]
      %v6103 = vld [vmem:[%s9 + $0x440] sm:$0xff]
      %v6104 = vld [vmem:[%s9 + $0x448] sm:$0xff]
      %v6105 = vld [vmem:[%s9 + $0x450] sm:$0xff]
      %v6106 = vld [vmem:[%s9 + $0x458] sm:$0xff]
      %v6107 = vld [vmem:[%s9 + $0x460] sm:$0xff]
      %v6108 = vld [vmem:[%s9 + $0x468] sm:$0xff]
      %v6109 = vld [vmem:[%s9 + $0x470] sm:$0xff]
      %v6110 = vld [vmem:[%s9 + $0x478] sm:$0xff]
      %v6111 = vld [vmem:[%s9 + $0x480] sm:$0xff]
      %v6112 = vld [vmem:[%s9 + $0x488] sm:$0xff]
      %v6113 = vld [vmem:[%s9 + $0x490] sm:$0xff]
      %v6114 = vld [vmem:[%s9 + $0x498] sm:$0xff]
      %v6115 = vld [vmem:[%s9 + $0x4a0] sm:$0xff]
      %v6116 = vld [vmem:[%s9 + $0x4a8] sm:$0xff]
      %v6117 = vld [vmem:[%s9 + $0x4b0] sm:$0xff]
      %v6118 = vld [vmem:[%s9 + $0x4b8] sm:$0xff]
      %v6119 = vld [vmem:[%s9 + $0x4c0] sm:$0xff]
      %v6120 = vld [vmem:[%s9 + $0x4c8] sm:$0xff]
      %v6121 = vld [vmem:[%s9 + $0x4d0] sm:$0xff]
      %v6122 = vld [vmem:[%s9 + $0x4d8] sm:$0xff]
      %v6123 = vld [vmem:[%s9 + $0x4e0] sm:$0xff]
      %v6124 = vld [vmem:[%s9 + $0x4e8] sm:$0xff]
      %v6125 = vld [vmem:[%s9 + $0x4f0] sm:$0xff]
      %v6126 = vld [vmem:[%s9 + $0x4f8] sm:$0xff]
      %v6127 = vld [vmem:[%s9 + $0x500] sm:$0xff]
      %v6128 = vld [vmem:[%s9 + $0x508] sm:$0xff]
      %v6129 = vld [vmem:[%s9 + $0x510] sm:$0xff]
      %v6130 = vld [vmem:[%s9 + $0x518] sm:$0xff]
      %v6131 = vld [vmem:[%s9 + $0x520] sm:$0xff]
      %v6132 = vld [vmem:[%s9 + $0x528] sm:$0xff]
      %v6133 = vld [vmem:[%s9 + $0x530] sm:$0xff]
      %v6134 = vld [vmem:[%s9 + $0x538] sm:$0xff]
      %v6135 = vld [vmem:[%s9 + $0x540] sm:$0xff]
      %v6136 = vld [vmem:[%s9 + $0x548] sm:$0xff]
      %v6137 = vld [vmem:[%s9 + $0x550] sm:$0xff]
      %v6138 = vld [vmem:[%s9 + $0x558] sm:$0xff]
      %v6139 = vld [vmem:[%s9 + $0x560] sm:$0xff]
      %v6140 = vld [vmem:[%s9 + $0x568] sm:$0xff]
      %v6141 = vld [vmem:[%s9 + $0x570] sm:$0xff]
      %v6142 = vld [vmem:[%s9 + $0x578] sm:$0xff]
      %v6143 = vld [vmem:[%s9 + $0x580] sm:$0xff]
      %v6144 = vld [vmem:[%s9 + $0x588] sm:$0xff]
      %v6145 = vld [vmem:[%s9 + $0x590] sm:$0xff]
      %v6146 = vld [vmem:[%s9 + $0x598] sm:$0xff]
      %v6147 = vld [vmem:[%s9 + $0x5a0] sm:$0xff]
      %v6148 = vld [vmem:[%s9 + $0x5a8] sm:$0xff]
      %v6149 = vld [vmem:[%s9 + $0x5b0] sm:$0xff]
      %v6150 = vld [vmem:[%s9 + $0x5b8] sm:$0xff]
      %v6151 = vld [vmem:[%s9 + $0x5c0] sm:$0xff]
      %v6152 = vld [vmem:[%s9 + $0x5c8] sm:$0xff]
      %v6153 = vld [vmem:[%s9 + $0x5d0] sm:$0xff]
      %v6154 = vld [vmem:[%s9 + $0x5d8] sm:$0xff]
      %v6155 = vld [vmem:[%s9 + $0x5e0] sm:$0xff]
      %v6156 = vld [vmem:[%s9 + $0x5e8] sm:$0xff]
      %v6157 = vld [vmem:[%s9 + $0x5f0] sm:$0xff]
      %v6158 = vld [vmem:[%s9 + $0x5f8] sm:$0xff]
      %v6159 = vld [vmem:[%s9 + $0x600] sm:$0xff]
      %v6160 = vld [vmem:[%s9 + $0x608] sm:$0xff]
      %v6161 = vld [vmem:[%s9 + $0x610] sm:$0xff]
      %v6162 = vld [vmem:[%s9 + $0x618] sm:$0xff]
      %v6163 = vld [vmem:[%s9 + $0x620] sm:$0xff]
      %v6164 = vld [vmem:[%s9 + $0x628] sm:$0xff]
      %v6165 = vld [vmem:[%s9 + $0x630] sm:$0xff]
      %v6166 = vld [vmem:[%s9 + $0x638] sm:$0xff]
      %v6167 = vld [vmem:[%s9 + $0x640] sm:$0xff]
      %v6168 = vld [vmem:[%s9 + $0x648] sm:$0xff]
      %v6169 = vld [vmem:[%s9 + $0x650] sm:$0xff]
      %v6170 = vld [vmem:[%s9 + $0x658] sm:$0xff]
      %v6171 = vld [vmem:[%s9 + $0x660] sm:$0xff]
      %v6172 = vld [vmem:[%s9 + $0x668] sm:$0xff]
      %v6173 = vld [vmem:[%s9 + $0x670] sm:$0xff]
      %v6174 = vld [vmem:[%s9 + $0x678] sm:$0xff]
      %v6175 = vld [vmem:[%s9 + $0x680] sm:$0xff]
      %v6176 = vld [vmem:[%s9 + $0x688] sm:$0xff]
      %v6177 = vld [vmem:[%s9 + $0x690] sm:$0xff]
      %v6178 = vld [vmem:[%s9 + $0x698] sm:$0xff]
      %v6179 = vld [vmem:[%s9 + $0x6a0] sm:$0xff]
      %v6180 = vld [vmem:[%s9 + $0x6a8] sm:$0xff]
      %v6181 = vld [vmem:[%s9 + $0x6b0] sm:$0xff]
      %v6182 = vld [vmem:[%s9 + $0x6b8] sm:$0xff]
      %v6183 = vld [vmem:[%s9 + $0x6c0] sm:$0xff]
      %v6184 = vld [vmem:[%s9 + $0x6c8] sm:$0xff]
      %v6185 = vld [vmem:[%s9 + $0x6d0] sm:$0xff]
      %v6186 = vld [vmem:[%s9 + $0x6d8] sm:$0xff]
      %v6187 = vld [vmem:[%s9 + $0x6e0] sm:$0xff]
      %v6188 = vld [vmem:[%s9 + $0x6e8] sm:$0xff]
      %v6189 = vld [vmem:[%s9 + $0x6f0] sm:$0xff]
      %v6190 = vld [vmem:[%s9 + $0x6f8] sm:$0xff]
      %v6191 = vld [vmem:[%s9 + $0x700] sm:$0xff]
      %v6192 = vld [vmem:[%s9 + $0x708] sm:$0xff]
      %v6193 = vld [vmem:[%s9 + $0x710] sm:$0xff]
      %v6194 = vld [vmem:[%s9 + $0x718] sm:$0xff]
      %v6195 = vld [vmem:[%s9 + $0x720] sm:$0xff]
      %v6196 = vld [vmem:[%s9 + $0x728] sm:$0xff]
      %v6197 = vld [vmem:[%s9 + $0x730] sm:$0xff]
      %v6198 = vld [vmem:[%s9 + $0x738] sm:$0xff]
      %v6199 = vld [vmem:[%s9 + $0x740] sm:$0xff]
      %v6200 = vld [vmem:[%s9 + $0x748] sm:$0xff]
      %v6201 = vld [vmem:[%s9 + $0x750] sm:$0xff]
      %v6202 = vld [vmem:[%s9 + $0x758] sm:$0xff]
      %v6203 = vld [vmem:[%s9 + $0x760] sm:$0xff]
      %v6204 = vld [vmem:[%s9 + $0x768] sm:$0xff]
      %v6205 = vld [vmem:[%s9 + $0x770] sm:$0xff]
      %v6206 = vld [vmem:[%s9 + $0x778] sm:$0xff]
      %v6207 = vld [vmem:[%s9 + $0x780] sm:$0xff]
      %v6208 = vld [vmem:[%s9 + $0x788] sm:$0xff]
      %v6209 = vld [vmem:[%s9 + $0x790] sm:$0xff]
      %v6210 = vld [vmem:[%s9 + $0x798] sm:$0xff]
      %v6211 = vld [vmem:[%s9 + $0x7a0] sm:$0xff]
      %v6212 = vld [vmem:[%s9 + $0x7a8] sm:$0xff]
      %v6213 = vld [vmem:[%s9 + $0x7b0] sm:$0xff]
      %v6214 = vld [vmem:[%s9 + $0x7b8] sm:$0xff]
      %v6215 = vld [vmem:[%s9 + $0x7c0] sm:$0xff]
      %v6216 = vld [vmem:[%s9 + $0x7c8] sm:$0xff]
      %v6217 = vld [vmem:[%s9 + $0x7d0] sm:$0xff]
      %v6218 = vld [vmem:[%s9 + $0x7d8] sm:$0xff]
      %v6219 = vld [vmem:[%s9 + $0x7e0] sm:$0xff]
      %v6220 = vld [vmem:[%s9 + $0x7e8] sm:$0xff]
      %v6221 = vld [vmem:[%s9 + $0x7f0] sm:$0xff]
      %v6222 = vld [vmem:[%s9 + $0x7f8] sm:$0xff]
      %v6223 = vld [vmem:[%s9 + $0x800] sm:$0xff]
      %v6224 = vld [vmem:[%s9 + $0x808] sm:$0xff]
      %v6225 = vld [vmem:[%s9 + $0x810] sm:$0xff]
      %v6226 = vld [vmem:[%s9 + $0x818] sm:$0xff]
      %v6227 = vld [vmem:[%s9 + $0x820] sm:$0xff]
      %v6228 = vld [vmem:[%s9 + $0x828] sm:$0xff]
      %v6229 = vld [vmem:[%s9 + $0x830] sm:$0xff]
      %v6230 = vld [vmem:[%s9 + $0x838] sm:$0xff]
      %v6231 = vld [vmem:[%s9 + $0x840] sm:$0xff]
      %v6232 = vld [vmem:[%s9 + $0x848] sm:$0xff]
      %v6233 = vld [vmem:[%s9 + $0x850] sm:$0xff]
      %v6234 = vld [vmem:[%s9 + $0x858] sm:$0xff]
      %v6235 = vld [vmem:[%s9 + $0x860] sm:$0xff]
      %v6236 = vld [vmem:[%s9 + $0x868] sm:$0xff]
      %v6237 = vld [vmem:[%s9 + $0x870] sm:$0xff]
      %v6238 = vld [vmem:[%s9 + $0x878] sm:$0xff]
      %v6239 = vld [vmem:[%s9 + $0x880] sm:$0xff]
      %v6240 = vld [vmem:[%s9 + $0x888] sm:$0xff]
      %v6241 = vld [vmem:[%s9 + $0x890] sm:$0xff]
      %v6242 = vld [vmem:[%s9 + $0x898] sm:$0xff]
      %v6243 = vld [vmem:[%s9 + $0x8a0] sm:$0xff]
      %v6244 = vld [vmem:[%s9 + $0x8a8] sm:$0xff]
      %v6245 = vld [vmem:[%s9 + $0x8b0] sm:$0xff]
      %v6246 = vld [vmem:[%s9 + $0x8b8] sm:$0xff]
      %v6247 = vld [vmem:[%s9 + $0x8c0] sm:$0xff]
      %v6248 = vld [vmem:[%s9 + $0x8c8] sm:$0xff]
      %v6249 = vld [vmem:[%s9 + $0x8d0] sm:$0xff]
      %v6250 = vld [vmem:[%s9 + $0x8d8] sm:$0xff]
      %v6251 = vld [vmem:[%s9 + $0x8e0] sm:$0xff]
      %v6252 = vld [vmem:[%s9 + $0x8e8] sm:$0xff]
      %v6253 = vld [vmem:[%s9 + $0x8f0] sm:$0xff]
      %v6254 = vld [vmem:[%s9 + $0x8f8] sm:$0xff]
      %v6255 = vld [vmem:[%s10] ss:$4 sm:$0x3]
      %s6256 = scalar_lea.vmem %s10, 1
      %v6257 = vld [vmem:[%s6256] ss:$4 sm:$0x3]
      %s6258 = scalar_lea.vmem %s10, 2
      %v6259 = vld [vmem:[%s6258] ss:$4 sm:$0x3]
      %v6261 = vlaneseq
      %v6262 = vshrl.u32 %v6261, 7
      %v6263 = vsub.s32 0, %v6262
      %v6264 = vrot.slane %v6255, %v6263
      %v6265 = vlaneseq
      %v6266 = vshrl.u32 %v6265, 7
      %v6267 = vsub.s32 1, %v6266
      %v6268 = vrot.slane %v6255, %v6267
      %6271 = vmatprep.subr.mxu0 %v5968
      %6272 = vmatpush1.msra.mxu0 %v5967
      %6273 = vmatprep.subr.mxu0 %v5970
      %6274 = vmatpush1.msra.mxu0 %v5969
      %6275 = vmatprep.subr.mxu0 %v5972
      %6276 = vmatpush1.msra.mxu0 %v5971
      %6277 = vmatprep.subr.mxu0 %v5974
      %6278 = vmatpush1.msra.mxu0 %v5973
      %6279 = vmatprep.subr.mxu0 %v5976
      %6280 = vmatpush1.msra.mxu0 %v5975
      %6281 = vmatprep.subr.mxu0 %v5978
      %6282 = vmatpush1.msra.mxu0 %v5977
      %6283 = vmatprep.subr.mxu0 %v5980
      %6284 = vmatpush1.msra.mxu0 %v5979
      %6285 = vmatprep.subr.mxu0 %v5982
      %6286 = vmatpush1.msra.mxu0 %v5981
      %6287 = vmatprep.subr.mxu0 %v5984
      %6288 = vmatpush1.msra.mxu0 %v5983
      %6289 = vmatprep.subr.mxu0 %v5986
      %6290 = vmatpush1.msra.mxu0 %v5985
      %6291 = vmatprep.subr.mxu0 %v5988
      %6292 = vmatpush1.msra.mxu0 %v5987
      %6293 = vmatprep.subr.mxu0 %v5990
      %6294 = vmatpush1.msra.mxu0 %v5989
      %6295 = vmatprep.subr.mxu0 %v5992
      %6296 = vmatpush1.msra.mxu0 %v5991
      %6297 = vmatprep.subr.mxu0 %v5994
      %6298 = vmatpush1.msra.mxu0 %v5993
      %6299 = vmatprep.subr.mxu0 %v5996
      %6300 = vmatpush1.msra.mxu0 %v5995
      %6301 = vmatprep.subr.mxu0 %v5998
      %6302 = vmatpush1.msra.mxu0 %v5997
      %6303 = vmatprep.subr.mxu0 %v6000
      %6304 = vmatpush1.msra.mxu0 %v5999
      %6305 = vmatprep.subr.mxu0 %v6002
      %6306 = vmatpush1.msra.mxu0 %v6001
      %6307 = vmatprep.subr.mxu0 %v6004
      %6308 = vmatpush1.msra.mxu0 %v6003
      %6309 = vmatprep.subr.mxu0 %v6006
      %6310 = vmatpush1.msra.mxu0 %v6005
      %6311 = vmatprep.subr.mxu0 %v6008
      %6312 = vmatpush1.msra.mxu0 %v6007
      %6313 = vmatprep.subr.mxu0 %v6010
      %6314 = vmatpush1.msra.mxu0 %v6009
      %6315 = vmatprep.subr.mxu0 %v6012
      %6316 = vmatpush1.msra.mxu0 %v6011
      %6317 = vmatprep.subr.mxu0 %v6014
      %6318 = vmatpush1.msra.mxu0 %v6013
      %6319 = vmatprep.subr.mxu0 %v6016
      %6320 = vmatpush1.msra.mxu0 %v6015
      %6321 = vmatprep.subr.mxu0 %v6018
      %6322 = vmatpush1.msra.mxu0 %v6017
      %6323 = vmatprep.subr.mxu0 %v6020
      %6324 = vmatpush1.msra.mxu0 %v6019
      %6325 = vmatprep.subr.mxu0 %v6022
      %6326 = vmatpush1.msra.mxu0 %v6021
      %6327 = vmatprep.subr.mxu0 %v6024
      %6328 = vmatpush1.msra.mxu0 %v6023
      %6329 = vmatprep.subr.mxu0 %v6026
      %6330 = vmatpush1.msra.mxu0 %v6025
      %6331 = vmatprep.subr.mxu0 %v6028
      %6332 = vmatpush1.msra.mxu0 %v6027
      %6333 = vmatprep.subr.mxu0 %v6030
      %6334 = vmatpush1.msra.mxu0 %v6029
      %6335 = vmatprep.mubr.f32.mxu0 %v5944
      %6336 = vmatmul.mubr.f32.gmra.mrb[0].mxu0 %v5942
      %v6337 = vpop.f32.mrb[0].mxu0
      %v6338 = vadd.f32 %v6264, %v6337
      %v6339 = vpop.f32.mrb[0].mxu0
      %v6340 = vadd.f32 %v6268, %v6339
      %6341 = vmatprep.mubr.f32.mxu0 %v5945
      %6342 = vmatmul.mubr.f32.gmra.mrb[0].mxu0 %v5943
      %v6343 = vpop.f32.mrb[0].mxu0
      %v6344 = vadd.f32 %v6264, %v6343
      %v6345 = vpop.f32.mrb[0].mxu0
      %v6346 = vadd.f32 %v6268, %v6345
      %6347 = vdwg.mxu0
      %6348 = vmatprep.subr.mxu0 %v6032
      %6349 = vmatpush1.msra.mxu0 %v6031
      %6350 = vmatprep.subr.mxu0 %v6034
      %6351 = vmatpush1.msra.mxu0 %v6033
      %6352 = vmatprep.subr.mxu0 %v6036
      %6353 = vmatpush1.msra.mxu0 %v6035
      %6354 = vmatprep.subr.mxu0 %v6038
      %6355 = vmatpush1.msra.mxu0 %v6037
      %6356 = vmatprep.subr.mxu0 %v6040
      %6357 = vmatpush1.msra.mxu0 %v6039
      %6358 = vmatprep.subr.mxu0 %v6042
      %6359 = vmatpush1.msra.mxu0 %v6041
      %6360 = vmatprep.subr.mxu0 %v6044
      %6361 = vmatpush1.msra.mxu0 %v6043
      %6362 = vmatprep.subr.mxu0 %v6046
      %6363 = vmatpush1.msra.mxu0 %v6045
      %6364 = vmatprep.subr.mxu0 %v6048
      %6365 = vmatpush1.msra.mxu0 %v6047
      %6366 = vmatprep.subr.mxu0 %v6050
      %6367 = vmatpush1.msra.mxu0 %v6049
      %6368 = vmatprep.subr.mxu0 %v6052
      %6369 = vmatpush1.msra.mxu0 %v6051
      %6370 = vmatprep.subr.mxu0 %v6054
      %6371 = vmatpush1.msra.mxu0 %v6053
      %6372 = vmatprep.subr.mxu0 %v6056
      %6373 = vmatpush1.msra.mxu0 %v6055
      %6374 = vmatprep.subr.mxu0 %v6058
      %6375 = vmatpush1.msra.mxu0 %v6057
      %6376 = vmatprep.subr.mxu0 %v6060
      %6377 = vmatpush1.msra.mxu0 %v6059
      %6378 = vmatprep.subr.mxu0 %v6062
      %6379 = vmatpush1.msra.mxu0 %v6061
      %6380 = vmatprep.subr.mxu0 %v6064
      %6381 = vmatpush1.msra.mxu0 %v6063
      %6382 = vmatprep.subr.mxu0 %v6066
      %6383 = vmatpush1.msra.mxu0 %v6065
      %6384 = vmatprep.subr.mxu0 %v6068
      %6385 = vmatpush1.msra.mxu0 %v6067
      %6386 = vmatprep.subr.mxu0 %v6070
      %6387 = vmatpush1.msra.mxu0 %v6069
      %6388 = vmatprep.subr.mxu0 %v6072
      %6389 = vmatpush1.msra.mxu0 %v6071
      %6390 = vmatprep.subr.mxu0 %v6074
      %6391 = vmatpush1.msra.mxu0 %v6073
      %6392 = vmatprep.subr.mxu0 %v6076
      %6393 = vmatpush1.msra.mxu0 %v6075
      %6394 = vmatprep.subr.mxu0 %v6078
      %6395 = vmatpush1.msra.mxu0 %v6077
      %6396 = vmatprep.subr.mxu0 %v6080
      %6397 = vmatpush1.msra.mxu0 %v6079
      %6398 = vmatprep.subr.mxu0 %v6082
      %6399 = vmatpush1.msra.mxu0 %v6081
      %6400 = vmatprep.subr.mxu0 %v6084
      %6401 = vmatpush1.msra.mxu0 %v6083
      %6402 = vmatprep.subr.mxu0 %v6086
      %6403 = vmatpush1.msra.mxu0 %v6085
      %6404 = vmatprep.subr.mxu0 %v6088
      %6405 = vmatpush1.msra.mxu0 %v6087
      %6406 = vmatprep.subr.mxu0 %v6090
      %6407 = vmatpush1.msra.mxu0 %v6089
      %6408 = vmatprep.subr.mxu0 %v6092
      %6409 = vmatpush1.msra.mxu0 %v6091
      %6410 = vmatprep.subr.mxu0 %v6094
      %6411 = vmatpush1.msra.mxu0 %v6093
      %6412 = vmatprep.mubr.f32.mxu0 %v5952
      %6413 = vmatmul.mubr.f32.gmra.mrb[0].mxu0 %v5948
      %v6414 = vpop.f32.mrb[0].mxu0
      %v6415 = vadd.f32 %v6338, %v6414
      %v6416 = vpop.f32.mrb[0].mxu0
      %v6417 = vadd.f32 %v6340, %v6416
      %6418 = vmatprep.mubr.f32.mxu0 %v5953
      %6419 = vmatmul.mubr.f32.gmra.mrb[0].mxu0 %v5949
      %v6420 = vpop.f32.mrb[0].mxu0
      %v6421 = vadd.f32 %v6344, %v6420
      %v6422 = vpop.f32.mrb[0].mxu0
      %v6423 = vadd.f32 %v6346, %v6422
      %6424 = vdwg.mxu0
      %6425 = vmatprep.subr.mxu0 %v6096
      %6426 = vmatpush1.msra.mxu0 %v6095
      %6427 = vmatprep.subr.mxu0 %v6098
      %6428 = vmatpush1.msra.mxu0 %v6097
      %6429 = vmatprep.subr.mxu0 %v6100
      %6430 = vmatpush1.msra.mxu0 %v6099
      %6431 = vmatprep.subr.mxu0 %v6102
      %6432 = vmatpush1.msra.mxu0 %v6101
      %6433 = vmatprep.subr.mxu0 %v6104
      %6434 = vmatpush1.msra.mxu0 %v6103
      %6435 = vmatprep.subr.mxu0 %v6106
      %6436 = vmatpush1.msra.mxu0 %v6105
      %6437 = vmatprep.subr.mxu0 %v6108
      %6438 = vmatpush1.msra.mxu0 %v6107
      %6439 = vmatprep.subr.mxu0 %v6110
      %6440 = vmatpush1.msra.mxu0 %v6109
      %6441 = vmatprep.subr.mxu0 %v6112
      %6442 = vmatpush1.msra.mxu0 %v6111
      %6443 = vmatprep.subr.mxu0 %v6114
      %6444 = vmatpush1.msra.mxu0 %v6113
      %6445 = vmatprep.subr.mxu0 %v6116
      %6446 = vmatpush1.msra.mxu0 %v6115
      %6447 = vmatprep.subr.mxu0 %v6118
      %6448 = vmatpush1.msra.mxu0 %v6117
      %6449 = vmatprep.subr.mxu0 %v6120
      %6450 = vmatpush1.msra.mxu0 %v6119
      %6451 = vmatprep.subr.mxu0 %v6122
      %6452 = vmatpush1.msra.mxu0 %v6121
      %6453 = vmatprep.subr.mxu0 %v6124
      %6454 = vmatpush1.msra.mxu0 %v6123
      %6455 = vmatprep.subr.mxu0 %v6126
      %6456 = vmatpush1.msra.mxu0 %v6125
      %6457 = vmatprep.subr.mxu0 %v6128
      %6458 = vmatpush1.msra.mxu0 %v6127
      %6459 = vmatprep.subr.mxu0 %v6130
      %6460 = vmatpush1.msra.mxu0 %v6129
      %6461 = vmatprep.subr.mxu0 %v6132
      %6462 = vmatpush1.msra.mxu0 %v6131
      %6463 = vmatprep.subr.mxu0 %v6134
      %6464 = vmatpush1.msra.mxu0 %v6133
      %6465 = vmatprep.subr.mxu0 %v6136
      %6466 = vmatpush1.msra.mxu0 %v6135
      %6467 = vmatprep.subr.mxu0 %v6138
      %6468 = vmatpush1.msra.mxu0 %v6137
      %6469 = vmatprep.subr.mxu0 %v6140
      %6470 = vmatpush1.msra.mxu0 %v6139
      %6471 = vmatprep.subr.mxu0 %v6142
      %6472 = vmatpush1.msra.mxu0 %v6141
      %6473 = vmatprep.subr.mxu0 %v6144
      %6474 = vmatpush1.msra.mxu0 %v6143
      %6475 = vmatprep.subr.mxu0 %v6146
      %6476 = vmatpush1.msra.mxu0 %v6145
      %6477 = vmatprep.subr.mxu0 %v6148
      %6478 = vmatpush1.msra.mxu0 %v6147
      %6479 = vmatprep.subr.mxu0 %v6150
      %6480 = vmatpush1.msra.mxu0 %v6149
      %6481 = vmatprep.subr.mxu0 %v6152
      %6482 = vmatpush1.msra.mxu0 %v6151
      %6483 = vmatprep.subr.mxu0 %v6154
      %6484 = vmatpush1.msra.mxu0 %v6153
      %6485 = vmatprep.subr.mxu0 %v6156
      %6486 = vmatpush1.msra.mxu0 %v6155
      %6487 = vmatprep.subr.mxu0 %v6158
      %6488 = vmatpush1.msra.mxu0 %v6157
      %6489 = vmatprep.mubr.f32.mxu0 %v5958
      %6490 = vmatmul.mubr.f32.gmra.mrb[0].mxu0 %v5954
      %v6491 = vpop.f32.mrb[0].mxu0
      %v6492 = vadd.f32 %v6415, %v6491
      %v6493 = vpop.f32.mrb[0].mxu0
      %v6494 = vadd.f32 %v6417, %v6493
      %6495 = vmatprep.mubr.f32.mxu0 %v5959
      %6496 = vmatmul.mubr.f32.gmra.mrb[0].mxu0 %v5955
      %v6497 = vpop.f32.mrb[0].mxu0
      %v6498 = vadd.f32 %v6421, %v6497
      %v6499 = vpop.f32.mrb[0].mxu0
      %v6500 = vadd.f32 %v6423, %v6499
      %6501 = vdwg.mxu0
      %6502 = vmatprep.subr.mxu0 %v6160
      %6503 = vmatpush1.msra.mxu0 %v6159
      %6504 = vmatprep.subr.mxu0 %v6162
      %6505 = vmatpush1.msra.mxu0 %v6161
      %6506 = vmatprep.subr.mxu0 %v6164
      %6507 = vmatpush1.msra.mxu0 %v6163
      %6508 = vmatprep.subr.mxu0 %v6166
      %6509 = vmatpush1.msra.mxu0 %v6165
      %6510 = vmatprep.subr.mxu0 %v6168
      %6511 = vmatpush1.msra.mxu0 %v6167
      %6512 = vmatprep.subr.mxu0 %v6170
      %6513 = vmatpush1.msra.mxu0 %v6169
      %6514 = vmatprep.subr.mxu0 %v6172
      %6515 = vmatpush1.msra.mxu0 %v6171
      %6516 = vmatprep.subr.mxu0 %v6174
      %6517 = vmatpush1.msra.mxu0 %v6173
      %6518 = vmatprep.subr.mxu0 %v6176
      %6519 = vmatpush1.msra.mxu0 %v6175
      %6520 = vmatprep.subr.mxu0 %v6178
      %6521 = vmatpush1.msra.mxu0 %v6177
      %6522 = vmatprep.subr.mxu0 %v6180
      %6523 = vmatpush1.msra.mxu0 %v6179
      %6524 = vmatprep.subr.mxu0 %v6182
      %6525 = vmatpush1.msra.mxu0 %v6181
      %6526 = vmatprep.subr.mxu0 %v6184
      %6527 = vmatpush1.msra.mxu0 %v6183
      %6528 = vmatprep.subr.mxu0 %v6186
      %6529 = vmatpush1.msra.mxu0 %v6185
      %6530 = vmatprep.subr.mxu0 %v6188
      %6531 = vmatpush1.msra.mxu0 %v6187
      %6532 = vmatprep.subr.mxu0 %v6190
      %6533 = vmatpush1.msra.mxu0 %v6189
      %6534 = vmatprep.subr.mxu0 %v6192
      %6535 = vmatpush1.msra.mxu0 %v6191
      %6536 = vmatprep.subr.mxu0 %v6194
      %6537 = vmatpush1.msra.mxu0 %v6193
      %6538 = vmatprep.subr.mxu0 %v6196
      %6539 = vmatpush1.msra.mxu0 %v6195
      %6540 = vmatprep.subr.mxu0 %v6198
      %6541 = vmatpush1.msra.mxu0 %v6197
      %6542 = vmatprep.subr.mxu0 %v6200
      %6543 = vmatpush1.msra.mxu0 %v6199
      %6544 = vmatprep.subr.mxu0 %v6202
      %6545 = vmatpush1.msra.mxu0 %v6201
      %6546 = vmatprep.subr.mxu0 %v6204
      %6547 = vmatpush1.msra.mxu0 %v6203
      %6548 = vmatprep.subr.mxu0 %v6206
      %6549 = vmatpush1.msra.mxu0 %v6205
      %6550 = vmatprep.subr.mxu0 %v6208
      %6551 = vmatpush1.msra.mxu0 %v6207
      %6552 = vmatprep.subr.mxu0 %v6210
      %6553 = vmatpush1.msra.mxu0 %v6209
      %6554 = vmatprep.subr.mxu0 %v6212
      %6555 = vmatpush1.msra.mxu0 %v6211
      %6556 = vmatprep.subr.mxu0 %v6214
      %6557 = vmatpush1.msra.mxu0 %v6213
      %6558 = vmatprep.subr.mxu0 %v6216
      %6559 = vmatpush1.msra.mxu0 %v6215
      %6560 = vmatprep.subr.mxu0 %v6218
      %6561 = vmatpush1.msra.mxu0 %v6217
      %6562 = vmatprep.subr.mxu0 %v6220
      %6563 = vmatpush1.msra.mxu0 %v6219
      %6564 = vmatprep.subr.mxu0 %v6222
      %6565 = vmatpush1.msra.mxu0 %v6221
      %6566 = vmatprep.mubr.f32.mxu0 %v5945
      %6567 = vmatmul.mubr.f32.gmra.mrb[0].mxu0 %v5961
      %v6568 = vpop.f32.mrb[0].mxu0
      %v6569 = vadd.f32 %v6492, %v6568
      %v6570 = vpop.f32.mrb[0].mxu0
      %v6571 = vadd.f32 %v6494, %v6570
      %6572 = vmatprep.mubr.f32.mxu0 %v5963
      %6573 = vmatmul.mubr.f32.gmra.mrb[0].mxu0 %v5962
      %v6574 = vpop.f32.mrb[0].mxu0
      %v6575 = vadd.f32 %v6498, %v6574
      %v6576 = vpop.f32.mrb[0].mxu0
      %v6577 = vadd.f32 %v6500, %v6576
      %6578 = vdwg.mxu0
      %6579 = vmatprep.subr.mxu0 %v6224
      %6580 = vmatpush1.msra.mxu0 %v6223
      %6581 = vmatprep.subr.mxu0 %v6226
      %6582 = vmatpush1.msra.mxu0 %v6225
      %6583 = vmatprep.subr.mxu0 %v6228
      %6584 = vmatpush1.msra.mxu0 %v6227
      %6585 = vmatprep.subr.mxu0 %v6230
      %6586 = vmatpush1.msra.mxu0 %v6229
      %6587 = vmatprep.subr.mxu0 %v6232
      %6588 = vmatpush1.msra.mxu0 %v6231
      %6589 = vmatprep.subr.mxu0 %v6234
      %6590 = vmatpush1.msra.mxu0 %v6233
      %6591 = vmatprep.subr.mxu0 %v6236
      %6592 = vmatpush1.msra.mxu0 %v6235
      %6593 = vmatprep.subr.mxu0 %v6238
      %6594 = vmatpush1.msra.mxu0 %v6237
      %6595 = vmatprep.subr.mxu0 %v6240
      %6596 = vmatpush1.msra.mxu0 %v6239
      %6597 = vmatprep.subr.mxu0 %v6242
      %6598 = vmatpush1.msra.mxu0 %v6241
      %6599 = vmatprep.subr.mxu0 %v6244
      %6600 = vmatpush1.msra.mxu0 %v6243
      %6601 = vmatprep.subr.mxu0 %v6246
      %6602 = vmatpush1.msra.mxu0 %v6245
      %6603 = vmatprep.subr.mxu0 %v6248
      %6604 = vmatpush1.msra.mxu0 %v6247
      %6605 = vmatprep.subr.mxu0 %v6250
      %6606 = vmatpush1.msra.mxu0 %v6249
      %6607 = vmatprep.subr.mxu0 %v6252
      %6608 = vmatpush1.msra.mxu0 %v6251
      %6609 = vmatprep.subr.mxu0 %v6254
      %6610 = vmatpush1.msra.mxu0 %v6253
      %6611 = vmatprep.subr.mxu0 0.0
      %6612 = vmatpush1.msra.mxu0 0.0
      %6613 = vmatprep.subr.mxu0 0.0
      %6614 = vmatpush1.msra.mxu0 0.0
      %6615 = vmatprep.subr.mxu0 0.0
      %6616 = vmatpush1.msra.mxu0 0.0
      %6617 = vmatprep.subr.mxu0 0.0
      %6618 = vmatpush1.msra.mxu0 0.0
      %6619 = vmatprep.subr.mxu0 0.0
      %6620 = vmatpush1.msra.mxu0 0.0
      %6621 = vmatprep.subr.mxu0 0.0
      %6622 = vmatpush1.msra.mxu0 0.0
      %6623 = vmatprep.subr.mxu0 0.0
      %6624 = vmatpush1.msra.mxu0 0.0
      %6625 = vmatprep.subr.mxu0 0.0
      %6626 = vmatpush1.msra.mxu0 0.0
      %6627 = vmatprep.subr.mxu0 0.0
      %6628 = vmatpush1.msra.mxu0 0.0
      %6629 = vmatprep.subr.mxu0 0.0
      %6630 = vmatpush1.msra.mxu0 0.0
      %6631 = vmatprep.subr.mxu0 0.0
      %6632 = vmatpush1.msra.mxu0 0.0
      %6633 = vmatprep.subr.mxu0 0.0
      %6634 = vmatpush1.msra.mxu0 0.0
      %6635 = vmatprep.subr.mxu0 0.0
      %6636 = vmatpush1.msra.mxu0 0.0
      %6637 = vmatprep.subr.mxu0 0.0
      %6638 = vmatpush1.msra.mxu0 0.0
      %6639 = vmatprep.subr.mxu0 0.0
      %6640 = vmatpush1.msra.mxu0 0.0
      %6641 = vmatprep.subr.mxu0 0.0
      %6642 = vmatpush1.msra.mxu0 0.0
      %6643 = vmatprep.mubr.f32.mxu0 0.0
      %6644 = vmatmul.mubr.f32.gmra.mrb[0].mxu0 %v5965
      %v6645 = vpop.f32.mrb[0].mxu0
      %v6646 = vadd.f32 %v6569, %v6645
      %v6647 = vpop.f32.mrb[0].mxu0
      %v6648 = vadd.f32 %v6571, %v6647
      %6649 = vmatprep.mubr.f32.mxu0 0.0
      %6650 = vmatmul.mubr.f32.gmra.mrb[0].mxu0 %v5966
      %v6651 = vpop.f32.mrb[0].mxu0
      %v6652 = vadd.f32 %v6575, %v6651
      %v6653 = vpop.f32.mrb[0].mxu0
      %v6654 = vadd.f32 %v6577, %v6653
      %6655 = vdwg.mxu0
      %v6656 = vmax.f32 %v6646, 0.0
      %v6657 = vmax.f32 %v6648, 0.0
      %v6658 = vmax.f32 %v6652, 0.0
      %v6659 = vmax.f32 %v6654, 0.0
      %v6661 = vlaneseq
      %v6662 = vshrl.u32 %v6661, 7
      %v6663 = vsub.s32 0, %v6662
      %v6664 = vrot.slane %v6257, %v6663
      %v6665 = vlaneseq
      %v6666 = vshrl.u32 %v6665, 7
      %v6667 = vsub.s32 1, %v6666
      %v6668 = vrot.slane %v6257, %v6667
      %v6671 = vmul.f32 %v6656, %v6664
      %v6672 = vmul.f32 %v6657, %v6668
      %v6673 = vmul.f32 %v6658, %v6664
      %v6674 = vmul.f32 %v6659, %v6668
      %v6676 = vlaneseq
      %v6677 = vshrl.u32 %v6676, 7
      %v6678 = vsub.s32 0, %v6677
      %v6679 = vrot.slane %v6259, %v6678
      %v6680 = vlaneseq
      %v6681 = vshrl.u32 %v6680, 7
      %v6682 = vsub.s32 1, %v6681
      %v6683 = vrot.slane %v6259, %v6682
      %v6686 = vadd.f32 %v6671, %v6679
      %v6687 = vadd.f32 %v6672, %v6683
      %v6688 = vadd.f32 %v6673, %v6679
      %v6689 = vadd.f32 %v6674, %v6683
      %v6690 = vld [vmem:[%s11] sm:$0xff]
      %v6691 = vld [vmem:[%s11 + $0x8] sm:$0xff]
      %v6693 = vsel %vm552, %v6690, 0
      %v6696 = vsel %vm552, %v6691, 0
      %6698 = vmatprep.subr.mxu0 %v6687
      %6699 = vmatpush1.msra.mxu0 %v6686
      %6700 = vmatprep.subr.mxu0 %v6689
      %6701 = vmatpush1.msra.mxu0 %v6688
      %6702 = vmatprep.subr.mxu0 0.0
      %6703 = vmatpush1.msra.mxu0 0.0
      %6704 = vmatprep.subr.mxu0 0.0
      %6705 = vmatpush1.msra.mxu0 0.0
      %6706 = vmatprep.subr.mxu0 0.0
      %6707 = vmatpush1.msra.mxu0 0.0
      %6708 = vmatprep.subr.mxu0 0.0
      %6709 = vmatpush1.msra.mxu0 0.0
      %6710 = vmatprep.subr.mxu0 0.0
      %6711 = vmatpush1.msra.mxu0 0.0
      %6712 = vmatprep.subr.mxu0 0.0
      %6713 = vmatpush1.msra.mxu0 0.0
      %6714 = vmatprep.subr.mxu0 0.0
      %6715 = vmatpush1.msra.mxu0 0.0
      %6716 = vmatprep.subr.mxu0 0.0
      %6717 = vmatpush1.msra.mxu0 0.0
      %6718 = vmatprep.subr.mxu0 0.0
      %6719 = vmatpush1.msra.mxu0 0.0
      %6720 = vmatprep.subr.mxu0 0.0
      %6721 = vmatpush1.msra.mxu0 0.0
      %6722 = vmatprep.subr.mxu0 0.0
      %6723 = vmatpush1.msra.mxu0 0.0
      %6724 = vmatprep.subr.mxu0 0.0
      %6725 = vmatpush1.msra.mxu0 0.0
      %6726 = vmatprep.subr.mxu0 0.0
      %6727 = vmatpush1.msra.mxu0 0.0
      %6728 = vmatprep.subr.mxu0 0.0
      %6729 = vmatpush1.msra.mxu0 0.0
      %6730 = vmatprep.subr.mxu0 0.0
      %6731 = vmatpush1.msra.mxu0 0.0
      %6732 = vmatprep.subr.mxu0 0.0
      %6733 = vmatpush1.msra.mxu0 0.0
      %6734 = vmatprep.subr.mxu0 0.0
      %6735 = vmatpush1.msra.mxu0 0.0
      %6736 = vmatprep.subr.mxu0 0.0
      %6737 = vmatpush1.msra.mxu0 0.0
      %6738 = vmatprep.subr.mxu0 0.0
      %6739 = vmatpush1.msra.mxu0 0.0
      %6740 = vmatprep.subr.mxu0 0.0
      %6741 = vmatpush1.msra.mxu0 0.0
      %6742 = vmatprep.subr.mxu0 0.0
      %6743 = vmatpush1.msra.mxu0 0.0
      %6744 = vmatprep.subr.mxu0 0.0
      %6745 = vmatpush1.msra.mxu0 0.0
      %6746 = vmatprep.subr.mxu0 0.0
      %6747 = vmatpush1.msra.mxu0 0.0
      %6748 = vmatprep.subr.mxu0 0.0
      %6749 = vmatpush1.msra.mxu0 0.0
      %6750 = vmatprep.subr.mxu0 0.0
      %6751 = vmatpush1.msra.mxu0 0.0
      %6752 = vmatprep.subr.mxu0 0.0
      %6753 = vmatpush1.msra.mxu0 0.0
      %6754 = vmatprep.subr.mxu0 0.0
      %6755 = vmatpush1.msra.mxu0 0.0
      %6756 = vmatprep.subr.mxu0 0.0
      %6757 = vmatpush1.msra.mxu0 0.0
      %6758 = vmatprep.subr.mxu0 0.0
      %6759 = vmatpush1.msra.mxu0 0.0
      %6760 = vmatprep.subr.mxu0 0.0
      %6761 = vmatpush1.msra.mxu0 0.0
      %6762 = vmatprep.mubr.f32.mxu0 0.0
      %6763 = vmatmul.mubr.f32.gmra.mrb[0].mxu0 %v6693
      %v6764 = vpop.f32.mrb[0].mxu0
      %v6765 = vadd.f32 0.0, %v6764
      %v6766 = vpop.f32.mrb[0].mxu0
      %v6767 = vadd.f32 0.0, %v6766
      %6768 = vmatprep.mubr.f32.mxu0 0.0
      %6769 = vmatmul.mubr.f32.gmra.mrb[0].mxu0 %v6696
      %v6770 = vpop.f32.mrb[0].mxu0
      %v6771 = vadd.f32 0.0, %v6770
      %v6772 = vpop.f32.mrb[0].mxu0
      %v6773 = vadd.f32 0.0, %v6772
      %6774 = vdwg.mxu0
      %v6777 = vrot.slane %v6765, 4
      %v6778 = vrot.slane %v6767, 4
      %v6781 = vmax.f32 %v6765, %v6777
      %v6782 = vmax.f32 %v6767, %v6778
      %v6785 = vrot.slane %v6771, 4
      %v6786 = vrot.slane %v6773, 4
      %v6789 = vmax.f32 %v6771, %v6785
      %v6790 = vmax.f32 %v6773, %v6786
      %v6791 = vmax.f32 %v6781, %v6789
      %v6792 = vmax.f32 %v6782, %v6790
      %v6793 = vld [vmem:[%s12] sm:$0xff]
      %v6794 = vld [vmem:[%s12 + $0x8] sm:$0xff]
      %v6795 = vld [vmem:[%s12 + $0x10] sm:$0xff]
      %v6796 = vld [vmem:[%s12 + $0x18] sm:$0xff]
      %v6797 = vld [vmem:[%s12 + $0x20] sm:$0xff]
      %v6798 = vld [vmem:[%s12 + $0x28] sm:$0xff]
      %v6799 = vld [vmem:[%s12 + $0x30] sm:$0xff]
      %v6800 = vld [vmem:[%s12 + $0x38] sm:$0xff]
      %v6801 = vld [vmem:[%s12 + $0x40] sm:$0xff]
      %v6802 = vld [vmem:[%s12 + $0x48] sm:$0xff]
      %v6803 = vld [vmem:[%s12 + $0x50] sm:$0xff]
      %v6804 = vld [vmem:[%s12 + $0x58] sm:$0xff]
      %v6805 = vld [vmem:[%s12 + $0x60] sm:$0xff]
      %v6806 = vld [vmem:[%s12 + $0x68] sm:$0xff]
      %v6807 = vld [vmem:[%s12 + $0x70] sm:$0xff]
      %v6808 = vld [vmem:[%s12 + $0x78] sm:$0xff]
      %v6809 = vld [vmem:[%s12 + $0x80] sm:$0xff]
      %v6810 = vld [vmem:[%s12 + $0x88] sm:$0xff]
      %v6811 = vld [vmem:[%s12 + $0x90] sm:$0xff]
      %v6812 = vld [vmem:[%s12 + $0x98] sm:$0xff]
      %v6813 = vld [vmem:[%s12 + $0xa0] sm:$0xff]
      %v6814 = vld [vmem:[%s12 + $0xa8] sm:$0xff]
      %v6815 = vld [vmem:[%s12 + $0xb0] sm:$0xff]
      %v6816 = vld [vmem:[%s12 + $0xb8] sm:$0xff]
      %v6817 = vld [vmem:[%s12 + $0xc0] sm:$0xff]
      %v6818 = vld [vmem:[%s12 + $0xc8] sm:$0xff]
      %v6819 = vld [vmem:[%s12 + $0xd0] sm:$0xff]
      %v6820 = vld [vmem:[%s12 + $0xd8] sm:$0xff]
      %v6821 = vld [vmem:[%s12 + $0xe0] sm:$0xff]
      %v6822 = vld [vmem:[%s12 + $0xe8] sm:$0xff]
      %v6823 = vld [vmem:[%s12 + $0xf0] sm:$0xff]
      %v6824 = vld [vmem:[%s12 + $0xf8] sm:$0xff]
      %v6825 = vld [vmem:[%s13] sm:$0x1]
      %v6827 = vlaneseq
      %v6828 = vshrl.u32 %v6827, 7
      %v6829 = vsub.s32 0, %v6828
      %v6830 = vrot.slane %v6825, %v6829
      %6832 = vmatprep.subr.mxu0 0.0
      %6833 = vmatpush1.msra.mxu0 %v6793
      %6834 = vmatprep.subr.mxu0 0.0
      %6835 = vmatpush1.msra.mxu0 %v6794
      %6836 = vmatprep.subr.mxu0 0.0
      %6837 = vmatpush1.msra.mxu0 %v6795
      %6838 = vmatprep.subr.mxu0 0.0
      %6839 = vmatpush1.msra.mxu0 %v6796
      %6840 = vmatprep.subr.mxu0 0.0
      %6841 = vmatpush1.msra.mxu0 %v6797
      %6842 = vmatprep.subr.mxu0 0.0
      %6843 = vmatpush1.msra.mxu0 %v6798
      %6844 = vmatprep.subr.mxu0 0.0
      %6845 = vmatpush1.msra.mxu0 %v6799
      %6846 = vmatprep.subr.mxu0 0.0
      %6847 = vmatpush1.msra.mxu0 %v6800
      %6848 = vmatprep.subr.mxu0 0.0
      %6849 = vmatpush1.msra.mxu0 %v6801
      %6850 = vmatprep.subr.mxu0 0.0
      %6851 = vmatpush1.msra.mxu0 %v6802
      %6852 = vmatprep.subr.mxu0 0.0
      %6853 = vmatpush1.msra.mxu0 %v6803
      %6854 = vmatprep.subr.mxu0 0.0
      %6855 = vmatpush1.msra.mxu0 %v6804
      %6856 = vmatprep.subr.mxu0 0.0
      %6857 = vmatpush1.msra.mxu0 %v6805
      %6858 = vmatprep.subr.mxu0 0.0
      %6859 = vmatpush1.msra.mxu0 %v6806
      %6860 = vmatprep.subr.mxu0 0.0
      %6861 = vmatpush1.msra.mxu0 %v6807
      %6862 = vmatprep.subr.mxu0 0.0
      %6863 = vmatpush1.msra.mxu0 %v6808
      %6864 = vmatprep.subr.mxu0 0.0
      %6865 = vmatpush1.msra.mxu0 %v6809
      %6866 = vmatprep.subr.mxu0 0.0
      %6867 = vmatpush1.msra.mxu0 %v6810
      %6868 = vmatprep.subr.mxu0 0.0
      %6869 = vmatpush1.msra.mxu0 %v6811
      %6870 = vmatprep.subr.mxu0 0.0
      %6871 = vmatpush1.msra.mxu0 %v6812
      %6872 = vmatprep.subr.mxu0 0.0
      %6873 = vmatpush1.msra.mxu0 %v6813
      %6874 = vmatprep.subr.mxu0 0.0
      %6875 = vmatpush1.msra.mxu0 %v6814
      %6876 = vmatprep.subr.mxu0 0.0
      %6877 = vmatpush1.msra.mxu0 %v6815
      %6878 = vmatprep.subr.mxu0 0.0
      %6879 = vmatpush1.msra.mxu0 %v6816
      %6880 = vmatprep.subr.mxu0 0.0
      %6881 = vmatpush1.msra.mxu0 %v6817
      %6882 = vmatprep.subr.mxu0 0.0
      %6883 = vmatpush1.msra.mxu0 %v6818
      %6884 = vmatprep.subr.mxu0 0.0
      %6885 = vmatpush1.msra.mxu0 %v6819
      %6886 = vmatprep.subr.mxu0 0.0
      %6887 = vmatpush1.msra.mxu0 %v6820
      %6888 = vmatprep.subr.mxu0 0.0
      %6889 = vmatpush1.msra.mxu0 %v6821
      %6890 = vmatprep.subr.mxu0 0.0
      %6891 = vmatpush1.msra.mxu0 %v6822
      %6892 = vmatprep.subr.mxu0 0.0
      %6893 = vmatpush1.msra.mxu0 %v6823
      %6894 = vmatprep.subr.mxu0 0.0
      %6895 = vmatpush1.msra.mxu0 %v6824
      %6896 = vmatprep.mubr.f32.mxu0 %v6792
      %6897 = vmatmul.mubr.f32.gmra.mrb[0].mxu0 %v6791
      %v6898 = vpop.f32.mrb[0].mxu0
      %v6899 = vadd.f32 %v6830, %v6898
      %v6900 = vpop.f32.mrb[0].mxu0
      %6901 = vdwg.mxu0
      %v6902 = vmax.f32 %v6899, 0.0
      %v6904 = vrot.slane %v6902, 1
      %v6906 = vadd.f32 %v6902, %v6904
      %v6907 = vrot.slane %v6902, 2
      %v6909 = vadd.f32 %v6906, %v6907
      %v6910 = vrot.slane %v6902, 3
      %v6912 = vadd.f32 %v6909, %v6910
      %v6913 = vld [vmem:[%s14] sm:$0xff]
      %v6914 = vld [vmem:[%s14 + $0x8] sm:$0xff]
      %v6915 = vld [vmem:[%s14 + $0x10] sm:$0xff]
      %v6916 = vld [vmem:[%s14 + $0x18] sm:$0xff]
      %v6917 = vld [vmem:[%s14 + $0x20] sm:$0xff]
      %v6918 = vld [vmem:[%s14 + $0x28] sm:$0xff]
      %v6919 = vld [vmem:[%s14 + $0x30] sm:$0xff]
      %v6920 = vld [vmem:[%s14 + $0x38] sm:$0xff]
      %v6921 = vld [vmem:[%s14 + $0x40] sm:$0xff]
      %v6922 = vld [vmem:[%s14 + $0x48] sm:$0xff]
      %v6923 = vld [vmem:[%s14 + $0x50] sm:$0xff]
      %v6924 = vld [vmem:[%s14 + $0x58] sm:$0xff]
      %v6925 = vld [vmem:[%s14 + $0x60] sm:$0xff]
      %v6926 = vld [vmem:[%s14 + $0x68] sm:$0xff]
      %v6927 = vld [vmem:[%s14 + $0x70] sm:$0xff]
      %v6928 = vld [vmem:[%s14 + $0x78] sm:$0xff]
      %v6929 = vld [vmem:[%s14 + $0x80] sm:$0xff]
      %v6930 = vld [vmem:[%s14 + $0x88] sm:$0xff]
      %v6931 = vld [vmem:[%s14 + $0x90] sm:$0xff]
      %v6932 = vld [vmem:[%s14 + $0x98] sm:$0xff]
      %v6933 = vld [vmem:[%s14 + $0xa0] sm:$0xff]
      %v6934 = vld [vmem:[%s14 + $0xa8] sm:$0xff]
      %v6935 = vld [vmem:[%s14 + $0xb0] sm:$0xff]
      %v6936 = vld [vmem:[%s14 + $0xb8] sm:$0xff]
      %v6937 = vld [vmem:[%s14 + $0xc0] sm:$0xff]
      %v6938 = vld [vmem:[%s14 + $0xc8] sm:$0xff]
      %v6939 = vld [vmem:[%s14 + $0xd0] sm:$0xff]
      %v6940 = vld [vmem:[%s14 + $0xd8] sm:$0xff]
      %v6941 = vld [vmem:[%s14 + $0xe0] sm:$0xff]
      %v6942 = vld [vmem:[%s14 + $0xe8] sm:$0xff]
      %v6943 = vld [vmem:[%s14 + $0xf0] sm:$0xff]
      %v6944 = vld [vmem:[%s14 + $0xf8] sm:$0xff]
      %v6945 = vld [vmem:[%s15] sm:$0x3]
      %v6947 = vlaneseq
      %v6948 = vshrl.u32 %v6947, 7
      %v6949 = vsub.s32 0, %v6948
      %v6950 = vrot.slane %v6945, %v6949
      %v6951 = vlaneseq
      %v6952 = vshrl.u32 %v6951, 7
      %v6953 = vsub.s32 1, %v6952
      %v6954 = vrot.slane %v6945, %v6953
      %6957 = vmatprep.subr.mxu0 %v6914
      %6958 = vmatpush1.msra.mxu0 %v6913
      %6959 = vmatprep.subr.mxu0 %v6916
      %6960 = vmatpush1.msra.mxu0 %v6915
      %6961 = vmatprep.subr.mxu0 %v6918
      %6962 = vmatpush1.msra.mxu0 %v6917
      %6963 = vmatprep.subr.mxu0 %v6920
      %6964 = vmatpush1.msra.mxu0 %v6919
      %6965 = vmatprep.subr.mxu0 %v6922
      %6966 = vmatpush1.msra.mxu0 %v6921
      %6967 = vmatprep.subr.mxu0 %v6924
      %6968 = vmatpush1.msra.mxu0 %v6923
      %6969 = vmatprep.subr.mxu0 %v6926
      %6970 = vmatpush1.msra.mxu0 %v6925
      %6971 = vmatprep.subr.mxu0 %v6928
      %6972 = vmatpush1.msra.mxu0 %v6927
      %6973 = vmatprep.subr.mxu0 %v6930
      %6974 = vmatpush1.msra.mxu0 %v6929
      %6975 = vmatprep.subr.mxu0 %v6932
      %6976 = vmatpush1.msra.mxu0 %v6931
      %6977 = vmatprep.subr.mxu0 %v6934
      %6978 = vmatpush1.msra.mxu0 %v6933
      %6979 = vmatprep.subr.mxu0 %v6936
      %6980 = vmatpush1.msra.mxu0 %v6935
      %6981 = vmatprep.subr.mxu0 %v6938
      %6982 = vmatpush1.msra.mxu0 %v6937
      %6983 = vmatprep.subr.mxu0 %v6940
      %6984 = vmatpush1.msra.mxu0 %v6939
      %6985 = vmatprep.subr.mxu0 %v6942
      %6986 = vmatpush1.msra.mxu0 %v6941
      %6987 = vmatprep.subr.mxu0 %v6944
      %6988 = vmatpush1.msra.mxu0 %v6943
      %6989 = vmatprep.subr.mxu0 0.0
      %6990 = vmatpush1.msra.mxu0 0.0
      %6991 = vmatprep.subr.mxu0 0.0
      %6992 = vmatpush1.msra.mxu0 0.0
      %6993 = vmatprep.subr.mxu0 0.0
      %6994 = vmatpush1.msra.mxu0 0.0
      %6995 = vmatprep.subr.mxu0 0.0
      %6996 = vmatpush1.msra.mxu0 0.0
      %6997 = vmatprep.subr.mxu0 0.0
      %6998 = vmatpush1.msra.mxu0 0.0
      %6999 = vmatprep.subr.mxu0 0.0
      %7000 = vmatpush1.msra.mxu0 0.0
      %7001 = vmatprep.subr.mxu0 0.0
      %7002 = vmatpush1.msra.mxu0 0.0
      %7003 = vmatprep.subr.mxu0 0.0
      %7004 = vmatpush1.msra.mxu0 0.0
      %7005 = vmatprep.subr.mxu0 0.0
      %7006 = vmatpush1.msra.mxu0 0.0
      %7007 = vmatprep.subr.mxu0 0.0
      %7008 = vmatpush1.msra.mxu0 0.0
      %7009 = vmatprep.subr.mxu0 0.0
      %7010 = vmatpush1.msra.mxu0 0.0
      %7011 = vmatprep.subr.mxu0 0.0
      %7012 = vmatpush1.msra.mxu0 0.0
      %7013 = vmatprep.subr.mxu0 0.0
      %7014 = vmatpush1.msra.mxu0 0.0
      %7015 = vmatprep.subr.mxu0 0.0
      %7016 = vmatpush1.msra.mxu0 0.0
      %7017 = vmatprep.subr.mxu0 0.0
      %7018 = vmatpush1.msra.mxu0 0.0
      %7019 = vmatprep.subr.mxu0 0.0
      %7020 = vmatpush1.msra.mxu0 0.0
      %7021 = vmatprep.mubr.f32.mxu0 0.0
      %7022 = vmatmul.mubr.f32.gmra.mrb[0].mxu0 %v6912
      %v7023 = vpop.f32.mrb[0].mxu0
      %v7024 = vadd.f32 %v6950, %v7023
      %v7025 = vpop.f32.mrb[0].mxu0
      %v7026 = vadd.f32 %v6954, %v7025
      %7027 = vdwg.mxu0
      %v7030 = vcombine.low %v7024, %v7026
      %v7032 = vunpack.c.l.s4 1966171168
      %v7033 = vunpack.c.0.s8 %v7032
      %v7034 = vlaneseq
      %v7035 = vshrl.u32 %v7034, 7
      %v7036 = vsub.s32 %v7033, %v7035
      %v7037 = vrot.slane %v7030, %v7036
      %v7039 = vunpack.c.l.s4 1966171168
      %v7040 = vunpack.c.0.s8 %v7039
      %v7041 = vlaneseq
      %v7042 = vshrl.u32 %v7041, 7
      %v7043 = vsub.s32 %v7040, %v7042
      %v7044 = vrot.slane %v7037, %v7043
      %v7046 = vlaneseq
      %vm7047 = vcmp.ge.s32.totalorder %v7046, 0
      %vm7048 = vcmp.lt.s32.totalorder %v7046, 160
      %vm7049 = vmand %vm7047, %vm7048
      %7050 = vst.msk [vmem:[%s519] sm:$0x3] %vm7049, %v7044
      %p7051 = scmp.lt.s32.totalorder %s27, 1
      %s7052 = scalar_select %p7051, %s27, 1
      %s7053 = smul.addr %s7052, 2
      %s7054 = scalar_lea.vmem %s16, %s7053
      // Predicated region
      $region85: #{forward.1} parent=83 // pred_check
        %p7055 = pneg %p386
      $region86: #{forward.1} parent=83 // pred_check_branch
        %7057 = sbr.rel (%p7055) target = $region88
      $region87: #{forward.1} parent=83 // pred_region
        _
      $region88: #{forward.1} parent=83 // pred_fallthru
        _
    $region84: #{forward.1} parent=5 // pred_fallthru
      _
    %p7058 = scmp.le.s32.totalorder 2, %s22
    // Predicated region
    $region89: #{forward.1} parent=5 // pred_check
      %p7059 = pneg %p7058
    $region90: #{forward.1} parent=5 // pred_check_branch
      %7061 = sbr.rel (%p7059) target = $region92
    $region91: #{forward.1} parent=5 // pred_region
      %s7062 = ssub.s32 %s22, 2
      // Predicated region
      $region93: #{forward.1} parent=91 // pred_check
        %p7063 = pneg %p392
      $region94: #{forward.1} parent=91 // pred_check_branch
        %7065 = sbr.rel (%p7063) target = $region96
      $region95: #{forward.1} parent=91 // pred_region
        %p7066 = scmp.lt.s32.totalorder %s28, 1
        %s7067 = scalar_select %p7066, %s28, 1
        %s7068 = smul.addr %s7067, 2
        %s7069 = scalar_lea.vmem %s16, %s7068
      $region96: #{forward.1} parent=91 // pred_fallthru
        _
    $region92: #{forward.1} parent=5 // pred_fallthru
      _
  $region6: #{forward.1} parent=0 // loop_footer
    %s26 = sadd.s32 1, %s22
  $region7: #{forward.1} parent=0 // loop_footer_branch
    %21 = sbr.rel target = $region3
  $region8: #{forward.1} parent=0 // loop_exit
    _

</llo_original>
